<compile_context>
chip_gen: v6e
topology: v6e:2x2x1
jax: 0.10.0
libtpu: 0.0.40
codegen_flags: <defaults>
</compile_context>

<pallas_src>
import jax
import jax.numpy as jnp
from jax import lax
from jax.experimental import pallas as pl
from jax.experimental.pallas import tpu as pltpu


_EPS = 1e-5          # BatchNorm3d default eps
_NEG_SLOPE = 0.01    # nn.LeakyReLU() default negative_slope


# ----------------------------------------------------------------------------
# Pallas kernel: fused GEMM + bias + LeakyReLU + BatchNorm, (C_out, M) layout
# Grid = (C_out blocks ["parallel"], M blocks ["arbitrary"]).
# ----------------------------------------------------------------------------
def _make_down_kernel(n_m, tm, M):
    inv_M = 1.0 / float(M)

    def kernel(p_ref, w_ref, b_ref, g_ref, bt_ref, o_ref, y_ref, s_ref, q_ref):
        # p: (K, tm) bf16 patch block, w: (tc, K) bf16, b/g/bt: (tc, 1) f32.
        # o: (tc, M) resident across the M axis; y_ref: (tc, M) f32 staging,
        # s_ref/q_ref: (tc, 1) f32 running sum / sum of squares.
        m = pl.program_id(1)

        @pl.when(m == 0)
        def _init():
            s_ref[...] = jnp.zeros_like(s_ref)
            q_ref[...] = jnp.zeros_like(q_ref)

        # MXU GEMM (bf16 operands, f32 accumulate) + bias + LeakyReLU.
        y = jnp.dot(w_ref[...], p_ref[...], preferred_element_type=jnp.float32)
        y = y + b_ref[...]
        y = jnp.where(y > 0, y, _NEG_SLOPE * y)

        # One-pass BN statistics (lane reductions -> XLU slot).
        s_ref[...] += jnp.sum(y, axis=1, keepdims=True)
        q_ref[...] += jnp.sum(y * y, axis=1, keepdims=True)

        # Stage pre-BN activations in f32 scratch (lane-aligned dynamic slice).
        off = pl.multiple_of(m * tm, tm)
        y_ref[:, pl.ds(off, tm)] = y

        @pl.when(m == n_m - 1)
        def _finalize():
            mean = s_ref[...] * inv_M
            var = jnp.maximum(q_ref[...] * inv_M - mean * mean, 0.0)
            scale = g_ref[...] * lax.rsqrt(var + _EPS)        # EUP rsqrt
            shift = bt_ref[...] - mean * scale
            # Chunked normalize + lane-dense store: live data is one (tc, tm) tile.
            for j in range(n_m):
                sl = pl.ds(j * tm, tm)
                o_ref[:, sl] = (y_ref[:, sl] * scale + shift).astype(o_ref.dtype)

    return kernel


def _choose_tm(M):
    # Biggest M tile (<= 2048) that divides M and still gives >= 2 pipeline
    # stages; fall back to the full extent for tiny layers.
    for tm in (2048, 1024, 512, 256, 128):
        if M % tm == 0 and M // tm >= 2:
            return tm
    return M


def _fused_down_block(patches, w_mat, bias, gamma, beta, out_dtype):
    """One Conv3d(k=4,s=2,p=1) + LeakyReLU + BatchNorm3d block as one Pallas call."""
    K, M = patches.shape
    C = w_mat.shape[0]
    tm = _choose_tm(M)
    n_m = M // tm
    # Split C_out only when it is a clean multiple of 16 (bf16 sublane tile),
    # otherwise keep the full channel extent in one block.
    tc = 16 if (C > 16 and C % 16 == 0) else C
    n_c = C // tc

    kernel = _make_down_kernel(n_m, tm, M)

    b2 = bias.reshape(C, 1).astype(jnp.float32)
    g2 = gamma.reshape(C, 1).astype(jnp.float32)
    bt2 = beta.reshape(C, 1).astype(jnp.float32)

    return pl.pallas_call(
        kernel,
        out_shape=jax.ShapeDtypeStruct((C, M), out_dtype),
        grid=(n_c, n_m),
        in_specs=[
            pl.BlockSpec((K, tm), lambda c, m: (0, m)),   # patches: pipelined over M
            pl.BlockSpec((tc, K), lambda c, m: (c, 0)),   # weights: per C block
            pl.BlockSpec((tc, 1), lambda c, m: (c, 0)),   # bias
            pl.BlockSpec((tc, 1), lambda c, m: (c, 0)),   # gamma
            pl.BlockSpec((tc, 1), lambda c, m: (c, 0)),   # beta
        ],
        out_specs=pl.BlockSpec((tc, M), lambda c, m: (c, 0)),
        scratch_shapes=[
            pltpu.VMEM((tc, M), jnp.float32),   # staged pre-BN activations
            pltpu.VMEM((tc, 1), jnp.float32),   # per-channel sum
            pltpu.VMEM((tc, 1), jnp.float32),   # per-channel sum of squares
        ],
        compiler_params=pltpu.CompilerParams(
            dimension_semantics=("parallel", "arbitrary"),
            vmem_limit_bytes=32 * 1024 * 1024,   # fits v7x's 64 MiB VMEM/TC
        ),
    )(patches, w_mat, b2, g2, bt2)


# ----------------------------------------------------------------------------
# im2col glue (plain JAX) — emits the (K, M) layout the kernel wants directly,
# casting to bf16 BEFORE padding/stacking so the intermediate is half size.
# ----------------------------------------------------------------------------
def _im2col_kM(x_cf, ksize, stride, padding, dtype):
    """x_cf: (C, N, D, H, W) -> patches (C*k^3, N*Do*Ho*Wo) in `dtype`.

    K is ordered (c, kd, kh, kw) channel-major, matching PyTorch
    weight.reshape(Cout, -1); M is ordered (n, do, ho, wo).
    """
    C, N, D, H, W = x_cf.shape
    x_cf = x_cf.astype(dtype)
    p = padding
    xp = jnp.pad(x_cf, ((0, 0), (0, 0), (p, p), (p, p), (p, p)))
    Dp, Hp, Wp = D + 2 * p, H + 2 * p, W + 2 * p
    Do = (Dp - ksize) // stride + 1
    Ho = (Hp - ksize) // stride + 1
    Wo = (Wp - ksize) // stride + 1

    cols = []
    for kd in range(ksize):
        for kh in range(ksize):
            for kw in range(ksize):
                cols.append(
                    xp[:, :,
                       kd: kd + (Do - 1) * stride + 1: stride,
                       kh: kh + (Ho - 1) * stride + 1: stride,
                       kw: kw + (Wo - 1) * stride + 1: stride])
    # (C, k^3, N, Do, Ho, Wo) -> (K, M): one slice+stack fusion, no transpose.
    col = jnp.stack(cols, axis=1)
    patches = col.reshape(C * ksize ** 3, N * Do * Ho * Wo)
    return patches, (N, Do, Ho, Wo)


# ----------------------------------------------------------------------------
# SimpleEncoder3D parameters / forward
# ----------------------------------------------------------------------------
def init_params(key, in_channel, pred_dim, chans):
    down_in = [in_channel, chans, 2 * chans]
    down_out = [chans, 2 * chans, 4 * chans]
    params = {"down": [], "final": None}
    for ci, co in zip(down_in, down_out):
        key, kw, kb = jax.random.split(key, 3)
        params["down"].append(
            dict(
                weight=0.05 * jax.random.normal(kw, (co, ci, 4, 4, 4), jnp.float32),
                bias=0.05 * jax.random.normal(kb, (co,), jnp.float32),
                gamma=jnp.ones((co,), jnp.float32),   # BatchNorm3d default init
                beta=jnp.zeros((co,), jnp.float32),
            )
        )
    key, kw, kb = jax.random.split(key, 3)
    params["final"] = dict(
        weight=0.05 * jax.random.normal(kw, (pred_dim, 4 * chans, 4, 4, 4), jnp.float32),
        bias=0.05 * jax.random.normal(kb, (pred_dim,), jnp.float32),
    )
    return params


@jax.jit
def simple_encoder3d_forward(x, params):
    # x: (N, C, D, H, W) float32 (PyTorch NCDHW).
    # Internal layout: (C, N, D, H, W) — NCDHW only at the module boundary.
    feat = jnp.transpose(x, (1, 0, 2, 3, 4))

    # Three down blocks: Conv3d(k=4, s=2, p=1) + LeakyReLU(0.01) + BatchNorm3d.
    n_down = len(params["down"])
    for i, layer in enumerate(params["down"]):
        w, b = layer["weight"], layer["bias"]
        g, bt = layer["gamma"], layer["beta"]
        co = w.shape[0]
        patches, (N, Do, Ho, Wo) = _im2col_kM(feat, 4, 2, 1, jnp.bfloat16)
        w_mat = w.reshape(co, -1).astype(jnp.bfloat16)               # (Cout, K) bf16
        # bf16 output for blocks feeding another down block, f32 for the last.
        out_dtype = jnp.bfloat16 if (i + 1) < n_down else jnp.float32
        out = _fused_down_block(patches, w_mat, b, g, bt, out_dtype)  # (Cout, M)
        feat = out.reshape(co, N, Do, Ho, Wo)                         # next layer's layout

    # Final feature: Conv3d(k=4, s=1, p=0), no activation, no BN.
    wf, bf = params["final"]["weight"], params["final"]["bias"]
    cf = wf.shape[0]
    Cf, Nn, Dd, Hh, Ww = feat.shape
    if (Dd, Hh, Ww) == (4, 4, 4):
        # k=4 with p=0 exactly covers the spatial extent -> direct contraction.
        out = jnp.einsum("pcdhw,cndhw->pn", wf, feat.astype(jnp.float32),
                         preferred_element_type=jnp.float32) + bf[:, None]
        out = out.reshape(cf, Nn, 1, 1, 1)
    else:
        pf, (Nn, Do, Ho, Wo) = _im2col_kM(feat, 4, 1, 0, jnp.float32)
        out = jnp.dot(wf.reshape(cf, -1), pf,
                      preferred_element_type=jnp.float32) + bf[:, None]
        out = out.reshape(cf, Nn, Do, Ho, Wo)
    return out.transpose(1, 0, 2, 3, 4)   # back to NCDHW


if __name__ == "__main__":
    # in_channel=4, pred_dim=8, chans=8 (down dims [8, 16, 32]),
    # input spatial 32 -> 16 -> 8 -> 4 -> final conv (k=4, p=0) -> 1
    in_channel, pred_dim, chans = 4, 8, 8
    N, S = 2, 32

    key = jax.random.PRNGKey(0)
    key, kx = jax.random.split(key)
    x = jax.random.normal(kx, (N, in_channel, S, S, S), jnp.float32)

    params = init_params(key, in_channel, pred_dim, chans)

    out = jax.block_until_ready(simple_encoder3d_forward(x, params))

    assert out.shape == (N, pred_dim, 1, 1, 1), out.shape
    assert bool(jnp.all(jnp.isfinite(out)))
    print("KERNEL_OK")
</pallas_src>

<mosaic_0001>
module attributes {stable_mosaic.version = 11 : i64} {
  func.func @kernel(%arg0: i32, %arg1: i32, %arg2: memref<256x2048xbf16, #tpu.memory_space<vmem>>, %arg3: memref<8x256xbf16, #tpu.memory_space<vmem>>, %arg4: memref<8x1xf32, #tpu.memory_space<vmem>>, %arg5: memref<8x1xf32, #tpu.memory_space<vmem>>, %arg6: memref<8x1xf32, #tpu.memory_space<vmem>>, %arg7: memref<8x8192xbf16, #tpu.memory_space<vmem>>, %arg8: memref<8x8192xf32, #tpu.memory_space<vmem>>, %arg9: memref<8x1xf32, #tpu.memory_space<vmem>>, %arg10: memref<8x1xf32, #tpu.memory_space<vmem>>) attributes {dimension_semantics = [#tpu.dimension_semantics<parallel>, #tpu.dimension_semantics<arbitrary>], iteration_bounds = array<i64: 1, 4>, scalar_prefetch = 0 : i64, scratch_operands = 3 : i64, tpu.core_type = #tpu.core_type<tc>, window_params = [{transform_indices = @transform_0, window_bounds = array<i64: 256, 2048>}, {transform_indices = @transform_1, window_bounds = array<i64: 8, 256>}, {transform_indices = @transform_2, window_bounds = array<i64: 8, 1>}, {transform_indices = @transform_3, window_bounds = array<i64: 8, 1>}, {transform_indices = @transform_4, window_bounds = array<i64: 8, 1>}, {transform_indices = @transform_5, window_bounds = array<i64: 8, 8192>}]} {
    %c0_i32 = arith.constant 0 : i32
    %0 = arith.cmpi eq, %arg1, %c0_i32 : i32
    %1 = arith.extui %0 : i1 to i32
    %c0_i32_0 = arith.constant 0 : i32
    %2 = arith.cmpi ne, %1, %c0_i32_0 : i32
    scf.if %2 {
      %cst_20 = arith.constant 0.000000e+00 : f32
      %32 = vector.broadcast %cst_20 : f32 to vector<8x1xf32>
      %c0_21 = arith.constant 0 : index
      %c0_22 = arith.constant 0 : index
      %33 = vector.load %arg9[%c0_21, %c0_22] : memref<8x1xf32, #tpu.memory_space<vmem>>, vector<8x1xf32>
      tpu.vector_store %arg9[%c0_21, %c0_22], %32 {strides = array<i32>} : memref<8x1xf32, #tpu.memory_space<vmem>>, vector<8x1xf32>,
      %cst_23 = arith.constant 0.000000e+00 : f32
      %34 = vector.broadcast %cst_23 : f32 to vector<8x1xf32>
      %c0_24 = arith.constant 0 : index
      %c0_25 = arith.constant 0 : index
      %35 = vector.load %arg10[%c0_24, %c0_25] : memref<8x1xf32, #tpu.memory_space<vmem>>, vector<8x1xf32>
      tpu.vector_store %arg10[%c0_24, %c0_25], %34 {strides = array<i32>} : memref<8x1xf32, #tpu.memory_space<vmem>>, vector<8x1xf32>,
    } else {
    }
    %c0 = arith.constant 0 : index
    %c0_1 = arith.constant 0 : index
    %3 = vector.load %arg3[%c0, %c0_1] : memref<8x256xbf16, #tpu.memory_space<vmem>>, vector<8x256xbf16>
    %c0_2 = arith.constant 0 : index
    %c0_3 = arith.constant 0 : index
    %4 = vector.load %arg2[%c0_2, %c0_3] : memref<256x2048xbf16, #tpu.memory_space<vmem>>, vector<256x2048xbf16>
    %cst = arith.constant dense<0.000000e+00> : vector<8x2048xf32>
    %5 = tpu.matmul %3, %4, %cst {dimension_numbers = #tpu.dot_dimension_numbers<[1], [0], [0], [1], [0, 0, 1, 1], [], []>} : vector<8x256xbf16>, vector<256x2048xbf16>, vector<8x2048xf32> -> vector<8x2048xf32>
    %c0_4 = arith.constant 0 : index
    %c0_5 = arith.constant 0 : index
    %6 = vector.load %arg4[%c0_4, %c0_5] : memref<8x1xf32, #tpu.memory_space<vmem>>, vector<8x1xf32>
    %7 = vector.broadcast %6 : vector<8x1xf32> to vector<8x2048xf32>
    %8 = arith.addf %5, %7 : vector<8x2048xf32>
    %cst_6 = arith.constant 0.000000e+00 : f32
    %9 = vector.broadcast %cst_6 : f32 to vector<8x2048xf32>
    %10 = arith.cmpf ogt, %8, %9 : vector<8x2048xf32>
    %cst_7 = arith.constant 0.00999999977 : f32
    %11 = vector.broadcast %cst_7 : f32 to vector<8x2048xf32>
    %12 = arith.mulf %11, %8 : vector<8x2048xf32>
    %13 = arith.select %10, %8, %12 : vector<8x2048xi1>, vector<8x2048xf32>
    %c0_8 = arith.constant 0 : index
    %c0_9 = arith.constant 0 : index
    %14 = vector.load %arg9[%c0_8, %c0_9] : memref<8x1xf32, #tpu.memory_space<vmem>>, vector<8x1xf32>
    %cst_10 = arith.constant dense<0.000000e+00> : vector<8xf32>
    %15 = vector.multi_reduction <add>, %13, %cst_10 [1] : vector<8x2048xf32> to vector<8xf32>
    %16 = vector.shape_cast %15 : vector<8xf32> to vector<8x1xf32>
    %17 = arith.addf %14, %16 : vector<8x1xf32>
    %c0_11 = arith.constant 0 : index
    %c0_12 = arith.constant 0 : index
    %18 = vector.load %arg9[%c0_11, %c0_12] : memref<8x1xf32, #tpu.memory_space<vmem>>, vector<8x1xf32>
    tpu.vector_store %arg9[%c0_11, %c0_12], %17 {strides = array<i32>} : memref<8x1xf32, #tpu.memory_space<vmem>>, vector<8x1xf32>,
    %c0_13 = arith.constant 0 : index
    %c0_14 = arith.constant 0 : index
    %19 = vector.load %arg10[%c0_13, %c0_14] : memref<8x1xf32, #tpu.memory_space<vmem>>, vector<8x1xf32>
    %20 = arith.mulf %13, %13 : vector<8x2048xf32>
    %cst_15 = arith.constant dense<0.000000e+00> : vector<8xf32>
    %21 = vector.multi_reduction <add>, %20, %cst_15 [1] : vector<8x2048xf32> to vector<8xf32>
    %22 = vector.shape_cast %21 : vector<8xf32> to vector<8x1xf32>
    %23 = arith.addf %19, %22 : vector<8x1xf32>
    %c0_16 = arith.constant 0 : index
    %c0_17 = arith.constant 0 : index
    %24 = vector.load %arg10[%c0_16, %c0_17] : memref<8x1xf32, #tpu.memory_space<vmem>>, vector<8x1xf32>
    tpu.vector_store %arg10[%c0_16, %c0_17], %23 {strides = array<i32>} : memref<8x1xf32, #tpu.memory_space<vmem>>, vector<8x1xf32>,
    %c2048_i32 = arith.constant 2048 : i32
    %25 = arith.muli %arg1, %c2048_i32 : i32
    %26 = tpu.assume_multiple %25, 2048 : i32
    %c0_18 = arith.constant 0 : index
    %27 = arith.index_cast %26 : i32 to index
    %28 = vector.load %arg8[%c0_18, %27] : memref<8x8192xf32, #tpu.memory_space<vmem>>, vector<8x2048xf32>
    tpu.vector_store %arg8[%c0_18, %27], %13 {strides = array<i32>} : memref<8x8192xf32, #tpu.memory_space<vmem>>, vector<8x2048xf32>,
    %c3_i32 = arith.constant 3 : i32
    %29 = arith.cmpi eq, %arg1, %c3_i32 : i32
    %30 = arith.extui %29 : i1 to i32
    %c0_i32_19 = arith.constant 0 : i32
    %31 = arith.cmpi ne, %30, %c0_i32_19 : i32
    scf.if %31 {
      %c0_20 = arith.constant 0 : index
      %c0_21 = arith.constant 0 : index
      %32 = vector.load %arg9[%c0_20, %c0_21] : memref<8x1xf32, #tpu.memory_space<vmem>>, vector<8x1xf32>
      %cst_22 = arith.constant 1.22070313E-4 : f32
      %33 = vector.broadcast %cst_22 : f32 to vector<8x1xf32>
      %34 = arith.mulf %32, %33 : vector<8x1xf32>
      %c0_23 = arith.constant 0 : index
      %c0_24 = arith.constant 0 : index
      %35 = vector.load %arg10[%c0_23, %c0_24] : memref<8x1xf32, #tpu.memory_space<vmem>>, vector<8x1xf32>
      %cst_25 = arith.constant 1.22070313E-4 : f32
      %36 = vector.broadcast %cst_25 : f32 to vector<8x1xf32>
      %37 = arith.mulf %35, %36 : vector<8x1xf32>
      %38 = arith.mulf %34, %34 : vector<8x1xf32>
      %39 = arith.subf %37, %38 : vector<8x1xf32>
      %cst_26 = arith.constant 0.000000e+00 : f32
      %40 = vector.broadcast %cst_26 : f32 to vector<8x1xf32>
      %41 = arith.maximumf %39, %40 : vector<8x1xf32>
      %c0_27 = arith.constant 0 : index
      %c0_28 = arith.constant 0 : index
      %42 = vector.load %arg5[%c0_27, %c0_28] : memref<8x1xf32, #tpu.memory_space<vmem>>, vector<8x1xf32>
      %cst_29 = arith.constant 9.99999974E-6 : f32
      %43 = vector.broadcast %cst_29 : f32 to vector<8x1xf32>
      %44 = arith.addf %41, %43 : vector<8x1xf32>
      %45 = math.rsqrt %44 : vector<8x1xf32>
      %46 = arith.mulf %42, %45 : vector<8x1xf32>
      %c0_30 = arith.constant 0 : index
      %c0_31 = arith.constant 0 : index
      %47 = vector.load %arg6[%c0_30, %c0_31] : memref<8x1xf32, #tpu.memory_space<vmem>>, vector<8x1xf32>
      %48 = arith.mulf %34, %46 : vector<8x1xf32>
      %49 = arith.subf %47, %48 : vector<8x1xf32>
      %c0_32 = arith.constant 0 : index
      %c0_33 = arith.constant 0 : index
      %50 = vector.load %arg8[%c0_32, %c0_33] : memref<8x8192xf32, #tpu.memory_space<vmem>>, vector<8x2048xf32>
      %51 = vector.broadcast %46 : vector<8x1xf32> to vector<8x2048xf32>
      %52 = arith.mulf %50, %51 : vector<8x2048xf32>
      %53 = vector.broadcast %49 : vector<8x1xf32> to vector<8x2048xf32>
      %54 = arith.addf %52, %53 : vector<8x2048xf32>
      %55 = arith.truncf %54 : vector<8x2048xf32> to vector<8x2048xbf16>
      %c0_34 = arith.constant 0 : index
      %c0_35 = arith.constant 0 : index
      %56 = vector.load %arg7[%c0_34, %c0_35] : memref<8x8192xbf16, #tpu.memory_space<vmem>>, vector<8x2048xbf16>
      tpu.vector_store %arg7[%c0_34, %c0_35], %55 {strides = array<i32>} : memref<8x8192xbf16, #tpu.memory_space<vmem>>, vector<8x2048xbf16>,
      %c0_36 = arith.constant 0 : index
      %c2048 = arith.constant 2048 : index
      %57 = vector.load %arg8[%c0_36, %c2048] : memref<8x8192xf32, #tpu.memory_space<vmem>>, vector<8x2048xf32>
      %58 = vector.broadcast %46 : vector<8x1xf32> to vector<8x2048xf32>
      %59 = arith.mulf %57, %58 : vector<8x2048xf32>
      %60 = vector.broadcast %49 : vector<8x1xf32> to vector<8x2048xf32>
      %61 = arith.addf %59, %60 : vector<8x2048xf32>
      %62 = arith.truncf %61 : vector<8x2048xf32> to vector<8x2048xbf16>
      %c0_37 = arith.constant 0 : index
      %c2048_38 = arith.constant 2048 : index
      %63 = vector.load %arg7[%c0_37, %c2048_38] : memref<8x8192xbf16, #tpu.memory_space<vmem>>, vector<8x2048xbf16>
      tpu.vector_store %arg7[%c0_37, %c2048_38], %62 {strides = array<i32>} : memref<8x8192xbf16, #tpu.memory_space<vmem>>, vector<8x2048xbf16>,
      %c0_39 = arith.constant 0 : index
      %c4096 = arith.constant 4096 : index
      %64 = vector.load %arg8[%c0_39, %c4096] : memref<8x8192xf32, #tpu.memory_space<vmem>>, vector<8x2048xf32>
      %65 = vector.broadcast %46 : vector<8x1xf32> to vector<8x2048xf32>
      %66 = arith.mulf %64, %65 : vector<8x2048xf32>
      %67 = vector.broadcast %49 : vector<8x1xf32> to vector<8x2048xf32>
      %68 = arith.addf %66, %67 : vector<8x2048xf32>
      %69 = arith.truncf %68 : vector<8x2048xf32> to vector<8x2048xbf16>
      %c0_40 = arith.constant 0 : index
      %c4096_41 = arith.constant 4096 : index
      %70 = vector.load %arg7[%c0_40, %c4096_41] : memref<8x8192xbf16, #tpu.memory_space<vmem>>, vector<8x2048xbf16>
      tpu.vector_store %arg7[%c0_40, %c4096_41], %69 {strides = array<i32>} : memref<8x8192xbf16, #tpu.memory_space<vmem>>, vector<8x2048xbf16>,
      %c0_42 = arith.constant 0 : index
      %c6144 = arith.constant 6144 : index
      %71 = vector.load %arg8[%c0_42, %c6144] : memref<8x8192xf32, #tpu.memory_space<vmem>>, vector<8x2048xf32>
      %72 = vector.broadcast %46 : vector<8x1xf32> to vector<8x2048xf32>
      %73 = arith.mulf %71, %72 : vector<8x2048xf32>
      %74 = vector.broadcast %49 : vector<8x1xf32> to vector<8x2048xf32>
      %75 = arith.addf %73, %74 : vector<8x2048xf32>
      %76 = arith.truncf %75 : vector<8x2048xf32> to vector<8x2048xbf16>
      %c0_43 = arith.constant 0 : index
      %c6144_44 = arith.constant 6144 : index
      %77 = vector.load %arg7[%c0_43, %c6144_44] : memref<8x8192xbf16, #tpu.memory_space<vmem>>, vector<8x2048xbf16>
      tpu.vector_store %arg7[%c0_43, %c6144_44], %76 {strides = array<i32>} : memref<8x8192xbf16, #tpu.memory_space<vmem>>, vector<8x2048xbf16>,
    } else {
    }
    return
  }
  func.func @transform_0(%arg0: i32, %arg1: i32) -> (i32, i32) {
    %c0_i32 = arith.constant 0 : i32
    %c0_i32_0 = arith.constant 0 : i32
    return %c0_i32, %arg1 : i32, i32
  }
  func.func @transform_1(%arg0: i32, %arg1: i32) -> (i32, i32) {
    %c0_i32 = arith.constant 0 : i32
    %c0_i32_0 = arith.constant 0 : i32
    return %arg0, %c0_i32 : i32, i32
  }
  func.func @transform_2(%arg0: i32, %arg1: i32) -> (i32, i32) {
    %c0_i32 = arith.constant 0 : i32
    %c0_i32_0 = arith.constant 0 : i32
    return %arg0, %c0_i32 : i32, i32
  }
  func.func @transform_3(%arg0: i32, %arg1: i32) -> (i32, i32) {
    %c0_i32 = arith.constant 0 : i32
    %c0_i32_0 = arith.constant 0 : i32
    return %arg0, %c0_i32 : i32, i32
  }
  func.func @transform_4(%arg0: i32, %arg1: i32) -> (i32, i32) {
    %c0_i32 = arith.constant 0 : i32
    %c0_i32_0 = arith.constant 0 : i32
    return %arg0, %c0_i32 : i32, i32
  }
  func.func @transform_5(%arg0: i32, %arg1: i32) -> (i32, i32) {
    %c0_i32 = arith.constant 0 : i32
    %c0_i32_0 = arith.constant 0 : i32
    return %arg0, %c0_i32 : i32, i32
  }
}

module attributes {stable_mosaic.version = 11 : i64} {
  func.func @kernel(%arg0: i32, %arg1: i32, %arg2: memref<512x512xbf16, #tpu.memory_space<vmem>>, %arg3: memref<16x512xbf16, #tpu.memory_space<vmem>>, %arg4: memref<16x1xf32, #tpu.memory_space<vmem>>, %arg5: memref<16x1xf32, #tpu.memory_space<vmem>>, %arg6: memref<16x1xf32, #tpu.memory_space<vmem>>, %arg7: memref<16x1024xbf16, #tpu.memory_space<vmem>>, %arg8: memref<16x1024xf32, #tpu.memory_space<vmem>>, %arg9: memref<16x1xf32, #tpu.memory_space<vmem>>, %arg10: memref<16x1xf32, #tpu.memory_space<vmem>>) attributes {dimension_semantics = [#tpu.dimension_semantics<parallel>, #tpu.dimension_semantics<arbitrary>], iteration_bounds = array<i64: 1, 2>, scalar_prefetch = 0 : i64, scratch_operands = 3 : i64, tpu.core_type = #tpu.core_type<tc>, window_params = [{transform_indices = @transform_0, window_bounds = array<i64: 512, 512>}, {transform_indices = @transform_1, window_bounds = array<i64: 16, 512>}, {transform_indices = @transform_2, window_bounds = array<i64: 16, 1>}, {transform_indices = @transform_3, window_bounds = array<i64: 16, 1>}, {transform_indices = @transform_4, window_bounds = array<i64: 16, 1>}, {transform_indices = @transform_5, window_bounds = array<i64: 16, 1024>}]} {
    %c0_i32 = arith.constant 0 : i32
    %0 = arith.cmpi eq, %arg1, %c0_i32 : i32
    %1 = arith.extui %0 : i1 to i32
    %c0_i32_0 = arith.constant 0 : i32
    %2 = arith.cmpi ne, %1, %c0_i32_0 : i32
    scf.if %2 {
      %cst_20 = arith.constant 0.000000e+00 : f32
      %32 = vector.broadcast %cst_20 : f32 to vector<16x1xf32>
      %c0_21 = arith.constant 0 : index
      %c0_22 = arith.constant 0 : index
      %33 = vector.load %arg9[%c0_21, %c0_22] : memref<16x1xf32, #tpu.memory_space<vmem>>, vector<16x1xf32>
      tpu.vector_store %arg9[%c0_21, %c0_22], %32 {strides = array<i32>} : memref<16x1xf32, #tpu.memory_space<vmem>>, vector<16x1xf32>,
      %cst_23 = arith.constant 0.000000e+00 : f32
      %34 = vector.broadcast %cst_23 : f32 to vector<16x1xf32>
      %c0_24 = arith.constant 0 : index
      %c0_25 = arith.constant 0 : index
      %35 = vector.load %arg10[%c0_24, %c0_25] : memref<16x1xf32, #tpu.memory_space<vmem>>, vector<16x1xf32>
      tpu.vector_store %arg10[%c0_24, %c0_25], %34 {strides = array<i32>} : memref<16x1xf32, #tpu.memory_space<vmem>>, vector<16x1xf32>,
    } else {
    }
    %c0 = arith.constant 0 : index
    %c0_1 = arith.constant 0 : index
    %3 = vector.load %arg3[%c0, %c0_1] : memref<16x512xbf16, #tpu.memory_space<vmem>>, vector<16x512xbf16>
    %c0_2 = arith.constant 0 : index
    %c0_3 = arith.constant 0 : index
    %4 = vector.load %arg2[%c0_2, %c0_3] : memref<512x512xbf16, #tpu.memory_space<vmem>>, vector<512x512xbf16>
    %cst = arith.constant dense<0.000000e+00> : vector<16x512xf32>
    %5 = tpu.matmul %3, %4, %cst {dimension_numbers = #tpu.dot_dimension_numbers<[1], [0], [0], [1], [0, 0, 1, 1], [], []>} : vector<16x512xbf16>, vector<512x512xbf16>, vector<16x512xf32> -> vector<16x512xf32>
    %c0_4 = arith.constant 0 : index
    %c0_5 = arith.constant 0 : index
    %6 = vector.load %arg4[%c0_4, %c0_5] : memref<16x1xf32, #tpu.memory_space<vmem>>, vector<16x1xf32>
    %7 = vector.broadcast %6 : vector<16x1xf32> to vector<16x512xf32>
    %8 = arith.addf %5, %7 : vector<16x512xf32>
    %cst_6 = arith.constant 0.000000e+00 : f32
    %9 = vector.broadcast %cst_6 : f32 to vector<16x512xf32>
    %10 = arith.cmpf ogt, %8, %9 : vector<16x512xf32>
    %cst_7 = arith.constant 0.00999999977 : f32
    %11 = vector.broadcast %cst_7 : f32 to vector<16x512xf32>
    %12 = arith.mulf %11, %8 : vector<16x512xf32>
    %13 = arith.select %10, %8, %12 : vector<16x512xi1>, vector<16x512xf32>
    %c0_8 = arith.constant 0 : index
    %c0_9 = arith.constant 0 : index
    %14 = vector.load %arg9[%c0_8, %c0_9] : memref<16x1xf32, #tpu.memory_space<vmem>>, vector<16x1xf32>
    %cst_10 = arith.constant dense<0.000000e+00> : vector<16xf32>
    %15 = vector.multi_reduction <add>, %13, %cst_10 [1] : vector<16x512xf32> to vector<16xf32>
    %16 = vector.shape_cast %15 : vector<16xf32> to vector<16x1xf32>
    %17 = arith.addf %14, %16 : vector<16x1xf32>
    %c0_11 = arith.constant 0 : index
    %c0_12 = arith.constant 0 : index
    %18 = vector.load %arg9[%c0_11, %c0_12] : memref<16x1xf32, #tpu.memory_space<vmem>>, vector<16x1xf32>
    tpu.vector_store %arg9[%c0_11, %c0_12], %17 {strides = array<i32>} : memref<16x1xf32, #tpu.memory_space<vmem>>, vector<16x1xf32>,
    %c0_13 = arith.constant 0 : index
    %c0_14 = arith.constant 0 : index
    %19 = vector.load %arg10[%c0_13, %c0_14] : memref<16x1xf32, #tpu.memory_space<vmem>>, vector<16x1xf32>
    %20 = arith.mulf %13, %13 : vector<16x512xf32>
    %cst_15 = arith.constant dense<0.000000e+00> : vector<16xf32>
    %21 = vector.multi_reduction <add>, %20, %cst_15 [1] : vector<16x512xf32> to vector<16xf32>
    %22 = vector.shape_cast %21 : vector<16xf32> to vector<16x1xf32>
    %23 = arith.addf %19, %22 : vector<16x1xf32>
    %c0_16 = arith.constant 0 : index
    %c0_17 = arith.constant 0 : index
    %24 = vector.load %arg10[%c0_16, %c0_17] : memref<16x1xf32, #tpu.memory_space<vmem>>, vector<16x1xf32>
    tpu.vector_store %arg10[%c0_16, %c0_17], %23 {strides = array<i32>} : memref<16x1xf32, #tpu.memory_space<vmem>>, vector<16x1xf32>,
    %c512_i32 = arith.constant 512 : i32
    %25 = arith.muli %arg1, %c512_i32 : i32
    %26 = tpu.assume_multiple %25, 512 : i32
    %c0_18 = arith.constant 0 : index
    %27 = arith.index_cast %26 : i32 to index
    %28 = vector.load %arg8[%c0_18, %27] : memref<16x1024xf32, #tpu.memory_space<vmem>>, vector<16x512xf32>
    tpu.vector_store %arg8[%c0_18, %27], %13 {strides = array<i32>} : memref<16x1024xf32, #tpu.memory_space<vmem>>, vector<16x512xf32>,
    %c1_i32 = arith.constant 1 : i32
    %29 = arith.cmpi eq, %arg1, %c1_i32 : i32
    %30 = arith.extui %29 : i1 to i32
    %c0_i32_19 = arith.constant 0 : i32
    %31 = arith.cmpi ne, %30, %c0_i32_19 : i32
    scf.if %31 {
      %c0_20 = arith.constant 0 : index
      %c0_21 = arith.constant 0 : index
      %32 = vector.load %arg9[%c0_20, %c0_21] : memref<16x1xf32, #tpu.memory_space<vmem>>, vector<16x1xf32>
      %cst_22 = arith.constant 9.765625E-4 : f32
      %33 = vector.broadcast %cst_22 : f32 to vector<16x1xf32>
      %34 = arith.mulf %32, %33 : vector<16x1xf32>
      %c0_23 = arith.constant 0 : index
      %c0_24 = arith.constant 0 : index
      %35 = vector.load %arg10[%c0_23, %c0_24] : memref<16x1xf32, #tpu.memory_space<vmem>>, vector<16x1xf32>
      %cst_25 = arith.constant 9.765625E-4 : f32
      %36 = vector.broadcast %cst_25 : f32 to vector<16x1xf32>
      %37 = arith.mulf %35, %36 : vector<16x1xf32>
      %38 = arith.mulf %34, %34 : vector<16x1xf32>
      %39 = arith.subf %37, %38 : vector<16x1xf32>
      %cst_26 = arith.constant 0.000000e+00 : f32
      %40 = vector.broadcast %cst_26 : f32 to vector<16x1xf32>
      %41 = arith.maximumf %39, %40 : vector<16x1xf32>
      %c0_27 = arith.constant 0 : index
      %c0_28 = arith.constant 0 : index
      %42 = vector.load %arg5[%c0_27, %c0_28] : memref<16x1xf32, #tpu.memory_space<vmem>>, vector<16x1xf32>
      %cst_29 = arith.constant 9.99999974E-6 : f32
      %43 = vector.broadcast %cst_29 : f32 to vector<16x1xf32>
      %44 = arith.addf %41, %43 : vector<16x1xf32>
      %45 = math.rsqrt %44 : vector<16x1xf32>
      %46 = arith.mulf %42, %45 : vector<16x1xf32>
      %c0_30 = arith.constant 0 : index
      %c0_31 = arith.constant 0 : index
      %47 = vector.load %arg6[%c0_30, %c0_31] : memref<16x1xf32, #tpu.memory_space<vmem>>, vector<16x1xf32>
      %48 = arith.mulf %34, %46 : vector<16x1xf32>
      %49 = arith.subf %47, %48 : vector<16x1xf32>
      %c0_32 = arith.constant 0 : index
      %c0_33 = arith.constant 0 : index
      %50 = vector.load %arg8[%c0_32, %c0_33] : memref<16x1024xf32, #tpu.memory_space<vmem>>, vector<16x512xf32>
      %51 = vector.broadcast %46 : vector<16x1xf32> to vector<16x512xf32>
      %52 = arith.mulf %50, %51 : vector<16x512xf32>
      %53 = vector.broadcast %49 : vector<16x1xf32> to vector<16x512xf32>
      %54 = arith.addf %52, %53 : vector<16x512xf32>
      %55 = arith.truncf %54 : vector<16x512xf32> to vector<16x512xbf16>
      %c0_34 = arith.constant 0 : index
      %c0_35 = arith.constant 0 : index
      %56 = vector.load %arg7[%c0_34, %c0_35] : memref<16x1024xbf16, #tpu.memory_space<vmem>>, vector<16x512xbf16>
      tpu.vector_store %arg7[%c0_34, %c0_35], %55 {strides = array<i32>} : memref<16x1024xbf16, #tpu.memory_space<vmem>>, vector<16x512xbf16>,
      %c0_36 = arith.constant 0 : index
      %c512 = arith.constant 512 : index
      %57 = vector.load %arg8[%c0_36, %c512] : memref<16x1024xf32, #tpu.memory_space<vmem>>, vector<16x512xf32>
      %58 = vector.broadcast %46 : vector<16x1xf32> to vector<16x512xf32>
      %59 = arith.mulf %57, %58 : vector<16x512xf32>
      %60 = vector.broadcast %49 : vector<16x1xf32> to vector<16x512xf32>
      %61 = arith.addf %59, %60 : vector<16x512xf32>
      %62 = arith.truncf %61 : vector<16x512xf32> to vector<16x512xbf16>
      %c0_37 = arith.constant 0 : index
      %c512_38 = arith.constant 512 : index
      %63 = vector.load %arg7[%c0_37, %c512_38] : memref<16x1024xbf16, #tpu.memory_space<vmem>>, vector<16x512xbf16>
      tpu.vector_store %arg7[%c0_37, %c512_38], %62 {strides = array<i32>} : memref<16x1024xbf16, #tpu.memory_space<vmem>>, vector<16x512xbf16>,
    } else {
    }
    return
  }
  func.func @transform_0(%arg0: i32, %arg1: i32) -> (i32, i32) {
    %c0_i32 = arith.constant 0 : i32
    %c0_i32_0 = arith.constant 0 : i32
    return %c0_i32, %arg1 : i32, i32
  }
  func.func @transform_1(%arg0: i32, %arg1: i32) -> (i32, i32) {
    %c0_i32 = arith.constant 0 : i32
    %c0_i32_0 = arith.constant 0 : i32
    return %arg0, %c0_i32 : i32, i32
  }
  func.func @transform_2(%arg0: i32, %arg1: i32) -> (i32, i32) {
    %c0_i32 = arith.constant 0 : i32
    %c0_i32_0 = arith.constant 0 : i32
    return %arg0, %c0_i32 : i32, i32
  }
  func.func @transform_3(%arg0: i32, %arg1: i32) -> (i32, i32) {
    %c0_i32 = arith.constant 0 : i32
    %c0_i32_0 = arith.constant 0 : i32
    return %arg0, %c0_i32 : i32, i32
  }
  func.func @transform_4(%arg0: i32, %arg1: i32) -> (i32, i32) {
    %c0_i32 = arith.constant 0 : i32
    %c0_i32_0 = arith.constant 0 : i32
    return %arg0, %c0_i32 : i32, i32
  }
  func.func @transform_5(%arg0: i32, %arg1: i32) -> (i32, i32) {
    %c0_i32 = arith.constant 0 : i32
    %c0_i32_0 = arith.constant 0 : i32
    return %arg0, %c0_i32 : i32, i32
  }
}

module attributes {stable_mosaic.version = 11 : i64} {
  func.func @kernel(%arg0: i32, %arg1: i32, %arg2: memref<1024x128xbf16, #tpu.memory_space<vmem>>, %arg3: memref<16x1024xbf16, #tpu.memory_space<vmem>>, %arg4: memref<16x1xf32, #tpu.memory_space<vmem>>, %arg5: memref<16x1xf32, #tpu.memory_space<vmem>>, %arg6: memref<16x1xf32, #tpu.memory_space<vmem>>, %arg7: memref<16x128xf32, #tpu.memory_space<vmem>>, %arg8: memref<16x128xf32, #tpu.memory_space<vmem>>, %arg9: memref<16x1xf32, #tpu.memory_space<vmem>>, %arg10: memref<16x1xf32, #tpu.memory_space<vmem>>) attributes {dimension_semantics = [#tpu.dimension_semantics<parallel>, #tpu.dimension_semantics<arbitrary>], iteration_bounds = array<i64: 2, 1>, scalar_prefetch = 0 : i64, scratch_operands = 3 : i64, tpu.core_type = #tpu.core_type<tc>, window_params = [{transform_indices = @transform_0, window_bounds = array<i64: 1024, 128>}, {transform_indices = @transform_1, window_bounds = array<i64: 16, 1024>}, {transform_indices = @transform_2, window_bounds = array<i64: 16, 1>}, {transform_indices = @transform_3, window_bounds = array<i64: 16, 1>}, {transform_indices = @transform_4, window_bounds = array<i64: 16, 1>}, {transform_indices = @transform_5, window_bounds = array<i64: 16, 128>}]} {
    %c0_i32 = arith.constant 0 : i32
    %0 = arith.cmpi eq, %arg1, %c0_i32 : i32
    %1 = arith.extui %0 : i1 to i32
    %c0_i32_0 = arith.constant 0 : i32
    %2 = arith.cmpi ne, %1, %c0_i32_0 : i32
    scf.if %2 {
      %cst_21 = arith.constant 0.000000e+00 : f32
      %32 = vector.broadcast %cst_21 : f32 to vector<16x1xf32>
      %c0_22 = arith.constant 0 : index
      %c0_23 = arith.constant 0 : index
      %33 = vector.load %arg9[%c0_22, %c0_23] : memref<16x1xf32, #tpu.memory_space<vmem>>, vector<16x1xf32>
      tpu.vector_store %arg9[%c0_22, %c0_23], %32 {strides = array<i32>} : memref<16x1xf32, #tpu.memory_space<vmem>>, vector<16x1xf32>,
      %cst_24 = arith.constant 0.000000e+00 : f32
      %34 = vector.broadcast %cst_24 : f32 to vector<16x1xf32>
      %c0_25 = arith.constant 0 : index
      %c0_26 = arith.constant 0 : index
      %35 = vector.load %arg10[%c0_25, %c0_26] : memref<16x1xf32, #tpu.memory_space<vmem>>, vector<16x1xf32>
      tpu.vector_store %arg10[%c0_25, %c0_26], %34 {strides = array<i32>} : memref<16x1xf32, #tpu.memory_space<vmem>>, vector<16x1xf32>,
    } else {
    }
    %c0 = arith.constant 0 : index
    %c0_1 = arith.constant 0 : index
    %3 = vector.load %arg3[%c0, %c0_1] : memref<16x1024xbf16, #tpu.memory_space<vmem>>, vector<16x1024xbf16>
    %c0_2 = arith.constant 0 : index
    %c0_3 = arith.constant 0 : index
    %4 = vector.load %arg2[%c0_2, %c0_3] : memref<1024x128xbf16, #tpu.memory_space<vmem>>, vector<1024x128xbf16>
    %cst = arith.constant dense<0.000000e+00> : vector<16x128xf32>
    %5 = tpu.matmul %3, %4, %cst {dimension_numbers = #tpu.dot_dimension_numbers<[1], [0], [0], [1], [0, 0, 1, 1], [], []>} : vector<16x1024xbf16>, vector<1024x128xbf16>, vector<16x128xf32> -> vector<16x128xf32>
    %c0_4 = arith.constant 0 : index
    %c0_5 = arith.constant 0 : index
    %6 = vector.load %arg4[%c0_4, %c0_5] : memref<16x1xf32, #tpu.memory_space<vmem>>, vector<16x1xf32>
    %7 = vector.broadcast %6 : vector<16x1xf32> to vector<16x128xf32>
    %8 = arith.addf %5, %7 : vector<16x128xf32>
    %cst_6 = arith.constant 0.000000e+00 : f32
    %9 = vector.broadcast %cst_6 : f32 to vector<16x128xf32>
    %10 = arith.cmpf ogt, %8, %9 : vector<16x128xf32>
    %cst_7 = arith.constant 0.00999999977 : f32
    %11 = vector.broadcast %cst_7 : f32 to vector<16x128xf32>
    %12 = arith.mulf %11, %8 : vector<16x128xf32>
    %13 = arith.select %10, %8, %12 : vector<16x128xi1>, vector<16x128xf32>
    %c0_8 = arith.constant 0 : index
    %c0_9 = arith.constant 0 : index
    %14 = vector.load %arg9[%c0_8, %c0_9] : memref<16x1xf32, #tpu.memory_space<vmem>>, vector<16x1xf32>
    %cst_10 = arith.constant dense<0.000000e+00> : vector<16xf32>
    %15 = vector.multi_reduction <add>, %13, %cst_10 [1] : vector<16x128xf32> to vector<16xf32>
    %16 = vector.shape_cast %15 : vector<16xf32> to vector<16x1xf32>
    %17 = arith.addf %14, %16 : vector<16x1xf32>
    %c0_11 = arith.constant 0 : index
    %c0_12 = arith.constant 0 : index
    %18 = vector.load %arg9[%c0_11, %c0_12] : memref<16x1xf32, #tpu.memory_space<vmem>>, vector<16x1xf32>
    tpu.vector_store %arg9[%c0_11, %c0_12], %17 {strides = array<i32>} : memref<16x1xf32, #tpu.memory_space<vmem>>, vector<16x1xf32>,
    %c0_13 = arith.constant 0 : index
    %c0_14 = arith.constant 0 : index
    %19 = vector.load %arg10[%c0_13, %c0_14] : memref<16x1xf32, #tpu.memory_space<vmem>>, vector<16x1xf32>
    %20 = arith.mulf %13, %13 : vector<16x128xf32>
    %cst_15 = arith.constant dense<0.000000e+00> : vector<16xf32>
    %21 = vector.multi_reduction <add>, %20, %cst_15 [1] : vector<16x128xf32> to vector<16xf32>
    %22 = vector.shape_cast %21 : vector<16xf32> to vector<16x1xf32>
    %23 = arith.addf %19, %22 : vector<16x1xf32>
    %c0_16 = arith.constant 0 : index
    %c0_17 = arith.constant 0 : index
    %24 = vector.load %arg10[%c0_16, %c0_17] : memref<16x1xf32, #tpu.memory_space<vmem>>, vector<16x1xf32>
    tpu.vector_store %arg10[%c0_16, %c0_17], %23 {strides = array<i32>} : memref<16x1xf32, #tpu.memory_space<vmem>>, vector<16x1xf32>,
    %c128_i32 = arith.constant 128 : i32
    %25 = arith.muli %arg1, %c128_i32 : i32
    %26 = tpu.assume_multiple %25, 128 : i32
    %c0_18 = arith.constant 0 : index
    %27 = arith.index_cast %26 : i32 to index
    %28 = vector.load %arg8[%c0_18, %27] : memref<16x128xf32, #tpu.memory_space<vmem>>, vector<16x128xf32>
    tpu.vector_store %arg8[%c0_18, %27], %13 {strides = array<i32>} : memref<16x128xf32, #tpu.memory_space<vmem>>, vector<16x128xf32>,
    %c0_i32_19 = arith.constant 0 : i32
    %29 = arith.cmpi eq, %arg1, %c0_i32_19 : i32
    %30 = arith.extui %29 : i1 to i32
    %c0_i32_20 = arith.constant 0 : i32
    %31 = arith.cmpi ne, %30, %c0_i32_20 : i32
    scf.if %31 {
      %c0_21 = arith.constant 0 : index
      %c0_22 = arith.constant 0 : index
      %32 = vector.load %arg9[%c0_21, %c0_22] : memref<16x1xf32, #tpu.memory_space<vmem>>, vector<16x1xf32>
      %cst_23 = arith.constant 7.812500e-03 : f32
      %33 = vector.broadcast %cst_23 : f32 to vector<16x1xf32>
      %34 = arith.mulf %32, %33 : vector<16x1xf32>
      %c0_24 = arith.constant 0 : index
      %c0_25 = arith.constant 0 : index
      %35 = vector.load %arg10[%c0_24, %c0_25] : memref<16x1xf32, #tpu.memory_space<vmem>>, vector<16x1xf32>
      %cst_26 = arith.constant 7.812500e-03 : f32
      %36 = vector.broadcast %cst_26 : f32 to vector<16x1xf32>
      %37 = arith.mulf %35, %36 : vector<16x1xf32>
      %38 = arith.mulf %34, %34 : vector<16x1xf32>
      %39 = arith.subf %37, %38 : vector<16x1xf32>
      %cst_27 = arith.constant 0.000000e+00 : f32
      %40 = vector.broadcast %cst_27 : f32 to vector<16x1xf32>
      %41 = arith.maximumf %39, %40 : vector<16x1xf32>
      %c0_28 = arith.constant 0 : index
      %c0_29 = arith.constant 0 : index
      %42 = vector.load %arg5[%c0_28, %c0_29] : memref<16x1xf32, #tpu.memory_space<vmem>>, vector<16x1xf32>
      %cst_30 = arith.constant 9.99999974E-6 : f32
      %43 = vector.broadcast %cst_30 : f32 to vector<16x1xf32>
      %44 = arith.addf %41, %43 : vector<16x1xf32>
      %45 = math.rsqrt %44 : vector<16x1xf32>
      %46 = arith.mulf %42, %45 : vector<16x1xf32>
      %c0_31 = arith.constant 0 : index
      %c0_32 = arith.constant 0 : index
      %47 = vector.load %arg6[%c0_31, %c0_32] : memref<16x1xf32, #tpu.memory_space<vmem>>, vector<16x1xf32>
      %48 = arith.mulf %34, %46 : vector<16x1xf32>
      %49 = arith.subf %47, %48 : vector<16x1xf32>
      %c0_33 = arith.constant 0 : index
      %c0_34 = arith.constant 0 : index
      %50 = vector.load %arg8[%c0_33, %c0_34] : memref<16x128xf32, #tpu.memory_space<vmem>>, vector<16x128xf32>
      %51 = vector.broadcast %46 : vector<16x1xf32> to vector<16x128xf32>
      %52 = arith.mulf %50, %51 : vector<16x128xf32>
      %53 = vector.broadcast %49 : vector<16x1xf32> to vector<16x128xf32>
      %54 = arith.addf %52, %53 : vector<16x128xf32>
      %c0_35 = arith.constant 0 : index
      %c0_36 = arith.constant 0 : index
      %55 = vector.load %arg7[%c0_35, %c0_36] : memref<16x128xf32, #tpu.memory_space<vmem>>, vector<16x128xf32>
      tpu.vector_store %arg7[%c0_35, %c0_36], %54 {strides = array<i32>} : memref<16x128xf32, #tpu.memory_space<vmem>>, vector<16x128xf32>,
    } else {
    }
    return
  }
  func.func @transform_0(%arg0: i32, %arg1: i32) -> (i32, i32) {
    %c0_i32 = arith.constant 0 : i32
    %c0_i32_0 = arith.constant 0 : i32
    return %c0_i32, %arg1 : i32, i32
  }
  func.func @transform_1(%arg0: i32, %arg1: i32) -> (i32, i32) {
    %c0_i32 = arith.constant 0 : i32
    %c0_i32_0 = arith.constant 0 : i32
    return %arg0, %c0_i32 : i32, i32
  }
  func.func @transform_2(%arg0: i32, %arg1: i32) -> (i32, i32) {
    %c0_i32 = arith.constant 0 : i32
    %c0_i32_0 = arith.constant 0 : i32
    return %arg0, %c0_i32 : i32, i32
  }
  func.func @transform_3(%arg0: i32, %arg1: i32) -> (i32, i32) {
    %c0_i32 = arith.constant 0 : i32
    %c0_i32_0 = arith.constant 0 : i32
    return %arg0, %c0_i32 : i32, i32
  }
  func.func @transform_4(%arg0: i32, %arg1: i32) -> (i32, i32) {
    %c0_i32 = arith.constant 0 : i32
    %c0_i32_0 = arith.constant 0 : i32
    return %arg0, %c0_i32 : i32, i32
  }
  func.func @transform_5(%arg0: i32, %arg1: i32) -> (i32, i32) {
    %c0_i32 = arith.constant 0 : i32
    %c0_i32_0 = arith.constant 0 : i32
    return %arg0, %c0_i32 : i32, i32
  }
}

</mosaic_0001>

<llo_original>
// kernel: simple_encoder3d_forward.3
$region0: #{simple_encoder3d_forward.3}
  #allocation0 [shape = 'u32[]', space=smem, size = 0x4, offset = 0x4, fixed_abs, tag = 'smem constant byte address 0x4 - core index']
  #allocation1 [shape = 'u32[144,128]{1,0:T(1,128)}', space=vmem, size = 0x12000, scoped, tag = 'internal scratch']
  #allocation2 [shape = 'f32[8,8192]{1,0:T(8,128)}', space=vmem, size = 0x40000, scoped, tag = 'scratch operand']
  #allocation3 [shape = 'f32[8,1]{1,0:T(8,128)}', space=vmem, size = 0x1000, scoped, tag = 'scratch operand']
  #allocation4 [shape = 'f32[8,1]{1,0:T(8,128)}', space=vmem, size = 0x1000, scoped, tag = 'scratch operand']
  %s0 = inlined_call_operand.vmem [shape: bf16[256,8192], index: 0, kind: input, shape index: {}]
  %s1 = inlined_call_operand.vmem [shape: bf16[8,256], index: 1, kind: input, shape index: {}]
  %s2 = inlined_call_operand.vmem [shape: f32[8,1], index: 2, kind: input, shape index: {}]
  %s3 = inlined_call_operand.vmem [shape: f32[8,1], index: 3, kind: input, shape index: {}]
  %s4 = inlined_call_operand.vmem [shape: f32[8,1], index: 4, kind: input, shape index: {}]
  %s5 = inlined_call_operand.vmem [shape: bf16[8,8192], index: 5, kind: output, shape index: {}]
  %s6 = sld [smem:[#allocation0]]
  $region84: #{simple_encoder3d_forward.3} parent=0
    _
  %s8 = ssub.s32 1, %s6
  %s9 = scalar_select 0, %s8, %s6
  $region1: #{simple_encoder3d_forward.3} parent=0
    #allocation5 [shape = 'u8[2097152]{0}', space=vmem, size = 0x200000, scoped, tag = 'input window, operand 0']
    loop: start=0, step=1, limit=6
    $region2: #{simple_encoder3d_forward.3} parent=1 // loop_pre_header
      _
    $region3: #{simple_encoder3d_forward.3} parent=1 // loop_header
      %s11 = sphi 0, %s15
      %p12 = scmp.ge.s32.totalorder %s11, 6
      %s18 = sphi 0, %s30
      %s19 = sphi 0, %s26
      %s20 = sphi 0, %s18
      %s21 = sphi 0, %s19
      %s22 = sphi 0, %s20
      %s23 = sphi 0, %s21
      %s33 = sphi 0, %s35
      %s36 = sphi 0, %s33
      %s37 = sphi 0, %s36
      %s53 = sphi 0, %s37
      %s59 = sphi 0, %s61
      %s62 = sphi 0, %s59
      %s63 = sphi 0, %s62
      %s79 = sphi 0, %s63
      %s85 = sphi 0, %s87
      %s88 = sphi 0, %s85
      %s89 = sphi 0, %s88
      %s105 = sphi 0, %s89
      %s111 = sphi 0, %s113
      %s114 = sphi 0, %s111
      %s115 = sphi 0, %s114
      %s131 = sphi 0, %s115
      %s137 = sphi 0, %s139
      %s140 = sphi 0, %s137
      %s141 = sphi 0, %s140
      %s157 = sphi 0, %s141
      %s163 = sphi 0, %s165
      %s166 = sphi 0, %s163
      %s167 = sphi 0, %s166
      %s183 = sphi 0, %s167
    $region4: #{simple_encoder3d_forward.3} parent=1 // loop_header_branch
      %14 = sbr.rel (%p12) target = $region8
    $region5: #{simple_encoder3d_forward.3} parent=1 // loop_body
      %s16 = ssub.s32 %s11, 1
      %s17 = ssub.s32 %s11, 2
      %s24 = sadd.s32 1, %s19
      %p25 = scmp.ge.s32.totalorder %s24, 4
      %s26 = scalar_select %p25, 0, %s24
      %s27 = sadd.s32 1, %s18
      %s28 = scalar_select %p25, %s27, %s18
      %p29 = scmp.ge.s32.totalorder %s28, 1
      %s30 = scalar_select %p29, 0, %s28
      %s31 = ssub.s32 %s19, %s26
      %p32 = scmp.eq.s32.totalorder %s31, 0
      %s34 = sadd.s32 %s33, 1
      %s35 = scalar_select %p32, %s33, %s34
      %p38 = pneg %p32
      %p39 = scmp.eq.s32.totalorder %s11, 3
      %p40 = por %p38, %p39
      %p41 = scmp.ne.s32.totalorder %s33, %s36
      %p42 = scmp.eq.s32.totalorder %s11, 0
      %p43 = por %p41, %p42
      %p44 = scmp.ne.s32.totalorder %s33, %s36
      %p45 = scmp.eq.s32.totalorder %s16, 3
      %p46 = por %p44, %p45
      %p47 = scmp.ne.s32.totalorder %s36, %s37
      %p48 = scmp.eq.s32.totalorder %s16, 0
      %p49 = por %p47, %p48
      %p50 = scmp.ne.s32.totalorder %s36, %s37
      %p51 = scmp.eq.s32.totalorder %s17, 3
      %p52 = por %p50, %p51
      %p54 = scmp.ne.s32.totalorder %s37, %s53
      %p55 = scmp.eq.s32.totalorder %s17, 0
      %p56 = por %p54, %p55
      %s57 = ssub.s32 %s18, %s30
      %p58 = scmp.eq.s32.totalorder %s57, 0
      %s60 = sadd.s32 %s59, 1
      %s61 = scalar_select %p58, %s59, %s60
      %p64 = pneg %p58
      %p65 = scmp.eq.s32.totalorder %s11, 3
      %p66 = por %p64, %p65
      %p67 = scmp.ne.s32.totalorder %s59, %s62
      %p68 = scmp.eq.s32.totalorder %s11, 0
      %p69 = por %p67, %p68
      %p70 = scmp.ne.s32.totalorder %s59, %s62
      %p71 = scmp.eq.s32.totalorder %s16, 3
      %p72 = por %p70, %p71
      %p73 = scmp.ne.s32.totalorder %s62, %s63
      %p74 = scmp.eq.s32.totalorder %s16, 0
      %p75 = por %p73, %p74
      %p76 = scmp.ne.s32.totalorder %s62, %s63
      %p77 = scmp.eq.s32.totalorder %s17, 3
      %p78 = por %p76, %p77
      %p80 = scmp.ne.s32.totalorder %s63, %s79
      %p81 = scmp.eq.s32.totalorder %s17, 0
      %p82 = por %p80, %p81
      %s83 = ssub.s32 %s18, %s30
      %p84 = scmp.eq.s32.totalorder %s83, 0
      %s86 = sadd.s32 %s85, 1
      %s87 = scalar_select %p84, %s85, %s86
      %p90 = pneg %p84
      %p91 = scmp.eq.s32.totalorder %s11, 3
      %p92 = por %p90, %p91
      %p93 = scmp.ne.s32.totalorder %s85, %s88
      %p94 = scmp.eq.s32.totalorder %s11, 0
      %p95 = por %p93, %p94
      %p96 = scmp.ne.s32.totalorder %s85, %s88
      %p97 = scmp.eq.s32.totalorder %s16, 3
      %p98 = por %p96, %p97
      %p99 = scmp.ne.s32.totalorder %s88, %s89
      %p100 = scmp.eq.s32.totalorder %s16, 0
      %p101 = por %p99, %p100
      %p102 = scmp.ne.s32.totalorder %s88, %s89
      %p103 = scmp.eq.s32.totalorder %s17, 3
      %p104 = por %p102, %p103
      %p106 = scmp.ne.s32.totalorder %s89, %s105
      %p107 = scmp.eq.s32.totalorder %s17, 0
      %p108 = por %p106, %p107
      %s109 = ssub.s32 %s18, %s30
      %p110 = scmp.eq.s32.totalorder %s109, 0
      %s112 = sadd.s32 %s111, 1
      %s113 = scalar_select %p110, %s111, %s112
      %p116 = pneg %p110
      %p117 = scmp.eq.s32.totalorder %s11, 3
      %p118 = por %p116, %p117
      %p119 = scmp.ne.s32.totalorder %s111, %s114
      %p120 = scmp.eq.s32.totalorder %s11, 0
      %p121 = por %p119, %p120
      %p122 = scmp.ne.s32.totalorder %s111, %s114
      %p123 = scmp.eq.s32.totalorder %s16, 3
      %p124 = por %p122, %p123
      %p125 = scmp.ne.s32.totalorder %s114, %s115
      %p126 = scmp.eq.s32.totalorder %s16, 0
      %p127 = por %p125, %p126
      %p128 = scmp.ne.s32.totalorder %s114, %s115
      %p129 = scmp.eq.s32.totalorder %s17, 3
      %p130 = por %p128, %p129
      %p132 = scmp.ne.s32.totalorder %s115, %s131
      %p133 = scmp.eq.s32.totalorder %s17, 0
      %p134 = por %p132, %p133
      %s135 = ssub.s32 %s18, %s30
      %p136 = scmp.eq.s32.totalorder %s135, 0
      %s138 = sadd.s32 %s137, 1
      %s139 = scalar_select %p136, %s137, %s138
      %p142 = pneg %p136
      %p143 = scmp.eq.s32.totalorder %s11, 3
      %p144 = por %p142, %p143
      %p145 = scmp.ne.s32.totalorder %s137, %s140
      %p146 = scmp.eq.s32.totalorder %s11, 0
      %p147 = por %p145, %p146
      %p148 = scmp.ne.s32.totalorder %s137, %s140
      %p149 = scmp.eq.s32.totalorder %s16, 3
      %p150 = por %p148, %p149
      %p151 = scmp.ne.s32.totalorder %s140, %s141
      %p152 = scmp.eq.s32.totalorder %s16, 0
      %p153 = por %p151, %p152
      %p154 = scmp.ne.s32.totalorder %s140, %s141
      %p155 = scmp.eq.s32.totalorder %s17, 3
      %p156 = por %p154, %p155
      %p158 = scmp.ne.s32.totalorder %s141, %s157
      %p159 = scmp.eq.s32.totalorder %s17, 0
      %p160 = por %p158, %p159
      %s161 = ssub.s32 %s18, %s30
      %p162 = scmp.eq.s32.totalorder %s161, 0
      %s164 = sadd.s32 %s163, 1
      %s165 = scalar_select %p162, %s163, %s164
      %p168 = pneg %p162
      %p169 = scmp.eq.s32.totalorder %s11, 3
      %p170 = por %p168, %p169
      %p171 = scmp.ne.s32.totalorder %s163, %s166
      %p172 = scmp.eq.s32.totalorder %s11, 0
      %p173 = por %p171, %p172
      %p174 = scmp.ne.s32.totalorder %s163, %s166
      %p175 = scmp.eq.s32.totalorder %s16, 3
      %p176 = por %p174, %p175
      %p177 = scmp.ne.s32.totalorder %s166, %s167
      %p178 = scmp.eq.s32.totalorder %s16, 0
      %p179 = por %p177, %p178
      %p180 = scmp.ne.s32.totalorder %s166, %s167
      %p181 = scmp.eq.s32.totalorder %s17, 3
      %p182 = por %p180, %p181
      %p184 = scmp.ne.s32.totalorder %s167, %s183
      %p185 = scmp.eq.s32.totalorder %s17, 0
      %p186 = por %p184, %p185
      %p187 = scmp.le.s32.totalorder 1, %s11
      %p188 = scmp.lt.s32.totalorder %s11, 5
      %p189 = pnand %p187, %p188
      %p190 = pneg %p189
      // Predicated region
      $region9: #{simple_encoder3d_forward.3} parent=5 // pred_check
        _
      $region10: #{simple_encoder3d_forward.3} parent=5 // pred_check_branch
        %192 = sbr.rel (%p189) target = $region12
      $region11: #{simple_encoder3d_forward.3} parent=5 // pred_region
        %s193 = ssub.s32 %s11, 1
        // Predicated region
        $region13: #{simple_encoder3d_forward.3} parent=11 // pred_check
          %p194 = pneg %p75
        $region14: #{simple_encoder3d_forward.3} parent=11 // pred_check_branch
          %196 = sbr.rel (%p194) target = $region16
        $region15: #{simple_encoder3d_forward.3} parent=11 // pred_region
          %p197 = scmp.lt.s32.totalorder %s20, 0
          %s198 = scalar_select %p197, %s20, 0
          %s199 = smul.addr %s198, 2
          %s200 = smul.addr %s199, 4
          %s201 = scalar_lea.vmem %s1, %s200
        $region16: #{simple_encoder3d_forward.3} parent=11 // pred_fallthru
          _
        // Predicated region
        $region17: #{simple_encoder3d_forward.3} parent=11 // pred_check
          %p202 = pneg %p101
        $region18: #{simple_encoder3d_forward.3} parent=11 // pred_check_branch
          %204 = sbr.rel (%p202) target = $region20
        $region19: #{simple_encoder3d_forward.3} parent=11 // pred_region
          %p205 = scmp.lt.s32.totalorder %s20, 0
          %s206 = scalar_select %p205, %s20, 0
          %s207 = smul.addr %s206, 8
          %s208 = scalar_lea.vmem %s2, %s207
        $region20: #{simple_encoder3d_forward.3} parent=11 // pred_fallthru
          _
        // Predicated region
        $region21: #{simple_encoder3d_forward.3} parent=11 // pred_check
          %p209 = pneg %p127
        $region22: #{simple_encoder3d_forward.3} parent=11 // pred_check_branch
          %211 = sbr.rel (%p209) target = $region24
        $region23: #{simple_encoder3d_forward.3} parent=11 // pred_region
          %p212 = scmp.lt.s32.totalorder %s20, 0
          %s213 = scalar_select %p212, %s20, 0
          %s214 = smul.addr %s213, 8
          %s215 = scalar_lea.vmem %s3, %s214
        $region24: #{simple_encoder3d_forward.3} parent=11 // pred_fallthru
          _
        // Predicated region
        $region25: #{simple_encoder3d_forward.3} parent=11 // pred_check
          %p216 = pneg %p153
        $region26: #{simple_encoder3d_forward.3} parent=11 // pred_check_branch
          %218 = sbr.rel (%p216) target = $region28
        $region27: #{simple_encoder3d_forward.3} parent=11 // pred_region
          %p219 = scmp.lt.s32.totalorder %s20, 0
          %s220 = scalar_select %p219, %s20, 0
          %s221 = smul.addr %s220, 8
          %s222 = scalar_lea.vmem %s4, %s221
        $region28: #{simple_encoder3d_forward.3} parent=11 // pred_fallthru
          _
      $region12: #{simple_encoder3d_forward.3} parent=5 // pred_fallthru
        _
      %p223 = scmp.lt.s32.totalorder %s11, 4
      // Predicated region
      $region29: #{simple_encoder3d_forward.3} parent=5 // pred_check
        %p224 = pneg %p223
      $region30: #{simple_encoder3d_forward.3} parent=5 // pred_check_branch
        %226 = sbr.rel (%p224) target = $region32
      $region31: #{simple_encoder3d_forward.3} parent=5 // pred_region
        // Predicated region
        $region33: #{simple_encoder3d_forward.3} parent=31 // pred_check
          %p227 = pneg %p43
        $region34: #{simple_encoder3d_forward.3} parent=31 // pred_check_branch
          %229 = sbr.rel (%p227) target = $region36
        $region35: #{simple_encoder3d_forward.3} parent=31 // pred_region
          %s230 = sand.u32 %s33, 1
          %s231 = sand.u32 %s33, 1
          %s232 = smul.addr %s231, 2048
          %s233 = scalar_lea.vmem [#allocation5], %s232
          %s234 = smul.u32 16, %s19
          %s235 = smul.addr %s234, 4
          %s236 = scalar_lea.vmem %s0, %s235
          // Predicated region
          $region37: #{simple_encoder3d_forward.3} parent=35 // pred_check
            _
          $region38: #{simple_encoder3d_forward.3} parent=35 // pred_check_branch
            %238 = sbr.rel (0) target = $region40
          $region39: #{simple_encoder3d_forward.3} parent=35 // pred_region
            // Predicated region
            $region41: #{simple_encoder3d_forward.3} parent=39 // pred_check
              _
            $region42: #{simple_encoder3d_forward.3} parent=39 // pred_check_branch
              %240 = sbr.rel (0) target = $region44
            $region43: #{simple_encoder3d_forward.3} parent=39 // pred_region
              loop: start=0, step=1, limit=1
              $region45: #{simple_encoder3d_forward.3} parent=43 // loop_pre_header
                _
              $region46: #{simple_encoder3d_forward.3} parent=43 // loop_header
                %s242 = sphi 0, %s246
                %p243 = scmp.ge.s32.totalorder %s242, 1
                %s247 = sphi %s236, %s236
                %s248 = sphi %s233, %s233
              $region47: #{simple_encoder3d_forward.3} parent=43 // loop_header_branch
                %245 = sbr.rel (%p243) target = $region51
              $region48: #{simple_encoder3d_forward.3} parent=43 // loop_body
                %v249 = vld [vmem:[%s247] sm:$0xff]
                %250 = vst [vmem:[%s248] sm:$0xff] %v249
                %v251 = vld [vmem:[%s247 + $0x8] sm:$0xff]
                %252 = vst [vmem:[%s248 + $0x8] sm:$0xff] %v251
                %v253 = vld [vmem:[%s247 + $0x10] sm:$0xff]
                %254 = vst [vmem:[%s248 + $0x10] sm:$0xff] %v253
                %v255 = vld [vmem:[%s247 + $0x18] sm:$0xff]
                %256 = vst [vmem:[%s248 + $0x18] sm:$0xff] %v255
                %v257 = vld [vmem:[%s247 + $0x20] sm:$0xff]
                %258 = vst [vmem:[%s248 + $0x20] sm:$0xff] %v257
                %v259 = vld [vmem:[%s247 + $0x28] sm:$0xff]
                %260 = vst [vmem:[%s248 + $0x28] sm:$0xff] %v259
                %v261 = vld [vmem:[%s247 + $0x30] sm:$0xff]
                %262 = vst [vmem:[%s248 + $0x30] sm:$0xff] %v261
                %v263 = vld [vmem:[%s247 + $0x38] sm:$0xff]
                %264 = vst [vmem:[%s248 + $0x38] sm:$0xff] %v263
                %v265 = vld [vmem:[%s247 + $0x100] sm:$0xff]
                %266 = vst [vmem:[%s248 + $0x40] sm:$0xff] %v265
                %v267 = vld [vmem:[%s247 + $0x108] sm:$0xff]
                %268 = vst [vmem:[%s248 + $0x48] sm:$0xff] %v267
                %v269 = vld [vmem:[%s247 + $0x110] sm:$0xff]
                %270 = vst [vmem:[%s248 + $0x50] sm:$0xff] %v269
                %v271 = vld [vmem:[%s247 + $0x118] sm:$0xff]
                %272 = vst [vmem:[%s248 + $0x58] sm:$0xff] %v271
                %v273 = vld [vmem:[%s247 + $0x120] sm:$0xff]
                %274 = vst [vmem:[%s248 + $0x60] sm:$0xff] %v273
                %v275 = vld [vmem:[%s247 + $0x128] sm:$0xff]
                %276 = vst [vmem:[%s248 + $0x68] sm:$0xff] %v275
                %v277 = vld [vmem:[%s247 + $0x130] sm:$0xff]
                %278 = vst [vmem:[%s248 + $0x70] sm:$0xff] %v277
                %v279 = vld [vmem:[%s247 + $0x138] sm:$0xff]
                %280 = vst [vmem:[%s248 + $0x78] sm:$0xff] %v279
                %v281 = vld [vmem:[%s247 + $0x200] sm:$0xff]
                %282 = vst [vmem:[%s248 + $0x80] sm:$0xff] %v281
                %v283 = vld [vmem:[%s247 + $0x208] sm:$0xff]
                %284 = vst [vmem:[%s248 + $0x88] sm:$0xff] %v283
                %v285 = vld [vmem:[%s247 + $0x210] sm:$0xff]
                %286 = vst [vmem:[%s248 + $0x90] sm:$0xff] %v285
                %v287 = vld [vmem:[%s247 + $0x218] sm:$0xff]
                %288 = vst [vmem:[%s248 + $0x98] sm:$0xff] %v287
                %v289 = vld [vmem:[%s247 + $0x220] sm:$0xff]
                %290 = vst [vmem:[%s248 + $0xa0] sm:$0xff] %v289
                %v291 = vld [vmem:[%s247 + $0x228] sm:$0xff]
                %292 = vst [vmem:[%s248 + $0xa8] sm:$0xff] %v291
                %v293 = vld [vmem:[%s247 + $0x230] sm:$0xff]
                %294 = vst [vmem:[%s248 + $0xb0] sm:$0xff] %v293
                %v295 = vld [vmem:[%s247 + $0x238] sm:$0xff]
                %296 = vst [vmem:[%s248 + $0xb8] sm:$0xff] %v295
                %v297 = vld [vmem:[%s247 + $0x300] sm:$0xff]
                %298 = vst [vmem:[%s248 + $0xc0] sm:$0xff] %v297
                %v299 = vld [vmem:[%s247 + $0x308] sm:$0xff]
                %300 = vst [vmem:[%s248 + $0xc8] sm:$0xff] %v299
                %v301 = vld [vmem:[%s247 + $0x310] sm:$0xff]
                %302 = vst [vmem:[%s248 + $0xd0] sm:$0xff] %v301
                %v303 = vld [vmem:[%s247 + $0x318] sm:$0xff]
                %304 = vst [vmem:[%s248 + $0xd8] sm:$0xff] %v303
                %v305 = vld [vmem:[%s247 + $0x320] sm:$0xff]
                %306 = vst [vmem:[%s248 + $0xe0] sm:$0xff] %v305
                %v307 = vld [vmem:[%s247 + $0x328] sm:$0xff]
                %308 = vst [vmem:[%s248 + $0xe8] sm:$0xff] %v307
                %v309 = vld [vmem:[%s247 + $0x330] sm:$0xff]
                %310 = vst [vmem:[%s248 + $0xf0] sm:$0xff] %v309
                %v311 = vld [vmem:[%s247 + $0x338] sm:$0xff]
                %312 = vst [vmem:[%s248 + $0xf8] sm:$0xff] %v311
                %v313 = vld [vmem:[%s247 + $0x400] sm:$0xff]
                %314 = vst [vmem:[%s248 + $0x100] sm:$0xff] %v313
                %v315 = vld [vmem:[%s247 + $0x408] sm:$0xff]
                %316 = vst [vmem:[%s248 + $0x108] sm:$0xff] %v315
                %v317 = vld [vmem:[%s247 + $0x410] sm:$0xff]
                %318 = vst [vmem:[%s248 + $0x110] sm:$0xff] %v317
                %v319 = vld [vmem:[%s247 + $0x418] sm:$0xff]
                %320 = vst [vmem:[%s248 + $0x118] sm:$0xff] %v319
                %v321 = vld [vmem:[%s247 + $0x420] sm:$0xff]
                %322 = vst [vmem:[%s248 + $0x120] sm:$0xff] %v321
                %v323 = vld [vmem:[%s247 + $0x428] sm:$0xff]
                %324 = vst [vmem:[%s248 + $0x128] sm:$0xff] %v323
                %v325 = vld [vmem:[%s247 + $0x430] sm:$0xff]
                %326 = vst [vmem:[%s248 + $0x130] sm:$0xff] %v325
                %v327 = vld [vmem:[%s247 + $0x438] sm:$0xff]
                %328 = vst [vmem:[%s248 + $0x138] sm:$0xff] %v327
                %v329 = vld [vmem:[%s247 + $0x500] sm:$0xff]
                %330 = vst [vmem:[%s248 + $0x140] sm:$0xff] %v329
                %v331 = vld [vmem:[%s247 + $0x508] sm:$0xff]
                %332 = vst [vmem:[%s248 + $0x148] sm:$0xff] %v331
                %v333 = vld [vmem:[%s247 + $0x510] sm:$0xff]
                %334 = vst [vmem:[%s248 + $0x150] sm:$0xff] %v333
                %v335 = vld [vmem:[%s247 + $0x518] sm:$0xff]
                %336 = vst [vmem:[%s248 + $0x158] sm:$0xff] %v335
                %v337 = vld [vmem:[%s247 + $0x520] sm:$0xff]
                %338 = vst [vmem:[%s248 + $0x160] sm:$0xff] %v337
                %v339 = vld [vmem:[%s247 + $0x528] sm:$0xff]
                %340 = vst [vmem:[%s248 + $0x168] sm:$0xff] %v339
                %v341 = vld [vmem:[%s247 + $0x530] sm:$0xff]
                %342 = vst [vmem:[%s248 + $0x170] sm:$0xff] %v341
                %v343 = vld [vmem:[%s247 + $0x538] sm:$0xff]
                %344 = vst [vmem:[%s248 + $0x178] sm:$0xff] %v343
                %v345 = vld [vmem:[%s247 + $0x600] sm:$0xff]
                %346 = vst [vmem:[%s248 + $0x180] sm:$0xff] %v345
                %v347 = vld [vmem:[%s247 + $0x608] sm:$0xff]
                %348 = vst [vmem:[%s248 + $0x188] sm:$0xff] %v347
                %v349 = vld [vmem:[%s247 + $0x610] sm:$0xff]
                %350 = vst [vmem:[%s248 + $0x190] sm:$0xff] %v349
                %v351 = vld [vmem:[%s247 + $0x618] sm:$0xff]
                %352 = vst [vmem:[%s248 + $0x198] sm:$0xff] %v351
                %v353 = vld [vmem:[%s247 + $0x620] sm:$0xff]
                %354 = vst [vmem:[%s248 + $0x1a0] sm:$0xff] %v353
                %v355 = vld [vmem:[%s247 + $0x628] sm:$0xff]
                %356 = vst [vmem:[%s248 + $0x1a8] sm:$0xff] %v355
                %v357 = vld [vmem:[%s247 + $0x630] sm:$0xff]
                %358 = vst [vmem:[%s248 + $0x1b0] sm:$0xff] %v357
                %v359 = vld [vmem:[%s247 + $0x638] sm:$0xff]
                %360 = vst [vmem:[%s248 + $0x1b8] sm:$0xff] %v359
                %v361 = vld [vmem:[%s247 + $0x700] sm:$0xff]
                %362 = vst [vmem:[%s248 + $0x1c0] sm:$0xff] %v361
                %v363 = vld [vmem:[%s247 + $0x708] sm:$0xff]
                %364 = vst [vmem:[%s248 + $0x1c8] sm:$0xff] %v363
                %v365 = vld [vmem:[%s247 + $0x710] sm:$0xff]
                %366 = vst [vmem:[%s248 + $0x1d0] sm:$0xff] %v365
                %v367 = vld [vmem:[%s247 + $0x718] sm:$0xff]
                %368 = vst [vmem:[%s248 + $0x1d8] sm:$0xff] %v367
                %v369 = vld [vmem:[%s247 + $0x720] sm:$0xff]
                %370 = vst [vmem:[%s248 + $0x1e0] sm:$0xff] %v369
                %v371 = vld [vmem:[%s247 + $0x728] sm:$0xff]
                %372 = vst [vmem:[%s248 + $0x1e8] sm:$0xff] %v371
                %v373 = vld [vmem:[%s247 + $0x730] sm:$0xff]
                %374 = vst [vmem:[%s248 + $0x1f0] sm:$0xff] %v373
                %v375 = vld [vmem:[%s247 + $0x738] sm:$0xff]
                %376 = vst [vmem:[%s248 + $0x1f8] sm:$0xff] %v375
                %v377 = vld [vmem:[%s247 + $0x800] sm:$0xff]
                %378 = vst [vmem:[%s248 + $0x200] sm:$0xff] %v377
                %v379 = vld [vmem:[%s247 + $0x808] sm:$0xff]
                %380 = vst [vmem:[%s248 + $0x208] sm:$0xff] %v379
                %v381 = vld [vmem:[%s247 + $0x810] sm:$0xff]
                %382 = vst [vmem:[%s248 + $0x210] sm:$0xff] %v381
                %v383 = vld [vmem:[%s247 + $0x818] sm:$0xff]
                %384 = vst [vmem:[%s248 + $0x218] sm:$0xff] %v383
                %v385 = vld [vmem:[%s247 + $0x820] sm:$0xff]
                %386 = vst [vmem:[%s248 + $0x220] sm:$0xff] %v385
                %v387 = vld [vmem:[%s247 + $0x828] sm:$0xff]
                %388 = vst [vmem:[%s248 + $0x228] sm:$0xff] %v387
                %v389 = vld [vmem:[%s247 + $0x830] sm:$0xff]
                %390 = vst [vmem:[%s248 + $0x230] sm:$0xff] %v389
                %v391 = vld [vmem:[%s247 + $0x838] sm:$0xff]
                %392 = vst [vmem:[%s248 + $0x238] sm:$0xff] %v391
                %v393 = vld [vmem:[%s247 + $0x900] sm:$0xff]
                %394 = vst [vmem:[%s248 + $0x240] sm:$0xff] %v393
                %v395 = vld [vmem:[%s247 + $0x908] sm:$0xff]
                %396 = vst [vmem:[%s248 + $0x248] sm:$0xff] %v395
                %v397 = vld [vmem:[%s247 + $0x910] sm:$0xff]
                %398 = vst [vmem:[%s248 + $0x250] sm:$0xff] %v397
                %v399 = vld [vmem:[%s247 + $0x918] sm:$0xff]
                %400 = vst [vmem:[%s248 + $0x258] sm:$0xff] %v399
                %v401 = vld [vmem:[%s247 + $0x920] sm:$0xff]
                %402 = vst [vmem:[%s248 + $0x260] sm:$0xff] %v401
                %v403 = vld [vmem:[%s247 + $0x928] sm:$0xff]
                %404 = vst [vmem:[%s248 + $0x268] sm:$0xff] %v403
                %v405 = vld [vmem:[%s247 + $0x930] sm:$0xff]
                %406 = vst [vmem:[%s248 + $0x270] sm:$0xff] %v405
                %v407 = vld [vmem:[%s247 + $0x938] sm:$0xff]
                %408 = vst [vmem:[%s248 + $0x278] sm:$0xff] %v407
                %v409 = vld [vmem:[%s247 + $0xa00] sm:$0xff]
                %410 = vst [vmem:[%s248 + $0x280] sm:$0xff] %v409
                %v411 = vld [vmem:[%s247 + $0xa08] sm:$0xff]
                %412 = vst [vmem:[%s248 + $0x288] sm:$0xff] %v411
                %v413 = vld [vmem:[%s247 + $0xa10] sm:$0xff]
                %414 = vst [vmem:[%s248 + $0x290] sm:$0xff] %v413
                %v415 = vld [vmem:[%s247 + $0xa18] sm:$0xff]
                %416 = vst [vmem:[%s248 + $0x298] sm:$0xff] %v415
                %v417 = vld [vmem:[%s247 + $0xa20] sm:$0xff]
                %418 = vst [vmem:[%s248 + $0x2a0] sm:$0xff] %v417
                %v419 = vld [vmem:[%s247 + $0xa28] sm:$0xff]
                %420 = vst [vmem:[%s248 + $0x2a8] sm:$0xff] %v419
                %v421 = vld [vmem:[%s247 + $0xa30] sm:$0xff]
                %422 = vst [vmem:[%s248 + $0x2b0] sm:$0xff] %v421
                %v423 = vld [vmem:[%s247 + $0xa38] sm:$0xff]
                %424 = vst [vmem:[%s248 + $0x2b8] sm:$0xff] %v423
                %v425 = vld [vmem:[%s247 + $0xb00] sm:$0xff]
                %426 = vst [vmem:[%s248 + $0x2c0] sm:$0xff] %v425
                %v427 = vld [vmem:[%s247 + $0xb08] sm:$0xff]
                %428 = vst [vmem:[%s248 + $0x2c8] sm:$0xff] %v427
                %v429 = vld [vmem:[%s247 + $0xb10] sm:$0xff]
                %430 = vst [vmem:[%s248 + $0x2d0] sm:$0xff] %v429
                %v431 = vld [vmem:[%s247 + $0xb18] sm:$0xff]
                %432 = vst [vmem:[%s248 + $0x2d8] sm:$0xff] %v431
                %v433 = vld [vmem:[%s247 + $0xb20] sm:$0xff]
                %434 = vst [vmem:[%s248 + $0x2e0] sm:$0xff] %v433
                %v435 = vld [vmem:[%s247 + $0xb28] sm:$0xff]
                %436 = vst [vmem:[%s248 + $0x2e8] sm:$0xff] %v435
                %v437 = vld [vmem:[%s247 + $0xb30] sm:$0xff]
                %438 = vst [vmem:[%s248 + $0x2f0] sm:$0xff] %v437
                %v439 = vld [vmem:[%s247 + $0xb38] sm:$0xff]
                %440 = vst [vmem:[%s248 + $0x2f8] sm:$0xff] %v439
                %v441 = vld [vmem:[%s247 + $0xc00] sm:$0xff]
                %442 = vst [vmem:[%s248 + $0x300] sm:$0xff] %v441
                %v443 = vld [vmem:[%s247 + $0xc08] sm:$0xff]
                %444 = vst [vmem:[%s248 + $0x308] sm:$0xff] %v443
                %v445 = vld [vmem:[%s247 + $0xc10] sm:$0xff]
                %446 = vst [vmem:[%s248 + $0x310] sm:$0xff] %v445
                %v447 = vld [vmem:[%s247 + $0xc18] sm:$0xff]
                %448 = vst [vmem:[%s248 + $0x318] sm:$0xff] %v447
                %v449 = vld [vmem:[%s247 + $0xc20] sm:$0xff]
                %450 = vst [vmem:[%s248 + $0x320] sm:$0xff] %v449
                %v451 = vld [vmem:[%s247 + $0xc28] sm:$0xff]
                %452 = vst [vmem:[%s248 + $0x328] sm:$0xff] %v451
                %v453 = vld [vmem:[%s247 + $0xc30] sm:$0xff]
                %454 = vst [vmem:[%s248 + $0x330] sm:$0xff] %v453
                %v455 = vld [vmem:[%s247 + $0xc38] sm:$0xff]
                %456 = vst [vmem:[%s248 + $0x338] sm:$0xff] %v455
                %v457 = vld [vmem:[%s247 + $0xd00] sm:$0xff]
                %458 = vst [vmem:[%s248 + $0x340] sm:$0xff] %v457
                %v459 = vld [vmem:[%s247 + $0xd08] sm:$0xff]
                %460 = vst [vmem:[%s248 + $0x348] sm:$0xff] %v459
                %v461 = vld [vmem:[%s247 + $0xd10] sm:$0xff]
                %462 = vst [vmem:[%s248 + $0x350] sm:$0xff] %v461
                %v463 = vld [vmem:[%s247 + $0xd18] sm:$0xff]
                %464 = vst [vmem:[%s248 + $0x358] sm:$0xff] %v463
                %v465 = vld [vmem:[%s247 + $0xd20] sm:$0xff]
                %466 = vst [vmem:[%s248 + $0x360] sm:$0xff] %v465
                %v467 = vld [vmem:[%s247 + $0xd28] sm:$0xff]
                %468 = vst [vmem:[%s248 + $0x368] sm:$0xff] %v467
                %v469 = vld [vmem:[%s247 + $0xd30] sm:$0xff]
                %470 = vst [vmem:[%s248 + $0x370] sm:$0xff] %v469
                %v471 = vld [vmem:[%s247 + $0xd38] sm:$0xff]
                %472 = vst [vmem:[%s248 + $0x378] sm:$0xff] %v471
                %v473 = vld [vmem:[%s247 + $0xe00] sm:$0xff]
                %474 = vst [vmem:[%s248 + $0x380] sm:$0xff] %v473
                %v475 = vld [vmem:[%s247 + $0xe08] sm:$0xff]
                %476 = vst [vmem:[%s248 + $0x388] sm:$0xff] %v475
                %v477 = vld [vmem:[%s247 + $0xe10] sm:$0xff]
                %478 = vst [vmem:[%s248 + $0x390] sm:$0xff] %v477
                %v479 = vld [vmem:[%s247 + $0xe18] sm:$0xff]
                %480 = vst [vmem:[%s248 + $0x398] sm:$0xff] %v479
                %v481 = vld [vmem:[%s247 + $0xe20] sm:$0xff]
                %482 = vst [vmem:[%s248 + $0x3a0] sm:$0xff] %v481
                %v483 = vld [vmem:[%s247 + $0xe28] sm:$0xff]
                %484 = vst [vmem:[%s248 + $0x3a8] sm:$0xff] %v483
                %v485 = vld [vmem:[%s247 + $0xe30] sm:$0xff]
                %486 = vst [vmem:[%s248 + $0x3b0] sm:$0xff] %v485
                %v487 = vld [vmem:[%s247 + $0xe38] sm:$0xff]
                %488 = vst [vmem:[%s248 + $0x3b8] sm:$0xff] %v487
                %v489 = vld [vmem:[%s247 + $0xf00] sm:$0xff]
                %490 = vst [vmem:[%s248 + $0x3c0] sm:$0xff] %v489
                %v491 = vld [vmem:[%s247 + $0xf08] sm:$0xff]
                %492 = vst [vmem:[%s248 + $0x3c8] sm:$0xff] %v491
                %v493 = vld [vmem:[%s247 + $0xf10] sm:$0xff]
                %494 = vst [vmem:[%s248 + $0x3d0] sm:$0xff] %v493
                %v495 = vld [vmem:[%s247 + $0xf18] sm:$0xff]
                %496 = vst [vmem:[%s248 + $0x3d8] sm:$0xff] %v495
                %v497 = vld [vmem:[%s247 + $0xf20] sm:$0xff]
                %498 = vst [vmem:[%s248 + $0x3e0] sm:$0xff] %v497
                %v499 = vld [vmem:[%s247 + $0xf28] sm:$0xff]
                %500 = vst [vmem:[%s248 + $0x3e8] sm:$0xff] %v499
                %v501 = vld [vmem:[%s247 + $0xf30] sm:$0xff]
                %502 = vst [vmem:[%s248 + $0x3f0] sm:$0xff] %v501
                %v503 = vld [vmem:[%s247 + $0xf38] sm:$0xff]
                %504 = vst [vmem:[%s248 + $0x3f8] sm:$0xff] %v503
                %v505 = vld [vmem:[%s247 + $0x1000] sm:$0xff]
                %506 = vst [vmem:[%s248 + $0x400] sm:$0xff] %v505
                %v507 = vld [vmem:[%s247 + $0x1008] sm:$0xff]
                %508 = vst [vmem:[%s248 + $0x408] sm:$0xff] %v507
                %v509 = vld [vmem:[%s247 + $0x1010] sm:$0xff]
                %510 = vst [vmem:[%s248 + $0x410] sm:$0xff] %v509
                %v511 = vld [vmem:[%s247 + $0x1018] sm:$0xff]
                %512 = vst [vmem:[%s248 + $0x418] sm:$0xff] %v511
                %v513 = vld [vmem:[%s247 + $0x1020] sm:$0xff]
                %514 = vst [vmem:[%s248 + $0x420] sm:$0xff] %v513
                %v515 = vld [vmem:[%s247 + $0x1028] sm:$0xff]
                %516 = vst [vmem:[%s248 + $0x428] sm:$0xff] %v515
                %v517 = vld [vmem:[%s247 + $0x1030] sm:$0xff]
                %518 = vst [vmem:[%s248 + $0x430] sm:$0xff] %v517
                %v519 = vld [vmem:[%s247 + $0x1038] sm:$0xff]
                %520 = vst [vmem:[%s248 + $0x438] sm:$0xff] %v519
                %v521 = vld [vmem:[%s247 + $0x1100] sm:$0xff]
                %522 = vst [vmem:[%s248 + $0x440] sm:$0xff] %v521
                %v523 = vld [vmem:[%s247 + $0x1108] sm:$0xff]
                %524 = vst [vmem:[%s248 + $0x448] sm:$0xff] %v523
                %v525 = vld [vmem:[%s247 + $0x1110] sm:$0xff]
                %526 = vst [vmem:[%s248 + $0x450] sm:$0xff] %v525
                %v527 = vld [vmem:[%s247 + $0x1118] sm:$0xff]
                %528 = vst [vmem:[%s248 + $0x458] sm:$0xff] %v527
                %v529 = vld [vmem:[%s247 + $0x1120] sm:$0xff]
                %530 = vst [vmem:[%s248 + $0x460] sm:$0xff] %v529
                %v531 = vld [vmem:[%s247 + $0x1128] sm:$0xff]
                %532 = vst [vmem:[%s248 + $0x468] sm:$0xff] %v531
                %v533 = vld [vmem:[%s247 + $0x1130] sm:$0xff]
                %534 = vst [vmem:[%s248 + $0x470] sm:$0xff] %v533
                %v535 = vld [vmem:[%s247 + $0x1138] sm:$0xff]
                %536 = vst [vmem:[%s248 + $0x478] sm:$0xff] %v535
                %v537 = vld [vmem:[%s247 + $0x1200] sm:$0xff]
                %538 = vst [vmem:[%s248 + $0x480] sm:$0xff] %v537
                %v539 = vld [vmem:[%s247 + $0x1208] sm:$0xff]
                %540 = vst [vmem:[%s248 + $0x488] sm:$0xff] %v539
                %v541 = vld [vmem:[%s247 + $0x1210] sm:$0xff]
                %542 = vst [vmem:[%s248 + $0x490] sm:$0xff] %v541
                %v543 = vld [vmem:[%s247 + $0x1218] sm:$0xff]
                %544 = vst [vmem:[%s248 + $0x498] sm:$0xff] %v543
                %v545 = vld [vmem:[%s247 + $0x1220] sm:$0xff]
                %546 = vst [vmem:[%s248 + $0x4a0] sm:$0xff] %v545
                %v547 = vld [vmem:[%s247 + $0x1228] sm:$0xff]
                %548 = vst [vmem:[%s248 + $0x4a8] sm:$0xff] %v547
                %v549 = vld [vmem:[%s247 + $0x1230] sm:$0xff]
                %550 = vst [vmem:[%s248 + $0x4b0] sm:$0xff] %v549
                %v551 = vld [vmem:[%s247 + $0x1238] sm:$0xff]
                %552 = vst [vmem:[%s248 + $0x4b8] sm:$0xff] %v551
                %v553 = vld [vmem:[%s247 + $0x1300] sm:$0xff]
                %554 = vst [vmem:[%s248 + $0x4c0] sm:$0xff] %v553
                %v555 = vld [vmem:[%s247 + $0x1308] sm:$0xff]
                %556 = vst [vmem:[%s248 + $0x4c8] sm:$0xff] %v555
                %v557 = vld [vmem:[%s247 + $0x1310] sm:$0xff]
                %558 = vst [vmem:[%s248 + $0x4d0] sm:$0xff] %v557
                %v559 = vld [vmem:[%s247 + $0x1318] sm:$0xff]
                %560 = vst [vmem:[%s248 + $0x4d8] sm:$0xff] %v559
                %v561 = vld [vmem:[%s247 + $0x1320] sm:$0xff]
                %562 = vst [vmem:[%s248 + $0x4e0] sm:$0xff] %v561
                %v563 = vld [vmem:[%s247 + $0x1328] sm:$0xff]
                %564 = vst [vmem:[%s248 + $0x4e8] sm:$0xff] %v563
                %v565 = vld [vmem:[%s247 + $0x1330] sm:$0xff]
                %566 = vst [vmem:[%s248 + $0x4f0] sm:$0xff] %v565
                %v567 = vld [vmem:[%s247 + $0x1338] sm:$0xff]
                %568 = vst [vmem:[%s248 + $0x4f8] sm:$0xff] %v567
                %v569 = vld [vmem:[%s247 + $0x1400] sm:$0xff]
                %570 = vst [vmem:[%s248 + $0x500] sm:$0xff] %v569
                %v571 = vld [vmem:[%s247 + $0x1408] sm:$0xff]
                %572 = vst [vmem:[%s248 + $0x508] sm:$0xff] %v571
                %v573 = vld [vmem:[%s247 + $0x1410] sm:$0xff]
                %574 = vst [vmem:[%s248 + $0x510] sm:$0xff] %v573
                %v575 = vld [vmem:[%s247 + $0x1418] sm:$0xff]
                %576 = vst [vmem:[%s248 + $0x518] sm:$0xff] %v575
                %v577 = vld [vmem:[%s247 + $0x1420] sm:$0xff]
                %578 = vst [vmem:[%s248 + $0x520] sm:$0xff] %v577
                %v579 = vld [vmem:[%s247 + $0x1428] sm:$0xff]
                %580 = vst [vmem:[%s248 + $0x528] sm:$0xff] %v579
                %v581 = vld [vmem:[%s247 + $0x1430] sm:$0xff]
                %582 = vst [vmem:[%s248 + $0x530] sm:$0xff] %v581
                %v583 = vld [vmem:[%s247 + $0x1438] sm:$0xff]
                %584 = vst [vmem:[%s248 + $0x538] sm:$0xff] %v583
                %v585 = vld [vmem:[%s247 + $0x1500] sm:$0xff]
                %586 = vst [vmem:[%s248 + $0x540] sm:$0xff] %v585
                %v587 = vld [vmem:[%s247 + $0x1508] sm:$0xff]
                %588 = vst [vmem:[%s248 + $0x548] sm:$0xff] %v587
                %v589 = vld [vmem:[%s247 + $0x1510] sm:$0xff]
                %590 = vst [vmem:[%s248 + $0x550] sm:$0xff] %v589
                %v591 = vld [vmem:[%s247 + $0x1518] sm:$0xff]
                %592 = vst [vmem:[%s248 + $0x558] sm:$0xff] %v591
                %v593 = vld [vmem:[%s247 + $0x1520] sm:$0xff]
                %594 = vst [vmem:[%s248 + $0x560] sm:$0xff] %v593
                %v595 = vld [vmem:[%s247 + $0x1528] sm:$0xff]
                %596 = vst [vmem:[%s248 + $0x568] sm:$0xff] %v595
                %v597 = vld [vmem:[%s247 + $0x1530] sm:$0xff]
                %598 = vst [vmem:[%s248 + $0x570] sm:$0xff] %v597
                %v599 = vld [vmem:[%s247 + $0x1538] sm:$0xff]
                %600 = vst [vmem:[%s248 + $0x578] sm:$0xff] %v599
                %v601 = vld [vmem:[%s247 + $0x1600] sm:$0xff]
                %602 = vst [vmem:[%s248 + $0x580] sm:$0xff] %v601
                %v603 = vld [vmem:[%s247 + $0x1608] sm:$0xff]
                %604 = vst [vmem:[%s248 + $0x588] sm:$0xff] %v603
                %v605 = vld [vmem:[%s247 + $0x1610] sm:$0xff]
                %606 = vst [vmem:[%s248 + $0x590] sm:$0xff] %v605
                %v607 = vld [vmem:[%s247 + $0x1618] sm:$0xff]
                %608 = vst [vmem:[%s248 + $0x598] sm:$0xff] %v607
                %v609 = vld [vmem:[%s247 + $0x1620] sm:$0xff]
                %610 = vst [vmem:[%s248 + $0x5a0] sm:$0xff] %v609
                %v611 = vld [vmem:[%s247 + $0x1628] sm:$0xff]
                %612 = vst [vmem:[%s248 + $0x5a8] sm:$0xff] %v611
                %v613 = vld [vmem:[%s247 + $0x1630] sm:$0xff]
                %614 = vst [vmem:[%s248 + $0x5b0] sm:$0xff] %v613
                %v615 = vld [vmem:[%s247 + $0x1638] sm:$0xff]
                %616 = vst [vmem:[%s248 + $0x5b8] sm:$0xff] %v615
                %v617 = vld [vmem:[%s247 + $0x1700] sm:$0xff]
                %618 = vst [vmem:[%s248 + $0x5c0] sm:$0xff] %v617
                %v619 = vld [vmem:[%s247 + $0x1708] sm:$0xff]
                %620 = vst [vmem:[%s248 + $0x5c8] sm:$0xff] %v619
                %v621 = vld [vmem:[%s247 + $0x1710] sm:$0xff]
                %622 = vst [vmem:[%s248 + $0x5d0] sm:$0xff] %v621
                %v623 = vld [vmem:[%s247 + $0x1718] sm:$0xff]
                %624 = vst [vmem:[%s248 + $0x5d8] sm:$0xff] %v623
                %v625 = vld [vmem:[%s247 + $0x1720] sm:$0xff]
                %626 = vst [vmem:[%s248 + $0x5e0] sm:$0xff] %v625
                %v627 = vld [vmem:[%s247 + $0x1728] sm:$0xff]
                %628 = vst [vmem:[%s248 + $0x5e8] sm:$0xff] %v627
                %v629 = vld [vmem:[%s247 + $0x1730] sm:$0xff]
                %630 = vst [vmem:[%s248 + $0x5f0] sm:$0xff] %v629
                %v631 = vld [vmem:[%s247 + $0x1738] sm:$0xff]
                %632 = vst [vmem:[%s248 + $0x5f8] sm:$0xff] %v631
                %v633 = vld [vmem:[%s247 + $0x1800] sm:$0xff]
                %634 = vst [vmem:[%s248 + $0x600] sm:$0xff] %v633
                %v635 = vld [vmem:[%s247 + $0x1808] sm:$0xff]
                %636 = vst [vmem:[%s248 + $0x608] sm:$0xff] %v635
                %v637 = vld [vmem:[%s247 + $0x1810] sm:$0xff]
                %638 = vst [vmem:[%s248 + $0x610] sm:$0xff] %v637
                %v639 = vld [vmem:[%s247 + $0x1818] sm:$0xff]
                %640 = vst [vmem:[%s248 + $0x618] sm:$0xff] %v639
                %v641 = vld [vmem:[%s247 + $0x1820] sm:$0xff]
                %642 = vst [vmem:[%s248 + $0x620] sm:$0xff] %v641
                %v643 = vld [vmem:[%s247 + $0x1828] sm:$0xff]
                %644 = vst [vmem:[%s248 + $0x628] sm:$0xff] %v643
                %v645 = vld [vmem:[%s247 + $0x1830] sm:$0xff]
                %646 = vst [vmem:[%s248 + $0x630] sm:$0xff] %v645
                %v647 = vld [vmem:[%s247 + $0x1838] sm:$0xff]
                %648 = vst [vmem:[%s248 + $0x638] sm:$0xff] %v647
                %v649 = vld [vmem:[%s247 + $0x1900] sm:$0xff]
                %650 = vst [vmem:[%s248 + $0x640] sm:$0xff] %v649
                %v651 = vld [vmem:[%s247 + $0x1908] sm:$0xff]
                %652 = vst [vmem:[%s248 + $0x648] sm:$0xff] %v651
                %v653 = vld [vmem:[%s247 + $0x1910] sm:$0xff]
                %654 = vst [vmem:[%s248 + $0x650] sm:$0xff] %v653
                %v655 = vld [vmem:[%s247 + $0x1918] sm:$0xff]
                %656 = vst [vmem:[%s248 + $0x658] sm:$0xff] %v655
                %v657 = vld [vmem:[%s247 + $0x1920] sm:$0xff]
                %658 = vst [vmem:[%s248 + $0x660] sm:$0xff] %v657
                %v659 = vld [vmem:[%s247 + $0x1928] sm:$0xff]
                %660 = vst [vmem:[%s248 + $0x668] sm:$0xff] %v659
                %v661 = vld [vmem:[%s247 + $0x1930] sm:$0xff]
                %662 = vst [vmem:[%s248 + $0x670] sm:$0xff] %v661
                %v663 = vld [vmem:[%s247 + $0x1938] sm:$0xff]
                %664 = vst [vmem:[%s248 + $0x678] sm:$0xff] %v663
                %v665 = vld [vmem:[%s247 + $0x1a00] sm:$0xff]
                %666 = vst [vmem:[%s248 + $0x680] sm:$0xff] %v665
                %v667 = vld [vmem:[%s247 + $0x1a08] sm:$0xff]
                %668 = vst [vmem:[%s248 + $0x688] sm:$0xff] %v667
                %v669 = vld [vmem:[%s247 + $0x1a10] sm:$0xff]
                %670 = vst [vmem:[%s248 + $0x690] sm:$0xff] %v669
                %v671 = vld [vmem:[%s247 + $0x1a18] sm:$0xff]
                %672 = vst [vmem:[%s248 + $0x698] sm:$0xff] %v671
                %v673 = vld [vmem:[%s247 + $0x1a20] sm:$0xff]
                %674 = vst [vmem:[%s248 + $0x6a0] sm:$0xff] %v673
                %v675 = vld [vmem:[%s247 + $0x1a28] sm:$0xff]
                %676 = vst [vmem:[%s248 + $0x6a8] sm:$0xff] %v675
                %v677 = vld [vmem:[%s247 + $0x1a30] sm:$0xff]
                %678 = vst [vmem:[%s248 + $0x6b0] sm:$0xff] %v677
                %v679 = vld [vmem:[%s247 + $0x1a38] sm:$0xff]
                %680 = vst [vmem:[%s248 + $0x6b8] sm:$0xff] %v679
                %v681 = vld [vmem:[%s247 + $0x1b00] sm:$0xff]
                %682 = vst [vmem:[%s248 + $0x6c0] sm:$0xff] %v681
                %v683 = vld [vmem:[%s247 + $0x1b08] sm:$0xff]
                %684 = vst [vmem:[%s248 + $0x6c8] sm:$0xff] %v683
                %v685 = vld [vmem:[%s247 + $0x1b10] sm:$0xff]
                %686 = vst [vmem:[%s248 + $0x6d0] sm:$0xff] %v685
                %v687 = vld [vmem:[%s247 + $0x1b18] sm:$0xff]
                %688 = vst [vmem:[%s248 + $0x6d8] sm:$0xff] %v687
                %v689 = vld [vmem:[%s247 + $0x1b20] sm:$0xff]
                %690 = vst [vmem:[%s248 + $0x6e0] sm:$0xff] %v689
                %v691 = vld [vmem:[%s247 + $0x1b28] sm:$0xff]
                %692 = vst [vmem:[%s248 + $0x6e8] sm:$0xff] %v691
                %v693 = vld [vmem:[%s247 + $0x1b30] sm:$0xff]
                %694 = vst [vmem:[%s248 + $0x6f0] sm:$0xff] %v693
                %v695 = vld [vmem:[%s247 + $0x1b38] sm:$0xff]
                %696 = vst [vmem:[%s248 + $0x6f8] sm:$0xff] %v695
                %v697 = vld [vmem:[%s247 + $0x1c00] sm:$0xff]
                %698 = vst [vmem:[%s248 + $0x700] sm:$0xff] %v697
                %v699 = vld [vmem:[%s247 + $0x1c08] sm:$0xff]
                %700 = vst [vmem:[%s248 + $0x708] sm:$0xff] %v699
                %v701 = vld [vmem:[%s247 + $0x1c10] sm:$0xff]
                %702 = vst [vmem:[%s248 + $0x710] sm:$0xff] %v701
                %v703 = vld [vmem:[%s247 + $0x1c18] sm:$0xff]
                %704 = vst [vmem:[%s248 + $0x718] sm:$0xff] %v703
                %v705 = vld [vmem:[%s247 + $0x1c20] sm:$0xff]
                %706 = vst [vmem:[%s248 + $0x720] sm:$0xff] %v705
                %v707 = vld [vmem:[%s247 + $0x1c28] sm:$0xff]
                %708 = vst [vmem:[%s248 + $0x728] sm:$0xff] %v707
                %v709 = vld [vmem:[%s247 + $0x1c30] sm:$0xff]
                %710 = vst [vmem:[%s248 + $0x730] sm:$0xff] %v709
                %v711 = vld [vmem:[%s247 + $0x1c38] sm:$0xff]
                %712 = vst [vmem:[%s248 + $0x738] sm:$0xff] %v711
                %v713 = vld [vmem:[%s247 + $0x1d00] sm:$0xff]
                %714 = vst [vmem:[%s248 + $0x740] sm:$0xff] %v713
                %v715 = vld [vmem:[%s247 + $0x1d08] sm:$0xff]
                %716 = vst [vmem:[%s248 + $0x748] sm:$0xff] %v715
                %v717 = vld [vmem:[%s247 + $0x1d10] sm:$0xff]
                %718 = vst [vmem:[%s248 + $0x750] sm:$0xff] %v717
                %v719 = vld [vmem:[%s247 + $0x1d18] sm:$0xff]
                %720 = vst [vmem:[%s248 + $0x758] sm:$0xff] %v719
                %v721 = vld [vmem:[%s247 + $0x1d20] sm:$0xff]
                %722 = vst [vmem:[%s248 + $0x760] sm:$0xff] %v721
                %v723 = vld [vmem:[%s247 + $0x1d28] sm:$0xff]
                %724 = vst [vmem:[%s248 + $0x768] sm:$0xff] %v723
                %v725 = vld [vmem:[%s247 + $0x1d30] sm:$0xff]
                %726 = vst [vmem:[%s248 + $0x770] sm:$0xff] %v725
                %v727 = vld [vmem:[%s247 + $0x1d38] sm:$0xff]
                %728 = vst [vmem:[%s248 + $0x778] sm:$0xff] %v727
                %v729 = vld [vmem:[%s247 + $0x1e00] sm:$0xff]
                %730 = vst [vmem:[%s248 + $0x780] sm:$0xff] %v729
                %v731 = vld [vmem:[%s247 + $0x1e08] sm:$0xff]
                %732 = vst [vmem:[%s248 + $0x788] sm:$0xff] %v731
                %v733 = vld [vmem:[%s247 + $0x1e10] sm:$0xff]
                %734 = vst [vmem:[%s248 + $0x790] sm:$0xff] %v733
                %v735 = vld [vmem:[%s247 + $0x1e18] sm:$0xff]
                %736 = vst [vmem:[%s248 + $0x798] sm:$0xff] %v735
                %v737 = vld [vmem:[%s247 + $0x1e20] sm:$0xff]
                %738 = vst [vmem:[%s248 + $0x7a0] sm:$0xff] %v737
                %v739 = vld [vmem:[%s247 + $0x1e28] sm:$0xff]
                %740 = vst [vmem:[%s248 + $0x7a8] sm:$0xff] %v739
                %v741 = vld [vmem:[%s247 + $0x1e30] sm:$0xff]
                %742 = vst [vmem:[%s248 + $0x7b0] sm:$0xff] %v741
                %v743 = vld [vmem:[%s247 + $0x1e38] sm:$0xff]
                %744 = vst [vmem:[%s248 + $0x7b8] sm:$0xff] %v743
                %v745 = vld [vmem:[%s247 + $0x1f00] sm:$0xff]
                %746 = vst [vmem:[%s248 + $0x7c0] sm:$0xff] %v745
                %v747 = vld [vmem:[%s247 + $0x1f08] sm:$0xff]
                %748 = vst [vmem:[%s248 + $0x7c8] sm:$0xff] %v747
                %v749 = vld [vmem:[%s247 + $0x1f10] sm:$0xff]
                %750 = vst [vmem:[%s248 + $0x7d0] sm:$0xff] %v749
                %v751 = vld [vmem:[%s247 + $0x1f18] sm:$0xff]
                %752 = vst [vmem:[%s248 + $0x7d8] sm:$0xff] %v751
                %v753 = vld [vmem:[%s247 + $0x1f20] sm:$0xff]
                %754 = vst [vmem:[%s248 + $0x7e0] sm:$0xff] %v753
                %v755 = vld [vmem:[%s247 + $0x1f28] sm:$0xff]
                %756 = vst [vmem:[%s248 + $0x7e8] sm:$0xff] %v755
                %v757 = vld [vmem:[%s247 + $0x1f30] sm:$0xff]
                %758 = vst [vmem:[%s248 + $0x7f0] sm:$0xff] %v757
                %v759 = vld [vmem:[%s247 + $0x1f38] sm:$0xff]
                %760 = vst [vmem:[%s248 + $0x7f8] sm:$0xff] %v759
              $region49: #{simple_encoder3d_forward.3} parent=43 // loop_footer
                %s246 = sadd.s32 1, %s242
              $region50: #{simple_encoder3d_forward.3} parent=43 // loop_footer_branch
                %241 = sbr.rel target = $region46
              $region51: #{simple_encoder3d_forward.3} parent=43 // loop_exit
                _
            $region44: #{simple_encoder3d_forward.3} parent=39 // pred_fallthru
              _
            // Predicated region
            $region52: #{simple_encoder3d_forward.3} parent=39 // pred_check
              _
            $region53: #{simple_encoder3d_forward.3} parent=39 // pred_check_branch
              %762 = sbr.rel target = $region55
            $region54: #{simple_encoder3d_forward.3} parent=39 // pred_region
              _
            $region55: #{simple_encoder3d_forward.3} parent=39 // pred_fallthru
              _
          $region40: #{simple_encoder3d_forward.3} parent=35 // pred_fallthru
            _
          %763 = vnop
        $region36: #{simple_encoder3d_forward.3} parent=31 // pred_fallthru
          _
      $region32: #{simple_encoder3d_forward.3} parent=5 // pred_fallthru
        _
      %p764 = scmp.le.s32.totalorder 1, %s11
      %p765 = scmp.lt.s32.totalorder %s11, 5
      %p766 = pnand %p764, %p765
      %p767 = pneg %p766
      // Predicated region
      $region56: #{simple_encoder3d_forward.3} parent=5 // pred_check
        _
      $region57: #{simple_encoder3d_forward.3} parent=5 // pred_check_branch
        %769 = sbr.rel (%p766) target = $region59
      $region58: #{simple_encoder3d_forward.3} parent=5 // pred_region
        %s770 = ssub.s32 %s11, 1
        %s771 = sand.u32 %s36, 1
        %s772 = sand.u32 %s36, 1
        %s773 = smul.addr %s772, 2048
        %s774 = scalar_lea.vmem [#allocation5], %s773
        // Predicated region
        $region60: #{simple_encoder3d_forward.3} parent=58 // pred_check
          %p775 = pneg %p49
        $region61: #{simple_encoder3d_forward.3} parent=58 // pred_check_branch
          %777 = sbr.rel (%p775) target = $region63
        $region62: #{simple_encoder3d_forward.3} parent=58 // pred_region
          _
        $region63: #{simple_encoder3d_forward.3} parent=58 // pred_fallthru
          _
        %s778 = sand.u32 %s36, 1
        %s779 = sand.u32 %s36, 1
        %s780 = smul.addr %s779, 2048
        %s781 = scalar_lea.vmem [#allocation5], %s780
        %p782 = pneg %p49
        %p783 = pneg %p46
        %p784 = scmp.lt.s32.totalorder %s20, 0
        %s785 = scalar_select %p784, %s20, 0
        %s786 = smul.addr %s785, 2
        %s787 = smul.addr %s786, 4
        %s788 = scalar_lea.vmem %s1, %s787
        %p789 = pneg %p75
        %p790 = pneg %p72
        %p791 = scmp.lt.s32.totalorder %s20, 0
        %s792 = scalar_select %p791, %s20, 0
        %s793 = smul.addr %s792, 8
        %s794 = scalar_lea.vmem %s2, %s793
        %p795 = pneg %p101
        %p796 = pneg %p98
        %p797 = scmp.lt.s32.totalorder %s20, 0
        %s798 = scalar_select %p797, %s20, 0
        %s799 = smul.addr %s798, 8
        %s800 = scalar_lea.vmem %s3, %s799
        %p801 = pneg %p127
        %p802 = pneg %p124
        %p803 = scmp.lt.s32.totalorder %s20, 0
        %s804 = scalar_select %p803, %s20, 0
        %s805 = smul.addr %s804, 8
        %s806 = scalar_lea.vmem %s4, %s805
        %p807 = pneg %p153
        %p808 = pneg %p150
        %p809 = pneg %p179
        %p810 = pneg %p176
        %p811 = scmp.lt.s32.totalorder %s20, 0
        %s812 = scalar_select %p811, %s20, 0
        %s813 = smul.addr %s812, 64
        %s814 = smul.addr %s813, 4
        %s815 = scalar_lea.vmem %s5, %s814
        %s816 = smul.u32 16, %s21
        %p817 = scmp.lt.s32.totalorder %s20, 0
        %s818 = scalar_select %p817, %s20, 0
        %s819 = smul.addr %s818, 2
        %s820 = smul.addr %s819, 4
        %s821 = scalar_lea.vmem %s1, %s820
        %p822 = scmp.lt.s32.totalorder %s20, 0
        %s823 = scalar_select %p822, %s20, 0
        %s824 = smul.addr %s823, 8
        %s825 = scalar_lea.vmem %s2, %s824
        %p826 = scmp.lt.s32.totalorder %s20, 0
        %s827 = scalar_select %p826, %s20, 0
        %s828 = smul.addr %s827, 8
        %s829 = scalar_lea.vmem %s3, %s828
        %p830 = scmp.lt.s32.totalorder %s20, 0
        %s831 = scalar_select %p830, %s20, 0
        %s832 = smul.addr %s831, 8
        %s833 = scalar_lea.vmem %s4, %s832
        %p834 = scmp.lt.s32.totalorder %s20, 0
        %s835 = scalar_select %p834, %s20, 0
        %s836 = smul.addr %s835, 64
        %s837 = smul.addr %s836, 4
        %s838 = scalar_lea.vmem %s5, %s837
        %p839 = scmp.eq.s32.totalorder %s21, 0
        // Predicated region
        $region64: #{simple_encoder3d_forward.3} parent=58 // pred_check
          %p840 = pneg %p839
        $region65: #{simple_encoder3d_forward.3} parent=58 // pred_check_branch
          %842 = sbr.rel (%p840) target = $region67
        $region66: #{simple_encoder3d_forward.3} parent=58 // pred_region
          %vm843 = vcmask 7168
          %844 = vst.msk [vmem:[#allocation3] sm:$0xff] %vm843, 0.0
          %845 = vst.msk [vmem:[#allocation4] sm:$0xff] %vm843, 0.0
        $region67: #{simple_encoder3d_forward.3} parent=58 // pred_fallthru
          _
        %v846 = vld [vmem:[%s821] sm:$0xff]
        %v847 = vld [vmem:[%s774] sm:$0xff]
        %v848 = vld [vmem:[%s774 + $0x8] sm:$0xff]
        %v849 = vld [vmem:[%s774 + $0x10] sm:$0xff]
        %v850 = vld [vmem:[%s774 + $0x18] sm:$0xff]
        %v851 = vld [vmem:[%s774 + $0x20] sm:$0xff]
        %v852 = vld [vmem:[%s774 + $0x28] sm:$0xff]
        %v853 = vld [vmem:[%s774 + $0x30] sm:$0xff]
        %v854 = vld [vmem:[%s774 + $0x38] sm:$0xff]
        %v855 = vld [vmem:[%s774 + $0x40] sm:$0xff]
        %v856 = vld [vmem:[%s774 + $0x48] sm:$0xff]
        %v857 = vld [vmem:[%s774 + $0x50] sm:$0xff]
        %v858 = vld [vmem:[%s774 + $0x58] sm:$0xff]
        %v859 = vld [vmem:[%s774 + $0x60] sm:$0xff]
        %v860 = vld [vmem:[%s774 + $0x68] sm:$0xff]
        %v861 = vld [vmem:[%s774 + $0x70] sm:$0xff]
        %v862 = vld [vmem:[%s774 + $0x78] sm:$0xff]
        %v863 = vld [vmem:[%s774 + $0x80] sm:$0xff]
        %v864 = vld [vmem:[%s774 + $0x88] sm:$0xff]
        %v865 = vld [vmem:[%s774 + $0x90] sm:$0xff]
        %v866 = vld [vmem:[%s774 + $0x98] sm:$0xff]
        %v867 = vld [vmem:[%s774 + $0xa0] sm:$0xff]
        %v868 = vld [vmem:[%s774 + $0xa8] sm:$0xff]
        %v869 = vld [vmem:[%s774 + $0xb0] sm:$0xff]
        %v870 = vld [vmem:[%s774 + $0xb8] sm:$0xff]
        %v871 = vld [vmem:[%s774 + $0xc0] sm:$0xff]
        %v872 = vld [vmem:[%s774 + $0xc8] sm:$0xff]
        %v873 = vld [vmem:[%s774 + $0xd0] sm:$0xff]
        %v874 = vld [vmem:[%s774 + $0xd8] sm:$0xff]
        %v875 = vld [vmem:[%s774 + $0xe0] sm:$0xff]
        %v876 = vld [vmem:[%s774 + $0xe8] sm:$0xff]
        %v877 = vld [vmem:[%s774 + $0xf0] sm:$0xff]
        %v878 = vld [vmem:[%s774 + $0xf8] sm:$0xff]
        %v879 = vld [vmem:[%s774 + $0x100] sm:$0xff]
        %v880 = vld [vmem:[%s774 + $0x108] sm:$0xff]
        %v881 = vld [vmem:[%s774 + $0x110] sm:$0xff]
        %v882 = vld [vmem:[%s774 + $0x118] sm:$0xff]
        %v883 = vld [vmem:[%s774 + $0x120] sm:$0xff]
        %v884 = vld [vmem:[%s774 + $0x128] sm:$0xff]
        %v885 = vld [vmem:[%s774 + $0x130] sm:$0xff]
        %v886 = vld [vmem:[%s774 + $0x138] sm:$0xff]
        %v887 = vld [vmem:[%s774 + $0x140] sm:$0xff]
        %v888 = vld [vmem:[%s774 + $0x148] sm:$0xff]
        %v889 = vld [vmem:[%s774 + $0x150] sm:$0xff]
        %v890 = vld [vmem:[%s774 + $0x158] sm:$0xff]
        %v891 = vld [vmem:[%s774 + $0x160] sm:$0xff]
        %v892 = vld [vmem:[%s774 + $0x168] sm:$0xff]
        %v893 = vld [vmem:[%s774 + $0x170] sm:$0xff]
        %v894 = vld [vmem:[%s774 + $0x178] sm:$0xff]
        %v895 = vld [vmem:[%s774 + $0x180] sm:$0xff]
        %v896 = vld [vmem:[%s774 + $0x188] sm:$0xff]
        %v897 = vld [vmem:[%s774 + $0x190] sm:$0xff]
        %v898 = vld [vmem:[%s774 + $0x198] sm:$0xff]
        %v899 = vld [vmem:[%s774 + $0x1a0] sm:$0xff]
        %v900 = vld [vmem:[%s774 + $0x1a8] sm:$0xff]
        %v901 = vld [vmem:[%s774 + $0x1b0] sm:$0xff]
        %v902 = vld [vmem:[%s774 + $0x1b8] sm:$0xff]
        %v903 = vld [vmem:[%s774 + $0x1c0] sm:$0xff]
        %v904 = vld [vmem:[%s774 + $0x1c8] sm:$0xff]
        %v905 = vld [vmem:[%s774 + $0x1d0] sm:$0xff]
        %v906 = vld [vmem:[%s774 + $0x1d8] sm:$0xff]
        %v907 = vld [vmem:[%s774 + $0x1e0] sm:$0xff]
        %v908 = vld [vmem:[%s774 + $0x1e8] sm:$0xff]
        %v909 = vld [vmem:[%s774 + $0x1f0] sm:$0xff]
        %v910 = vld [vmem:[%s774 + $0x1f8] sm:$0xff]
        %v911 = vld [vmem:[%s774 + $0x200] sm:$0xff]
        %v912 = vld [vmem:[%s774 + $0x208] sm:$0xff]
        %v913 = vld [vmem:[%s774 + $0x210] sm:$0xff]
        %v914 = vld [vmem:[%s774 + $0x218] sm:$0xff]
        %v915 = vld [vmem:[%s774 + $0x220] sm:$0xff]
        %v916 = vld [vmem:[%s774 + $0x228] sm:$0xff]
        %v917 = vld [vmem:[%s774 + $0x230] sm:$0xff]
        %v918 = vld [vmem:[%s774 + $0x238] sm:$0xff]
        %v919 = vld [vmem:[%s774 + $0x240] sm:$0xff]
        %v920 = vld [vmem:[%s774 + $0x248] sm:$0xff]
        %v921 = vld [vmem:[%s774 + $0x250] sm:$0xff]
        %v922 = vld [vmem:[%s774 + $0x258] sm:$0xff]
        %v923 = vld [vmem:[%s774 + $0x260] sm:$0xff]
        %v924 = vld [vmem:[%s774 + $0x268] sm:$0xff]
        %v925 = vld [vmem:[%s774 + $0x270] sm:$0xff]
        %v926 = vld [vmem:[%s774 + $0x278] sm:$0xff]
        %v927 = vld [vmem:[%s774 + $0x280] sm:$0xff]
        %v928 = vld [vmem:[%s774 + $0x288] sm:$0xff]
        %v929 = vld [vmem:[%s774 + $0x290] sm:$0xff]
        %v930 = vld [vmem:[%s774 + $0x298] sm:$0xff]
        %v931 = vld [vmem:[%s774 + $0x2a0] sm:$0xff]
        %v932 = vld [vmem:[%s774 + $0x2a8] sm:$0xff]
        %v933 = vld [vmem:[%s774 + $0x2b0] sm:$0xff]
        %v934 = vld [vmem:[%s774 + $0x2b8] sm:$0xff]
        %v935 = vld [vmem:[%s774 + $0x2c0] sm:$0xff]
        %v936 = vld [vmem:[%s774 + $0x2c8] sm:$0xff]
        %v937 = vld [vmem:[%s774 + $0x2d0] sm:$0xff]
        %v938 = vld [vmem:[%s774 + $0x2d8] sm:$0xff]
        %v939 = vld [vmem:[%s774 + $0x2e0] sm:$0xff]
        %v940 = vld [vmem:[%s774 + $0x2e8] sm:$0xff]
        %v941 = vld [vmem:[%s774 + $0x2f0] sm:$0xff]
        %v942 = vld [vmem:[%s774 + $0x2f8] sm:$0xff]
        %v943 = vld [vmem:[%s774 + $0x300] sm:$0xff]
        %v944 = vld [vmem:[%s774 + $0x308] sm:$0xff]
        %v945 = vld [vmem:[%s774 + $0x310] sm:$0xff]
        %v946 = vld [vmem:[%s774 + $0x318] sm:$0xff]
        %v947 = vld [vmem:[%s774 + $0x320] sm:$0xff]
        %v948 = vld [vmem:[%s774 + $0x328] sm:$0xff]
        %v949 = vld [vmem:[%s774 + $0x330] sm:$0xff]
        %v950 = vld [vmem:[%s774 + $0x338] sm:$0xff]
        %v951 = vld [vmem:[%s774 + $0x340] sm:$0xff]
        %v952 = vld [vmem:[%s774 + $0x348] sm:$0xff]
        %v953 = vld [vmem:[%s774 + $0x350] sm:$0xff]
        %v954 = vld [vmem:[%s774 + $0x358] sm:$0xff]
        %v955 = vld [vmem:[%s774 + $0x360] sm:$0xff]
        %v956 = vld [vmem:[%s774 + $0x368] sm:$0xff]
        %v957 = vld [vmem:[%s774 + $0x370] sm:$0xff]
        %v958 = vld [vmem:[%s774 + $0x378] sm:$0xff]
        %v959 = vld [vmem:[%s774 + $0x380] sm:$0xff]
        %v960 = vld [vmem:[%s774 + $0x388] sm:$0xff]
        %v961 = vld [vmem:[%s774 + $0x390] sm:$0xff]
        %v962 = vld [vmem:[%s774 + $0x398] sm:$0xff]
        %v963 = vld [vmem:[%s774 + $0x3a0] sm:$0xff]
        %v964 = vld [vmem:[%s774 + $0x3a8] sm:$0xff]
        %v965 = vld [vmem:[%s774 + $0x3b0] sm:$0xff]
        %v966 = vld [vmem:[%s774 + $0x3b8] sm:$0xff]
        %v967 = vld [vmem:[%s774 + $0x3c0] sm:$0xff]
        %v968 = vld [vmem:[%s774 + $0x3c8] sm:$0xff]
        %v969 = vld [vmem:[%s774 + $0x3d0] sm:$0xff]
        %v970 = vld [vmem:[%s774 + $0x3d8] sm:$0xff]
        %v971 = vld [vmem:[%s774 + $0x3e0] sm:$0xff]
        %v972 = vld [vmem:[%s774 + $0x3e8] sm:$0xff]
        %v973 = vld [vmem:[%s774 + $0x3f0] sm:$0xff]
        %v974 = vld [vmem:[%s774 + $0x3f8] sm:$0xff]
        %v975 = vld [vmem:[%s774 + $0x400] sm:$0xff]
        %v976 = vld [vmem:[%s774 + $0x408] sm:$0xff]
        %v977 = vld [vmem:[%s774 + $0x410] sm:$0xff]
        %v978 = vld [vmem:[%s774 + $0x418] sm:$0xff]
        %v979 = vld [vmem:[%s774 + $0x420] sm:$0xff]
        %v980 = vld [vmem:[%s774 + $0x428] sm:$0xff]
        %v981 = vld [vmem:[%s774 + $0x430] sm:$0xff]
        %v982 = vld [vmem:[%s774 + $0x438] sm:$0xff]
        %v983 = vld [vmem:[%s774 + $0x440] sm:$0xff]
        %v984 = vld [vmem:[%s774 + $0x448] sm:$0xff]
        %v985 = vld [vmem:[%s774 + $0x450] sm:$0xff]
        %v986 = vld [vmem:[%s774 + $0x458] sm:$0xff]
        %v987 = vld [vmem:[%s774 + $0x460] sm:$0xff]
        %v988 = vld [vmem:[%s774 + $0x468] sm:$0xff]
        %v989 = vld [vmem:[%s774 + $0x470] sm:$0xff]
        %v990 = vld [vmem:[%s774 + $0x478] sm:$0xff]
        %v991 = vld [vmem:[%s774 + $0x480] sm:$0xff]
        %v992 = vld [vmem:[%s774 + $0x488] sm:$0xff]
        %v993 = vld [vmem:[%s774 + $0x490] sm:$0xff]
        %v994 = vld [vmem:[%s774 + $0x498] sm:$0xff]
        %v995 = vld [vmem:[%s774 + $0x4a0] sm:$0xff]
        %v996 = vld [vmem:[%s774 + $0x4a8] sm:$0xff]
        %v997 = vld [vmem:[%s774 + $0x4b0] sm:$0xff]
        %v998 = vld [vmem:[%s774 + $0x4b8] sm:$0xff]
        %v999 = vld [vmem:[%s774 + $0x4c0] sm:$0xff]
        %v1000 = vld [vmem:[%s774 + $0x4c8] sm:$0xff]
        %v1001 = vld [vmem:[%s774 + $0x4d0] sm:$0xff]
        %v1002 = vld [vmem:[%s774 + $0x4d8] sm:$0xff]
        %v1003 = vld [vmem:[%s774 + $0x4e0] sm:$0xff]
        %v1004 = vld [vmem:[%s774 + $0x4e8] sm:$0xff]
        %v1005 = vld [vmem:[%s774 + $0x4f0] sm:$0xff]
        %v1006 = vld [vmem:[%s774 + $0x4f8] sm:$0xff]
        %v1007 = vld [vmem:[%s774 + $0x500] sm:$0xff]
        %v1008 = vld [vmem:[%s774 + $0x508] sm:$0xff]
        %v1009 = vld [vmem:[%s774 + $0x510] sm:$0xff]
        %v1010 = vld [vmem:[%s774 + $0x518] sm:$0xff]
        %v1011 = vld [vmem:[%s774 + $0x520] sm:$0xff]
        %v1012 = vld [vmem:[%s774 + $0x528] sm:$0xff]
        %v1013 = vld [vmem:[%s774 + $0x530] sm:$0xff]
        %v1014 = vld [vmem:[%s774 + $0x538] sm:$0xff]
        %v1015 = vld [vmem:[%s774 + $0x540] sm:$0xff]
        %v1016 = vld [vmem:[%s774 + $0x548] sm:$0xff]
        %v1017 = vld [vmem:[%s774 + $0x550] sm:$0xff]
        %v1018 = vld [vmem:[%s774 + $0x558] sm:$0xff]
        %v1019 = vld [vmem:[%s774 + $0x560] sm:$0xff]
        %v1020 = vld [vmem:[%s774 + $0x568] sm:$0xff]
        %v1021 = vld [vmem:[%s774 + $0x570] sm:$0xff]
        %v1022 = vld [vmem:[%s774 + $0x578] sm:$0xff]
        %v1023 = vld [vmem:[%s774 + $0x580] sm:$0xff]
        %v1024 = vld [vmem:[%s774 + $0x588] sm:$0xff]
        %v1025 = vld [vmem:[%s774 + $0x590] sm:$0xff]
        %v1026 = vld [vmem:[%s774 + $0x598] sm:$0xff]
        %v1027 = vld [vmem:[%s774 + $0x5a0] sm:$0xff]
        %v1028 = vld [vmem:[%s774 + $0x5a8] sm:$0xff]
        %v1029 = vld [vmem:[%s774 + $0x5b0] sm:$0xff]
        %v1030 = vld [vmem:[%s774 + $0x5b8] sm:$0xff]
        %v1031 = vld [vmem:[%s774 + $0x5c0] sm:$0xff]
        %v1032 = vld [vmem:[%s774 + $0x5c8] sm:$0xff]
        %v1033 = vld [vmem:[%s774 + $0x5d0] sm:$0xff]
        %v1034 = vld [vmem:[%s774 + $0x5d8] sm:$0xff]
        %v1035 = vld [vmem:[%s774 + $0x5e0] sm:$0xff]
        %v1036 = vld [vmem:[%s774 + $0x5e8] sm:$0xff]
        %v1037 = vld [vmem:[%s774 + $0x5f0] sm:$0xff]
        %v1038 = vld [vmem:[%s774 + $0x5f8] sm:$0xff]
        %v1039 = vld [vmem:[%s774 + $0x600] sm:$0xff]
        %v1040 = vld [vmem:[%s774 + $0x608] sm:$0xff]
        %v1041 = vld [vmem:[%s774 + $0x610] sm:$0xff]
        %v1042 = vld [vmem:[%s774 + $0x618] sm:$0xff]
        %v1043 = vld [vmem:[%s774 + $0x620] sm:$0xff]
        %v1044 = vld [vmem:[%s774 + $0x628] sm:$0xff]
        %v1045 = vld [vmem:[%s774 + $0x630] sm:$0xff]
        %v1046 = vld [vmem:[%s774 + $0x638] sm:$0xff]
        %v1047 = vld [vmem:[%s774 + $0x640] sm:$0xff]
        %v1048 = vld [vmem:[%s774 + $0x648] sm:$0xff]
        %v1049 = vld [vmem:[%s774 + $0x650] sm:$0xff]
        %v1050 = vld [vmem:[%s774 + $0x658] sm:$0xff]
        %v1051 = vld [vmem:[%s774 + $0x660] sm:$0xff]
        %v1052 = vld [vmem:[%s774 + $0x668] sm:$0xff]
        %v1053 = vld [vmem:[%s774 + $0x670] sm:$0xff]
        %v1054 = vld [vmem:[%s774 + $0x678] sm:$0xff]
        %v1055 = vld [vmem:[%s774 + $0x680] sm:$0xff]
        %v1056 = vld [vmem:[%s774 + $0x688] sm:$0xff]
        %v1057 = vld [vmem:[%s774 + $0x690] sm:$0xff]
        %v1058 = vld [vmem:[%s774 + $0x698] sm:$0xff]
        %v1059 = vld [vmem:[%s774 + $0x6a0] sm:$0xff]
        %v1060 = vld [vmem:[%s774 + $0x6a8] sm:$0xff]
        %v1061 = vld [vmem:[%s774 + $0x6b0] sm:$0xff]
        %v1062 = vld [vmem:[%s774 + $0x6b8] sm:$0xff]
        %v1063 = vld [vmem:[%s774 + $0x6c0] sm:$0xff]
        %v1064 = vld [vmem:[%s774 + $0x6c8] sm:$0xff]
        %v1065 = vld [vmem:[%s774 + $0x6d0] sm:$0xff]
        %v1066 = vld [vmem:[%s774 + $0x6d8] sm:$0xff]
        %v1067 = vld [vmem:[%s774 + $0x6e0] sm:$0xff]
        %v1068 = vld [vmem:[%s774 + $0x6e8] sm:$0xff]
        %v1069 = vld [vmem:[%s774 + $0x6f0] sm:$0xff]
        %v1070 = vld [vmem:[%s774 + $0x6f8] sm:$0xff]
        %v1071 = vld [vmem:[%s774 + $0x700] sm:$0xff]
        %v1072 = vld [vmem:[%s774 + $0x708] sm:$0xff]
        %v1073 = vld [vmem:[%s774 + $0x710] sm:$0xff]
        %v1074 = vld [vmem:[%s774 + $0x718] sm:$0xff]
        %v1075 = vld [vmem:[%s774 + $0x720] sm:$0xff]
        %v1076 = vld [vmem:[%s774 + $0x728] sm:$0xff]
        %v1077 = vld [vmem:[%s774 + $0x730] sm:$0xff]
        %v1078 = vld [vmem:[%s774 + $0x738] sm:$0xff]
        %v1079 = vld [vmem:[%s774 + $0x740] sm:$0xff]
        %v1080 = vld [vmem:[%s774 + $0x748] sm:$0xff]
        %v1081 = vld [vmem:[%s774 + $0x750] sm:$0xff]
        %v1082 = vld [vmem:[%s774 + $0x758] sm:$0xff]
        %v1083 = vld [vmem:[%s774 + $0x760] sm:$0xff]
        %v1084 = vld [vmem:[%s774 + $0x768] sm:$0xff]
        %v1085 = vld [vmem:[%s774 + $0x770] sm:$0xff]
        %v1086 = vld [vmem:[%s774 + $0x778] sm:$0xff]
        %v1087 = vld [vmem:[%s774 + $0x780] sm:$0xff]
        %v1088 = vld [vmem:[%s774 + $0x788] sm:$0xff]
        %v1089 = vld [vmem:[%s774 + $0x790] sm:$0xff]
        %v1090 = vld [vmem:[%s774 + $0x798] sm:$0xff]
        %v1091 = vld [vmem:[%s774 + $0x7a0] sm:$0xff]
        %v1092 = vld [vmem:[%s774 + $0x7a8] sm:$0xff]
        %v1093 = vld [vmem:[%s774 + $0x7b0] sm:$0xff]
        %v1094 = vld [vmem:[%s774 + $0x7b8] sm:$0xff]
        %v1095 = vld [vmem:[%s774 + $0x7c0] sm:$0xff]
        %v1096 = vld [vmem:[%s774 + $0x7c8] sm:$0xff]
        %v1097 = vld [vmem:[%s774 + $0x7d0] sm:$0xff]
        %v1098 = vld [vmem:[%s774 + $0x7d8] sm:$0xff]
        %v1099 = vld [vmem:[%s774 + $0x7e0] sm:$0xff]
        %v1100 = vld [vmem:[%s774 + $0x7e8] sm:$0xff]
        %v1101 = vld [vmem:[%s774 + $0x7f0] sm:$0xff]
        %v1102 = vld [vmem:[%s774 + $0x7f8] sm:$0xff]
        %v1103 = vld [vmem:[%s825] sm:$0xff]
        %1105 = vset.pattern.permute.xlu0 0
        %1106 = vperm.xlu0 %1105, %v1103
        %v1107 = vpop.permute.xlu0 %1106
        %v1110 = vunpack.c.l.b16 %v846
        %v1111 = vunpack.c.h.b16 %v846
        %v1112 = vpack.c.b16 %v1110, %v1110
        %v1113 = vpack.c.b16 %v1111, %v1111
        %v1372 = vunpack.c.l.b16 %v847
        %v1373 = vunpack.c.h.b16 %v847
        %v1374 = vunpack.c.l.b16 %v848
        %v1375 = vunpack.c.h.b16 %v848
        %v1376 = vunpack.c.l.b16 %v849
        %v1377 = vunpack.c.h.b16 %v849
        %v1378 = vunpack.c.l.b16 %v850
        %v1379 = vunpack.c.h.b16 %v850
        %v1380 = vunpack.c.l.b16 %v851
        %v1381 = vunpack.c.h.b16 %v851
        %v1382 = vunpack.c.l.b16 %v852
        %v1383 = vunpack.c.h.b16 %v852
        %v1384 = vunpack.c.l.b16 %v853
        %v1385 = vunpack.c.h.b16 %v853
        %v1386 = vunpack.c.l.b16 %v854
        %v1387 = vunpack.c.h.b16 %v854
        %v1388 = vunpack.c.l.b16 %v855
        %v1389 = vunpack.c.h.b16 %v855
        %v1390 = vunpack.c.l.b16 %v856
        %v1391 = vunpack.c.h.b16 %v856
        %v1392 = vunpack.c.l.b16 %v857
        %v1393 = vunpack.c.h.b16 %v857
        %v1394 = vunpack.c.l.b16 %v858
        %v1395 = vunpack.c.h.b16 %v858
        %v1396 = vunpack.c.l.b16 %v859
        %v1397 = vunpack.c.h.b16 %v859
        %v1398 = vunpack.c.l.b16 %v860
        %v1399 = vunpack.c.h.b16 %v860
        %v1400 = vunpack.c.l.b16 %v861
        %v1401 = vunpack.c.h.b16 %v861
        %v1402 = vunpack.c.l.b16 %v862
        %v1403 = vunpack.c.h.b16 %v862
        %v1404 = vunpack.c.l.b16 %v863
        %v1405 = vunpack.c.h.b16 %v863
        %v1406 = vunpack.c.l.b16 %v864
        %v1407 = vunpack.c.h.b16 %v864
        %v1408 = vunpack.c.l.b16 %v865
        %v1409 = vunpack.c.h.b16 %v865
        %v1410 = vunpack.c.l.b16 %v866
        %v1411 = vunpack.c.h.b16 %v866
        %v1412 = vunpack.c.l.b16 %v867
        %v1413 = vunpack.c.h.b16 %v867
        %v1414 = vunpack.c.l.b16 %v868
        %v1415 = vunpack.c.h.b16 %v868
        %v1416 = vunpack.c.l.b16 %v869
        %v1417 = vunpack.c.h.b16 %v869
        %v1418 = vunpack.c.l.b16 %v870
        %v1419 = vunpack.c.h.b16 %v870
        %v1420 = vunpack.c.l.b16 %v871
        %v1421 = vunpack.c.h.b16 %v871
        %v1422 = vunpack.c.l.b16 %v872
        %v1423 = vunpack.c.h.b16 %v872
        %v1424 = vunpack.c.l.b16 %v873
        %v1425 = vunpack.c.h.b16 %v873
        %v1426 = vunpack.c.l.b16 %v874
        %v1427 = vunpack.c.h.b16 %v874
        %v1428 = vunpack.c.l.b16 %v875
        %v1429 = vunpack.c.h.b16 %v875
        %v1430 = vunpack.c.l.b16 %v876
        %v1431 = vunpack.c.h.b16 %v876
        %v1432 = vunpack.c.l.b16 %v877
        %v1433 = vunpack.c.h.b16 %v877
        %v1434 = vunpack.c.l.b16 %v878
        %v1435 = vunpack.c.h.b16 %v878
        %v1436 = vunpack.c.l.b16 %v879
        %v1437 = vunpack.c.h.b16 %v879
        %v1438 = vunpack.c.l.b16 %v880
        %v1439 = vunpack.c.h.b16 %v880
        %v1440 = vunpack.c.l.b16 %v881
        %v1441 = vunpack.c.h.b16 %v881
        %v1442 = vunpack.c.l.b16 %v882
        %v1443 = vunpack.c.h.b16 %v882
        %v1444 = vunpack.c.l.b16 %v883
        %v1445 = vunpack.c.h.b16 %v883
        %v1446 = vunpack.c.l.b16 %v884
        %v1447 = vunpack.c.h.b16 %v884
        %v1448 = vunpack.c.l.b16 %v885
        %v1449 = vunpack.c.h.b16 %v885
        %v1450 = vunpack.c.l.b16 %v886
        %v1451 = vunpack.c.h.b16 %v886
        %v1452 = vunpack.c.l.b16 %v887
        %v1453 = vunpack.c.h.b16 %v887
        %v1454 = vunpack.c.l.b16 %v888
        %v1455 = vunpack.c.h.b16 %v888
        %v1456 = vunpack.c.l.b16 %v889
        %v1457 = vunpack.c.h.b16 %v889
        %v1458 = vunpack.c.l.b16 %v890
        %v1459 = vunpack.c.h.b16 %v890
        %v1460 = vunpack.c.l.b16 %v891
        %v1461 = vunpack.c.h.b16 %v891
        %v1462 = vunpack.c.l.b16 %v892
        %v1463 = vunpack.c.h.b16 %v892
        %v1464 = vunpack.c.l.b16 %v893
        %v1465 = vunpack.c.h.b16 %v893
        %v1466 = vunpack.c.l.b16 %v894
        %v1467 = vunpack.c.h.b16 %v894
        %v1468 = vunpack.c.l.b16 %v895
        %v1469 = vunpack.c.h.b16 %v895
        %v1470 = vunpack.c.l.b16 %v896
        %v1471 = vunpack.c.h.b16 %v896
        %v1472 = vunpack.c.l.b16 %v897
        %v1473 = vunpack.c.h.b16 %v897
        %v1474 = vunpack.c.l.b16 %v898
        %v1475 = vunpack.c.h.b16 %v898
        %v1476 = vunpack.c.l.b16 %v899
        %v1477 = vunpack.c.h.b16 %v899
        %v1478 = vunpack.c.l.b16 %v900
        %v1479 = vunpack.c.h.b16 %v900
        %v1480 = vunpack.c.l.b16 %v901
        %v1481 = vunpack.c.h.b16 %v901
        %v1482 = vunpack.c.l.b16 %v902
        %v1483 = vunpack.c.h.b16 %v902
        %v1484 = vunpack.c.l.b16 %v903
        %v1485 = vunpack.c.h.b16 %v903
        %v1486 = vunpack.c.l.b16 %v904
        %v1487 = vunpack.c.h.b16 %v904
        %v1488 = vunpack.c.l.b16 %v905
        %v1489 = vunpack.c.h.b16 %v905
        %v1490 = vunpack.c.l.b16 %v906
        %v1491 = vunpack.c.h.b16 %v906
        %v1492 = vunpack.c.l.b16 %v907
        %v1493 = vunpack.c.h.b16 %v907
        %v1494 = vunpack.c.l.b16 %v908
        %v1495 = vunpack.c.h.b16 %v908
        %v1496 = vunpack.c.l.b16 %v909
        %v1497 = vunpack.c.h.b16 %v909
        %v1498 = vunpack.c.l.b16 %v910
        %v1499 = vunpack.c.h.b16 %v910
        %v1500 = vunpack.c.l.b16 %v911
        %v1501 = vunpack.c.h.b16 %v911
        %v1502 = vunpack.c.l.b16 %v912
        %v1503 = vunpack.c.h.b16 %v912
        %v1504 = vunpack.c.l.b16 %v913
        %v1505 = vunpack.c.h.b16 %v913
        %v1506 = vunpack.c.l.b16 %v914
        %v1507 = vunpack.c.h.b16 %v914
        %v1508 = vunpack.c.l.b16 %v915
        %v1509 = vunpack.c.h.b16 %v915
        %v1510 = vunpack.c.l.b16 %v916
        %v1511 = vunpack.c.h.b16 %v916
        %v1512 = vunpack.c.l.b16 %v917
        %v1513 = vunpack.c.h.b16 %v917
        %v1514 = vunpack.c.l.b16 %v918
        %v1515 = vunpack.c.h.b16 %v918
        %v1516 = vunpack.c.l.b16 %v919
        %v1517 = vunpack.c.h.b16 %v919
        %v1518 = vunpack.c.l.b16 %v920
        %v1519 = vunpack.c.h.b16 %v920
        %v1520 = vunpack.c.l.b16 %v921
        %v1521 = vunpack.c.h.b16 %v921
        %v1522 = vunpack.c.l.b16 %v922
        %v1523 = vunpack.c.h.b16 %v922
        %v1524 = vunpack.c.l.b16 %v923
        %v1525 = vunpack.c.h.b16 %v923
        %v1526 = vunpack.c.l.b16 %v924
        %v1527 = vunpack.c.h.b16 %v924
        %v1528 = vunpack.c.l.b16 %v925
        %v1529 = vunpack.c.h.b16 %v925
        %v1530 = vunpack.c.l.b16 %v926
        %v1531 = vunpack.c.h.b16 %v926
        %v1532 = vunpack.c.l.b16 %v927
        %v1533 = vunpack.c.h.b16 %v927
        %v1534 = vunpack.c.l.b16 %v928
        %v1535 = vunpack.c.h.b16 %v928
        %v1536 = vunpack.c.l.b16 %v929
        %v1537 = vunpack.c.h.b16 %v929
        %v1538 = vunpack.c.l.b16 %v930
        %v1539 = vunpack.c.h.b16 %v930
        %v1540 = vunpack.c.l.b16 %v931
        %v1541 = vunpack.c.h.b16 %v931
        %v1542 = vunpack.c.l.b16 %v932
        %v1543 = vunpack.c.h.b16 %v932
        %v1544 = vunpack.c.l.b16 %v933
        %v1545 = vunpack.c.h.b16 %v933
        %v1546 = vunpack.c.l.b16 %v934
        %v1547 = vunpack.c.h.b16 %v934
        %v1548 = vunpack.c.l.b16 %v935
        %v1549 = vunpack.c.h.b16 %v935
        %v1550 = vunpack.c.l.b16 %v936
        %v1551 = vunpack.c.h.b16 %v936
        %v1552 = vunpack.c.l.b16 %v937
        %v1553 = vunpack.c.h.b16 %v937
        %v1554 = vunpack.c.l.b16 %v938
        %v1555 = vunpack.c.h.b16 %v938
        %v1556 = vunpack.c.l.b16 %v939
        %v1557 = vunpack.c.h.b16 %v939
        %v1558 = vunpack.c.l.b16 %v940
        %v1559 = vunpack.c.h.b16 %v940
        %v1560 = vunpack.c.l.b16 %v941
        %v1561 = vunpack.c.h.b16 %v941
        %v1562 = vunpack.c.l.b16 %v942
        %v1563 = vunpack.c.h.b16 %v942
        %v1564 = vunpack.c.l.b16 %v943
        %v1565 = vunpack.c.h.b16 %v943
        %v1566 = vunpack.c.l.b16 %v944
        %v1567 = vunpack.c.h.b16 %v944
        %v1568 = vunpack.c.l.b16 %v945
        %v1569 = vunpack.c.h.b16 %v945
        %v1570 = vunpack.c.l.b16 %v946
        %v1571 = vunpack.c.h.b16 %v946
        %v1572 = vunpack.c.l.b16 %v947
        %v1573 = vunpack.c.h.b16 %v947
        %v1574 = vunpack.c.l.b16 %v948
        %v1575 = vunpack.c.h.b16 %v948
        %v1576 = vunpack.c.l.b16 %v949
        %v1577 = vunpack.c.h.b16 %v949
        %v1578 = vunpack.c.l.b16 %v950
        %v1579 = vunpack.c.h.b16 %v950
        %v1580 = vunpack.c.l.b16 %v951
        %v1581 = vunpack.c.h.b16 %v951
        %v1582 = vunpack.c.l.b16 %v952
        %v1583 = vunpack.c.h.b16 %v952
        %v1584 = vunpack.c.l.b16 %v953
        %v1585 = vunpack.c.h.b16 %v953
        %v1586 = vunpack.c.l.b16 %v954
        %v1587 = vunpack.c.h.b16 %v954
        %v1588 = vunpack.c.l.b16 %v955
        %v1589 = vunpack.c.h.b16 %v955
        %v1590 = vunpack.c.l.b16 %v956
        %v1591 = vunpack.c.h.b16 %v956
        %v1592 = vunpack.c.l.b16 %v957
        %v1593 = vunpack.c.h.b16 %v957
        %v1594 = vunpack.c.l.b16 %v958
        %v1595 = vunpack.c.h.b16 %v958
        %v1596 = vunpack.c.l.b16 %v959
        %v1597 = vunpack.c.h.b16 %v959
        %v1598 = vunpack.c.l.b16 %v960
        %v1599 = vunpack.c.h.b16 %v960
        %v1600 = vunpack.c.l.b16 %v961
        %v1601 = vunpack.c.h.b16 %v961
        %v1602 = vunpack.c.l.b16 %v962
        %v1603 = vunpack.c.h.b16 %v962
        %v1604 = vunpack.c.l.b16 %v963
        %v1605 = vunpack.c.h.b16 %v963
        %v1606 = vunpack.c.l.b16 %v964
        %v1607 = vunpack.c.h.b16 %v964
        %v1608 = vunpack.c.l.b16 %v965
        %v1609 = vunpack.c.h.b16 %v965
        %v1610 = vunpack.c.l.b16 %v966
        %v1611 = vunpack.c.h.b16 %v966
        %v1612 = vunpack.c.l.b16 %v967
        %v1613 = vunpack.c.h.b16 %v967
        %v1614 = vunpack.c.l.b16 %v968
        %v1615 = vunpack.c.h.b16 %v968
        %v1616 = vunpack.c.l.b16 %v969
        %v1617 = vunpack.c.h.b16 %v969
        %v1618 = vunpack.c.l.b16 %v970
        %v1619 = vunpack.c.h.b16 %v970
        %v1620 = vunpack.c.l.b16 %v971
        %v1621 = vunpack.c.h.b16 %v971
        %v1622 = vunpack.c.l.b16 %v972
        %v1623 = vunpack.c.h.b16 %v972
        %v1624 = vunpack.c.l.b16 %v973
        %v1625 = vunpack.c.h.b16 %v973
        %v1626 = vunpack.c.l.b16 %v974
        %v1627 = vunpack.c.h.b16 %v974
        %v1628 = vunpack.c.l.b16 %v975
        %v1629 = vunpack.c.h.b16 %v975
        %v1630 = vunpack.c.l.b16 %v976
        %v1631 = vunpack.c.h.b16 %v976
        %v1632 = vunpack.c.l.b16 %v977
        %v1633 = vunpack.c.h.b16 %v977
        %v1634 = vunpack.c.l.b16 %v978
        %v1635 = vunpack.c.h.b16 %v978
        %v1636 = vunpack.c.l.b16 %v979
        %v1637 = vunpack.c.h.b16 %v979
        %v1638 = vunpack.c.l.b16 %v980
        %v1639 = vunpack.c.h.b16 %v980
        %v1640 = vunpack.c.l.b16 %v981
        %v1641 = vunpack.c.h.b16 %v981
        %v1642 = vunpack.c.l.b16 %v982
        %v1643 = vunpack.c.h.b16 %v982
        %v1644 = vunpack.c.l.b16 %v983
        %v1645 = vunpack.c.h.b16 %v983
        %v1646 = vunpack.c.l.b16 %v984
        %v1647 = vunpack.c.h.b16 %v984
        %v1648 = vunpack.c.l.b16 %v985
        %v1649 = vunpack.c.h.b16 %v985
        %v1650 = vunpack.c.l.b16 %v986
        %v1651 = vunpack.c.h.b16 %v986
        %v1652 = vunpack.c.l.b16 %v987
        %v1653 = vunpack.c.h.b16 %v987
        %v1654 = vunpack.c.l.b16 %v988
        %v1655 = vunpack.c.h.b16 %v988
        %v1656 = vunpack.c.l.b16 %v989
        %v1657 = vunpack.c.h.b16 %v989
        %v1658 = vunpack.c.l.b16 %v990
        %v1659 = vunpack.c.h.b16 %v990
        %v1660 = vunpack.c.l.b16 %v991
        %v1661 = vunpack.c.h.b16 %v991
        %v1662 = vunpack.c.l.b16 %v992
        %v1663 = vunpack.c.h.b16 %v992
        %v1664 = vunpack.c.l.b16 %v993
        %v1665 = vunpack.c.h.b16 %v993
        %v1666 = vunpack.c.l.b16 %v994
        %v1667 = vunpack.c.h.b16 %v994
        %v1668 = vunpack.c.l.b16 %v995
        %v1669 = vunpack.c.h.b16 %v995
        %v1670 = vunpack.c.l.b16 %v996
        %v1671 = vunpack.c.h.b16 %v996
        %v1672 = vunpack.c.l.b16 %v997
        %v1673 = vunpack.c.h.b16 %v997
        %v1674 = vunpack.c.l.b16 %v998
        %v1675 = vunpack.c.h.b16 %v998
        %v1676 = vunpack.c.l.b16 %v999
        %v1677 = vunpack.c.h.b16 %v999
        %v1678 = vunpack.c.l.b16 %v1000
        %v1679 = vunpack.c.h.b16 %v1000
        %v1680 = vunpack.c.l.b16 %v1001
        %v1681 = vunpack.c.h.b16 %v1001
        %v1682 = vunpack.c.l.b16 %v1002
        %v1683 = vunpack.c.h.b16 %v1002
        %v1684 = vunpack.c.l.b16 %v1003
        %v1685 = vunpack.c.h.b16 %v1003
        %v1686 = vunpack.c.l.b16 %v1004
        %v1687 = vunpack.c.h.b16 %v1004
        %v1688 = vunpack.c.l.b16 %v1005
        %v1689 = vunpack.c.h.b16 %v1005
        %v1690 = vunpack.c.l.b16 %v1006
        %v1691 = vunpack.c.h.b16 %v1006
        %v1692 = vunpack.c.l.b16 %v1007
        %v1693 = vunpack.c.h.b16 %v1007
        %v1694 = vunpack.c.l.b16 %v1008
        %v1695 = vunpack.c.h.b16 %v1008
        %v1696 = vunpack.c.l.b16 %v1009
        %v1697 = vunpack.c.h.b16 %v1009
        %v1698 = vunpack.c.l.b16 %v1010
        %v1699 = vunpack.c.h.b16 %v1010
        %v1700 = vunpack.c.l.b16 %v1011
        %v1701 = vunpack.c.h.b16 %v1011
        %v1702 = vunpack.c.l.b16 %v1012
        %v1703 = vunpack.c.h.b16 %v1012
        %v1704 = vunpack.c.l.b16 %v1013
        %v1705 = vunpack.c.h.b16 %v1013
        %v1706 = vunpack.c.l.b16 %v1014
        %v1707 = vunpack.c.h.b16 %v1014
        %v1708 = vunpack.c.l.b16 %v1015
        %v1709 = vunpack.c.h.b16 %v1015
        %v1710 = vunpack.c.l.b16 %v1016
        %v1711 = vunpack.c.h.b16 %v1016
        %v1712 = vunpack.c.l.b16 %v1017
        %v1713 = vunpack.c.h.b16 %v1017
        %v1714 = vunpack.c.l.b16 %v1018
        %v1715 = vunpack.c.h.b16 %v1018
        %v1716 = vunpack.c.l.b16 %v1019
        %v1717 = vunpack.c.h.b16 %v1019
        %v1718 = vunpack.c.l.b16 %v1020
        %v1719 = vunpack.c.h.b16 %v1020
        %v1720 = vunpack.c.l.b16 %v1021
        %v1721 = vunpack.c.h.b16 %v1021
        %v1722 = vunpack.c.l.b16 %v1022
        %v1723 = vunpack.c.h.b16 %v1022
        %v1724 = vunpack.c.l.b16 %v1023
        %v1725 = vunpack.c.h.b16 %v1023
        %v1726 = vunpack.c.l.b16 %v1024
        %v1727 = vunpack.c.h.b16 %v1024
        %v1728 = vunpack.c.l.b16 %v1025
        %v1729 = vunpack.c.h.b16 %v1025
        %v1730 = vunpack.c.l.b16 %v1026
        %v1731 = vunpack.c.h.b16 %v1026
        %v1732 = vunpack.c.l.b16 %v1027
        %v1733 = vunpack.c.h.b16 %v1027
        %v1734 = vunpack.c.l.b16 %v1028
        %v1735 = vunpack.c.h.b16 %v1028
        %v1736 = vunpack.c.l.b16 %v1029
        %v1737 = vunpack.c.h.b16 %v1029
        %v1738 = vunpack.c.l.b16 %v1030
        %v1739 = vunpack.c.h.b16 %v1030
        %v1740 = vunpack.c.l.b16 %v1031
        %v1741 = vunpack.c.h.b16 %v1031
        %v1742 = vunpack.c.l.b16 %v1032
        %v1743 = vunpack.c.h.b16 %v1032
        %v1744 = vunpack.c.l.b16 %v1033
        %v1745 = vunpack.c.h.b16 %v1033
        %v1746 = vunpack.c.l.b16 %v1034
        %v1747 = vunpack.c.h.b16 %v1034
        %v1748 = vunpack.c.l.b16 %v1035
        %v1749 = vunpack.c.h.b16 %v1035
        %v1750 = vunpack.c.l.b16 %v1036
        %v1751 = vunpack.c.h.b16 %v1036
        %v1752 = vunpack.c.l.b16 %v1037
        %v1753 = vunpack.c.h.b16 %v1037
        %v1754 = vunpack.c.l.b16 %v1038
        %v1755 = vunpack.c.h.b16 %v1038
        %v1756 = vunpack.c.l.b16 %v1039
        %v1757 = vunpack.c.h.b16 %v1039
        %v1758 = vunpack.c.l.b16 %v1040
        %v1759 = vunpack.c.h.b16 %v1040
        %v1760 = vunpack.c.l.b16 %v1041
        %v1761 = vunpack.c.h.b16 %v1041
        %v1762 = vunpack.c.l.b16 %v1042
        %v1763 = vunpack.c.h.b16 %v1042
        %v1764 = vunpack.c.l.b16 %v1043
        %v1765 = vunpack.c.h.b16 %v1043
        %v1766 = vunpack.c.l.b16 %v1044
        %v1767 = vunpack.c.h.b16 %v1044
        %v1768 = vunpack.c.l.b16 %v1045
        %v1769 = vunpack.c.h.b16 %v1045
        %v1770 = vunpack.c.l.b16 %v1046
        %v1771 = vunpack.c.h.b16 %v1046
        %v1772 = vunpack.c.l.b16 %v1047
        %v1773 = vunpack.c.h.b16 %v1047
        %v1774 = vunpack.c.l.b16 %v1048
        %v1775 = vunpack.c.h.b16 %v1048
        %v1776 = vunpack.c.l.b16 %v1049
        %v1777 = vunpack.c.h.b16 %v1049
        %v1778 = vunpack.c.l.b16 %v1050
        %v1779 = vunpack.c.h.b16 %v1050
        %v1780 = vunpack.c.l.b16 %v1051
        %v1781 = vunpack.c.h.b16 %v1051
        %v1782 = vunpack.c.l.b16 %v1052
        %v1783 = vunpack.c.h.b16 %v1052
        %v1784 = vunpack.c.l.b16 %v1053
        %v1785 = vunpack.c.h.b16 %v1053
        %v1786 = vunpack.c.l.b16 %v1054
        %v1787 = vunpack.c.h.b16 %v1054
        %v1788 = vunpack.c.l.b16 %v1055
        %v1789 = vunpack.c.h.b16 %v1055
        %v1790 = vunpack.c.l.b16 %v1056
        %v1791 = vunpack.c.h.b16 %v1056
        %v1792 = vunpack.c.l.b16 %v1057
        %v1793 = vunpack.c.h.b16 %v1057
        %v1794 = vunpack.c.l.b16 %v1058
        %v1795 = vunpack.c.h.b16 %v1058
        %v1796 = vunpack.c.l.b16 %v1059
        %v1797 = vunpack.c.h.b16 %v1059
        %v1798 = vunpack.c.l.b16 %v1060
        %v1799 = vunpack.c.h.b16 %v1060
        %v1800 = vunpack.c.l.b16 %v1061
        %v1801 = vunpack.c.h.b16 %v1061
        %v1802 = vunpack.c.l.b16 %v1062
        %v1803 = vunpack.c.h.b16 %v1062
        %v1804 = vunpack.c.l.b16 %v1063
        %v1805 = vunpack.c.h.b16 %v1063
        %v1806 = vunpack.c.l.b16 %v1064
        %v1807 = vunpack.c.h.b16 %v1064
        %v1808 = vunpack.c.l.b16 %v1065
        %v1809 = vunpack.c.h.b16 %v1065
        %v1810 = vunpack.c.l.b16 %v1066
        %v1811 = vunpack.c.h.b16 %v1066
        %v1812 = vunpack.c.l.b16 %v1067
        %v1813 = vunpack.c.h.b16 %v1067
        %v1814 = vunpack.c.l.b16 %v1068
        %v1815 = vunpack.c.h.b16 %v1068
        %v1816 = vunpack.c.l.b16 %v1069
        %v1817 = vunpack.c.h.b16 %v1069
        %v1818 = vunpack.c.l.b16 %v1070
        %v1819 = vunpack.c.h.b16 %v1070
        %v1820 = vunpack.c.l.b16 %v1071
        %v1821 = vunpack.c.h.b16 %v1071
        %v1822 = vunpack.c.l.b16 %v1072
        %v1823 = vunpack.c.h.b16 %v1072
        %v1824 = vunpack.c.l.b16 %v1073
        %v1825 = vunpack.c.h.b16 %v1073
        %v1826 = vunpack.c.l.b16 %v1074
        %v1827 = vunpack.c.h.b16 %v1074
        %v1828 = vunpack.c.l.b16 %v1075
        %v1829 = vunpack.c.h.b16 %v1075
        %v1830 = vunpack.c.l.b16 %v1076
        %v1831 = vunpack.c.h.b16 %v1076
        %v1832 = vunpack.c.l.b16 %v1077
        %v1833 = vunpack.c.h.b16 %v1077
        %v1834 = vunpack.c.l.b16 %v1078
        %v1835 = vunpack.c.h.b16 %v1078
        %v1836 = vunpack.c.l.b16 %v1079
        %v1837 = vunpack.c.h.b16 %v1079
        %v1838 = vunpack.c.l.b16 %v1080
        %v1839 = vunpack.c.h.b16 %v1080
        %v1840 = vunpack.c.l.b16 %v1081
        %v1841 = vunpack.c.h.b16 %v1081
        %v1842 = vunpack.c.l.b16 %v1082
        %v1843 = vunpack.c.h.b16 %v1082
        %v1844 = vunpack.c.l.b16 %v1083
        %v1845 = vunpack.c.h.b16 %v1083
        %v1846 = vunpack.c.l.b16 %v1084
        %v1847 = vunpack.c.h.b16 %v1084
        %v1848 = vunpack.c.l.b16 %v1085
        %v1849 = vunpack.c.h.b16 %v1085
        %v1850 = vunpack.c.l.b16 %v1086
        %v1851 = vunpack.c.h.b16 %v1086
        %v1852 = vunpack.c.l.b16 %v1087
        %v1853 = vunpack.c.h.b16 %v1087
        %v1854 = vunpack.c.l.b16 %v1088
        %v1855 = vunpack.c.h.b16 %v1088
        %v1856 = vunpack.c.l.b16 %v1089
        %v1857 = vunpack.c.h.b16 %v1089
        %v1858 = vunpack.c.l.b16 %v1090
        %v1859 = vunpack.c.h.b16 %v1090
        %v1860 = vunpack.c.l.b16 %v1091
        %v1861 = vunpack.c.h.b16 %v1091
        %v1862 = vunpack.c.l.b16 %v1092
        %v1863 = vunpack.c.h.b16 %v1092
        %v1864 = vunpack.c.l.b16 %v1093
        %v1865 = vunpack.c.h.b16 %v1093
        %v1866 = vunpack.c.l.b16 %v1094
        %v1867 = vunpack.c.h.b16 %v1094
        %v1868 = vunpack.c.l.b16 %v1095
        %v1869 = vunpack.c.h.b16 %v1095
        %v1870 = vunpack.c.l.b16 %v1096
        %v1871 = vunpack.c.h.b16 %v1096
        %v1872 = vunpack.c.l.b16 %v1097
        %v1873 = vunpack.c.h.b16 %v1097
        %v1874 = vunpack.c.l.b16 %v1098
        %v1875 = vunpack.c.h.b16 %v1098
        %v1876 = vunpack.c.l.b16 %v1099
        %v1877 = vunpack.c.h.b16 %v1099
        %v1878 = vunpack.c.l.b16 %v1100
        %v1879 = vunpack.c.h.b16 %v1100
        %v1880 = vunpack.c.l.b16 %v1101
        %v1881 = vunpack.c.h.b16 %v1101
        %v1882 = vunpack.c.l.b16 %v1102
        %v1883 = vunpack.c.h.b16 %v1102
        %v1884 = vpack.c.b16 %v1388, %v1372
        %v1885 = vpack.c.b16 %v1389, %v1373
        %v1886 = vpack.c.b16 %v1390, %v1374
        %v1887 = vpack.c.b16 %v1391, %v1375
        %v1888 = vpack.c.b16 %v1392, %v1376
        %v1889 = vpack.c.b16 %v1393, %v1377
        %v1890 = vpack.c.b16 %v1394, %v1378
        %v1891 = vpack.c.b16 %v1395, %v1379
        %v1892 = vpack.c.b16 %v1396, %v1380
        %v1893 = vpack.c.b16 %v1397, %v1381
        %v1894 = vpack.c.b16 %v1398, %v1382
        %v1895 = vpack.c.b16 %v1399, %v1383
        %v1896 = vpack.c.b16 %v1400, %v1384
        %v1897 = vpack.c.b16 %v1401, %v1385
        %v1898 = vpack.c.b16 %v1402, %v1386
        %v1899 = vpack.c.b16 %v1403, %v1387
        %v1900 = vpack.c.b16 %v1420, %v1404
        %v1901 = vpack.c.b16 %v1421, %v1405
        %v1902 = vpack.c.b16 %v1422, %v1406
        %v1903 = vpack.c.b16 %v1423, %v1407
        %v1904 = vpack.c.b16 %v1424, %v1408
        %v1905 = vpack.c.b16 %v1425, %v1409
        %v1906 = vpack.c.b16 %v1426, %v1410
        %v1907 = vpack.c.b16 %v1427, %v1411
        %v1908 = vpack.c.b16 %v1428, %v1412
        %v1909 = vpack.c.b16 %v1429, %v1413
        %v1910 = vpack.c.b16 %v1430, %v1414
        %v1911 = vpack.c.b16 %v1431, %v1415
        %v1912 = vpack.c.b16 %v1432, %v1416
        %v1913 = vpack.c.b16 %v1433, %v1417
        %v1914 = vpack.c.b16 %v1434, %v1418
        %v1915 = vpack.c.b16 %v1435, %v1419
        %v1916 = vpack.c.b16 %v1452, %v1436
        %v1917 = vpack.c.b16 %v1453, %v1437
        %v1918 = vpack.c.b16 %v1454, %v1438
        %v1919 = vpack.c.b16 %v1455, %v1439
        %v1920 = vpack.c.b16 %v1456, %v1440
        %v1921 = vpack.c.b16 %v1457, %v1441
        %v1922 = vpack.c.b16 %v1458, %v1442
        %v1923 = vpack.c.b16 %v1459, %v1443
        %v1924 = vpack.c.b16 %v1460, %v1444
        %v1925 = vpack.c.b16 %v1461, %v1445
        %v1926 = vpack.c.b16 %v1462, %v1446
        %v1927 = vpack.c.b16 %v1463, %v1447
        %v1928 = vpack.c.b16 %v1464, %v1448
        %v1929 = vpack.c.b16 %v1465, %v1449
        %v1930 = vpack.c.b16 %v1466, %v1450
        %v1931 = vpack.c.b16 %v1467, %v1451
        %v1932 = vpack.c.b16 %v1484, %v1468
        %v1933 = vpack.c.b16 %v1485, %v1469
        %v1934 = vpack.c.b16 %v1486, %v1470
        %v1935 = vpack.c.b16 %v1487, %v1471
        %v1936 = vpack.c.b16 %v1488, %v1472
        %v1937 = vpack.c.b16 %v1489, %v1473
        %v1938 = vpack.c.b16 %v1490, %v1474
        %v1939 = vpack.c.b16 %v1491, %v1475
        %v1940 = vpack.c.b16 %v1492, %v1476
        %v1941 = vpack.c.b16 %v1493, %v1477
        %v1942 = vpack.c.b16 %v1494, %v1478
        %v1943 = vpack.c.b16 %v1495, %v1479
        %v1944 = vpack.c.b16 %v1496, %v1480
        %v1945 = vpack.c.b16 %v1497, %v1481
        %v1946 = vpack.c.b16 %v1498, %v1482
        %v1947 = vpack.c.b16 %v1499, %v1483
        %v1948 = vpack.c.b16 %v1516, %v1500
        %v1949 = vpack.c.b16 %v1517, %v1501
        %v1950 = vpack.c.b16 %v1518, %v1502
        %v1951 = vpack.c.b16 %v1519, %v1503
        %v1952 = vpack.c.b16 %v1520, %v1504
        %v1953 = vpack.c.b16 %v1521, %v1505
        %v1954 = vpack.c.b16 %v1522, %v1506
        %v1955 = vpack.c.b16 %v1523, %v1507
        %v1956 = vpack.c.b16 %v1524, %v1508
        %v1957 = vpack.c.b16 %v1525, %v1509
        %v1958 = vpack.c.b16 %v1526, %v1510
        %v1959 = vpack.c.b16 %v1527, %v1511
        %v1960 = vpack.c.b16 %v1528, %v1512
        %v1961 = vpack.c.b16 %v1529, %v1513
        %v1962 = vpack.c.b16 %v1530, %v1514
        %v1963 = vpack.c.b16 %v1531, %v1515
        %v1964 = vpack.c.b16 %v1548, %v1532
        %v1965 = vpack.c.b16 %v1549, %v1533
        %v1966 = vpack.c.b16 %v1550, %v1534
        %v1967 = vpack.c.b16 %v1551, %v1535
        %v1968 = vpack.c.b16 %v1552, %v1536
        %v1969 = vpack.c.b16 %v1553, %v1537
        %v1970 = vpack.c.b16 %v1554, %v1538
        %v1971 = vpack.c.b16 %v1555, %v1539
        %v1972 = vpack.c.b16 %v1556, %v1540
        %v1973 = vpack.c.b16 %v1557, %v1541
        %v1974 = vpack.c.b16 %v1558, %v1542
        %v1975 = vpack.c.b16 %v1559, %v1543
        %v1976 = vpack.c.b16 %v1560, %v1544
        %v1977 = vpack.c.b16 %v1561, %v1545
        %v1978 = vpack.c.b16 %v1562, %v1546
        %v1979 = vpack.c.b16 %v1563, %v1547
        %v1980 = vpack.c.b16 %v1580, %v1564
        %v1981 = vpack.c.b16 %v1581, %v1565
        %v1982 = vpack.c.b16 %v1582, %v1566
        %v1983 = vpack.c.b16 %v1583, %v1567
        %v1984 = vpack.c.b16 %v1584, %v1568
        %v1985 = vpack.c.b16 %v1585, %v1569
        %v1986 = vpack.c.b16 %v1586, %v1570
        %v1987 = vpack.c.b16 %v1587, %v1571
        %v1988 = vpack.c.b16 %v1588, %v1572
        %v1989 = vpack.c.b16 %v1589, %v1573
        %v1990 = vpack.c.b16 %v1590, %v1574
        %v1991 = vpack.c.b16 %v1591, %v1575
        %v1992 = vpack.c.b16 %v1592, %v1576
        %v1993 = vpack.c.b16 %v1593, %v1577
        %v1994 = vpack.c.b16 %v1594, %v1578
        %v1995 = vpack.c.b16 %v1595, %v1579
        %v1996 = vpack.c.b16 %v1612, %v1596
        %v1997 = vpack.c.b16 %v1613, %v1597
        %v1998 = vpack.c.b16 %v1614, %v1598
        %v1999 = vpack.c.b16 %v1615, %v1599
        %v2000 = vpack.c.b16 %v1616, %v1600
        %v2001 = vpack.c.b16 %v1617, %v1601
        %v2002 = vpack.c.b16 %v1618, %v1602
        %v2003 = vpack.c.b16 %v1619, %v1603
        %v2004 = vpack.c.b16 %v1620, %v1604
        %v2005 = vpack.c.b16 %v1621, %v1605
        %v2006 = vpack.c.b16 %v1622, %v1606
        %v2007 = vpack.c.b16 %v1623, %v1607
        %v2008 = vpack.c.b16 %v1624, %v1608
        %v2009 = vpack.c.b16 %v1625, %v1609
        %v2010 = vpack.c.b16 %v1626, %v1610
        %v2011 = vpack.c.b16 %v1627, %v1611
        %v2012 = vpack.c.b16 %v1644, %v1628
        %v2013 = vpack.c.b16 %v1645, %v1629
        %v2014 = vpack.c.b16 %v1646, %v1630
        %v2015 = vpack.c.b16 %v1647, %v1631
        %v2016 = vpack.c.b16 %v1648, %v1632
        %v2017 = vpack.c.b16 %v1649, %v1633
        %v2018 = vpack.c.b16 %v1650, %v1634
        %v2019 = vpack.c.b16 %v1651, %v1635
        %v2020 = vpack.c.b16 %v1652, %v1636
        %v2021 = vpack.c.b16 %v1653, %v1637
        %v2022 = vpack.c.b16 %v1654, %v1638
        %v2023 = vpack.c.b16 %v1655, %v1639
        %v2024 = vpack.c.b16 %v1656, %v1640
        %v2025 = vpack.c.b16 %v1657, %v1641
        %v2026 = vpack.c.b16 %v1658, %v1642
        %v2027 = vpack.c.b16 %v1659, %v1643
        %v2028 = vpack.c.b16 %v1676, %v1660
        %v2029 = vpack.c.b16 %v1677, %v1661
        %v2030 = vpack.c.b16 %v1678, %v1662
        %v2031 = vpack.c.b16 %v1679, %v1663
        %v2032 = vpack.c.b16 %v1680, %v1664
        %v2033 = vpack.c.b16 %v1681, %v1665
        %v2034 = vpack.c.b16 %v1682, %v1666
        %v2035 = vpack.c.b16 %v1683, %v1667
        %v2036 = vpack.c.b16 %v1684, %v1668
        %v2037 = vpack.c.b16 %v1685, %v1669
        %v2038 = vpack.c.b16 %v1686, %v1670
        %v2039 = vpack.c.b16 %v1687, %v1671
        %v2040 = vpack.c.b16 %v1688, %v1672
        %v2041 = vpack.c.b16 %v1689, %v1673
        %v2042 = vpack.c.b16 %v1690, %v1674
        %v2043 = vpack.c.b16 %v1691, %v1675
        %v2044 = vpack.c.b16 %v1708, %v1692
        %v2045 = vpack.c.b16 %v1709, %v1693
        %v2046 = vpack.c.b16 %v1710, %v1694
        %v2047 = vpack.c.b16 %v1711, %v1695
        %v2048 = vpack.c.b16 %v1712, %v1696
        %v2049 = vpack.c.b16 %v1713, %v1697
        %v2050 = vpack.c.b16 %v1714, %v1698
        %v2051 = vpack.c.b16 %v1715, %v1699
        %v2052 = vpack.c.b16 %v1716, %v1700
        %v2053 = vpack.c.b16 %v1717, %v1701
        %v2054 = vpack.c.b16 %v1718, %v1702
        %v2055 = vpack.c.b16 %v1719, %v1703
        %v2056 = vpack.c.b16 %v1720, %v1704
        %v2057 = vpack.c.b16 %v1721, %v1705
        %v2058 = vpack.c.b16 %v1722, %v1706
        %v2059 = vpack.c.b16 %v1723, %v1707
        %v2060 = vpack.c.b16 %v1740, %v1724
        %v2061 = vpack.c.b16 %v1741, %v1725
        %v2062 = vpack.c.b16 %v1742, %v1726
        %v2063 = vpack.c.b16 %v1743, %v1727
        %v2064 = vpack.c.b16 %v1744, %v1728
        %v2065 = vpack.c.b16 %v1745, %v1729
        %v2066 = vpack.c.b16 %v1746, %v1730
        %v2067 = vpack.c.b16 %v1747, %v1731
        %v2068 = vpack.c.b16 %v1748, %v1732
        %v2069 = vpack.c.b16 %v1749, %v1733
        %v2070 = vpack.c.b16 %v1750, %v1734
        %v2071 = vpack.c.b16 %v1751, %v1735
        %v2072 = vpack.c.b16 %v1752, %v1736
        %v2073 = vpack.c.b16 %v1753, %v1737
        %v2074 = vpack.c.b16 %v1754, %v1738
        %v2075 = vpack.c.b16 %v1755, %v1739
        %v2076 = vpack.c.b16 %v1772, %v1756
        %v2077 = vpack.c.b16 %v1773, %v1757
        %v2078 = vpack.c.b16 %v1774, %v1758
        %v2079 = vpack.c.b16 %v1775, %v1759
        %v2080 = vpack.c.b16 %v1776, %v1760
        %v2081 = vpack.c.b16 %v1777, %v1761
        %v2082 = vpack.c.b16 %v1778, %v1762
        %v2083 = vpack.c.b16 %v1779, %v1763
        %v2084 = vpack.c.b16 %v1780, %v1764
        %v2085 = vpack.c.b16 %v1781, %v1765
        %v2086 = vpack.c.b16 %v1782, %v1766
        %v2087 = vpack.c.b16 %v1783, %v1767
        %v2088 = vpack.c.b16 %v1784, %v1768
        %v2089 = vpack.c.b16 %v1785, %v1769
        %v2090 = vpack.c.b16 %v1786, %v1770
        %v2091 = vpack.c.b16 %v1787, %v1771
        %v2092 = vpack.c.b16 %v1804, %v1788
        %v2093 = vpack.c.b16 %v1805, %v1789
        %v2094 = vpack.c.b16 %v1806, %v1790
        %v2095 = vpack.c.b16 %v1807, %v1791
        %v2096 = vpack.c.b16 %v1808, %v1792
        %v2097 = vpack.c.b16 %v1809, %v1793
        %v2098 = vpack.c.b16 %v1810, %v1794
        %v2099 = vpack.c.b16 %v1811, %v1795
        %v2100 = vpack.c.b16 %v1812, %v1796
        %v2101 = vpack.c.b16 %v1813, %v1797
        %v2102 = vpack.c.b16 %v1814, %v1798
        %v2103 = vpack.c.b16 %v1815, %v1799
        %v2104 = vpack.c.b16 %v1816, %v1800
        %v2105 = vpack.c.b16 %v1817, %v1801
        %v2106 = vpack.c.b16 %v1818, %v1802
        %v2107 = vpack.c.b16 %v1819, %v1803
        %v2108 = vpack.c.b16 %v1836, %v1820
        %v2109 = vpack.c.b16 %v1837, %v1821
        %v2110 = vpack.c.b16 %v1838, %v1822
        %v2111 = vpack.c.b16 %v1839, %v1823
        %v2112 = vpack.c.b16 %v1840, %v1824
        %v2113 = vpack.c.b16 %v1841, %v1825
        %v2114 = vpack.c.b16 %v1842, %v1826
        %v2115 = vpack.c.b16 %v1843, %v1827
        %v2116 = vpack.c.b16 %v1844, %v1828
        %v2117 = vpack.c.b16 %v1845, %v1829
        %v2118 = vpack.c.b16 %v1846, %v1830
        %v2119 = vpack.c.b16 %v1847, %v1831
        %v2120 = vpack.c.b16 %v1848, %v1832
        %v2121 = vpack.c.b16 %v1849, %v1833
        %v2122 = vpack.c.b16 %v1850, %v1834
        %v2123 = vpack.c.b16 %v1851, %v1835
        %v2124 = vpack.c.b16 %v1868, %v1852
        %v2125 = vpack.c.b16 %v1869, %v1853
        %v2126 = vpack.c.b16 %v1870, %v1854
        %v2127 = vpack.c.b16 %v1871, %v1855
        %v2128 = vpack.c.b16 %v1872, %v1856
        %v2129 = vpack.c.b16 %v1873, %v1857
        %v2130 = vpack.c.b16 %v1874, %v1858
        %v2131 = vpack.c.b16 %v1875, %v1859
        %v2132 = vpack.c.b16 %v1876, %v1860
        %v2133 = vpack.c.b16 %v1877, %v1861
        %v2134 = vpack.c.b16 %v1878, %v1862
        %v2135 = vpack.c.b16 %v1879, %v1863
        %v2136 = vpack.c.b16 %v1880, %v1864
        %v2137 = vpack.c.b16 %v1881, %v1865
        %v2138 = vpack.c.b16 %v1882, %v1866
        %v2139 = vpack.c.b16 %v1883, %v1867
        %2396 = vmatprep.subr.bf16.mxu0 %v1997
        %2397 = vmatpush1.bf16.msra.mxu0 %v1996
        %2398 = vmatprep.subr.bf16.mxu0 %v1981
        %2399 = vmatpush1.bf16.msra.mxu0 %v1980
        %2400 = vmatprep.subr.bf16.mxu0 %v1965
        %2401 = vmatpush1.bf16.msra.mxu0 %v1964
        %2402 = vmatprep.subr.bf16.mxu0 %v1949
        %2403 = vmatpush1.bf16.msra.mxu0 %v1948
        %2404 = vmatprep.subr.bf16.mxu0 %v1933
        %2405 = vmatpush1.bf16.msra.mxu0 %v1932
        %2406 = vmatprep.subr.bf16.mxu0 %v1917
        %2407 = vmatpush1.bf16.msra.mxu0 %v1916
        %2408 = vmatprep.subr.bf16.mxu0 %v1901
        %2409 = vmatpush1.bf16.msra.mxu0 %v1900
        %2410 = vmatprep.subr.bf16.mxu0 %v1885
        %2411 = vmatpush1.bf16.msra.mxu0 %v1884
        %2412 = vmatprep.subr.bf16.mxu0 %v2125
        %2413 = vmatpush2.bf16.msra.mxu0 %v2124
        %2414 = vmatprep.subr.bf16.mxu0 %v2109
        %2415 = vmatpush2.bf16.msra.mxu0 %v2108
        %2416 = vmatprep.subr.bf16.mxu0 %v2093
        %2417 = vmatpush2.bf16.msra.mxu0 %v2092
        %2418 = vmatprep.subr.bf16.mxu0 %v2077
        %2419 = vmatpush2.bf16.msra.mxu0 %v2076
        %2420 = vmatprep.subr.bf16.mxu0 %v2061
        %2421 = vmatpush2.bf16.msra.mxu0 %v2060
        %2422 = vmatprep.subr.bf16.mxu0 %v2045
        %2423 = vmatpush2.bf16.msra.mxu0 %v2044
        %2424 = vmatprep.subr.bf16.mxu0 %v2029
        %2425 = vmatpush2.bf16.msra.mxu0 %v2028
        %2426 = vmatprep.subr.bf16.mxu0 %v2013
        %2427 = vmatpush2.bf16.msra.mxu0 %v2012
        %2428 = vmatprep.mubr.bf16.mxu0 %v1113
        %2429 = vmatmul.mubr.bf16.gmra.mxu0 %v1112
        %v2430 = vpop.f32.mrf.mxu0
        %v2431 = vadd.f32 %v1107, %v2430
        %v2432 = vpop.f32.mrf.mxu0
        %v2433 = vadd.f32 %v1107, %v2432
        %v2434 = vpop.f32.mrf.mxu0
        %v2435 = vpop.f32.mrf.mxu0
        %2436 = vdwg.mxu0
        %2437 = vmatprep.subr.bf16.mxu0 %v1999
        %2438 = vmatpush1.bf16.msra.mxu0 %v1998
        %2439 = vmatprep.subr.bf16.mxu0 %v1983
        %2440 = vmatpush1.bf16.msra.mxu0 %v1982
        %2441 = vmatprep.subr.bf16.mxu0 %v1967
        %2442 = vmatpush1.bf16.msra.mxu0 %v1966
        %2443 = vmatprep.subr.bf16.mxu0 %v1951
        %2444 = vmatpush1.bf16.msra.mxu0 %v1950
        %2445 = vmatprep.subr.bf16.mxu0 %v1935
        %2446 = vmatpush1.bf16.msra.mxu0 %v1934
        %2447 = vmatprep.subr.bf16.mxu0 %v1919
        %2448 = vmatpush1.bf16.msra.mxu0 %v1918
        %2449 = vmatprep.subr.bf16.mxu0 %v1903
        %2450 = vmatpush1.bf16.msra.mxu0 %v1902
        %2451 = vmatprep.subr.bf16.mxu0 %v1887
        %2452 = vmatpush1.bf16.msra.mxu0 %v1886
        %2453 = vmatprep.subr.bf16.mxu0 %v2127
        %2454 = vmatpush2.bf16.msra.mxu0 %v2126
        %2455 = vmatprep.subr.bf16.mxu0 %v2111
        %2456 = vmatpush2.bf16.msra.mxu0 %v2110
        %2457 = vmatprep.subr.bf16.mxu0 %v2095
        %2458 = vmatpush2.bf16.msra.mxu0 %v2094
        %2459 = vmatprep.subr.bf16.mxu0 %v2079
        %2460 = vmatpush2.bf16.msra.mxu0 %v2078
        %2461 = vmatprep.subr.bf16.mxu0 %v2063
        %2462 = vmatpush2.bf16.msra.mxu0 %v2062
        %2463 = vmatprep.subr.bf16.mxu0 %v2047
        %2464 = vmatpush2.bf16.msra.mxu0 %v2046
        %2465 = vmatprep.subr.bf16.mxu0 %v2031
        %2466 = vmatpush2.bf16.msra.mxu0 %v2030
        %2467 = vmatprep.subr.bf16.mxu0 %v2015
        %2468 = vmatpush2.bf16.msra.mxu0 %v2014
        %2469 = vmatprep.mubr.bf16.mxu0 %v1113
        %2470 = vmatmul.mubr.bf16.gmra.mxu0 %v1112
        %v2471 = vpop.f32.mrf.mxu0
        %v2472 = vadd.f32 %v1107, %v2471
        %v2473 = vpop.f32.mrf.mxu0
        %v2474 = vadd.f32 %v1107, %v2473
        %v2475 = vpop.f32.mrf.mxu0
        %v2476 = vpop.f32.mrf.mxu0
        %2477 = vdwg.mxu0
        %2478 = vmatprep.subr.bf16.mxu0 %v2001
        %2479 = vmatpush1.bf16.msra.mxu0 %v2000
        %2480 = vmatprep.subr.bf16.mxu0 %v1985
        %2481 = vmatpush1.bf16.msra.mxu0 %v1984
        %2482 = vmatprep.subr.bf16.mxu0 %v1969
        %2483 = vmatpush1.bf16.msra.mxu0 %v1968
        %2484 = vmatprep.subr.bf16.mxu0 %v1953
        %2485 = vmatpush1.bf16.msra.mxu0 %v1952
        %2486 = vmatprep.subr.bf16.mxu0 %v1937
        %2487 = vmatpush1.bf16.msra.mxu0 %v1936
        %2488 = vmatprep.subr.bf16.mxu0 %v1921
        %2489 = vmatpush1.bf16.msra.mxu0 %v1920
        %2490 = vmatprep.subr.bf16.mxu0 %v1905
        %2491 = vmatpush1.bf16.msra.mxu0 %v1904
        %2492 = vmatprep.subr.bf16.mxu0 %v1889
        %2493 = vmatpush1.bf16.msra.mxu0 %v1888
        %2494 = vmatprep.subr.bf16.mxu0 %v2129
        %2495 = vmatpush2.bf16.msra.mxu0 %v2128
        %2496 = vmatprep.subr.bf16.mxu0 %v2113
        %2497 = vmatpush2.bf16.msra.mxu0 %v2112
        %2498 = vmatprep.subr.bf16.mxu0 %v2097
        %2499 = vmatpush2.bf16.msra.mxu0 %v2096
        %2500 = vmatprep.subr.bf16.mxu0 %v2081
        %2501 = vmatpush2.bf16.msra.mxu0 %v2080
        %2502 = vmatprep.subr.bf16.mxu0 %v2065
        %2503 = vmatpush2.bf16.msra.mxu0 %v2064
        %2504 = vmatprep.subr.bf16.mxu0 %v2049
        %2505 = vmatpush2.bf16.msra.mxu0 %v2048
        %2506 = vmatprep.subr.bf16.mxu0 %v2033
        %2507 = vmatpush2.bf16.msra.mxu0 %v2032
        %2508 = vmatprep.subr.bf16.mxu0 %v2017
        %2509 = vmatpush2.bf16.msra.mxu0 %v2016
        %2510 = vmatprep.mubr.bf16.mxu0 %v1113
        %2511 = vmatmul.mubr.bf16.gmra.mxu0 %v1112
        %v2512 = vpop.f32.mrf.mxu0
        %v2513 = vadd.f32 %v1107, %v2512
        %v2514 = vpop.f32.mrf.mxu0
        %v2515 = vadd.f32 %v1107, %v2514
        %v2516 = vpop.f32.mrf.mxu0
        %v2517 = vpop.f32.mrf.mxu0
        %2518 = vdwg.mxu0
        %2519 = vmatprep.subr.bf16.mxu0 %v2003
        %2520 = vmatpush1.bf16.msra.mxu0 %v2002
        %2521 = vmatprep.subr.bf16.mxu0 %v1987
        %2522 = vmatpush1.bf16.msra.mxu0 %v1986
        %2523 = vmatprep.subr.bf16.mxu0 %v1971
        %2524 = vmatpush1.bf16.msra.mxu0 %v1970
        %2525 = vmatprep.subr.bf16.mxu0 %v1955
        %2526 = vmatpush1.bf16.msra.mxu0 %v1954
        %2527 = vmatprep.subr.bf16.mxu0 %v1939
        %2528 = vmatpush1.bf16.msra.mxu0 %v1938
        %2529 = vmatprep.subr.bf16.mxu0 %v1923
        %2530 = vmatpush1.bf16.msra.mxu0 %v1922
        %2531 = vmatprep.subr.bf16.mxu0 %v1907
        %2532 = vmatpush1.bf16.msra.mxu0 %v1906
        %2533 = vmatprep.subr.bf16.mxu0 %v1891
        %2534 = vmatpush1.bf16.msra.mxu0 %v1890
        %2535 = vmatprep.subr.bf16.mxu0 %v2131
        %2536 = vmatpush2.bf16.msra.mxu0 %v2130
        %2537 = vmatprep.subr.bf16.mxu0 %v2115
        %2538 = vmatpush2.bf16.msra.mxu0 %v2114
        %2539 = vmatprep.subr.bf16.mxu0 %v2099
        %2540 = vmatpush2.bf16.msra.mxu0 %v2098
        %2541 = vmatprep.subr.bf16.mxu0 %v2083
        %2542 = vmatpush2.bf16.msra.mxu0 %v2082
        %2543 = vmatprep.subr.bf16.mxu0 %v2067
        %2544 = vmatpush2.bf16.msra.mxu0 %v2066
        %2545 = vmatprep.subr.bf16.mxu0 %v2051
        %2546 = vmatpush2.bf16.msra.mxu0 %v2050
        %2547 = vmatprep.subr.bf16.mxu0 %v2035
        %2548 = vmatpush2.bf16.msra.mxu0 %v2034
        %2549 = vmatprep.subr.bf16.mxu0 %v2019
        %2550 = vmatpush2.bf16.msra.mxu0 %v2018
        %2551 = vmatprep.mubr.bf16.mxu0 %v1113
        %2552 = vmatmul.mubr.bf16.gmra.mxu0 %v1112
        %v2553 = vpop.f32.mrf.mxu0
        %v2554 = vadd.f32 %v1107, %v2553
        %v2555 = vpop.f32.mrf.mxu0
        %v2556 = vadd.f32 %v1107, %v2555
        %v2557 = vpop.f32.mrf.mxu0
        %v2558 = vpop.f32.mrf.mxu0
        %2559 = vdwg.mxu0
        %2560 = vmatprep.subr.bf16.mxu0 %v2005
        %2561 = vmatpush1.bf16.msra.mxu0 %v2004
        %2562 = vmatprep.subr.bf16.mxu0 %v1989
        %2563 = vmatpush1.bf16.msra.mxu0 %v1988
        %2564 = vmatprep.subr.bf16.mxu0 %v1973
        %2565 = vmatpush1.bf16.msra.mxu0 %v1972
        %2566 = vmatprep.subr.bf16.mxu0 %v1957
        %2567 = vmatpush1.bf16.msra.mxu0 %v1956
        %2568 = vmatprep.subr.bf16.mxu0 %v1941
        %2569 = vmatpush1.bf16.msra.mxu0 %v1940
        %2570 = vmatprep.subr.bf16.mxu0 %v1925
        %2571 = vmatpush1.bf16.msra.mxu0 %v1924
        %2572 = vmatprep.subr.bf16.mxu0 %v1909
        %2573 = vmatpush1.bf16.msra.mxu0 %v1908
        %2574 = vmatprep.subr.bf16.mxu0 %v1893
        %2575 = vmatpush1.bf16.msra.mxu0 %v1892
        %2576 = vmatprep.subr.bf16.mxu0 %v2133
        %2577 = vmatpush2.bf16.msra.mxu0 %v2132
        %2578 = vmatprep.subr.bf16.mxu0 %v2117
        %2579 = vmatpush2.bf16.msra.mxu0 %v2116
        %2580 = vmatprep.subr.bf16.mxu0 %v2101
        %2581 = vmatpush2.bf16.msra.mxu0 %v2100
        %2582 = vmatprep.subr.bf16.mxu0 %v2085
        %2583 = vmatpush2.bf16.msra.mxu0 %v2084
        %2584 = vmatprep.subr.bf16.mxu0 %v2069
        %2585 = vmatpush2.bf16.msra.mxu0 %v2068
        %2586 = vmatprep.subr.bf16.mxu0 %v2053
        %2587 = vmatpush2.bf16.msra.mxu0 %v2052
        %2588 = vmatprep.subr.bf16.mxu0 %v2037
        %2589 = vmatpush2.bf16.msra.mxu0 %v2036
        %2590 = vmatprep.subr.bf16.mxu0 %v2021
        %2591 = vmatpush2.bf16.msra.mxu0 %v2020
        %2592 = vmatprep.mubr.bf16.mxu0 %v1113
        %2593 = vmatmul.mubr.bf16.gmra.mxu0 %v1112
        %v2594 = vpop.f32.mrf.mxu0
        %v2595 = vadd.f32 %v1107, %v2594
        %v2596 = vpop.f32.mrf.mxu0
        %v2597 = vadd.f32 %v1107, %v2596
        %v2598 = vpop.f32.mrf.mxu0
        %v2599 = vpop.f32.mrf.mxu0
        %2600 = vdwg.mxu0
        %2601 = vmatprep.subr.bf16.mxu0 %v2007
        %2602 = vmatpush1.bf16.msra.mxu0 %v2006
        %2603 = vmatprep.subr.bf16.mxu0 %v1991
        %2604 = vmatpush1.bf16.msra.mxu0 %v1990
        %2605 = vmatprep.subr.bf16.mxu0 %v1975
        %2606 = vmatpush1.bf16.msra.mxu0 %v1974
        %2607 = vmatprep.subr.bf16.mxu0 %v1959
        %2608 = vmatpush1.bf16.msra.mxu0 %v1958
        %2609 = vmatprep.subr.bf16.mxu0 %v1943
        %2610 = vmatpush1.bf16.msra.mxu0 %v1942
        %2611 = vmatprep.subr.bf16.mxu0 %v1927
        %2612 = vmatpush1.bf16.msra.mxu0 %v1926
        %2613 = vmatprep.subr.bf16.mxu0 %v1911
        %2614 = vmatpush1.bf16.msra.mxu0 %v1910
        %2615 = vmatprep.subr.bf16.mxu0 %v1895
        %2616 = vmatpush1.bf16.msra.mxu0 %v1894
        %2617 = vmatprep.subr.bf16.mxu0 %v2135
        %2618 = vmatpush2.bf16.msra.mxu0 %v2134
        %2619 = vmatprep.subr.bf16.mxu0 %v2119
        %2620 = vmatpush2.bf16.msra.mxu0 %v2118
        %2621 = vmatprep.subr.bf16.mxu0 %v2103
        %2622 = vmatpush2.bf16.msra.mxu0 %v2102
        %2623 = vmatprep.subr.bf16.mxu0 %v2087
        %2624 = vmatpush2.bf16.msra.mxu0 %v2086
        %2625 = vmatprep.subr.bf16.mxu0 %v2071
        %2626 = vmatpush2.bf16.msra.mxu0 %v2070
        %2627 = vmatprep.subr.bf16.mxu0 %v2055
        %2628 = vmatpush2.bf16.msra.mxu0 %v2054
        %2629 = vmatprep.subr.bf16.mxu0 %v2039
        %2630 = vmatpush2.bf16.msra.mxu0 %v2038
        %2631 = vmatprep.subr.bf16.mxu0 %v2023
        %2632 = vmatpush2.bf16.msra.mxu0 %v2022
        %2633 = vmatprep.mubr.bf16.mxu0 %v1113
        %2634 = vmatmul.mubr.bf16.gmra.mxu0 %v1112
        %v2635 = vpop.f32.mrf.mxu0
        %v2636 = vadd.f32 %v1107, %v2635
        %v2637 = vpop.f32.mrf.mxu0
        %v2638 = vadd.f32 %v1107, %v2637
        %v2639 = vpop.f32.mrf.mxu0
        %v2640 = vpop.f32.mrf.mxu0
        %2641 = vdwg.mxu0
        %2642 = vmatprep.subr.bf16.mxu0 %v2009
        %2643 = vmatpush1.bf16.msra.mxu0 %v2008
        %2644 = vmatprep.subr.bf16.mxu0 %v1993
        %2645 = vmatpush1.bf16.msra.mxu0 %v1992
        %2646 = vmatprep.subr.bf16.mxu0 %v1977
        %2647 = vmatpush1.bf16.msra.mxu0 %v1976
        %2648 = vmatprep.subr.bf16.mxu0 %v1961
        %2649 = vmatpush1.bf16.msra.mxu0 %v1960
        %2650 = vmatprep.subr.bf16.mxu0 %v1945
        %2651 = vmatpush1.bf16.msra.mxu0 %v1944
        %2652 = vmatprep.subr.bf16.mxu0 %v1929
        %2653 = vmatpush1.bf16.msra.mxu0 %v1928
        %2654 = vmatprep.subr.bf16.mxu0 %v1913
        %2655 = vmatpush1.bf16.msra.mxu0 %v1912
        %2656 = vmatprep.subr.bf16.mxu0 %v1897
        %2657 = vmatpush1.bf16.msra.mxu0 %v1896
        %2658 = vmatprep.subr.bf16.mxu0 %v2137
        %2659 = vmatpush2.bf16.msra.mxu0 %v2136
        %2660 = vmatprep.subr.bf16.mxu0 %v2121
        %2661 = vmatpush2.bf16.msra.mxu0 %v2120
        %2662 = vmatprep.subr.bf16.mxu0 %v2105
        %2663 = vmatpush2.bf16.msra.mxu0 %v2104
        %2664 = vmatprep.subr.bf16.mxu0 %v2089
        %2665 = vmatpush2.bf16.msra.mxu0 %v2088
        %2666 = vmatprep.subr.bf16.mxu0 %v2073
        %2667 = vmatpush2.bf16.msra.mxu0 %v2072
        %2668 = vmatprep.subr.bf16.mxu0 %v2057
        %2669 = vmatpush2.bf16.msra.mxu0 %v2056
        %2670 = vmatprep.subr.bf16.mxu0 %v2041
        %2671 = vmatpush2.bf16.msra.mxu0 %v2040
        %2672 = vmatprep.subr.bf16.mxu0 %v2025
        %2673 = vmatpush2.bf16.msra.mxu0 %v2024
        %2674 = vmatprep.mubr.bf16.mxu0 %v1113
        %2675 = vmatmul.mubr.bf16.gmra.mxu0 %v1112
        %v2676 = vpop.f32.mrf.mxu0
        %v2677 = vadd.f32 %v1107, %v2676
        %v2678 = vpop.f32.mrf.mxu0
        %v2679 = vadd.f32 %v1107, %v2678
        %v2680 = vpop.f32.mrf.mxu0
        %v2681 = vpop.f32.mrf.mxu0
        %2682 = vdwg.mxu0
        %2683 = vmatprep.subr.bf16.mxu0 %v2011
        %2684 = vmatpush1.bf16.msra.mxu0 %v2010
        %2685 = vmatprep.subr.bf16.mxu0 %v1995
        %2686 = vmatpush1.bf16.msra.mxu0 %v1994
        %2687 = vmatprep.subr.bf16.mxu0 %v1979
        %2688 = vmatpush1.bf16.msra.mxu0 %v1978
        %2689 = vmatprep.subr.bf16.mxu0 %v1963
        %2690 = vmatpush1.bf16.msra.mxu0 %v1962
        %2691 = vmatprep.subr.bf16.mxu0 %v1947
        %2692 = vmatpush1.bf16.msra.mxu0 %v1946
        %2693 = vmatprep.subr.bf16.mxu0 %v1931
        %2694 = vmatpush1.bf16.msra.mxu0 %v1930
        %2695 = vmatprep.subr.bf16.mxu0 %v1915
        %2696 = vmatpush1.bf16.msra.mxu0 %v1914
        %2697 = vmatprep.subr.bf16.mxu0 %v1899
        %2698 = vmatpush1.bf16.msra.mxu0 %v1898
        %2699 = vmatprep.subr.bf16.mxu0 %v2139
        %2700 = vmatpush2.bf16.msra.mxu0 %v2138
        %2701 = vmatprep.subr.bf16.mxu0 %v2123
        %2702 = vmatpush2.bf16.msra.mxu0 %v2122
        %2703 = vmatprep.subr.bf16.mxu0 %v2107
        %2704 = vmatpush2.bf16.msra.mxu0 %v2106
        %2705 = vmatprep.subr.bf16.mxu0 %v2091
        %2706 = vmatpush2.bf16.msra.mxu0 %v2090
        %2707 = vmatprep.subr.bf16.mxu0 %v2075
        %2708 = vmatpush2.bf16.msra.mxu0 %v2074
        %2709 = vmatprep.subr.bf16.mxu0 %v2059
        %2710 = vmatpush2.bf16.msra.mxu0 %v2058
        %2711 = vmatprep.subr.bf16.mxu0 %v2043
        %2712 = vmatpush2.bf16.msra.mxu0 %v2042
        %2713 = vmatprep.subr.bf16.mxu0 %v2027
        %2714 = vmatpush2.bf16.msra.mxu0 %v2026
        %2715 = vmatprep.mubr.bf16.mxu0 %v1113
        %2716 = vmatmul.mubr.bf16.gmra.mxu0 %v1112
        %v2717 = vpop.f32.mrf.mxu0
        %v2718 = vadd.f32 %v1107, %v2717
        %v2719 = vpop.f32.mrf.mxu0
        %v2720 = vadd.f32 %v1107, %v2719
        %v2721 = vpop.f32.mrf.mxu0
        %v2722 = vpop.f32.mrf.mxu0
        %2723 = vdwg.mxu0
        %vm2724 = vcmp.gt.f32.partialorder %v2431, 0.0
        %vm2725 = vcmp.gt.f32.partialorder %v2433, 0.0
        %vm2726 = vcmp.gt.f32.partialorder %v2472, 0.0
        %vm2727 = vcmp.gt.f32.partialorder %v2474, 0.0
        %vm2728 = vcmp.gt.f32.partialorder %v2513, 0.0
        %vm2729 = vcmp.gt.f32.partialorder %v2515, 0.0
        %vm2730 = vcmp.gt.f32.partialorder %v2554, 0.0
        %vm2731 = vcmp.gt.f32.partialorder %v2556, 0.0
        %vm2732 = vcmp.gt.f32.partialorder %v2595, 0.0
        %vm2733 = vcmp.gt.f32.partialorder %v2597, 0.0
        %vm2734 = vcmp.gt.f32.partialorder %v2636, 0.0
        %vm2735 = vcmp.gt.f32.partialorder %v2638, 0.0
        %vm2736 = vcmp.gt.f32.partialorder %v2677, 0.0
        %vm2737 = vcmp.gt.f32.partialorder %v2679, 0.0
        %vm2738 = vcmp.gt.f32.partialorder %v2718, 0.0
        %vm2739 = vcmp.gt.f32.partialorder %v2720, 0.0
        %v2740 = vmul.f32 %v2431, 0.01
        %v2741 = vmul.f32 %v2433, 0.01
        %v2742 = vmul.f32 %v2472, 0.01
        %v2743 = vmul.f32 %v2474, 0.01
        %v2744 = vmul.f32 %v2513, 0.01
        %v2745 = vmul.f32 %v2515, 0.01
        %v2746 = vmul.f32 %v2554, 0.01
        %v2747 = vmul.f32 %v2556, 0.01
        %v2748 = vmul.f32 %v2595, 0.01
        %v2749 = vmul.f32 %v2597, 0.01
        %v2750 = vmul.f32 %v2636, 0.01
        %v2751 = vmul.f32 %v2638, 0.01
        %v2752 = vmul.f32 %v2677, 0.01
        %v2753 = vmul.f32 %v2679, 0.01
        %v2754 = vmul.f32 %v2718, 0.01
        %v2755 = vmul.f32 %v2720, 0.01
        %v2756 = vsel %vm2724, %v2431, %v2740
        %v2757 = vsel %vm2725, %v2433, %v2741
        %v2758 = vsel %vm2726, %v2472, %v2742
        %v2759 = vsel %vm2727, %v2474, %v2743
        %v2760 = vsel %vm2728, %v2513, %v2744
        %v2761 = vsel %vm2729, %v2515, %v2745
        %v2762 = vsel %vm2730, %v2554, %v2746
        %v2763 = vsel %vm2731, %v2556, %v2747
        %v2764 = vsel %vm2732, %v2595, %v2748
        %v2765 = vsel %vm2733, %v2597, %v2749
        %v2766 = vsel %vm2734, %v2636, %v2750
        %v2767 = vsel %vm2735, %v2638, %v2751
        %v2768 = vsel %vm2736, %v2677, %v2752
        %v2769 = vsel %vm2737, %v2679, %v2753
        %v2770 = vsel %vm2738, %v2718, %v2754
        %v2771 = vsel %vm2739, %v2720, %v2755
        %v2772 = vld [vmem:[#allocation3] sm:$0xff]
        %v2773 = vadd.f32 %v2756, %v2757
        %v2774 = vadd.f32 %v2773, %v2758
        %v2775 = vadd.f32 %v2774, %v2759
        %v2776 = vadd.f32 %v2775, %v2760
        %v2777 = vadd.f32 %v2776, %v2761
        %v2778 = vadd.f32 %v2777, %v2762
        %v2779 = vadd.f32 %v2778, %v2763
        %v2780 = vadd.f32 %v2779, %v2764
        %v2781 = vadd.f32 %v2780, %v2765
        %v2782 = vadd.f32 %v2781, %v2766
        %v2783 = vadd.f32 %v2782, %v2767
        %v2784 = vadd.f32 %v2783, %v2768
        %v2785 = vadd.f32 %v2784, %v2769
        %v2786 = vadd.f32 %v2785, %v2770
        %v2787 = vadd.f32 %v2786, %v2771
        %2788 = vadd.xlane.f32.xlu0 %v2787
        %v2789 = vpop.xlane.xlu0 %2788
        %v2790 = vadd.f32 %v2772, %v2789
        %vm2791 = vcmask 7168
        %2792 = vst.msk [vmem:[#allocation3] sm:$0xff] %vm2791, %v2790
        %v2793 = vld [vmem:[#allocation4] sm:$0xff]
        %v2794 = vmul.f32 %v2756, %v2756
        %v2795 = vmul.f32 %v2757, %v2757
        %v2796 = vmul.f32 %v2758, %v2758
        %v2797 = vmul.f32 %v2759, %v2759
        %v2798 = vmul.f32 %v2760, %v2760
        %v2799 = vmul.f32 %v2761, %v2761
        %v2800 = vmul.f32 %v2762, %v2762
        %v2801 = vmul.f32 %v2763, %v2763
        %v2802 = vmul.f32 %v2764, %v2764
        %v2803 = vmul.f32 %v2765, %v2765
        %v2804 = vmul.f32 %v2766, %v2766
        %v2805 = vmul.f32 %v2767, %v2767
        %v2806 = vmul.f32 %v2768, %v2768
        %v2807 = vmul.f32 %v2769, %v2769
        %v2808 = vmul.f32 %v2770, %v2770
        %v2809 = vmul.f32 %v2771, %v2771
        %v2810 = vadd.f32 %v2794, %v2795
        %v2811 = vadd.f32 %v2810, %v2796
        %v2812 = vadd.f32 %v2811, %v2797
        %v2813 = vadd.f32 %v2812, %v2798
        %v2814 = vadd.f32 %v2813, %v2799
        %v2815 = vadd.f32 %v2814, %v2800
        %v2816 = vadd.f32 %v2815, %v2801
        %v2817 = vadd.f32 %v2816, %v2802
        %v2818 = vadd.f32 %v2817, %v2803
        %v2819 = vadd.f32 %v2818, %v2804
        %v2820 = vadd.f32 %v2819, %v2805
        %v2821 = vadd.f32 %v2820, %v2806
        %v2822 = vadd.f32 %v2821, %v2807
        %v2823 = vadd.f32 %v2822, %v2808
        %v2824 = vadd.f32 %v2823, %v2809
        %2825 = vadd.xlane.f32.xlu0 %v2824
        %v2826 = vpop.xlane.xlu0 %2825
        %v2827 = vadd.f32 %v2793, %v2826
        %2828 = vst.msk [vmem:[#allocation4] sm:$0xff] %vm2791, %v2827
        %s2829 = smul.u32 %s21, 2048
        %s2830 = sshra.s32 %s2829, 7
        %s2831 = sand.u32 %s2829, 127
        %s2832 = smul.addr %s2830, 8
        %s2833 = scalar_lea.vmem [#allocation2], %s2832
        %2834 = vst [vmem:[%s2833] sm:$0xff] %v2756
        %2835 = vst [vmem:[%s2833 + $0x8] sm:$0xff] %v2757
        %2836 = vst [vmem:[%s2833 + $0x10] sm:$0xff] %v2758
        %2837 = vst [vmem:[%s2833 + $0x18] sm:$0xff] %v2759
        %2838 = vst [vmem:[%s2833 + $0x20] sm:$0xff] %v2760
        %2839 = vst [vmem:[%s2833 + $0x28] sm:$0xff] %v2761
        %2840 = vst [vmem:[%s2833 + $0x30] sm:$0xff] %v2762
        %2841 = vst [vmem:[%s2833 + $0x38] sm:$0xff] %v2763
        %2842 = vst [vmem:[%s2833 + $0x40] sm:$0xff] %v2764
        %2843 = vst [vmem:[%s2833 + $0x48] sm:$0xff] %v2765
        %2844 = vst [vmem:[%s2833 + $0x50] sm:$0xff] %v2766
        %2845 = vst [vmem:[%s2833 + $0x58] sm:$0xff] %v2767
        %2846 = vst [vmem:[%s2833 + $0x60] sm:$0xff] %v2768
        %2847 = vst [vmem:[%s2833 + $0x68] sm:$0xff] %v2769
        %2848 = vst [vmem:[%s2833 + $0x70] sm:$0xff] %v2770
        %2849 = vst [vmem:[%s2833 + $0x78] sm:$0xff] %v2771
        %p2850 = scmp.eq.s32.totalorder %s21, 3
        // Predicated region
        $region68: #{simple_encoder3d_forward.3} parent=58 // pred_check
          %p2851 = pneg %p2850
        $region69: #{simple_encoder3d_forward.3} parent=58 // pred_check_branch
          %2853 = sbr.rel (%p2851) target = $region71
        $region70: #{simple_encoder3d_forward.3} parent=58 // pred_region
          %v2854 = vld [vmem:[#allocation3] sm:$0xff]
          %v2855 = vmul.f32 %v2854, 0.00012207031
          %v2856 = vld [vmem:[#allocation4] sm:$0xff]
          %v2857 = vmul.f32 %v2856, 0.00012207031
          %v2858 = vmul.f32 %v2855, %v2855
          %v2859 = vsub.f32 %v2857, %v2858
          %v2860 = vmax.f32 %v2859, 0.0
          %v2861 = vld [vmem:[%s829] sm:$0xff]
          %v2862 = vadd.f32 %v2860, 1e-05
          %v2863 = vrsqrt.pop %v2862
          %v2864 = vmul.f32 %v2861, %v2863
          %v2865 = vld [vmem:[%s833] sm:$0xff]
          %v2866 = vmul.f32 %v2855, %v2864
          %v2867 = vsub.f32 %v2865, %v2866
          %v2868 = vld [vmem:[#allocation2] sm:$0xff]
          %v2869 = vld [vmem:[#allocation2 + $0x8] sm:$0xff]
          %v2870 = vld [vmem:[#allocation2 + $0x10] sm:$0xff]
          %v2871 = vld [vmem:[#allocation2 + $0x18] sm:$0xff]
          %v2872 = vld [vmem:[#allocation2 + $0x20] sm:$0xff]
          %v2873 = vld [vmem:[#allocation2 + $0x28] sm:$0xff]
          %v2874 = vld [vmem:[#allocation2 + $0x30] sm:$0xff]
          %v2875 = vld [vmem:[#allocation2 + $0x38] sm:$0xff]
          %v2876 = vld [vmem:[#allocation2 + $0x40] sm:$0xff]
          %v2877 = vld [vmem:[#allocation2 + $0x48] sm:$0xff]
          %v2878 = vld [vmem:[#allocation2 + $0x50] sm:$0xff]
          %v2879 = vld [vmem:[#allocation2 + $0x58] sm:$0xff]
          %v2880 = vld [vmem:[#allocation2 + $0x60] sm:$0xff]
          %v2881 = vld [vmem:[#allocation2 + $0x68] sm:$0xff]
          %v2882 = vld [vmem:[#allocation2 + $0x70] sm:$0xff]
          %v2883 = vld [vmem:[#allocation2 + $0x78] sm:$0xff]
          %2885 = vset.pattern.permute.xlu0 0
          %2886 = vperm.xlu0 %2885, %v2864
          %v2887 = vpop.permute.xlu0 %2886
          %v2889 = vmul.f32 %v2868, %v2887
          %v2890 = vmul.f32 %v2869, %v2887
          %v2891 = vmul.f32 %v2870, %v2887
          %v2892 = vmul.f32 %v2871, %v2887
          %v2893 = vmul.f32 %v2872, %v2887
          %v2894 = vmul.f32 %v2873, %v2887
          %v2895 = vmul.f32 %v2874, %v2887
          %v2896 = vmul.f32 %v2875, %v2887
          %v2897 = vmul.f32 %v2876, %v2887
          %v2898 = vmul.f32 %v2877, %v2887
          %v2899 = vmul.f32 %v2878, %v2887
          %v2900 = vmul.f32 %v2879, %v2887
          %v2901 = vmul.f32 %v2880, %v2887
          %v2902 = vmul.f32 %v2881, %v2887
          %v2903 = vmul.f32 %v2882, %v2887
          %v2904 = vmul.f32 %v2883, %v2887
          %2906 = vset.pattern.permute.xlu0 0
          %2907 = vperm.xlu0 %2906, %v2867
          %v2908 = vpop.permute.xlu0 %2907
          %v2910 = vadd.f32 %v2889, %v2908
          %v2911 = vadd.f32 %v2890, %v2908
          %v2912 = vadd.f32 %v2891, %v2908
          %v2913 = vadd.f32 %v2892, %v2908
          %v2914 = vadd.f32 %v2893, %v2908
          %v2915 = vadd.f32 %v2894, %v2908
          %v2916 = vadd.f32 %v2895, %v2908
          %v2917 = vadd.f32 %v2896, %v2908
          %v2918 = vadd.f32 %v2897, %v2908
          %v2919 = vadd.f32 %v2898, %v2908
          %v2920 = vadd.f32 %v2899, %v2908
          %v2921 = vadd.f32 %v2900, %v2908
          %v2922 = vadd.f32 %v2901, %v2908
          %v2923 = vadd.f32 %v2902, %v2908
          %v2924 = vadd.f32 %v2903, %v2908
          %v2925 = vadd.f32 %v2904, %v2908
          %v2926 = vpack.c.bf16 %v2910, %v2910
          %v2927 = vpack.c.bf16 %v2911, %v2911
          %v2928 = vpack.c.bf16 %v2912, %v2912
          %v2929 = vpack.c.bf16 %v2913, %v2913
          %v2930 = vpack.c.bf16 %v2914, %v2914
          %v2931 = vpack.c.bf16 %v2915, %v2915
          %v2932 = vpack.c.bf16 %v2916, %v2916
          %v2933 = vpack.c.bf16 %v2917, %v2917
          %v2934 = vpack.c.bf16 %v2918, %v2918
          %v2935 = vpack.c.bf16 %v2919, %v2919
          %v2936 = vpack.c.bf16 %v2920, %v2920
          %v2937 = vpack.c.bf16 %v2921, %v2921
          %v2938 = vpack.c.bf16 %v2922, %v2922
          %v2939 = vpack.c.bf16 %v2923, %v2923
          %v2940 = vpack.c.bf16 %v2924, %v2924
          %v2941 = vpack.c.bf16 %v2925, %v2925
          %v2958 = vunpack.c.l.b16 %v2926
          %v2959 = vunpack.c.l.b16 %v2927
          %v2960 = vunpack.c.l.b16 %v2928
          %v2961 = vunpack.c.l.b16 %v2929
          %v2962 = vunpack.c.l.b16 %v2930
          %v2963 = vunpack.c.l.b16 %v2931
          %v2964 = vunpack.c.l.b16 %v2932
          %v2965 = vunpack.c.l.b16 %v2933
          %v2966 = vunpack.c.l.b16 %v2934
          %v2967 = vunpack.c.l.b16 %v2935
          %v2968 = vunpack.c.l.b16 %v2936
          %v2969 = vunpack.c.l.b16 %v2937
          %v2970 = vunpack.c.l.b16 %v2938
          %v2971 = vunpack.c.l.b16 %v2939
          %v2972 = vunpack.c.l.b16 %v2940
          %v2973 = vunpack.c.l.b16 %v2941
          %v2974 = vpack.c.b16 %v2959, %v2958
          %v2975 = vpack.c.b16 %v2961, %v2960
          %v2976 = vpack.c.b16 %v2963, %v2962
          %v2977 = vpack.c.b16 %v2965, %v2964
          %v2978 = vpack.c.b16 %v2967, %v2966
          %v2979 = vpack.c.b16 %v2969, %v2968
          %v2980 = vpack.c.b16 %v2971, %v2970
          %v2981 = vpack.c.b16 %v2973, %v2972
          %2990 = vst [vmem:[%s838] sm:$0xff] %v2974
          %2991 = vst [vmem:[%s838 + $0x8] sm:$0xff] %v2975
          %2992 = vst [vmem:[%s838 + $0x10] sm:$0xff] %v2976
          %2993 = vst [vmem:[%s838 + $0x18] sm:$0xff] %v2977
          %2994 = vst [vmem:[%s838 + $0x20] sm:$0xff] %v2978
          %2995 = vst [vmem:[%s838 + $0x28] sm:$0xff] %v2979
          %2996 = vst [vmem:[%s838 + $0x30] sm:$0xff] %v2980
          %2997 = vst [vmem:[%s838 + $0x38] sm:$0xff] %v2981
          %v2998 = vld [vmem:[#allocation2 + $0x80] sm:$0xff]
          %v2999 = vld [vmem:[#allocation2 + $0x88] sm:$0xff]
          %v3000 = vld [vmem:[#allocation2 + $0x90] sm:$0xff]
          %v3001 = vld [vmem:[#allocation2 + $0x98] sm:$0xff]
          %v3002 = vld [vmem:[#allocation2 + $0xa0] sm:$0xff]
          %v3003 = vld [vmem:[#allocation2 + $0xa8] sm:$0xff]
          %v3004 = vld [vmem:[#allocation2 + $0xb0] sm:$0xff]
          %v3005 = vld [vmem:[#allocation2 + $0xb8] sm:$0xff]
          %v3006 = vld [vmem:[#allocation2 + $0xc0] sm:$0xff]
          %v3007 = vld [vmem:[#allocation2 + $0xc8] sm:$0xff]
          %v3008 = vld [vmem:[#allocation2 + $0xd0] sm:$0xff]
          %v3009 = vld [vmem:[#allocation2 + $0xd8] sm:$0xff]
          %v3010 = vld [vmem:[#allocation2 + $0xe0] sm:$0xff]
          %v3011 = vld [vmem:[#allocation2 + $0xe8] sm:$0xff]
          %v3012 = vld [vmem:[#allocation2 + $0xf0] sm:$0xff]
          %v3013 = vld [vmem:[#allocation2 + $0xf8] sm:$0xff]
          %v3014 = vmul.f32 %v2998, %v2887
          %v3015 = vmul.f32 %v2999, %v2887
          %v3016 = vmul.f32 %v3000, %v2887
          %v3017 = vmul.f32 %v3001, %v2887
          %v3018 = vmul.f32 %v3002, %v2887
          %v3019 = vmul.f32 %v3003, %v2887
          %v3020 = vmul.f32 %v3004, %v2887
          %v3021 = vmul.f32 %v3005, %v2887
          %v3022 = vmul.f32 %v3006, %v2887
          %v3023 = vmul.f32 %v3007, %v2887
          %v3024 = vmul.f32 %v3008, %v2887
          %v3025 = vmul.f32 %v3009, %v2887
          %v3026 = vmul.f32 %v3010, %v2887
          %v3027 = vmul.f32 %v3011, %v2887
          %v3028 = vmul.f32 %v3012, %v2887
          %v3029 = vmul.f32 %v3013, %v2887
          %v3030 = vadd.f32 %v3014, %v2908
          %v3031 = vadd.f32 %v3015, %v2908
          %v3032 = vadd.f32 %v3016, %v2908
          %v3033 = vadd.f32 %v3017, %v2908
          %v3034 = vadd.f32 %v3018, %v2908
          %v3035 = vadd.f32 %v3019, %v2908
          %v3036 = vadd.f32 %v3020, %v2908
          %v3037 = vadd.f32 %v3021, %v2908
          %v3038 = vadd.f32 %v3022, %v2908
          %v3039 = vadd.f32 %v3023, %v2908
          %v3040 = vadd.f32 %v3024, %v2908
          %v3041 = vadd.f32 %v3025, %v2908
          %v3042 = vadd.f32 %v3026, %v2908
          %v3043 = vadd.f32 %v3027, %v2908
          %v3044 = vadd.f32 %v3028, %v2908
          %v3045 = vadd.f32 %v3029, %v2908
          %v3046 = vpack.c.bf16 %v3030, %v3030
          %v3047 = vpack.c.bf16 %v3031, %v3031
          %v3048 = vpack.c.bf16 %v3032, %v3032
          %v3049 = vpack.c.bf16 %v3033, %v3033
          %v3050 = vpack.c.bf16 %v3034, %v3034
          %v3051 = vpack.c.bf16 %v3035, %v3035
          %v3052 = vpack.c.bf16 %v3036, %v3036
          %v3053 = vpack.c.bf16 %v3037, %v3037
          %v3054 = vpack.c.bf16 %v3038, %v3038
          %v3055 = vpack.c.bf16 %v3039, %v3039
          %v3056 = vpack.c.bf16 %v3040, %v3040
          %v3057 = vpack.c.bf16 %v3041, %v3041
          %v3058 = vpack.c.bf16 %v3042, %v3042
          %v3059 = vpack.c.bf16 %v3043, %v3043
          %v3060 = vpack.c.bf16 %v3044, %v3044
          %v3061 = vpack.c.bf16 %v3045, %v3045
          %v3078 = vunpack.c.l.b16 %v3046
          %v3079 = vunpack.c.l.b16 %v3047
          %v3080 = vunpack.c.l.b16 %v3048
          %v3081 = vunpack.c.l.b16 %v3049
          %v3082 = vunpack.c.l.b16 %v3050
          %v3083 = vunpack.c.l.b16 %v3051
          %v3084 = vunpack.c.l.b16 %v3052
          %v3085 = vunpack.c.l.b16 %v3053
          %v3086 = vunpack.c.l.b16 %v3054
          %v3087 = vunpack.c.l.b16 %v3055
          %v3088 = vunpack.c.l.b16 %v3056
          %v3089 = vunpack.c.l.b16 %v3057
          %v3090 = vunpack.c.l.b16 %v3058
          %v3091 = vunpack.c.l.b16 %v3059
          %v3092 = vunpack.c.l.b16 %v3060
          %v3093 = vunpack.c.l.b16 %v3061
          %v3094 = vpack.c.b16 %v3079, %v3078
          %v3095 = vpack.c.b16 %v3081, %v3080
          %v3096 = vpack.c.b16 %v3083, %v3082
          %v3097 = vpack.c.b16 %v3085, %v3084
          %v3098 = vpack.c.b16 %v3087, %v3086
          %v3099 = vpack.c.b16 %v3089, %v3088
          %v3100 = vpack.c.b16 %v3091, %v3090
          %v3101 = vpack.c.b16 %v3093, %v3092
          %3110 = vst [vmem:[%s838 + $0x40] sm:$0xff] %v3094
          %3111 = vst [vmem:[%s838 + $0x48] sm:$0xff] %v3095
          %3112 = vst [vmem:[%s838 + $0x50] sm:$0xff] %v3096
          %3113 = vst [vmem:[%s838 + $0x58] sm:$0xff] %v3097
          %3114 = vst [vmem:[%s838 + $0x60] sm:$0xff] %v3098
          %3115 = vst [vmem:[%s838 + $0x68] sm:$0xff] %v3099
          %3116 = vst [vmem:[%s838 + $0x70] sm:$0xff] %v3100
          %3117 = vst [vmem:[%s838 + $0x78] sm:$0xff] %v3101
          %v3118 = vld [vmem:[#allocation2 + $0x100] sm:$0xff]
          %v3119 = vld [vmem:[#allocation2 + $0x108] sm:$0xff]
          %v3120 = vld [vmem:[#allocation2 + $0x110] sm:$0xff]
          %v3121 = vld [vmem:[#allocation2 + $0x118] sm:$0xff]
          %v3122 = vld [vmem:[#allocation2 + $0x120] sm:$0xff]
          %v3123 = vld [vmem:[#allocation2 + $0x128] sm:$0xff]
          %v3124 = vld [vmem:[#allocation2 + $0x130] sm:$0xff]
          %v3125 = vld [vmem:[#allocation2 + $0x138] sm:$0xff]
          %v3126 = vld [vmem:[#allocation2 + $0x140] sm:$0xff]
          %v3127 = vld [vmem:[#allocation2 + $0x148] sm:$0xff]
          %v3128 = vld [vmem:[#allocation2 + $0x150] sm:$0xff]
          %v3129 = vld [vmem:[#allocation2 + $0x158] sm:$0xff]
          %v3130 = vld [vmem:[#allocation2 + $0x160] sm:$0xff]
          %v3131 = vld [vmem:[#allocation2 + $0x168] sm:$0xff]
          %v3132 = vld [vmem:[#allocation2 + $0x170] sm:$0xff]
          %v3133 = vld [vmem:[#allocation2 + $0x178] sm:$0xff]
          %v3134 = vmul.f32 %v3118, %v2887
          %v3135 = vmul.f32 %v3119, %v2887
          %v3136 = vmul.f32 %v3120, %v2887
          %v3137 = vmul.f32 %v3121, %v2887
          %v3138 = vmul.f32 %v3122, %v2887
          %v3139 = vmul.f32 %v3123, %v2887
          %v3140 = vmul.f32 %v3124, %v2887
          %v3141 = vmul.f32 %v3125, %v2887
          %v3142 = vmul.f32 %v3126, %v2887
          %v3143 = vmul.f32 %v3127, %v2887
          %v3144 = vmul.f32 %v3128, %v2887
          %v3145 = vmul.f32 %v3129, %v2887
          %v3146 = vmul.f32 %v3130, %v2887
          %v3147 = vmul.f32 %v3131, %v2887
          %v3148 = vmul.f32 %v3132, %v2887
          %v3149 = vmul.f32 %v3133, %v2887
          %v3150 = vadd.f32 %v3134, %v2908
          %v3151 = vadd.f32 %v3135, %v2908
          %v3152 = vadd.f32 %v3136, %v2908
          %v3153 = vadd.f32 %v3137, %v2908
          %v3154 = vadd.f32 %v3138, %v2908
          %v3155 = vadd.f32 %v3139, %v2908
          %v3156 = vadd.f32 %v3140, %v2908
          %v3157 = vadd.f32 %v3141, %v2908
          %v3158 = vadd.f32 %v3142, %v2908
          %v3159 = vadd.f32 %v3143, %v2908
          %v3160 = vadd.f32 %v3144, %v2908
          %v3161 = vadd.f32 %v3145, %v2908
          %v3162 = vadd.f32 %v3146, %v2908
          %v3163 = vadd.f32 %v3147, %v2908
          %v3164 = vadd.f32 %v3148, %v2908
          %v3165 = vadd.f32 %v3149, %v2908
          %v3166 = vpack.c.bf16 %v3150, %v3150
          %v3167 = vpack.c.bf16 %v3151, %v3151
          %v3168 = vpack.c.bf16 %v3152, %v3152
          %v3169 = vpack.c.bf16 %v3153, %v3153
          %v3170 = vpack.c.bf16 %v3154, %v3154
          %v3171 = vpack.c.bf16 %v3155, %v3155
          %v3172 = vpack.c.bf16 %v3156, %v3156
          %v3173 = vpack.c.bf16 %v3157, %v3157
          %v3174 = vpack.c.bf16 %v3158, %v3158
          %v3175 = vpack.c.bf16 %v3159, %v3159
          %v3176 = vpack.c.bf16 %v3160, %v3160
          %v3177 = vpack.c.bf16 %v3161, %v3161
          %v3178 = vpack.c.bf16 %v3162, %v3162
          %v3179 = vpack.c.bf16 %v3163, %v3163
          %v3180 = vpack.c.bf16 %v3164, %v3164
          %v3181 = vpack.c.bf16 %v3165, %v3165
          %v3198 = vunpack.c.l.b16 %v3166
          %v3199 = vunpack.c.l.b16 %v3167
          %v3200 = vunpack.c.l.b16 %v3168
          %v3201 = vunpack.c.l.b16 %v3169
          %v3202 = vunpack.c.l.b16 %v3170
          %v3203 = vunpack.c.l.b16 %v3171
          %v3204 = vunpack.c.l.b16 %v3172
          %v3205 = vunpack.c.l.b16 %v3173
          %v3206 = vunpack.c.l.b16 %v3174
          %v3207 = vunpack.c.l.b16 %v3175
          %v3208 = vunpack.c.l.b16 %v3176
          %v3209 = vunpack.c.l.b16 %v3177
          %v3210 = vunpack.c.l.b16 %v3178
          %v3211 = vunpack.c.l.b16 %v3179
          %v3212 = vunpack.c.l.b16 %v3180
          %v3213 = vunpack.c.l.b16 %v3181
          %v3214 = vpack.c.b16 %v3199, %v3198
          %v3215 = vpack.c.b16 %v3201, %v3200
          %v3216 = vpack.c.b16 %v3203, %v3202
          %v3217 = vpack.c.b16 %v3205, %v3204
          %v3218 = vpack.c.b16 %v3207, %v3206
          %v3219 = vpack.c.b16 %v3209, %v3208
          %v3220 = vpack.c.b16 %v3211, %v3210
          %v3221 = vpack.c.b16 %v3213, %v3212
          %3230 = vst [vmem:[%s838 + $0x80] sm:$0xff] %v3214
          %3231 = vst [vmem:[%s838 + $0x88] sm:$0xff] %v3215
          %3232 = vst [vmem:[%s838 + $0x90] sm:$0xff] %v3216
          %3233 = vst [vmem:[%s838 + $0x98] sm:$0xff] %v3217
          %3234 = vst [vmem:[%s838 + $0xa0] sm:$0xff] %v3218
          %3235 = vst [vmem:[%s838 + $0xa8] sm:$0xff] %v3219
          %3236 = vst [vmem:[%s838 + $0xb0] sm:$0xff] %v3220
          %3237 = vst [vmem:[%s838 + $0xb8] sm:$0xff] %v3221
          %v3238 = vld [vmem:[#allocation2 + $0x180] sm:$0xff]
          %v3239 = vld [vmem:[#allocation2 + $0x188] sm:$0xff]
          %v3240 = vld [vmem:[#allocation2 + $0x190] sm:$0xff]
          %v3241 = vld [vmem:[#allocation2 + $0x198] sm:$0xff]
          %v3242 = vld [vmem:[#allocation2 + $0x1a0] sm:$0xff]
          %v3243 = vld [vmem:[#allocation2 + $0x1a8] sm:$0xff]
          %v3244 = vld [vmem:[#allocation2 + $0x1b0] sm:$0xff]
          %v3245 = vld [vmem:[#allocation2 + $0x1b8] sm:$0xff]
          %v3246 = vld [vmem:[#allocation2 + $0x1c0] sm:$0xff]
          %v3247 = vld [vmem:[#allocation2 + $0x1c8] sm:$0xff]
          %v3248 = vld [vmem:[#allocation2 + $0x1d0] sm:$0xff]
          %v3249 = vld [vmem:[#allocation2 + $0x1d8] sm:$0xff]
          %v3250 = vld [vmem:[#allocation2 + $0x1e0] sm:$0xff]
          %v3251 = vld [vmem:[#allocation2 + $0x1e8] sm:$0xff]
          %v3252 = vld [vmem:[#allocation2 + $0x1f0] sm:$0xff]
          %v3253 = vld [vmem:[#allocation2 + $0x1f8] sm:$0xff]
          %v3254 = vmul.f32 %v3238, %v2887
          %v3255 = vmul.f32 %v3239, %v2887
          %v3256 = vmul.f32 %v3240, %v2887
          %v3257 = vmul.f32 %v3241, %v2887
          %v3258 = vmul.f32 %v3242, %v2887
          %v3259 = vmul.f32 %v3243, %v2887
          %v3260 = vmul.f32 %v3244, %v2887
          %v3261 = vmul.f32 %v3245, %v2887
          %v3262 = vmul.f32 %v3246, %v2887
          %v3263 = vmul.f32 %v3247, %v2887
          %v3264 = vmul.f32 %v3248, %v2887
          %v3265 = vmul.f32 %v3249, %v2887
          %v3266 = vmul.f32 %v3250, %v2887
          %v3267 = vmul.f32 %v3251, %v2887
          %v3268 = vmul.f32 %v3252, %v2887
          %v3269 = vmul.f32 %v3253, %v2887
          %v3270 = vadd.f32 %v3254, %v2908
          %v3271 = vadd.f32 %v3255, %v2908
          %v3272 = vadd.f32 %v3256, %v2908
          %v3273 = vadd.f32 %v3257, %v2908
          %v3274 = vadd.f32 %v3258, %v2908
          %v3275 = vadd.f32 %v3259, %v2908
          %v3276 = vadd.f32 %v3260, %v2908
          %v3277 = vadd.f32 %v3261, %v2908
          %v3278 = vadd.f32 %v3262, %v2908
          %v3279 = vadd.f32 %v3263, %v2908
          %v3280 = vadd.f32 %v3264, %v2908
          %v3281 = vadd.f32 %v3265, %v2908
          %v3282 = vadd.f32 %v3266, %v2908
          %v3283 = vadd.f32 %v3267, %v2908
          %v3284 = vadd.f32 %v3268, %v2908
          %v3285 = vadd.f32 %v3269, %v2908
          %v3286 = vpack.c.bf16 %v3270, %v3270
          %v3287 = vpack.c.bf16 %v3271, %v3271
          %v3288 = vpack.c.bf16 %v3272, %v3272
          %v3289 = vpack.c.bf16 %v3273, %v3273
          %v3290 = vpack.c.bf16 %v3274, %v3274
          %v3291 = vpack.c.bf16 %v3275, %v3275
          %v3292 = vpack.c.bf16 %v3276, %v3276
          %v3293 = vpack.c.bf16 %v3277, %v3277
          %v3294 = vpack.c.bf16 %v3278, %v3278
          %v3295 = vpack.c.bf16 %v3279, %v3279
          %v3296 = vpack.c.bf16 %v3280, %v3280
          %v3297 = vpack.c.bf16 %v3281, %v3281
          %v3298 = vpack.c.bf16 %v3282, %v3282
          %v3299 = vpack.c.bf16 %v3283, %v3283
          %v3300 = vpack.c.bf16 %v3284, %v3284
          %v3301 = vpack.c.bf16 %v3285, %v3285
          %v3318 = vunpack.c.l.b16 %v3286
          %v3319 = vunpack.c.l.b16 %v3287
          %v3320 = vunpack.c.l.b16 %v3288
          %v3321 = vunpack.c.l.b16 %v3289
          %v3322 = vunpack.c.l.b16 %v3290
          %v3323 = vunpack.c.l.b16 %v3291
          %v3324 = vunpack.c.l.b16 %v3292
          %v3325 = vunpack.c.l.b16 %v3293
          %v3326 = vunpack.c.l.b16 %v3294
          %v3327 = vunpack.c.l.b16 %v3295
          %v3328 = vunpack.c.l.b16 %v3296
          %v3329 = vunpack.c.l.b16 %v3297
          %v3330 = vunpack.c.l.b16 %v3298
          %v3331 = vunpack.c.l.b16 %v3299
          %v3332 = vunpack.c.l.b16 %v3300
          %v3333 = vunpack.c.l.b16 %v3301
          %v3334 = vpack.c.b16 %v3319, %v3318
          %v3335 = vpack.c.b16 %v3321, %v3320
          %v3336 = vpack.c.b16 %v3323, %v3322
          %v3337 = vpack.c.b16 %v3325, %v3324
          %v3338 = vpack.c.b16 %v3327, %v3326
          %v3339 = vpack.c.b16 %v3329, %v3328
          %v3340 = vpack.c.b16 %v3331, %v3330
          %v3341 = vpack.c.b16 %v3333, %v3332
          %3350 = vst [vmem:[%s838 + $0xc0] sm:$0xff] %v3334
          %3351 = vst [vmem:[%s838 + $0xc8] sm:$0xff] %v3335
          %3352 = vst [vmem:[%s838 + $0xd0] sm:$0xff] %v3336
          %3353 = vst [vmem:[%s838 + $0xd8] sm:$0xff] %v3337
          %3354 = vst [vmem:[%s838 + $0xe0] sm:$0xff] %v3338
          %3355 = vst [vmem:[%s838 + $0xe8] sm:$0xff] %v3339
          %3356 = vst [vmem:[%s838 + $0xf0] sm:$0xff] %v3340
          %3357 = vst [vmem:[%s838 + $0xf8] sm:$0xff] %v3341
        $region71: #{simple_encoder3d_forward.3} parent=58 // pred_fallthru
          _
        %p3358 = scmp.lt.s32.totalorder %s20, 0
        %s3359 = scalar_select %p3358, %s20, 0
        %s3360 = smul.addr %s3359, 64
        %s3361 = smul.addr %s3360, 4
        %s3362 = scalar_lea.vmem %s5, %s3361
        // Predicated region
        $region72: #{simple_encoder3d_forward.3} parent=58 // pred_check
          %p3363 = pneg %p176
        $region73: #{simple_encoder3d_forward.3} parent=58 // pred_check_branch
          %3365 = sbr.rel (%p3363) target = $region75
        $region74: #{simple_encoder3d_forward.3} parent=58 // pred_region
          _
        $region75: #{simple_encoder3d_forward.3} parent=58 // pred_fallthru
          _
        // Predicated region
        $region76: #{simple_encoder3d_forward.3} parent=58 // pred_check
          %p3366 = pneg %p176
        $region77: #{simple_encoder3d_forward.3} parent=58 // pred_check_branch
          %3368 = sbr.rel (%p3366) target = $region79
        $region78: #{simple_encoder3d_forward.3} parent=58 // pred_region
          %p3369 = scmp.lt.s32.totalorder %s20, 0
          %s3370 = scalar_select %p3369, %s20, 0
          %s3371 = smul.addr %s3370, 64
          %s3372 = smul.addr %s3371, 4
          %s3373 = scalar_lea.vmem %s5, %s3372
        $region79: #{simple_encoder3d_forward.3} parent=58 // pred_fallthru
          _
      $region59: #{simple_encoder3d_forward.3} parent=5 // pred_fallthru
        _
      %p3374 = scmp.le.s32.totalorder 2, %s11
      // Predicated region
      $region80: #{simple_encoder3d_forward.3} parent=5 // pred_check
        %p3375 = pneg %p3374
      $region81: #{simple_encoder3d_forward.3} parent=5 // pred_check_branch
        %3377 = sbr.rel (%p3375) target = $region83
      $region82: #{simple_encoder3d_forward.3} parent=5 // pred_region
        %s3378 = ssub.s32 %s11, 2
      $region83: #{simple_encoder3d_forward.3} parent=5 // pred_fallthru
        _
    $region6: #{simple_encoder3d_forward.3} parent=1 // loop_footer
      %s15 = sadd.s32 1, %s11
    $region7: #{simple_encoder3d_forward.3} parent=1 // loop_footer_branch
      %10 = sbr.rel target = $region3
    $region8: #{simple_encoder3d_forward.3} parent=1 // loop_exit
      _

// kernel: simple_encoder3d_forward.4
$region0: #{simple_encoder3d_forward.4}
  #allocation0 [shape = 'u32[]', space=smem, size = 0x4, offset = 0x4, fixed_abs, tag = 'smem constant byte address 0x4 - core index']
  #allocation1 [shape = 'u32[144,128]{1,0:T(1,128)}', space=vmem, size = 0x12000, scoped, tag = 'internal scratch']
  #allocation2 [shape = 'f32[16,1024]{1,0:T(8,128)}', space=vmem, size = 0x10000, scoped, tag = 'scratch operand']
  #allocation3 [shape = 'f32[16,1]{1,0:T(8,128)}', space=vmem, size = 0x2000, scoped, tag = 'scratch operand']
  #allocation4 [shape = 'f32[16,1]{1,0:T(8,128)}', space=vmem, size = 0x2000, scoped, tag = 'scratch operand']
  %s0 = inlined_call_operand.vmem [shape: bf16[512,1024], index: 0, kind: input, shape index: {}]
  %s1 = inlined_call_operand.vmem [shape: bf16[16,512], index: 1, kind: input, shape index: {}]
  %s2 = inlined_call_operand.vmem [shape: f32[16,1], index: 2, kind: input, shape index: {}]
  %s3 = inlined_call_operand.vmem [shape: f32[16,1], index: 3, kind: input, shape index: {}]
  %s4 = inlined_call_operand.vmem [shape: f32[16,1], index: 4, kind: input, shape index: {}]
  %s5 = inlined_call_operand.vmem [shape: bf16[16,1024], index: 5, kind: output, shape index: {}]
  %s6 = sld [smem:[#allocation0]]
  $region84: #{simple_encoder3d_forward.4} parent=0
    _
  %s8 = ssub.s32 1, %s6
  %s9 = scalar_select 0, %s8, %s6
  $region1: #{simple_encoder3d_forward.4} parent=0
    #allocation5 [shape = 'u8[1048576]{0}', space=vmem, size = 0x100000, scoped, tag = 'input window, operand 0']
    loop: start=0, step=1, limit=4
    $region2: #{simple_encoder3d_forward.4} parent=1 // loop_pre_header
      _
    $region3: #{simple_encoder3d_forward.4} parent=1 // loop_header
      %s11 = sphi 0, %s15
      %p12 = scmp.ge.s32.totalorder %s11, 4
      %s18 = sphi 0, %s30
      %s19 = sphi 0, %s26
      %s20 = sphi 0, %s18
      %s21 = sphi 0, %s19
      %s22 = sphi 0, %s20
      %s23 = sphi 0, %s21
      %s33 = sphi 0, %s35
      %s36 = sphi 0, %s33
      %s37 = sphi 0, %s36
      %s53 = sphi 0, %s37
      %s59 = sphi 0, %s61
      %s62 = sphi 0, %s59
      %s63 = sphi 0, %s62
      %s79 = sphi 0, %s63
      %s85 = sphi 0, %s87
      %s88 = sphi 0, %s85
      %s89 = sphi 0, %s88
      %s105 = sphi 0, %s89
      %s111 = sphi 0, %s113
      %s114 = sphi 0, %s111
      %s115 = sphi 0, %s114
      %s131 = sphi 0, %s115
      %s137 = sphi 0, %s139
      %s140 = sphi 0, %s137
      %s141 = sphi 0, %s140
      %s157 = sphi 0, %s141
      %s163 = sphi 0, %s165
      %s166 = sphi 0, %s163
      %s167 = sphi 0, %s166
      %s183 = sphi 0, %s167
    $region4: #{simple_encoder3d_forward.4} parent=1 // loop_header_branch
      %14 = sbr.rel (%p12) target = $region8
    $region5: #{simple_encoder3d_forward.4} parent=1 // loop_body
      %s16 = ssub.s32 %s11, 1
      %s17 = ssub.s32 %s11, 2
      %s24 = sadd.s32 1, %s19
      %p25 = scmp.ge.s32.totalorder %s24, 2
      %s26 = scalar_select %p25, 0, %s24
      %s27 = sadd.s32 1, %s18
      %s28 = scalar_select %p25, %s27, %s18
      %p29 = scmp.ge.s32.totalorder %s28, 1
      %s30 = scalar_select %p29, 0, %s28
      %s31 = ssub.s32 %s19, %s26
      %p32 = scmp.eq.s32.totalorder %s31, 0
      %s34 = sadd.s32 %s33, 1
      %s35 = scalar_select %p32, %s33, %s34
      %p38 = pneg %p32
      %p39 = scmp.eq.s32.totalorder %s11, 1
      %p40 = por %p38, %p39
      %p41 = scmp.ne.s32.totalorder %s33, %s36
      %p42 = scmp.eq.s32.totalorder %s11, 0
      %p43 = por %p41, %p42
      %p44 = scmp.ne.s32.totalorder %s33, %s36
      %p45 = scmp.eq.s32.totalorder %s16, 1
      %p46 = por %p44, %p45
      %p47 = scmp.ne.s32.totalorder %s36, %s37
      %p48 = scmp.eq.s32.totalorder %s16, 0
      %p49 = por %p47, %p48
      %p50 = scmp.ne.s32.totalorder %s36, %s37
      %p51 = scmp.eq.s32.totalorder %s17, 1
      %p52 = por %p50, %p51
      %p54 = scmp.ne.s32.totalorder %s37, %s53
      %p55 = scmp.eq.s32.totalorder %s17, 0
      %p56 = por %p54, %p55
      %s57 = ssub.s32 %s18, %s30
      %p58 = scmp.eq.s32.totalorder %s57, 0
      %s60 = sadd.s32 %s59, 1
      %s61 = scalar_select %p58, %s59, %s60
      %p64 = pneg %p58
      %p65 = scmp.eq.s32.totalorder %s11, 1
      %p66 = por %p64, %p65
      %p67 = scmp.ne.s32.totalorder %s59, %s62
      %p68 = scmp.eq.s32.totalorder %s11, 0
      %p69 = por %p67, %p68
      %p70 = scmp.ne.s32.totalorder %s59, %s62
      %p71 = scmp.eq.s32.totalorder %s16, 1
      %p72 = por %p70, %p71
      %p73 = scmp.ne.s32.totalorder %s62, %s63
      %p74 = scmp.eq.s32.totalorder %s16, 0
      %p75 = por %p73, %p74
      %p76 = scmp.ne.s32.totalorder %s62, %s63
      %p77 = scmp.eq.s32.totalorder %s17, 1
      %p78 = por %p76, %p77
      %p80 = scmp.ne.s32.totalorder %s63, %s79
      %p81 = scmp.eq.s32.totalorder %s17, 0
      %p82 = por %p80, %p81
      %s83 = ssub.s32 %s18, %s30
      %p84 = scmp.eq.s32.totalorder %s83, 0
      %s86 = sadd.s32 %s85, 1
      %s87 = scalar_select %p84, %s85, %s86
      %p90 = pneg %p84
      %p91 = scmp.eq.s32.totalorder %s11, 1
      %p92 = por %p90, %p91
      %p93 = scmp.ne.s32.totalorder %s85, %s88
      %p94 = scmp.eq.s32.totalorder %s11, 0
      %p95 = por %p93, %p94
      %p96 = scmp.ne.s32.totalorder %s85, %s88
      %p97 = scmp.eq.s32.totalorder %s16, 1
      %p98 = por %p96, %p97
      %p99 = scmp.ne.s32.totalorder %s88, %s89
      %p100 = scmp.eq.s32.totalorder %s16, 0
      %p101 = por %p99, %p100
      %p102 = scmp.ne.s32.totalorder %s88, %s89
      %p103 = scmp.eq.s32.totalorder %s17, 1
      %p104 = por %p102, %p103
      %p106 = scmp.ne.s32.totalorder %s89, %s105
      %p107 = scmp.eq.s32.totalorder %s17, 0
      %p108 = por %p106, %p107
      %s109 = ssub.s32 %s18, %s30
      %p110 = scmp.eq.s32.totalorder %s109, 0
      %s112 = sadd.s32 %s111, 1
      %s113 = scalar_select %p110, %s111, %s112
      %p116 = pneg %p110
      %p117 = scmp.eq.s32.totalorder %s11, 1
      %p118 = por %p116, %p117
      %p119 = scmp.ne.s32.totalorder %s111, %s114
      %p120 = scmp.eq.s32.totalorder %s11, 0
      %p121 = por %p119, %p120
      %p122 = scmp.ne.s32.totalorder %s111, %s114
      %p123 = scmp.eq.s32.totalorder %s16, 1
      %p124 = por %p122, %p123
      %p125 = scmp.ne.s32.totalorder %s114, %s115
      %p126 = scmp.eq.s32.totalorder %s16, 0
      %p127 = por %p125, %p126
      %p128 = scmp.ne.s32.totalorder %s114, %s115
      %p129 = scmp.eq.s32.totalorder %s17, 1
      %p130 = por %p128, %p129
      %p132 = scmp.ne.s32.totalorder %s115, %s131
      %p133 = scmp.eq.s32.totalorder %s17, 0
      %p134 = por %p132, %p133
      %s135 = ssub.s32 %s18, %s30
      %p136 = scmp.eq.s32.totalorder %s135, 0
      %s138 = sadd.s32 %s137, 1
      %s139 = scalar_select %p136, %s137, %s138
      %p142 = pneg %p136
      %p143 = scmp.eq.s32.totalorder %s11, 1
      %p144 = por %p142, %p143
      %p145 = scmp.ne.s32.totalorder %s137, %s140
      %p146 = scmp.eq.s32.totalorder %s11, 0
      %p147 = por %p145, %p146
      %p148 = scmp.ne.s32.totalorder %s137, %s140
      %p149 = scmp.eq.s32.totalorder %s16, 1
      %p150 = por %p148, %p149
      %p151 = scmp.ne.s32.totalorder %s140, %s141
      %p152 = scmp.eq.s32.totalorder %s16, 0
      %p153 = por %p151, %p152
      %p154 = scmp.ne.s32.totalorder %s140, %s141
      %p155 = scmp.eq.s32.totalorder %s17, 1
      %p156 = por %p154, %p155
      %p158 = scmp.ne.s32.totalorder %s141, %s157
      %p159 = scmp.eq.s32.totalorder %s17, 0
      %p160 = por %p158, %p159
      %s161 = ssub.s32 %s18, %s30
      %p162 = scmp.eq.s32.totalorder %s161, 0
      %s164 = sadd.s32 %s163, 1
      %s165 = scalar_select %p162, %s163, %s164
      %p168 = pneg %p162
      %p169 = scmp.eq.s32.totalorder %s11, 1
      %p170 = por %p168, %p169
      %p171 = scmp.ne.s32.totalorder %s163, %s166
      %p172 = scmp.eq.s32.totalorder %s11, 0
      %p173 = por %p171, %p172
      %p174 = scmp.ne.s32.totalorder %s163, %s166
      %p175 = scmp.eq.s32.totalorder %s16, 1
      %p176 = por %p174, %p175
      %p177 = scmp.ne.s32.totalorder %s166, %s167
      %p178 = scmp.eq.s32.totalorder %s16, 0
      %p179 = por %p177, %p178
      %p180 = scmp.ne.s32.totalorder %s166, %s167
      %p181 = scmp.eq.s32.totalorder %s17, 1
      %p182 = por %p180, %p181
      %p184 = scmp.ne.s32.totalorder %s167, %s183
      %p185 = scmp.eq.s32.totalorder %s17, 0
      %p186 = por %p184, %p185
      %p187 = scmp.le.s32.totalorder 1, %s11
      %p188 = scmp.lt.s32.totalorder %s11, 3
      %p189 = pnand %p187, %p188
      %p190 = pneg %p189
      // Predicated region
      $region9: #{simple_encoder3d_forward.4} parent=5 // pred_check
        _
      $region10: #{simple_encoder3d_forward.4} parent=5 // pred_check_branch
        %192 = sbr.rel (%p189) target = $region12
      $region11: #{simple_encoder3d_forward.4} parent=5 // pred_region
        %s193 = ssub.s32 %s11, 1
        // Predicated region
        $region13: #{simple_encoder3d_forward.4} parent=11 // pred_check
          %p194 = pneg %p75
        $region14: #{simple_encoder3d_forward.4} parent=11 // pred_check_branch
          %196 = sbr.rel (%p194) target = $region16
        $region15: #{simple_encoder3d_forward.4} parent=11 // pred_region
          %s197 = smul.u32 2, %s20
          %p198 = scmp.lt.s32.totalorder %s197, 1
          %s199 = scalar_select %p198, %s197, 1
          %s200 = smul.addr %s199, 4
          %s201 = smul.addr %s200, 4
          %s202 = scalar_lea.vmem %s1, %s201
          %s203 = smul.u32 2, %s20
        $region16: #{simple_encoder3d_forward.4} parent=11 // pred_fallthru
          _
        // Predicated region
        $region17: #{simple_encoder3d_forward.4} parent=11 // pred_check
          %p204 = pneg %p101
        $region18: #{simple_encoder3d_forward.4} parent=11 // pred_check_branch
          %206 = sbr.rel (%p204) target = $region20
        $region19: #{simple_encoder3d_forward.4} parent=11 // pred_region
          %s207 = smul.u32 2, %s20
          %p208 = scmp.lt.s32.totalorder %s207, 1
          %s209 = scalar_select %p208, %s207, 1
          %s210 = smul.addr %s209, 8
          %s211 = scalar_lea.vmem %s2, %s210
          %s212 = smul.u32 2, %s20
        $region20: #{simple_encoder3d_forward.4} parent=11 // pred_fallthru
          _
        // Predicated region
        $region21: #{simple_encoder3d_forward.4} parent=11 // pred_check
          %p213 = pneg %p127
        $region22: #{simple_encoder3d_forward.4} parent=11 // pred_check_branch
          %215 = sbr.rel (%p213) target = $region24
        $region23: #{simple_encoder3d_forward.4} parent=11 // pred_region
          %s216 = smul.u32 2, %s20
          %p217 = scmp.lt.s32.totalorder %s216, 1
          %s218 = scalar_select %p217, %s216, 1
          %s219 = smul.addr %s218, 8
          %s220 = scalar_lea.vmem %s3, %s219
          %s221 = smul.u32 2, %s20
        $region24: #{simple_encoder3d_forward.4} parent=11 // pred_fallthru
          _
        // Predicated region
        $region25: #{simple_encoder3d_forward.4} parent=11 // pred_check
          %p222 = pneg %p153
        $region26: #{simple_encoder3d_forward.4} parent=11 // pred_check_branch
          %224 = sbr.rel (%p222) target = $region28
        $region27: #{simple_encoder3d_forward.4} parent=11 // pred_region
          %s225 = smul.u32 2, %s20
          %p226 = scmp.lt.s32.totalorder %s225, 1
          %s227 = scalar_select %p226, %s225, 1
          %s228 = smul.addr %s227, 8
          %s229 = scalar_lea.vmem %s4, %s228
          %s230 = smul.u32 2, %s20
        $region28: #{simple_encoder3d_forward.4} parent=11 // pred_fallthru
          _
      $region12: #{simple_encoder3d_forward.4} parent=5 // pred_fallthru
        _
      %p231 = scmp.lt.s32.totalorder %s11, 2
      // Predicated region
      $region29: #{simple_encoder3d_forward.4} parent=5 // pred_check
        %p232 = pneg %p231
      $region30: #{simple_encoder3d_forward.4} parent=5 // pred_check_branch
        %234 = sbr.rel (%p232) target = $region32
      $region31: #{simple_encoder3d_forward.4} parent=5 // pred_region
        // Predicated region
        $region33: #{simple_encoder3d_forward.4} parent=31 // pred_check
          %p235 = pneg %p43
        $region34: #{simple_encoder3d_forward.4} parent=31 // pred_check_branch
          %237 = sbr.rel (%p235) target = $region36
        $region35: #{simple_encoder3d_forward.4} parent=31 // pred_region
          %s238 = sand.u32 %s33, 1
          %s239 = sand.u32 %s33, 1
          %s240 = smul.addr %s239, 1024
          %s241 = scalar_lea.vmem [#allocation5], %s240
          %s242 = smul.u32 4, %s19
          %s243 = smul.addr %s242, 4
          %s244 = scalar_lea.vmem %s0, %s243
          // Predicated region
          $region37: #{simple_encoder3d_forward.4} parent=35 // pred_check
            _
          $region38: #{simple_encoder3d_forward.4} parent=35 // pred_check_branch
            %246 = sbr.rel (0) target = $region40
          $region39: #{simple_encoder3d_forward.4} parent=35 // pred_region
            // Predicated region
            $region41: #{simple_encoder3d_forward.4} parent=39 // pred_check
              _
            $region42: #{simple_encoder3d_forward.4} parent=39 // pred_check_branch
              %248 = sbr.rel (0) target = $region44
            $region43: #{simple_encoder3d_forward.4} parent=39 // pred_region
              loop: start=0, step=1, limit=1
              $region45: #{simple_encoder3d_forward.4} parent=43 // loop_pre_header
                _
              $region46: #{simple_encoder3d_forward.4} parent=43 // loop_header
                %s250 = sphi 0, %s254
                %p251 = scmp.ge.s32.totalorder %s250, 1
                %s255 = sphi %s244, %s244
                %s256 = sphi %s241, %s241
              $region47: #{simple_encoder3d_forward.4} parent=43 // loop_header_branch
                %253 = sbr.rel (%p251) target = $region51
              $region48: #{simple_encoder3d_forward.4} parent=43 // loop_body
                %v257 = vld [vmem:[%s255] sm:$0xff]
                %258 = vst [vmem:[%s256] sm:$0xff] %v257
                %v259 = vld [vmem:[%s255 + $0x8] sm:$0xff]
                %260 = vst [vmem:[%s256 + $0x8] sm:$0xff] %v259
                %v261 = vld [vmem:[%s255 + $0x20] sm:$0xff]
                %262 = vst [vmem:[%s256 + $0x10] sm:$0xff] %v261
                %v263 = vld [vmem:[%s255 + $0x28] sm:$0xff]
                %264 = vst [vmem:[%s256 + $0x18] sm:$0xff] %v263
                %v265 = vld [vmem:[%s255 + $0x40] sm:$0xff]
                %266 = vst [vmem:[%s256 + $0x20] sm:$0xff] %v265
                %v267 = vld [vmem:[%s255 + $0x48] sm:$0xff]
                %268 = vst [vmem:[%s256 + $0x28] sm:$0xff] %v267
                %v269 = vld [vmem:[%s255 + $0x60] sm:$0xff]
                %270 = vst [vmem:[%s256 + $0x30] sm:$0xff] %v269
                %v271 = vld [vmem:[%s255 + $0x68] sm:$0xff]
                %272 = vst [vmem:[%s256 + $0x38] sm:$0xff] %v271
                %v273 = vld [vmem:[%s255 + $0x80] sm:$0xff]
                %274 = vst [vmem:[%s256 + $0x40] sm:$0xff] %v273
                %v275 = vld [vmem:[%s255 + $0x88] sm:$0xff]
                %276 = vst [vmem:[%s256 + $0x48] sm:$0xff] %v275
                %v277 = vld [vmem:[%s255 + $0xa0] sm:$0xff]
                %278 = vst [vmem:[%s256 + $0x50] sm:$0xff] %v277
                %v279 = vld [vmem:[%s255 + $0xa8] sm:$0xff]
                %280 = vst [vmem:[%s256 + $0x58] sm:$0xff] %v279
                %v281 = vld [vmem:[%s255 + $0xc0] sm:$0xff]
                %282 = vst [vmem:[%s256 + $0x60] sm:$0xff] %v281
                %v283 = vld [vmem:[%s255 + $0xc8] sm:$0xff]
                %284 = vst [vmem:[%s256 + $0x68] sm:$0xff] %v283
                %v285 = vld [vmem:[%s255 + $0xe0] sm:$0xff]
                %286 = vst [vmem:[%s256 + $0x70] sm:$0xff] %v285
                %v287 = vld [vmem:[%s255 + $0xe8] sm:$0xff]
                %288 = vst [vmem:[%s256 + $0x78] sm:$0xff] %v287
                %v289 = vld [vmem:[%s255 + $0x100] sm:$0xff]
                %290 = vst [vmem:[%s256 + $0x80] sm:$0xff] %v289
                %v291 = vld [vmem:[%s255 + $0x108] sm:$0xff]
                %292 = vst [vmem:[%s256 + $0x88] sm:$0xff] %v291
                %v293 = vld [vmem:[%s255 + $0x120] sm:$0xff]
                %294 = vst [vmem:[%s256 + $0x90] sm:$0xff] %v293
                %v295 = vld [vmem:[%s255 + $0x128] sm:$0xff]
                %296 = vst [vmem:[%s256 + $0x98] sm:$0xff] %v295
                %v297 = vld [vmem:[%s255 + $0x140] sm:$0xff]
                %298 = vst [vmem:[%s256 + $0xa0] sm:$0xff] %v297
                %v299 = vld [vmem:[%s255 + $0x148] sm:$0xff]
                %300 = vst [vmem:[%s256 + $0xa8] sm:$0xff] %v299
                %v301 = vld [vmem:[%s255 + $0x160] sm:$0xff]
                %302 = vst [vmem:[%s256 + $0xb0] sm:$0xff] %v301
                %v303 = vld [vmem:[%s255 + $0x168] sm:$0xff]
                %304 = vst [vmem:[%s256 + $0xb8] sm:$0xff] %v303
                %v305 = vld [vmem:[%s255 + $0x180] sm:$0xff]
                %306 = vst [vmem:[%s256 + $0xc0] sm:$0xff] %v305
                %v307 = vld [vmem:[%s255 + $0x188] sm:$0xff]
                %308 = vst [vmem:[%s256 + $0xc8] sm:$0xff] %v307
                %v309 = vld [vmem:[%s255 + $0x1a0] sm:$0xff]
                %310 = vst [vmem:[%s256 + $0xd0] sm:$0xff] %v309
                %v311 = vld [vmem:[%s255 + $0x1a8] sm:$0xff]
                %312 = vst [vmem:[%s256 + $0xd8] sm:$0xff] %v311
                %v313 = vld [vmem:[%s255 + $0x1c0] sm:$0xff]
                %314 = vst [vmem:[%s256 + $0xe0] sm:$0xff] %v313
                %v315 = vld [vmem:[%s255 + $0x1c8] sm:$0xff]
                %316 = vst [vmem:[%s256 + $0xe8] sm:$0xff] %v315
                %v317 = vld [vmem:[%s255 + $0x1e0] sm:$0xff]
                %318 = vst [vmem:[%s256 + $0xf0] sm:$0xff] %v317
                %v319 = vld [vmem:[%s255 + $0x1e8] sm:$0xff]
                %320 = vst [vmem:[%s256 + $0xf8] sm:$0xff] %v319
                %v321 = vld [vmem:[%s255 + $0x200] sm:$0xff]
                %322 = vst [vmem:[%s256 + $0x100] sm:$0xff] %v321
                %v323 = vld [vmem:[%s255 + $0x208] sm:$0xff]
                %324 = vst [vmem:[%s256 + $0x108] sm:$0xff] %v323
                %v325 = vld [vmem:[%s255 + $0x220] sm:$0xff]
                %326 = vst [vmem:[%s256 + $0x110] sm:$0xff] %v325
                %v327 = vld [vmem:[%s255 + $0x228] sm:$0xff]
                %328 = vst [vmem:[%s256 + $0x118] sm:$0xff] %v327
                %v329 = vld [vmem:[%s255 + $0x240] sm:$0xff]
                %330 = vst [vmem:[%s256 + $0x120] sm:$0xff] %v329
                %v331 = vld [vmem:[%s255 + $0x248] sm:$0xff]
                %332 = vst [vmem:[%s256 + $0x128] sm:$0xff] %v331
                %v333 = vld [vmem:[%s255 + $0x260] sm:$0xff]
                %334 = vst [vmem:[%s256 + $0x130] sm:$0xff] %v333
                %v335 = vld [vmem:[%s255 + $0x268] sm:$0xff]
                %336 = vst [vmem:[%s256 + $0x138] sm:$0xff] %v335
                %v337 = vld [vmem:[%s255 + $0x280] sm:$0xff]
                %338 = vst [vmem:[%s256 + $0x140] sm:$0xff] %v337
                %v339 = vld [vmem:[%s255 + $0x288] sm:$0xff]
                %340 = vst [vmem:[%s256 + $0x148] sm:$0xff] %v339
                %v341 = vld [vmem:[%s255 + $0x2a0] sm:$0xff]
                %342 = vst [vmem:[%s256 + $0x150] sm:$0xff] %v341
                %v343 = vld [vmem:[%s255 + $0x2a8] sm:$0xff]
                %344 = vst [vmem:[%s256 + $0x158] sm:$0xff] %v343
                %v345 = vld [vmem:[%s255 + $0x2c0] sm:$0xff]
                %346 = vst [vmem:[%s256 + $0x160] sm:$0xff] %v345
                %v347 = vld [vmem:[%s255 + $0x2c8] sm:$0xff]
                %348 = vst [vmem:[%s256 + $0x168] sm:$0xff] %v347
                %v349 = vld [vmem:[%s255 + $0x2e0] sm:$0xff]
                %350 = vst [vmem:[%s256 + $0x170] sm:$0xff] %v349
                %v351 = vld [vmem:[%s255 + $0x2e8] sm:$0xff]
                %352 = vst [vmem:[%s256 + $0x178] sm:$0xff] %v351
                %v353 = vld [vmem:[%s255 + $0x300] sm:$0xff]
                %354 = vst [vmem:[%s256 + $0x180] sm:$0xff] %v353
                %v355 = vld [vmem:[%s255 + $0x308] sm:$0xff]
                %356 = vst [vmem:[%s256 + $0x188] sm:$0xff] %v355
                %v357 = vld [vmem:[%s255 + $0x320] sm:$0xff]
                %358 = vst [vmem:[%s256 + $0x190] sm:$0xff] %v357
                %v359 = vld [vmem:[%s255 + $0x328] sm:$0xff]
                %360 = vst [vmem:[%s256 + $0x198] sm:$0xff] %v359
                %v361 = vld [vmem:[%s255 + $0x340] sm:$0xff]
                %362 = vst [vmem:[%s256 + $0x1a0] sm:$0xff] %v361
                %v363 = vld [vmem:[%s255 + $0x348] sm:$0xff]
                %364 = vst [vmem:[%s256 + $0x1a8] sm:$0xff] %v363
                %v365 = vld [vmem:[%s255 + $0x360] sm:$0xff]
                %366 = vst [vmem:[%s256 + $0x1b0] sm:$0xff] %v365
                %v367 = vld [vmem:[%s255 + $0x368] sm:$0xff]
                %368 = vst [vmem:[%s256 + $0x1b8] sm:$0xff] %v367
                %v369 = vld [vmem:[%s255 + $0x380] sm:$0xff]
                %370 = vst [vmem:[%s256 + $0x1c0] sm:$0xff] %v369
                %v371 = vld [vmem:[%s255 + $0x388] sm:$0xff]
                %372 = vst [vmem:[%s256 + $0x1c8] sm:$0xff] %v371
                %v373 = vld [vmem:[%s255 + $0x3a0] sm:$0xff]
                %374 = vst [vmem:[%s256 + $0x1d0] sm:$0xff] %v373
                %v375 = vld [vmem:[%s255 + $0x3a8] sm:$0xff]
                %376 = vst [vmem:[%s256 + $0x1d8] sm:$0xff] %v375
                %v377 = vld [vmem:[%s255 + $0x3c0] sm:$0xff]
                %378 = vst [vmem:[%s256 + $0x1e0] sm:$0xff] %v377
                %v379 = vld [vmem:[%s255 + $0x3c8] sm:$0xff]
                %380 = vst [vmem:[%s256 + $0x1e8] sm:$0xff] %v379
                %v381 = vld [vmem:[%s255 + $0x3e0] sm:$0xff]
                %382 = vst [vmem:[%s256 + $0x1f0] sm:$0xff] %v381
                %v383 = vld [vmem:[%s255 + $0x3e8] sm:$0xff]
                %384 = vst [vmem:[%s256 + $0x1f8] sm:$0xff] %v383
                %v385 = vld [vmem:[%s255 + $0x400] sm:$0xff]
                %386 = vst [vmem:[%s256 + $0x200] sm:$0xff] %v385
                %v387 = vld [vmem:[%s255 + $0x408] sm:$0xff]
                %388 = vst [vmem:[%s256 + $0x208] sm:$0xff] %v387
                %v389 = vld [vmem:[%s255 + $0x420] sm:$0xff]
                %390 = vst [vmem:[%s256 + $0x210] sm:$0xff] %v389
                %v391 = vld [vmem:[%s255 + $0x428] sm:$0xff]
                %392 = vst [vmem:[%s256 + $0x218] sm:$0xff] %v391
                %v393 = vld [vmem:[%s255 + $0x440] sm:$0xff]
                %394 = vst [vmem:[%s256 + $0x220] sm:$0xff] %v393
                %v395 = vld [vmem:[%s255 + $0x448] sm:$0xff]
                %396 = vst [vmem:[%s256 + $0x228] sm:$0xff] %v395
                %v397 = vld [vmem:[%s255 + $0x460] sm:$0xff]
                %398 = vst [vmem:[%s256 + $0x230] sm:$0xff] %v397
                %v399 = vld [vmem:[%s255 + $0x468] sm:$0xff]
                %400 = vst [vmem:[%s256 + $0x238] sm:$0xff] %v399
                %v401 = vld [vmem:[%s255 + $0x480] sm:$0xff]
                %402 = vst [vmem:[%s256 + $0x240] sm:$0xff] %v401
                %v403 = vld [vmem:[%s255 + $0x488] sm:$0xff]
                %404 = vst [vmem:[%s256 + $0x248] sm:$0xff] %v403
                %v405 = vld [vmem:[%s255 + $0x4a0] sm:$0xff]
                %406 = vst [vmem:[%s256 + $0x250] sm:$0xff] %v405
                %v407 = vld [vmem:[%s255 + $0x4a8] sm:$0xff]
                %408 = vst [vmem:[%s256 + $0x258] sm:$0xff] %v407
                %v409 = vld [vmem:[%s255 + $0x4c0] sm:$0xff]
                %410 = vst [vmem:[%s256 + $0x260] sm:$0xff] %v409
                %v411 = vld [vmem:[%s255 + $0x4c8] sm:$0xff]
                %412 = vst [vmem:[%s256 + $0x268] sm:$0xff] %v411
                %v413 = vld [vmem:[%s255 + $0x4e0] sm:$0xff]
                %414 = vst [vmem:[%s256 + $0x270] sm:$0xff] %v413
                %v415 = vld [vmem:[%s255 + $0x4e8] sm:$0xff]
                %416 = vst [vmem:[%s256 + $0x278] sm:$0xff] %v415
                %v417 = vld [vmem:[%s255 + $0x500] sm:$0xff]
                %418 = vst [vmem:[%s256 + $0x280] sm:$0xff] %v417
                %v419 = vld [vmem:[%s255 + $0x508] sm:$0xff]
                %420 = vst [vmem:[%s256 + $0x288] sm:$0xff] %v419
                %v421 = vld [vmem:[%s255 + $0x520] sm:$0xff]
                %422 = vst [vmem:[%s256 + $0x290] sm:$0xff] %v421
                %v423 = vld [vmem:[%s255 + $0x528] sm:$0xff]
                %424 = vst [vmem:[%s256 + $0x298] sm:$0xff] %v423
                %v425 = vld [vmem:[%s255 + $0x540] sm:$0xff]
                %426 = vst [vmem:[%s256 + $0x2a0] sm:$0xff] %v425
                %v427 = vld [vmem:[%s255 + $0x548] sm:$0xff]
                %428 = vst [vmem:[%s256 + $0x2a8] sm:$0xff] %v427
                %v429 = vld [vmem:[%s255 + $0x560] sm:$0xff]
                %430 = vst [vmem:[%s256 + $0x2b0] sm:$0xff] %v429
                %v431 = vld [vmem:[%s255 + $0x568] sm:$0xff]
                %432 = vst [vmem:[%s256 + $0x2b8] sm:$0xff] %v431
                %v433 = vld [vmem:[%s255 + $0x580] sm:$0xff]
                %434 = vst [vmem:[%s256 + $0x2c0] sm:$0xff] %v433
                %v435 = vld [vmem:[%s255 + $0x588] sm:$0xff]
                %436 = vst [vmem:[%s256 + $0x2c8] sm:$0xff] %v435
                %v437 = vld [vmem:[%s255 + $0x5a0] sm:$0xff]
                %438 = vst [vmem:[%s256 + $0x2d0] sm:$0xff] %v437
                %v439 = vld [vmem:[%s255 + $0x5a8] sm:$0xff]
                %440 = vst [vmem:[%s256 + $0x2d8] sm:$0xff] %v439
                %v441 = vld [vmem:[%s255 + $0x5c0] sm:$0xff]
                %442 = vst [vmem:[%s256 + $0x2e0] sm:$0xff] %v441
                %v443 = vld [vmem:[%s255 + $0x5c8] sm:$0xff]
                %444 = vst [vmem:[%s256 + $0x2e8] sm:$0xff] %v443
                %v445 = vld [vmem:[%s255 + $0x5e0] sm:$0xff]
                %446 = vst [vmem:[%s256 + $0x2f0] sm:$0xff] %v445
                %v447 = vld [vmem:[%s255 + $0x5e8] sm:$0xff]
                %448 = vst [vmem:[%s256 + $0x2f8] sm:$0xff] %v447
                %v449 = vld [vmem:[%s255 + $0x600] sm:$0xff]
                %450 = vst [vmem:[%s256 + $0x300] sm:$0xff] %v449
                %v451 = vld [vmem:[%s255 + $0x608] sm:$0xff]
                %452 = vst [vmem:[%s256 + $0x308] sm:$0xff] %v451
                %v453 = vld [vmem:[%s255 + $0x620] sm:$0xff]
                %454 = vst [vmem:[%s256 + $0x310] sm:$0xff] %v453
                %v455 = vld [vmem:[%s255 + $0x628] sm:$0xff]
                %456 = vst [vmem:[%s256 + $0x318] sm:$0xff] %v455
                %v457 = vld [vmem:[%s255 + $0x640] sm:$0xff]
                %458 = vst [vmem:[%s256 + $0x320] sm:$0xff] %v457
                %v459 = vld [vmem:[%s255 + $0x648] sm:$0xff]
                %460 = vst [vmem:[%s256 + $0x328] sm:$0xff] %v459
                %v461 = vld [vmem:[%s255 + $0x660] sm:$0xff]
                %462 = vst [vmem:[%s256 + $0x330] sm:$0xff] %v461
                %v463 = vld [vmem:[%s255 + $0x668] sm:$0xff]
                %464 = vst [vmem:[%s256 + $0x338] sm:$0xff] %v463
                %v465 = vld [vmem:[%s255 + $0x680] sm:$0xff]
                %466 = vst [vmem:[%s256 + $0x340] sm:$0xff] %v465
                %v467 = vld [vmem:[%s255 + $0x688] sm:$0xff]
                %468 = vst [vmem:[%s256 + $0x348] sm:$0xff] %v467
                %v469 = vld [vmem:[%s255 + $0x6a0] sm:$0xff]
                %470 = vst [vmem:[%s256 + $0x350] sm:$0xff] %v469
                %v471 = vld [vmem:[%s255 + $0x6a8] sm:$0xff]
                %472 = vst [vmem:[%s256 + $0x358] sm:$0xff] %v471
                %v473 = vld [vmem:[%s255 + $0x6c0] sm:$0xff]
                %474 = vst [vmem:[%s256 + $0x360] sm:$0xff] %v473
                %v475 = vld [vmem:[%s255 + $0x6c8] sm:$0xff]
                %476 = vst [vmem:[%s256 + $0x368] sm:$0xff] %v475
                %v477 = vld [vmem:[%s255 + $0x6e0] sm:$0xff]
                %478 = vst [vmem:[%s256 + $0x370] sm:$0xff] %v477
                %v479 = vld [vmem:[%s255 + $0x6e8] sm:$0xff]
                %480 = vst [vmem:[%s256 + $0x378] sm:$0xff] %v479
                %v481 = vld [vmem:[%s255 + $0x700] sm:$0xff]
                %482 = vst [vmem:[%s256 + $0x380] sm:$0xff] %v481
                %v483 = vld [vmem:[%s255 + $0x708] sm:$0xff]
                %484 = vst [vmem:[%s256 + $0x388] sm:$0xff] %v483
                %v485 = vld [vmem:[%s255 + $0x720] sm:$0xff]
                %486 = vst [vmem:[%s256 + $0x390] sm:$0xff] %v485
                %v487 = vld [vmem:[%s255 + $0x728] sm:$0xff]
                %488 = vst [vmem:[%s256 + $0x398] sm:$0xff] %v487
                %v489 = vld [vmem:[%s255 + $0x740] sm:$0xff]
                %490 = vst [vmem:[%s256 + $0x3a0] sm:$0xff] %v489
                %v491 = vld [vmem:[%s255 + $0x748] sm:$0xff]
                %492 = vst [vmem:[%s256 + $0x3a8] sm:$0xff] %v491
                %v493 = vld [vmem:[%s255 + $0x760] sm:$0xff]
                %494 = vst [vmem:[%s256 + $0x3b0] sm:$0xff] %v493
                %v495 = vld [vmem:[%s255 + $0x768] sm:$0xff]
                %496 = vst [vmem:[%s256 + $0x3b8] sm:$0xff] %v495
                %v497 = vld [vmem:[%s255 + $0x780] sm:$0xff]
                %498 = vst [vmem:[%s256 + $0x3c0] sm:$0xff] %v497
                %v499 = vld [vmem:[%s255 + $0x788] sm:$0xff]
                %500 = vst [vmem:[%s256 + $0x3c8] sm:$0xff] %v499
                %v501 = vld [vmem:[%s255 + $0x7a0] sm:$0xff]
                %502 = vst [vmem:[%s256 + $0x3d0] sm:$0xff] %v501
                %v503 = vld [vmem:[%s255 + $0x7a8] sm:$0xff]
                %504 = vst [vmem:[%s256 + $0x3d8] sm:$0xff] %v503
                %v505 = vld [vmem:[%s255 + $0x7c0] sm:$0xff]
                %506 = vst [vmem:[%s256 + $0x3e0] sm:$0xff] %v505
                %v507 = vld [vmem:[%s255 + $0x7c8] sm:$0xff]
                %508 = vst [vmem:[%s256 + $0x3e8] sm:$0xff] %v507
                %v509 = vld [vmem:[%s255 + $0x7e0] sm:$0xff]
                %510 = vst [vmem:[%s256 + $0x3f0] sm:$0xff] %v509
                %v511 = vld [vmem:[%s255 + $0x7e8] sm:$0xff]
                %512 = vst [vmem:[%s256 + $0x3f8] sm:$0xff] %v511
              $region49: #{simple_encoder3d_forward.4} parent=43 // loop_footer
                %s254 = sadd.s32 1, %s250
              $region50: #{simple_encoder3d_forward.4} parent=43 // loop_footer_branch
                %249 = sbr.rel target = $region46
              $region51: #{simple_encoder3d_forward.4} parent=43 // loop_exit
                _
            $region44: #{simple_encoder3d_forward.4} parent=39 // pred_fallthru
              _
            // Predicated region
            $region52: #{simple_encoder3d_forward.4} parent=39 // pred_check
              _
            $region53: #{simple_encoder3d_forward.4} parent=39 // pred_check_branch
              %514 = sbr.rel target = $region55
            $region54: #{simple_encoder3d_forward.4} parent=39 // pred_region
              _
            $region55: #{simple_encoder3d_forward.4} parent=39 // pred_fallthru
              _
          $region40: #{simple_encoder3d_forward.4} parent=35 // pred_fallthru
            _
          %515 = vnop
        $region36: #{simple_encoder3d_forward.4} parent=31 // pred_fallthru
          _
      $region32: #{simple_encoder3d_forward.4} parent=5 // pred_fallthru
        _
      %p516 = scmp.le.s32.totalorder 1, %s11
      %p517 = scmp.lt.s32.totalorder %s11, 3
      %p518 = pnand %p516, %p517
      %p519 = pneg %p518
      // Predicated region
      $region56: #{simple_encoder3d_forward.4} parent=5 // pred_check
        _
      $region57: #{simple_encoder3d_forward.4} parent=5 // pred_check_branch
        %521 = sbr.rel (%p518) target = $region59
      $region58: #{simple_encoder3d_forward.4} parent=5 // pred_region
        %s522 = ssub.s32 %s11, 1
        %s523 = sand.u32 %s36, 1
        %s524 = sand.u32 %s36, 1
        %s525 = smul.addr %s524, 1024
        %s526 = scalar_lea.vmem [#allocation5], %s525
        // Predicated region
        $region60: #{simple_encoder3d_forward.4} parent=58 // pred_check
          %p527 = pneg %p49
        $region61: #{simple_encoder3d_forward.4} parent=58 // pred_check_branch
          %529 = sbr.rel (%p527) target = $region63
        $region62: #{simple_encoder3d_forward.4} parent=58 // pred_region
          _
        $region63: #{simple_encoder3d_forward.4} parent=58 // pred_fallthru
          _
        %s530 = sand.u32 %s36, 1
        %s531 = sand.u32 %s36, 1
        %s532 = smul.addr %s531, 1024
        %s533 = scalar_lea.vmem [#allocation5], %s532
        %p534 = pneg %p49
        %p535 = pneg %p46
        %s536 = smul.u32 2, %s20
        %p537 = scmp.lt.s32.totalorder %s536, 1
        %s538 = scalar_select %p537, %s536, 1
        %s539 = smul.addr %s538, 4
        %s540 = smul.addr %s539, 4
        %s541 = scalar_lea.vmem %s1, %s540
        %p542 = pneg %p75
        %p543 = pneg %p72
        %s544 = smul.u32 2, %s20
        %p545 = scmp.lt.s32.totalorder %s544, 1
        %s546 = scalar_select %p545, %s544, 1
        %s547 = smul.addr %s546, 8
        %s548 = scalar_lea.vmem %s2, %s547
        %p549 = pneg %p101
        %p550 = pneg %p98
        %s551 = smul.u32 2, %s20
        %p552 = scmp.lt.s32.totalorder %s551, 1
        %s553 = scalar_select %p552, %s551, 1
        %s554 = smul.addr %s553, 8
        %s555 = scalar_lea.vmem %s3, %s554
        %p556 = pneg %p127
        %p557 = pneg %p124
        %s558 = smul.u32 2, %s20
        %p559 = scmp.lt.s32.totalorder %s558, 1
        %s560 = scalar_select %p559, %s558, 1
        %s561 = smul.addr %s560, 8
        %s562 = scalar_lea.vmem %s4, %s561
        %p563 = pneg %p153
        %p564 = pneg %p150
        %p565 = pneg %p179
        %p566 = pneg %p176
        %s567 = smul.u32 2, %s20
        %p568 = scmp.lt.s32.totalorder %s567, 1
        %s569 = scalar_select %p568, %s567, 1
        %s570 = smul.addr %s569, 8
        %s571 = smul.addr %s570, 4
        %s572 = scalar_lea.vmem %s5, %s571
        %s573 = smul.u32 4, %s21
        %s574 = smul.u32 2, %s20
        %p575 = scmp.lt.s32.totalorder %s574, 1
        %s576 = scalar_select %p575, %s574, 1
        %s577 = smul.addr %s576, 4
        %s578 = smul.addr %s577, 4
        %s579 = scalar_lea.vmem %s1, %s578
        %s580 = smul.u32 2, %s20
        %s581 = smul.u32 2, %s20
        %p582 = scmp.lt.s32.totalorder %s581, 1
        %s583 = scalar_select %p582, %s581, 1
        %s584 = smul.addr %s583, 8
        %s585 = scalar_lea.vmem %s2, %s584
        %s586 = smul.u32 2, %s20
        %s587 = smul.u32 2, %s20
        %p588 = scmp.lt.s32.totalorder %s587, 1
        %s589 = scalar_select %p588, %s587, 1
        %s590 = smul.addr %s589, 8
        %s591 = scalar_lea.vmem %s3, %s590
        %s592 = smul.u32 2, %s20
        %s593 = smul.u32 2, %s20
        %p594 = scmp.lt.s32.totalorder %s593, 1
        %s595 = scalar_select %p594, %s593, 1
        %s596 = smul.addr %s595, 8
        %s597 = scalar_lea.vmem %s4, %s596
        %s598 = smul.u32 2, %s20
        %s599 = smul.u32 2, %s20
        %p600 = scmp.lt.s32.totalorder %s599, 1
        %s601 = scalar_select %p600, %s599, 1
        %s602 = smul.addr %s601, 8
        %s603 = smul.addr %s602, 4
        %s604 = scalar_lea.vmem %s5, %s603
        %s605 = smul.u32 2, %s20
        %p606 = scmp.eq.s32.totalorder %s21, 0
        // Predicated region
        $region64: #{simple_encoder3d_forward.4} parent=58 // pred_check
          %p607 = pneg %p606
        $region65: #{simple_encoder3d_forward.4} parent=58 // pred_check_branch
          %609 = sbr.rel (%p607) target = $region67
        $region66: #{simple_encoder3d_forward.4} parent=58 // pred_region
          %vm610 = vcmask 7168
          %611 = vst.msk [vmem:[#allocation3] sm:$0xff] %vm610, 0.0
          %612 = vst.msk [vmem:[#allocation3 + $0x8] sm:$0xff] %vm610, 0.0
          %613 = vst.msk [vmem:[#allocation4] sm:$0xff] %vm610, 0.0
          %614 = vst.msk [vmem:[#allocation4 + $0x8] sm:$0xff] %vm610, 0.0
        $region67: #{simple_encoder3d_forward.4} parent=58 // pred_fallthru
          _
        %v615 = vld [vmem:[%s579] sm:$0xff]
        %v616 = vld [vmem:[%s579 + $0x8] sm:$0xff]
        %v617 = vld [vmem:[%s579 + $0x10] sm:$0xff]
        %v618 = vld [vmem:[%s579 + $0x18] sm:$0xff]
        %v619 = vld [vmem:[%s526] sm:$0xff]
        %v620 = vld [vmem:[%s526 + $0x8] sm:$0xff]
        %v621 = vld [vmem:[%s526 + $0x10] sm:$0xff]
        %v622 = vld [vmem:[%s526 + $0x18] sm:$0xff]
        %v623 = vld [vmem:[%s526 + $0x20] sm:$0xff]
        %v624 = vld [vmem:[%s526 + $0x28] sm:$0xff]
        %v625 = vld [vmem:[%s526 + $0x30] sm:$0xff]
        %v626 = vld [vmem:[%s526 + $0x38] sm:$0xff]
        %v627 = vld [vmem:[%s526 + $0x40] sm:$0xff]
        %v628 = vld [vmem:[%s526 + $0x48] sm:$0xff]
        %v629 = vld [vmem:[%s526 + $0x50] sm:$0xff]
        %v630 = vld [vmem:[%s526 + $0x58] sm:$0xff]
        %v631 = vld [vmem:[%s526 + $0x60] sm:$0xff]
        %v632 = vld [vmem:[%s526 + $0x68] sm:$0xff]
        %v633 = vld [vmem:[%s526 + $0x70] sm:$0xff]
        %v634 = vld [vmem:[%s526 + $0x78] sm:$0xff]
        %v635 = vld [vmem:[%s526 + $0x80] sm:$0xff]
        %v636 = vld [vmem:[%s526 + $0x88] sm:$0xff]
        %v637 = vld [vmem:[%s526 + $0x90] sm:$0xff]
        %v638 = vld [vmem:[%s526 + $0x98] sm:$0xff]
        %v639 = vld [vmem:[%s526 + $0xa0] sm:$0xff]
        %v640 = vld [vmem:[%s526 + $0xa8] sm:$0xff]
        %v641 = vld [vmem:[%s526 + $0xb0] sm:$0xff]
        %v642 = vld [vmem:[%s526 + $0xb8] sm:$0xff]
        %v643 = vld [vmem:[%s526 + $0xc0] sm:$0xff]
        %v644 = vld [vmem:[%s526 + $0xc8] sm:$0xff]
        %v645 = vld [vmem:[%s526 + $0xd0] sm:$0xff]
        %v646 = vld [vmem:[%s526 + $0xd8] sm:$0xff]
        %v647 = vld [vmem:[%s526 + $0xe0] sm:$0xff]
        %v648 = vld [vmem:[%s526 + $0xe8] sm:$0xff]
        %v649 = vld [vmem:[%s526 + $0xf0] sm:$0xff]
        %v650 = vld [vmem:[%s526 + $0xf8] sm:$0xff]
        %v651 = vld [vmem:[%s526 + $0x100] sm:$0xff]
        %v652 = vld [vmem:[%s526 + $0x108] sm:$0xff]
        %v653 = vld [vmem:[%s526 + $0x110] sm:$0xff]
        %v654 = vld [vmem:[%s526 + $0x118] sm:$0xff]
        %v655 = vld [vmem:[%s526 + $0x120] sm:$0xff]
        %v656 = vld [vmem:[%s526 + $0x128] sm:$0xff]
        %v657 = vld [vmem:[%s526 + $0x130] sm:$0xff]
        %v658 = vld [vmem:[%s526 + $0x138] sm:$0xff]
        %v659 = vld [vmem:[%s526 + $0x140] sm:$0xff]
        %v660 = vld [vmem:[%s526 + $0x148] sm:$0xff]
        %v661 = vld [vmem:[%s526 + $0x150] sm:$0xff]
        %v662 = vld [vmem:[%s526 + $0x158] sm:$0xff]
        %v663 = vld [vmem:[%s526 + $0x160] sm:$0xff]
        %v664 = vld [vmem:[%s526 + $0x168] sm:$0xff]
        %v665 = vld [vmem:[%s526 + $0x170] sm:$0xff]
        %v666 = vld [vmem:[%s526 + $0x178] sm:$0xff]
        %v667 = vld [vmem:[%s526 + $0x180] sm:$0xff]
        %v668 = vld [vmem:[%s526 + $0x188] sm:$0xff]
        %v669 = vld [vmem:[%s526 + $0x190] sm:$0xff]
        %v670 = vld [vmem:[%s526 + $0x198] sm:$0xff]
        %v671 = vld [vmem:[%s526 + $0x1a0] sm:$0xff]
        %v672 = vld [vmem:[%s526 + $0x1a8] sm:$0xff]
        %v673 = vld [vmem:[%s526 + $0x1b0] sm:$0xff]
        %v674 = vld [vmem:[%s526 + $0x1b8] sm:$0xff]
        %v675 = vld [vmem:[%s526 + $0x1c0] sm:$0xff]
        %v676 = vld [vmem:[%s526 + $0x1c8] sm:$0xff]
        %v677 = vld [vmem:[%s526 + $0x1d0] sm:$0xff]
        %v678 = vld [vmem:[%s526 + $0x1d8] sm:$0xff]
        %v679 = vld [vmem:[%s526 + $0x1e0] sm:$0xff]
        %v680 = vld [vmem:[%s526 + $0x1e8] sm:$0xff]
        %v681 = vld [vmem:[%s526 + $0x1f0] sm:$0xff]
        %v682 = vld [vmem:[%s526 + $0x1f8] sm:$0xff]
        %v683 = vld [vmem:[%s526 + $0x200] sm:$0xff]
        %v684 = vld [vmem:[%s526 + $0x208] sm:$0xff]
        %v685 = vld [vmem:[%s526 + $0x210] sm:$0xff]
        %v686 = vld [vmem:[%s526 + $0x218] sm:$0xff]
        %v687 = vld [vmem:[%s526 + $0x220] sm:$0xff]
        %v688 = vld [vmem:[%s526 + $0x228] sm:$0xff]
        %v689 = vld [vmem:[%s526 + $0x230] sm:$0xff]
        %v690 = vld [vmem:[%s526 + $0x238] sm:$0xff]
        %v691 = vld [vmem:[%s526 + $0x240] sm:$0xff]
        %v692 = vld [vmem:[%s526 + $0x248] sm:$0xff]
        %v693 = vld [vmem:[%s526 + $0x250] sm:$0xff]
        %v694 = vld [vmem:[%s526 + $0x258] sm:$0xff]
        %v695 = vld [vmem:[%s526 + $0x260] sm:$0xff]
        %v696 = vld [vmem:[%s526 + $0x268] sm:$0xff]
        %v697 = vld [vmem:[%s526 + $0x270] sm:$0xff]
        %v698 = vld [vmem:[%s526 + $0x278] sm:$0xff]
        %v699 = vld [vmem:[%s526 + $0x280] sm:$0xff]
        %v700 = vld [vmem:[%s526 + $0x288] sm:$0xff]
        %v701 = vld [vmem:[%s526 + $0x290] sm:$0xff]
        %v702 = vld [vmem:[%s526 + $0x298] sm:$0xff]
        %v703 = vld [vmem:[%s526 + $0x2a0] sm:$0xff]
        %v704 = vld [vmem:[%s526 + $0x2a8] sm:$0xff]
        %v705 = vld [vmem:[%s526 + $0x2b0] sm:$0xff]
        %v706 = vld [vmem:[%s526 + $0x2b8] sm:$0xff]
        %v707 = vld [vmem:[%s526 + $0x2c0] sm:$0xff]
        %v708 = vld [vmem:[%s526 + $0x2c8] sm:$0xff]
        %v709 = vld [vmem:[%s526 + $0x2d0] sm:$0xff]
        %v710 = vld [vmem:[%s526 + $0x2d8] sm:$0xff]
        %v711 = vld [vmem:[%s526 + $0x2e0] sm:$0xff]
        %v712 = vld [vmem:[%s526 + $0x2e8] sm:$0xff]
        %v713 = vld [vmem:[%s526 + $0x2f0] sm:$0xff]
        %v714 = vld [vmem:[%s526 + $0x2f8] sm:$0xff]
        %v715 = vld [vmem:[%s526 + $0x300] sm:$0xff]
        %v716 = vld [vmem:[%s526 + $0x308] sm:$0xff]
        %v717 = vld [vmem:[%s526 + $0x310] sm:$0xff]
        %v718 = vld [vmem:[%s526 + $0x318] sm:$0xff]
        %v719 = vld [vmem:[%s526 + $0x320] sm:$0xff]
        %v720 = vld [vmem:[%s526 + $0x328] sm:$0xff]
        %v721 = vld [vmem:[%s526 + $0x330] sm:$0xff]
        %v722 = vld [vmem:[%s526 + $0x338] sm:$0xff]
        %v723 = vld [vmem:[%s526 + $0x340] sm:$0xff]
        %v724 = vld [vmem:[%s526 + $0x348] sm:$0xff]
        %v725 = vld [vmem:[%s526 + $0x350] sm:$0xff]
        %v726 = vld [vmem:[%s526 + $0x358] sm:$0xff]
        %v727 = vld [vmem:[%s526 + $0x360] sm:$0xff]
        %v728 = vld [vmem:[%s526 + $0x368] sm:$0xff]
        %v729 = vld [vmem:[%s526 + $0x370] sm:$0xff]
        %v730 = vld [vmem:[%s526 + $0x378] sm:$0xff]
        %v731 = vld [vmem:[%s526 + $0x380] sm:$0xff]
        %v732 = vld [vmem:[%s526 + $0x388] sm:$0xff]
        %v733 = vld [vmem:[%s526 + $0x390] sm:$0xff]
        %v734 = vld [vmem:[%s526 + $0x398] sm:$0xff]
        %v735 = vld [vmem:[%s526 + $0x3a0] sm:$0xff]
        %v736 = vld [vmem:[%s526 + $0x3a8] sm:$0xff]
        %v737 = vld [vmem:[%s526 + $0x3b0] sm:$0xff]
        %v738 = vld [vmem:[%s526 + $0x3b8] sm:$0xff]
        %v739 = vld [vmem:[%s526 + $0x3c0] sm:$0xff]
        %v740 = vld [vmem:[%s526 + $0x3c8] sm:$0xff]
        %v741 = vld [vmem:[%s526 + $0x3d0] sm:$0xff]
        %v742 = vld [vmem:[%s526 + $0x3d8] sm:$0xff]
        %v743 = vld [vmem:[%s526 + $0x3e0] sm:$0xff]
        %v744 = vld [vmem:[%s526 + $0x3e8] sm:$0xff]
        %v745 = vld [vmem:[%s526 + $0x3f0] sm:$0xff]
        %v746 = vld [vmem:[%s526 + $0x3f8] sm:$0xff]
        %v747 = vld [vmem:[%s585] sm:$0xff]
        %v748 = vld [vmem:[%s585 + $0x8] sm:$0xff]
        %750 = vset.pattern.permute.xlu0 0
        %751 = vperm.xlu0 %750, %v747
        %v752 = vpop.permute.xlu0 %751
        %755 = vset.pattern.permute.xlu0 0
        %756 = vperm.xlu0 %755, %v748
        %v757 = vpop.permute.xlu0 %756
        %v763 = vunpack.c.l.b16 %v615
        %v764 = vunpack.c.h.b16 %v615
        %v765 = vunpack.c.l.b16 %v616
        %v766 = vunpack.c.h.b16 %v616
        %v767 = vunpack.c.l.b16 %v617
        %v768 = vunpack.c.h.b16 %v617
        %v769 = vunpack.c.l.b16 %v618
        %v770 = vunpack.c.h.b16 %v618
        %v771 = vpack.c.b16 %v767, %v763
        %v772 = vpack.c.b16 %v768, %v764
        %v773 = vpack.c.b16 %v769, %v765
        %v774 = vpack.c.b16 %v770, %v766
        %v907 = vunpack.c.l.b16 %v619
        %v908 = vunpack.c.h.b16 %v619
        %v909 = vunpack.c.l.b16 %v620
        %v910 = vunpack.c.h.b16 %v620
        %v911 = vunpack.c.l.b16 %v621
        %v912 = vunpack.c.h.b16 %v621
        %v913 = vunpack.c.l.b16 %v622
        %v914 = vunpack.c.h.b16 %v622
        %v915 = vunpack.c.l.b16 %v623
        %v916 = vunpack.c.h.b16 %v623
        %v917 = vunpack.c.l.b16 %v624
        %v918 = vunpack.c.h.b16 %v624
        %v919 = vunpack.c.l.b16 %v625
        %v920 = vunpack.c.h.b16 %v625
        %v921 = vunpack.c.l.b16 %v626
        %v922 = vunpack.c.h.b16 %v626
        %v923 = vunpack.c.l.b16 %v627
        %v924 = vunpack.c.h.b16 %v627
        %v925 = vunpack.c.l.b16 %v628
        %v926 = vunpack.c.h.b16 %v628
        %v927 = vunpack.c.l.b16 %v629
        %v928 = vunpack.c.h.b16 %v629
        %v929 = vunpack.c.l.b16 %v630
        %v930 = vunpack.c.h.b16 %v630
        %v931 = vunpack.c.l.b16 %v631
        %v932 = vunpack.c.h.b16 %v631
        %v933 = vunpack.c.l.b16 %v632
        %v934 = vunpack.c.h.b16 %v632
        %v935 = vunpack.c.l.b16 %v633
        %v936 = vunpack.c.h.b16 %v633
        %v937 = vunpack.c.l.b16 %v634
        %v938 = vunpack.c.h.b16 %v634
        %v939 = vunpack.c.l.b16 %v635
        %v940 = vunpack.c.h.b16 %v635
        %v941 = vunpack.c.l.b16 %v636
        %v942 = vunpack.c.h.b16 %v636
        %v943 = vunpack.c.l.b16 %v637
        %v944 = vunpack.c.h.b16 %v637
        %v945 = vunpack.c.l.b16 %v638
        %v946 = vunpack.c.h.b16 %v638
        %v947 = vunpack.c.l.b16 %v639
        %v948 = vunpack.c.h.b16 %v639
        %v949 = vunpack.c.l.b16 %v640
        %v950 = vunpack.c.h.b16 %v640
        %v951 = vunpack.c.l.b16 %v641
        %v952 = vunpack.c.h.b16 %v641
        %v953 = vunpack.c.l.b16 %v642
        %v954 = vunpack.c.h.b16 %v642
        %v955 = vunpack.c.l.b16 %v643
        %v956 = vunpack.c.h.b16 %v643
        %v957 = vunpack.c.l.b16 %v644
        %v958 = vunpack.c.h.b16 %v644
        %v959 = vunpack.c.l.b16 %v645
        %v960 = vunpack.c.h.b16 %v645
        %v961 = vunpack.c.l.b16 %v646
        %v962 = vunpack.c.h.b16 %v646
        %v963 = vunpack.c.l.b16 %v647
        %v964 = vunpack.c.h.b16 %v647
        %v965 = vunpack.c.l.b16 %v648
        %v966 = vunpack.c.h.b16 %v648
        %v967 = vunpack.c.l.b16 %v649
        %v968 = vunpack.c.h.b16 %v649
        %v969 = vunpack.c.l.b16 %v650
        %v970 = vunpack.c.h.b16 %v650
        %v971 = vunpack.c.l.b16 %v651
        %v972 = vunpack.c.h.b16 %v651
        %v973 = vunpack.c.l.b16 %v652
        %v974 = vunpack.c.h.b16 %v652
        %v975 = vunpack.c.l.b16 %v653
        %v976 = vunpack.c.h.b16 %v653
        %v977 = vunpack.c.l.b16 %v654
        %v978 = vunpack.c.h.b16 %v654
        %v979 = vunpack.c.l.b16 %v655
        %v980 = vunpack.c.h.b16 %v655
        %v981 = vunpack.c.l.b16 %v656
        %v982 = vunpack.c.h.b16 %v656
        %v983 = vunpack.c.l.b16 %v657
        %v984 = vunpack.c.h.b16 %v657
        %v985 = vunpack.c.l.b16 %v658
        %v986 = vunpack.c.h.b16 %v658
        %v987 = vunpack.c.l.b16 %v659
        %v988 = vunpack.c.h.b16 %v659
        %v989 = vunpack.c.l.b16 %v660
        %v990 = vunpack.c.h.b16 %v660
        %v991 = vunpack.c.l.b16 %v661
        %v992 = vunpack.c.h.b16 %v661
        %v993 = vunpack.c.l.b16 %v662
        %v994 = vunpack.c.h.b16 %v662
        %v995 = vunpack.c.l.b16 %v663
        %v996 = vunpack.c.h.b16 %v663
        %v997 = vunpack.c.l.b16 %v664
        %v998 = vunpack.c.h.b16 %v664
        %v999 = vunpack.c.l.b16 %v665
        %v1000 = vunpack.c.h.b16 %v665
        %v1001 = vunpack.c.l.b16 %v666
        %v1002 = vunpack.c.h.b16 %v666
        %v1003 = vunpack.c.l.b16 %v667
        %v1004 = vunpack.c.h.b16 %v667
        %v1005 = vunpack.c.l.b16 %v668
        %v1006 = vunpack.c.h.b16 %v668
        %v1007 = vunpack.c.l.b16 %v669
        %v1008 = vunpack.c.h.b16 %v669
        %v1009 = vunpack.c.l.b16 %v670
        %v1010 = vunpack.c.h.b16 %v670
        %v1011 = vunpack.c.l.b16 %v671
        %v1012 = vunpack.c.h.b16 %v671
        %v1013 = vunpack.c.l.b16 %v672
        %v1014 = vunpack.c.h.b16 %v672
        %v1015 = vunpack.c.l.b16 %v673
        %v1016 = vunpack.c.h.b16 %v673
        %v1017 = vunpack.c.l.b16 %v674
        %v1018 = vunpack.c.h.b16 %v674
        %v1019 = vunpack.c.l.b16 %v675
        %v1020 = vunpack.c.h.b16 %v675
        %v1021 = vunpack.c.l.b16 %v676
        %v1022 = vunpack.c.h.b16 %v676
        %v1023 = vunpack.c.l.b16 %v677
        %v1024 = vunpack.c.h.b16 %v677
        %v1025 = vunpack.c.l.b16 %v678
        %v1026 = vunpack.c.h.b16 %v678
        %v1027 = vunpack.c.l.b16 %v679
        %v1028 = vunpack.c.h.b16 %v679
        %v1029 = vunpack.c.l.b16 %v680
        %v1030 = vunpack.c.h.b16 %v680
        %v1031 = vunpack.c.l.b16 %v681
        %v1032 = vunpack.c.h.b16 %v681
        %v1033 = vunpack.c.l.b16 %v682
        %v1034 = vunpack.c.h.b16 %v682
        %v1035 = vunpack.c.l.b16 %v683
        %v1036 = vunpack.c.h.b16 %v683
        %v1037 = vunpack.c.l.b16 %v684
        %v1038 = vunpack.c.h.b16 %v684
        %v1039 = vunpack.c.l.b16 %v685
        %v1040 = vunpack.c.h.b16 %v685
        %v1041 = vunpack.c.l.b16 %v686
        %v1042 = vunpack.c.h.b16 %v686
        %v1043 = vunpack.c.l.b16 %v687
        %v1044 = vunpack.c.h.b16 %v687
        %v1045 = vunpack.c.l.b16 %v688
        %v1046 = vunpack.c.h.b16 %v688
        %v1047 = vunpack.c.l.b16 %v689
        %v1048 = vunpack.c.h.b16 %v689
        %v1049 = vunpack.c.l.b16 %v690
        %v1050 = vunpack.c.h.b16 %v690
        %v1051 = vunpack.c.l.b16 %v691
        %v1052 = vunpack.c.h.b16 %v691
        %v1053 = vunpack.c.l.b16 %v692
        %v1054 = vunpack.c.h.b16 %v692
        %v1055 = vunpack.c.l.b16 %v693
        %v1056 = vunpack.c.h.b16 %v693
        %v1057 = vunpack.c.l.b16 %v694
        %v1058 = vunpack.c.h.b16 %v694
        %v1059 = vunpack.c.l.b16 %v695
        %v1060 = vunpack.c.h.b16 %v695
        %v1061 = vunpack.c.l.b16 %v696
        %v1062 = vunpack.c.h.b16 %v696
        %v1063 = vunpack.c.l.b16 %v697
        %v1064 = vunpack.c.h.b16 %v697
        %v1065 = vunpack.c.l.b16 %v698
        %v1066 = vunpack.c.h.b16 %v698
        %v1067 = vunpack.c.l.b16 %v699
        %v1068 = vunpack.c.h.b16 %v699
        %v1069 = vunpack.c.l.b16 %v700
        %v1070 = vunpack.c.h.b16 %v700
        %v1071 = vunpack.c.l.b16 %v701
        %v1072 = vunpack.c.h.b16 %v701
        %v1073 = vunpack.c.l.b16 %v702
        %v1074 = vunpack.c.h.b16 %v702
        %v1075 = vunpack.c.l.b16 %v703
        %v1076 = vunpack.c.h.b16 %v703
        %v1077 = vunpack.c.l.b16 %v704
        %v1078 = vunpack.c.h.b16 %v704
        %v1079 = vunpack.c.l.b16 %v705
        %v1080 = vunpack.c.h.b16 %v705
        %v1081 = vunpack.c.l.b16 %v706
        %v1082 = vunpack.c.h.b16 %v706
        %v1083 = vunpack.c.l.b16 %v707
        %v1084 = vunpack.c.h.b16 %v707
        %v1085 = vunpack.c.l.b16 %v708
        %v1086 = vunpack.c.h.b16 %v708
        %v1087 = vunpack.c.l.b16 %v709
        %v1088 = vunpack.c.h.b16 %v709
        %v1089 = vunpack.c.l.b16 %v710
        %v1090 = vunpack.c.h.b16 %v710
        %v1091 = vunpack.c.l.b16 %v711
        %v1092 = vunpack.c.h.b16 %v711
        %v1093 = vunpack.c.l.b16 %v712
        %v1094 = vunpack.c.h.b16 %v712
        %v1095 = vunpack.c.l.b16 %v713
        %v1096 = vunpack.c.h.b16 %v713
        %v1097 = vunpack.c.l.b16 %v714
        %v1098 = vunpack.c.h.b16 %v714
        %v1099 = vunpack.c.l.b16 %v715
        %v1100 = vunpack.c.h.b16 %v715
        %v1101 = vunpack.c.l.b16 %v716
        %v1102 = vunpack.c.h.b16 %v716
        %v1103 = vunpack.c.l.b16 %v717
        %v1104 = vunpack.c.h.b16 %v717
        %v1105 = vunpack.c.l.b16 %v718
        %v1106 = vunpack.c.h.b16 %v718
        %v1107 = vunpack.c.l.b16 %v719
        %v1108 = vunpack.c.h.b16 %v719
        %v1109 = vunpack.c.l.b16 %v720
        %v1110 = vunpack.c.h.b16 %v720
        %v1111 = vunpack.c.l.b16 %v721
        %v1112 = vunpack.c.h.b16 %v721
        %v1113 = vunpack.c.l.b16 %v722
        %v1114 = vunpack.c.h.b16 %v722
        %v1115 = vunpack.c.l.b16 %v723
        %v1116 = vunpack.c.h.b16 %v723
        %v1117 = vunpack.c.l.b16 %v724
        %v1118 = vunpack.c.h.b16 %v724
        %v1119 = vunpack.c.l.b16 %v725
        %v1120 = vunpack.c.h.b16 %v725
        %v1121 = vunpack.c.l.b16 %v726
        %v1122 = vunpack.c.h.b16 %v726
        %v1123 = vunpack.c.l.b16 %v727
        %v1124 = vunpack.c.h.b16 %v727
        %v1125 = vunpack.c.l.b16 %v728
        %v1126 = vunpack.c.h.b16 %v728
        %v1127 = vunpack.c.l.b16 %v729
        %v1128 = vunpack.c.h.b16 %v729
        %v1129 = vunpack.c.l.b16 %v730
        %v1130 = vunpack.c.h.b16 %v730
        %v1131 = vunpack.c.l.b16 %v731
        %v1132 = vunpack.c.h.b16 %v731
        %v1133 = vunpack.c.l.b16 %v732
        %v1134 = vunpack.c.h.b16 %v732
        %v1135 = vunpack.c.l.b16 %v733
        %v1136 = vunpack.c.h.b16 %v733
        %v1137 = vunpack.c.l.b16 %v734
        %v1138 = vunpack.c.h.b16 %v734
        %v1139 = vunpack.c.l.b16 %v735
        %v1140 = vunpack.c.h.b16 %v735
        %v1141 = vunpack.c.l.b16 %v736
        %v1142 = vunpack.c.h.b16 %v736
        %v1143 = vunpack.c.l.b16 %v737
        %v1144 = vunpack.c.h.b16 %v737
        %v1145 = vunpack.c.l.b16 %v738
        %v1146 = vunpack.c.h.b16 %v738
        %v1147 = vunpack.c.l.b16 %v739
        %v1148 = vunpack.c.h.b16 %v739
        %v1149 = vunpack.c.l.b16 %v740
        %v1150 = vunpack.c.h.b16 %v740
        %v1151 = vunpack.c.l.b16 %v741
        %v1152 = vunpack.c.h.b16 %v741
        %v1153 = vunpack.c.l.b16 %v742
        %v1154 = vunpack.c.h.b16 %v742
        %v1155 = vunpack.c.l.b16 %v743
        %v1156 = vunpack.c.h.b16 %v743
        %v1157 = vunpack.c.l.b16 %v744
        %v1158 = vunpack.c.h.b16 %v744
        %v1159 = vunpack.c.l.b16 %v745
        %v1160 = vunpack.c.h.b16 %v745
        %v1161 = vunpack.c.l.b16 %v746
        %v1162 = vunpack.c.h.b16 %v746
        %v1163 = vpack.c.b16 %v911, %v907
        %v1164 = vpack.c.b16 %v912, %v908
        %v1165 = vpack.c.b16 %v913, %v909
        %v1166 = vpack.c.b16 %v914, %v910
        %v1167 = vpack.c.b16 %v919, %v915
        %v1168 = vpack.c.b16 %v920, %v916
        %v1169 = vpack.c.b16 %v921, %v917
        %v1170 = vpack.c.b16 %v922, %v918
        %v1171 = vpack.c.b16 %v927, %v923
        %v1172 = vpack.c.b16 %v928, %v924
        %v1173 = vpack.c.b16 %v929, %v925
        %v1174 = vpack.c.b16 %v930, %v926
        %v1175 = vpack.c.b16 %v935, %v931
        %v1176 = vpack.c.b16 %v936, %v932
        %v1177 = vpack.c.b16 %v937, %v933
        %v1178 = vpack.c.b16 %v938, %v934
        %v1179 = vpack.c.b16 %v943, %v939
        %v1180 = vpack.c.b16 %v944, %v940
        %v1181 = vpack.c.b16 %v945, %v941
        %v1182 = vpack.c.b16 %v946, %v942
        %v1183 = vpack.c.b16 %v951, %v947
        %v1184 = vpack.c.b16 %v952, %v948
        %v1185 = vpack.c.b16 %v953, %v949
        %v1186 = vpack.c.b16 %v954, %v950
        %v1187 = vpack.c.b16 %v959, %v955
        %v1188 = vpack.c.b16 %v960, %v956
        %v1189 = vpack.c.b16 %v961, %v957
        %v1190 = vpack.c.b16 %v962, %v958
        %v1191 = vpack.c.b16 %v967, %v963
        %v1192 = vpack.c.b16 %v968, %v964
        %v1193 = vpack.c.b16 %v969, %v965
        %v1194 = vpack.c.b16 %v970, %v966
        %v1195 = vpack.c.b16 %v975, %v971
        %v1196 = vpack.c.b16 %v976, %v972
        %v1197 = vpack.c.b16 %v977, %v973
        %v1198 = vpack.c.b16 %v978, %v974
        %v1199 = vpack.c.b16 %v983, %v979
        %v1200 = vpack.c.b16 %v984, %v980
        %v1201 = vpack.c.b16 %v985, %v981
        %v1202 = vpack.c.b16 %v986, %v982
        %v1203 = vpack.c.b16 %v991, %v987
        %v1204 = vpack.c.b16 %v992, %v988
        %v1205 = vpack.c.b16 %v993, %v989
        %v1206 = vpack.c.b16 %v994, %v990
        %v1207 = vpack.c.b16 %v999, %v995
        %v1208 = vpack.c.b16 %v1000, %v996
        %v1209 = vpack.c.b16 %v1001, %v997
        %v1210 = vpack.c.b16 %v1002, %v998
        %v1211 = vpack.c.b16 %v1007, %v1003
        %v1212 = vpack.c.b16 %v1008, %v1004
        %v1213 = vpack.c.b16 %v1009, %v1005
        %v1214 = vpack.c.b16 %v1010, %v1006
        %v1215 = vpack.c.b16 %v1015, %v1011
        %v1216 = vpack.c.b16 %v1016, %v1012
        %v1217 = vpack.c.b16 %v1017, %v1013
        %v1218 = vpack.c.b16 %v1018, %v1014
        %v1219 = vpack.c.b16 %v1023, %v1019
        %v1220 = vpack.c.b16 %v1024, %v1020
        %v1221 = vpack.c.b16 %v1025, %v1021
        %v1222 = vpack.c.b16 %v1026, %v1022
        %v1223 = vpack.c.b16 %v1031, %v1027
        %v1224 = vpack.c.b16 %v1032, %v1028
        %v1225 = vpack.c.b16 %v1033, %v1029
        %v1226 = vpack.c.b16 %v1034, %v1030
        %v1227 = vpack.c.b16 %v1039, %v1035
        %v1228 = vpack.c.b16 %v1040, %v1036
        %v1229 = vpack.c.b16 %v1041, %v1037
        %v1230 = vpack.c.b16 %v1042, %v1038
        %v1231 = vpack.c.b16 %v1047, %v1043
        %v1232 = vpack.c.b16 %v1048, %v1044
        %v1233 = vpack.c.b16 %v1049, %v1045
        %v1234 = vpack.c.b16 %v1050, %v1046
        %v1235 = vpack.c.b16 %v1055, %v1051
        %v1236 = vpack.c.b16 %v1056, %v1052
        %v1237 = vpack.c.b16 %v1057, %v1053
        %v1238 = vpack.c.b16 %v1058, %v1054
        %v1239 = vpack.c.b16 %v1063, %v1059
        %v1240 = vpack.c.b16 %v1064, %v1060
        %v1241 = vpack.c.b16 %v1065, %v1061
        %v1242 = vpack.c.b16 %v1066, %v1062
        %v1243 = vpack.c.b16 %v1071, %v1067
        %v1244 = vpack.c.b16 %v1072, %v1068
        %v1245 = vpack.c.b16 %v1073, %v1069
        %v1246 = vpack.c.b16 %v1074, %v1070
        %v1247 = vpack.c.b16 %v1079, %v1075
        %v1248 = vpack.c.b16 %v1080, %v1076
        %v1249 = vpack.c.b16 %v1081, %v1077
        %v1250 = vpack.c.b16 %v1082, %v1078
        %v1251 = vpack.c.b16 %v1087, %v1083
        %v1252 = vpack.c.b16 %v1088, %v1084
        %v1253 = vpack.c.b16 %v1089, %v1085
        %v1254 = vpack.c.b16 %v1090, %v1086
        %v1255 = vpack.c.b16 %v1095, %v1091
        %v1256 = vpack.c.b16 %v1096, %v1092
        %v1257 = vpack.c.b16 %v1097, %v1093
        %v1258 = vpack.c.b16 %v1098, %v1094
        %v1259 = vpack.c.b16 %v1103, %v1099
        %v1260 = vpack.c.b16 %v1104, %v1100
        %v1261 = vpack.c.b16 %v1105, %v1101
        %v1262 = vpack.c.b16 %v1106, %v1102
        %v1263 = vpack.c.b16 %v1111, %v1107
        %v1264 = vpack.c.b16 %v1112, %v1108
        %v1265 = vpack.c.b16 %v1113, %v1109
        %v1266 = vpack.c.b16 %v1114, %v1110
        %v1267 = vpack.c.b16 %v1119, %v1115
        %v1268 = vpack.c.b16 %v1120, %v1116
        %v1269 = vpack.c.b16 %v1121, %v1117
        %v1270 = vpack.c.b16 %v1122, %v1118
        %v1271 = vpack.c.b16 %v1127, %v1123
        %v1272 = vpack.c.b16 %v1128, %v1124
        %v1273 = vpack.c.b16 %v1129, %v1125
        %v1274 = vpack.c.b16 %v1130, %v1126
        %v1275 = vpack.c.b16 %v1135, %v1131
        %v1276 = vpack.c.b16 %v1136, %v1132
        %v1277 = vpack.c.b16 %v1137, %v1133
        %v1278 = vpack.c.b16 %v1138, %v1134
        %v1279 = vpack.c.b16 %v1143, %v1139
        %v1280 = vpack.c.b16 %v1144, %v1140
        %v1281 = vpack.c.b16 %v1145, %v1141
        %v1282 = vpack.c.b16 %v1146, %v1142
        %v1283 = vpack.c.b16 %v1151, %v1147
        %v1284 = vpack.c.b16 %v1152, %v1148
        %v1285 = vpack.c.b16 %v1153, %v1149
        %v1286 = vpack.c.b16 %v1154, %v1150
        %v1287 = vpack.c.b16 %v1159, %v1155
        %v1288 = vpack.c.b16 %v1160, %v1156
        %v1289 = vpack.c.b16 %v1161, %v1157
        %v1290 = vpack.c.b16 %v1162, %v1158
        %1419 = vmatprep.subr.bf16.mxu0 %v1192
        %1420 = vmatpush1.bf16.msra.mxu0 %v1191
        %1421 = vmatprep.subr.bf16.mxu0 %v1188
        %1422 = vmatpush1.bf16.msra.mxu0 %v1187
        %1423 = vmatprep.subr.bf16.mxu0 %v1184
        %1424 = vmatpush1.bf16.msra.mxu0 %v1183
        %1425 = vmatprep.subr.bf16.mxu0 %v1180
        %1426 = vmatpush1.bf16.msra.mxu0 %v1179
        %1427 = vmatprep.subr.bf16.mxu0 %v1176
        %1428 = vmatpush1.bf16.msra.mxu0 %v1175
        %1429 = vmatprep.subr.bf16.mxu0 %v1172
        %1430 = vmatpush1.bf16.msra.mxu0 %v1171
        %1431 = vmatprep.subr.bf16.mxu0 %v1168
        %1432 = vmatpush1.bf16.msra.mxu0 %v1167
        %1433 = vmatprep.subr.bf16.mxu0 %v1164
        %1434 = vmatpush1.bf16.msra.mxu0 %v1163
        %1435 = vmatprep.subr.bf16.mxu0 %v1224
        %1436 = vmatpush2.bf16.msra.mxu0 %v1223
        %1437 = vmatprep.subr.bf16.mxu0 %v1220
        %1438 = vmatpush2.bf16.msra.mxu0 %v1219
        %1439 = vmatprep.subr.bf16.mxu0 %v1216
        %1440 = vmatpush2.bf16.msra.mxu0 %v1215
        %1441 = vmatprep.subr.bf16.mxu0 %v1212
        %1442 = vmatpush2.bf16.msra.mxu0 %v1211
        %1443 = vmatprep.subr.bf16.mxu0 %v1208
        %1444 = vmatpush2.bf16.msra.mxu0 %v1207
        %1445 = vmatprep.subr.bf16.mxu0 %v1204
        %1446 = vmatpush2.bf16.msra.mxu0 %v1203
        %1447 = vmatprep.subr.bf16.mxu0 %v1200
        %1448 = vmatpush2.bf16.msra.mxu0 %v1199
        %1449 = vmatprep.subr.bf16.mxu0 %v1196
        %1450 = vmatpush2.bf16.msra.mxu0 %v1195
        %1451 = vmatprep.mubr.bf16.mxu0 %v772
        %1452 = vmatmul.mubr.bf16.gmra.mxu0 %v771
        %v1453 = vpop.f32.mrf.mxu0
        %v1454 = vadd.f32 %v752, %v1453
        %v1455 = vpop.f32.mrf.mxu0
        %v1456 = vadd.f32 %v752, %v1455
        %v1457 = vpop.f32.mrf.mxu0
        %v1458 = vadd.f32 %v757, %v1457
        %v1459 = vpop.f32.mrf.mxu0
        %v1460 = vadd.f32 %v757, %v1459
        %1461 = vdwg.mxu0
        %1462 = vmatprep.subr.bf16.mxu0 %v1256
        %1463 = vmatpush1.bf16.msra.mxu0 %v1255
        %1464 = vmatprep.subr.bf16.mxu0 %v1252
        %1465 = vmatpush1.bf16.msra.mxu0 %v1251
        %1466 = vmatprep.subr.bf16.mxu0 %v1248
        %1467 = vmatpush1.bf16.msra.mxu0 %v1247
        %1468 = vmatprep.subr.bf16.mxu0 %v1244
        %1469 = vmatpush1.bf16.msra.mxu0 %v1243
        %1470 = vmatprep.subr.bf16.mxu0 %v1240
        %1471 = vmatpush1.bf16.msra.mxu0 %v1239
        %1472 = vmatprep.subr.bf16.mxu0 %v1236
        %1473 = vmatpush1.bf16.msra.mxu0 %v1235
        %1474 = vmatprep.subr.bf16.mxu0 %v1232
        %1475 = vmatpush1.bf16.msra.mxu0 %v1231
        %1476 = vmatprep.subr.bf16.mxu0 %v1228
        %1477 = vmatpush1.bf16.msra.mxu0 %v1227
        %1478 = vmatprep.subr.bf16.mxu0 %v1288
        %1479 = vmatpush2.bf16.msra.mxu0 %v1287
        %1480 = vmatprep.subr.bf16.mxu0 %v1284
        %1481 = vmatpush2.bf16.msra.mxu0 %v1283
        %1482 = vmatprep.subr.bf16.mxu0 %v1280
        %1483 = vmatpush2.bf16.msra.mxu0 %v1279
        %1484 = vmatprep.subr.bf16.mxu0 %v1276
        %1485 = vmatpush2.bf16.msra.mxu0 %v1275
        %1486 = vmatprep.subr.bf16.mxu0 %v1272
        %1487 = vmatpush2.bf16.msra.mxu0 %v1271
        %1488 = vmatprep.subr.bf16.mxu0 %v1268
        %1489 = vmatpush2.bf16.msra.mxu0 %v1267
        %1490 = vmatprep.subr.bf16.mxu0 %v1264
        %1491 = vmatpush2.bf16.msra.mxu0 %v1263
        %1492 = vmatprep.subr.bf16.mxu0 %v1260
        %1493 = vmatpush2.bf16.msra.mxu0 %v1259
        %1494 = vmatprep.mubr.bf16.mxu0 %v774
        %1495 = vmatmul.mubr.bf16.gmra.mxu0 %v773
        %v1496 = vpop.f32.mrf.mxu0
        %v1497 = vadd.f32 %v1454, %v1496
        %v1498 = vpop.f32.mrf.mxu0
        %v1499 = vadd.f32 %v1456, %v1498
        %v1500 = vpop.f32.mrf.mxu0
        %v1501 = vadd.f32 %v1458, %v1500
        %v1502 = vpop.f32.mrf.mxu0
        %v1503 = vadd.f32 %v1460, %v1502
        %1504 = vdwg.mxu0
        %1505 = vmatprep.subr.bf16.mxu0 %v1194
        %1506 = vmatpush1.bf16.msra.mxu0 %v1193
        %1507 = vmatprep.subr.bf16.mxu0 %v1190
        %1508 = vmatpush1.bf16.msra.mxu0 %v1189
        %1509 = vmatprep.subr.bf16.mxu0 %v1186
        %1510 = vmatpush1.bf16.msra.mxu0 %v1185
        %1511 = vmatprep.subr.bf16.mxu0 %v1182
        %1512 = vmatpush1.bf16.msra.mxu0 %v1181
        %1513 = vmatprep.subr.bf16.mxu0 %v1178
        %1514 = vmatpush1.bf16.msra.mxu0 %v1177
        %1515 = vmatprep.subr.bf16.mxu0 %v1174
        %1516 = vmatpush1.bf16.msra.mxu0 %v1173
        %1517 = vmatprep.subr.bf16.mxu0 %v1170
        %1518 = vmatpush1.bf16.msra.mxu0 %v1169
        %1519 = vmatprep.subr.bf16.mxu0 %v1166
        %1520 = vmatpush1.bf16.msra.mxu0 %v1165
        %1521 = vmatprep.subr.bf16.mxu0 %v1226
        %1522 = vmatpush2.bf16.msra.mxu0 %v1225
        %1523 = vmatprep.subr.bf16.mxu0 %v1222
        %1524 = vmatpush2.bf16.msra.mxu0 %v1221
        %1525 = vmatprep.subr.bf16.mxu0 %v1218
        %1526 = vmatpush2.bf16.msra.mxu0 %v1217
        %1527 = vmatprep.subr.bf16.mxu0 %v1214
        %1528 = vmatpush2.bf16.msra.mxu0 %v1213
        %1529 = vmatprep.subr.bf16.mxu0 %v1210
        %1530 = vmatpush2.bf16.msra.mxu0 %v1209
        %1531 = vmatprep.subr.bf16.mxu0 %v1206
        %1532 = vmatpush2.bf16.msra.mxu0 %v1205
        %1533 = vmatprep.subr.bf16.mxu0 %v1202
        %1534 = vmatpush2.bf16.msra.mxu0 %v1201
        %1535 = vmatprep.subr.bf16.mxu0 %v1198
        %1536 = vmatpush2.bf16.msra.mxu0 %v1197
        %1537 = vmatprep.mubr.bf16.mxu0 %v772
        %1538 = vmatmul.mubr.bf16.gmra.mxu0 %v771
        %v1539 = vpop.f32.mrf.mxu0
        %v1540 = vadd.f32 %v752, %v1539
        %v1541 = vpop.f32.mrf.mxu0
        %v1542 = vadd.f32 %v752, %v1541
        %v1543 = vpop.f32.mrf.mxu0
        %v1544 = vadd.f32 %v757, %v1543
        %v1545 = vpop.f32.mrf.mxu0
        %v1546 = vadd.f32 %v757, %v1545
        %1547 = vdwg.mxu0
        %1548 = vmatprep.subr.bf16.mxu0 %v1258
        %1549 = vmatpush1.bf16.msra.mxu0 %v1257
        %1550 = vmatprep.subr.bf16.mxu0 %v1254
        %1551 = vmatpush1.bf16.msra.mxu0 %v1253
        %1552 = vmatprep.subr.bf16.mxu0 %v1250
        %1553 = vmatpush1.bf16.msra.mxu0 %v1249
        %1554 = vmatprep.subr.bf16.mxu0 %v1246
        %1555 = vmatpush1.bf16.msra.mxu0 %v1245
        %1556 = vmatprep.subr.bf16.mxu0 %v1242
        %1557 = vmatpush1.bf16.msra.mxu0 %v1241
        %1558 = vmatprep.subr.bf16.mxu0 %v1238
        %1559 = vmatpush1.bf16.msra.mxu0 %v1237
        %1560 = vmatprep.subr.bf16.mxu0 %v1234
        %1561 = vmatpush1.bf16.msra.mxu0 %v1233
        %1562 = vmatprep.subr.bf16.mxu0 %v1230
        %1563 = vmatpush1.bf16.msra.mxu0 %v1229
        %1564 = vmatprep.subr.bf16.mxu0 %v1290
        %1565 = vmatpush2.bf16.msra.mxu0 %v1289
        %1566 = vmatprep.subr.bf16.mxu0 %v1286
        %1567 = vmatpush2.bf16.msra.mxu0 %v1285
        %1568 = vmatprep.subr.bf16.mxu0 %v1282
        %1569 = vmatpush2.bf16.msra.mxu0 %v1281
        %1570 = vmatprep.subr.bf16.mxu0 %v1278
        %1571 = vmatpush2.bf16.msra.mxu0 %v1277
        %1572 = vmatprep.subr.bf16.mxu0 %v1274
        %1573 = vmatpush2.bf16.msra.mxu0 %v1273
        %1574 = vmatprep.subr.bf16.mxu0 %v1270
        %1575 = vmatpush2.bf16.msra.mxu0 %v1269
        %1576 = vmatprep.subr.bf16.mxu0 %v1266
        %1577 = vmatpush2.bf16.msra.mxu0 %v1265
        %1578 = vmatprep.subr.bf16.mxu0 %v1262
        %1579 = vmatpush2.bf16.msra.mxu0 %v1261
        %1580 = vmatprep.mubr.bf16.mxu0 %v774
        %1581 = vmatmul.mubr.bf16.gmra.mxu0 %v773
        %v1582 = vpop.f32.mrf.mxu0
        %v1583 = vadd.f32 %v1540, %v1582
        %v1584 = vpop.f32.mrf.mxu0
        %v1585 = vadd.f32 %v1542, %v1584
        %v1586 = vpop.f32.mrf.mxu0
        %v1587 = vadd.f32 %v1544, %v1586
        %v1588 = vpop.f32.mrf.mxu0
        %v1589 = vadd.f32 %v1546, %v1588
        %1590 = vdwg.mxu0
        %vm1591 = vcmp.gt.f32.partialorder %v1497, 0.0
        %vm1592 = vcmp.gt.f32.partialorder %v1499, 0.0
        %vm1593 = vcmp.gt.f32.partialorder %v1583, 0.0
        %vm1594 = vcmp.gt.f32.partialorder %v1585, 0.0
        %vm1595 = vcmp.gt.f32.partialorder %v1501, 0.0
        %vm1596 = vcmp.gt.f32.partialorder %v1503, 0.0
        %vm1597 = vcmp.gt.f32.partialorder %v1587, 0.0
        %vm1598 = vcmp.gt.f32.partialorder %v1589, 0.0
        %v1599 = vmul.f32 %v1497, 0.01
        %v1600 = vmul.f32 %v1499, 0.01
        %v1601 = vmul.f32 %v1583, 0.01
        %v1602 = vmul.f32 %v1585, 0.01
        %v1603 = vmul.f32 %v1501, 0.01
        %v1604 = vmul.f32 %v1503, 0.01
        %v1605 = vmul.f32 %v1587, 0.01
        %v1606 = vmul.f32 %v1589, 0.01
        %v1607 = vsel %vm1591, %v1497, %v1599
        %v1608 = vsel %vm1592, %v1499, %v1600
        %v1609 = vsel %vm1593, %v1583, %v1601
        %v1610 = vsel %vm1594, %v1585, %v1602
        %v1611 = vsel %vm1595, %v1501, %v1603
        %v1612 = vsel %vm1596, %v1503, %v1604
        %v1613 = vsel %vm1597, %v1587, %v1605
        %v1614 = vsel %vm1598, %v1589, %v1606
        %v1615 = vld [vmem:[#allocation3] sm:$0xff]
        %v1616 = vld [vmem:[#allocation3 + $0x8] sm:$0xff]
        %v1617 = vadd.f32 %v1607, %v1608
        %v1618 = vadd.f32 %v1617, %v1609
        %v1619 = vadd.f32 %v1618, %v1610
        %1620 = vadd.xlane.f32.xlu0 %v1619
        %v1621 = vpop.xlane.xlu0 %1620
        %v1622 = vadd.f32 %v1611, %v1612
        %v1623 = vadd.f32 %v1622, %v1613
        %v1624 = vadd.f32 %v1623, %v1614
        %1625 = vadd.xlane.f32.xlu0 %v1624
        %v1626 = vpop.xlane.xlu0 %1625
        %v1627 = vadd.f32 %v1615, %v1621
        %v1628 = vadd.f32 %v1616, %v1626
        %vm1629 = vcmask 7168
        %1630 = vst.msk [vmem:[#allocation3] sm:$0xff] %vm1629, %v1627
        %1631 = vst.msk [vmem:[#allocation3 + $0x8] sm:$0xff] %vm1629, %v1628
        %v1632 = vld [vmem:[#allocation4] sm:$0xff]
        %v1633 = vld [vmem:[#allocation4 + $0x8] sm:$0xff]
        %v1634 = vmul.f32 %v1607, %v1607
        %v1635 = vmul.f32 %v1608, %v1608
        %v1636 = vmul.f32 %v1609, %v1609
        %v1637 = vmul.f32 %v1610, %v1610
        %v1638 = vmul.f32 %v1611, %v1611
        %v1639 = vmul.f32 %v1612, %v1612
        %v1640 = vmul.f32 %v1613, %v1613
        %v1641 = vmul.f32 %v1614, %v1614
        %v1642 = vadd.f32 %v1634, %v1635
        %v1643 = vadd.f32 %v1642, %v1636
        %v1644 = vadd.f32 %v1643, %v1637
        %1645 = vadd.xlane.f32.xlu0 %v1644
        %v1646 = vpop.xlane.xlu0 %1645
        %v1647 = vadd.f32 %v1638, %v1639
        %v1648 = vadd.f32 %v1647, %v1640
        %v1649 = vadd.f32 %v1648, %v1641
        %1650 = vadd.xlane.f32.xlu0 %v1649
        %v1651 = vpop.xlane.xlu0 %1650
        %v1652 = vadd.f32 %v1632, %v1646
        %v1653 = vadd.f32 %v1633, %v1651
        %1654 = vst.msk [vmem:[#allocation4] sm:$0xff] %vm1629, %v1652
        %1655 = vst.msk [vmem:[#allocation4 + $0x8] sm:$0xff] %vm1629, %v1653
        %s1656 = smul.u32 %s21, 512
        %s1657 = sshra.s32 %s1656, 7
        %s1658 = sand.u32 %s1656, 127
        %s1659 = smul.addr %s1657, 8
        %s1660 = scalar_lea.vmem [#allocation2], %s1659
        %1661 = vst [vmem:[%s1660] sm:$0xff] %v1607
        %1662 = vst [vmem:[%s1660 + $0x8] sm:$0xff] %v1608
        %1663 = vst [vmem:[%s1660 + $0x10] sm:$0xff] %v1609
        %1664 = vst [vmem:[%s1660 + $0x18] sm:$0xff] %v1610
        %1665 = vst [vmem:[%s1660 + $0x40] sm:$0xff] %v1611
        %1666 = vst [vmem:[%s1660 + $0x48] sm:$0xff] %v1612
        %1667 = vst [vmem:[%s1660 + $0x50] sm:$0xff] %v1613
        %1668 = vst [vmem:[%s1660 + $0x58] sm:$0xff] %v1614
        %p1669 = scmp.eq.s32.totalorder %s21, 1
        // Predicated region
        $region68: #{simple_encoder3d_forward.4} parent=58 // pred_check
          %p1670 = pneg %p1669
        $region69: #{simple_encoder3d_forward.4} parent=58 // pred_check_branch
          %1672 = sbr.rel (%p1670) target = $region71
        $region70: #{simple_encoder3d_forward.4} parent=58 // pred_region
          %v1673 = vld [vmem:[#allocation3] sm:$0xff]
          %v1674 = vld [vmem:[#allocation3 + $0x8] sm:$0xff]
          %v1675 = vmul.f32 %v1673, 0.0009765625
          %v1676 = vmul.f32 %v1674, 0.0009765625
          %v1677 = vld [vmem:[#allocation4] sm:$0xff]
          %v1678 = vld [vmem:[#allocation4 + $0x8] sm:$0xff]
          %v1679 = vmul.f32 %v1677, 0.0009765625
          %v1680 = vmul.f32 %v1678, 0.0009765625
          %v1681 = vmul.f32 %v1675, %v1675
          %v1682 = vmul.f32 %v1676, %v1676
          %v1683 = vsub.f32 %v1679, %v1681
          %v1684 = vsub.f32 %v1680, %v1682
          %v1685 = vmax.f32 %v1683, 0.0
          %v1686 = vmax.f32 %v1684, 0.0
          %v1687 = vld [vmem:[%s591] sm:$0xff]
          %v1688 = vld [vmem:[%s591 + $0x8] sm:$0xff]
          %v1689 = vadd.f32 %v1685, 1e-05
          %v1690 = vadd.f32 %v1686, 1e-05
          %v1691 = vrsqrt.pop %v1689
          %v1692 = vrsqrt.pop %v1690
          %v1693 = vmul.f32 %v1687, %v1691
          %v1694 = vmul.f32 %v1688, %v1692
          %v1695 = vld [vmem:[%s597] sm:$0xff]
          %v1696 = vld [vmem:[%s597 + $0x8] sm:$0xff]
          %v1697 = vmul.f32 %v1675, %v1693
          %v1698 = vmul.f32 %v1676, %v1694
          %v1699 = vsub.f32 %v1695, %v1697
          %v1700 = vsub.f32 %v1696, %v1698
          %v1701 = vld [vmem:[#allocation2] sm:$0xff]
          %v1702 = vld [vmem:[#allocation2 + $0x8] sm:$0xff]
          %v1703 = vld [vmem:[#allocation2 + $0x10] sm:$0xff]
          %v1704 = vld [vmem:[#allocation2 + $0x18] sm:$0xff]
          %v1705 = vld [vmem:[#allocation2 + $0x40] sm:$0xff]
          %v1706 = vld [vmem:[#allocation2 + $0x48] sm:$0xff]
          %v1707 = vld [vmem:[#allocation2 + $0x50] sm:$0xff]
          %v1708 = vld [vmem:[#allocation2 + $0x58] sm:$0xff]
          %1710 = vset.pattern.permute.xlu0 0
          %1711 = vperm.xlu0 %1710, %v1693
          %v1712 = vpop.permute.xlu0 %1711
          %1715 = vset.pattern.permute.xlu0 0
          %1716 = vperm.xlu0 %1715, %v1694
          %v1717 = vpop.permute.xlu0 %1716
          %v1719 = vmul.f32 %v1701, %v1712
          %v1720 = vmul.f32 %v1702, %v1712
          %v1721 = vmul.f32 %v1703, %v1712
          %v1722 = vmul.f32 %v1704, %v1712
          %v1723 = vmul.f32 %v1705, %v1717
          %v1724 = vmul.f32 %v1706, %v1717
          %v1725 = vmul.f32 %v1707, %v1717
          %v1726 = vmul.f32 %v1708, %v1717
          %1728 = vset.pattern.permute.xlu0 0
          %1729 = vperm.xlu0 %1728, %v1699
          %v1730 = vpop.permute.xlu0 %1729
          %1733 = vset.pattern.permute.xlu0 0
          %1734 = vperm.xlu0 %1733, %v1700
          %v1735 = vpop.permute.xlu0 %1734
          %v1737 = vadd.f32 %v1719, %v1730
          %v1738 = vadd.f32 %v1720, %v1730
          %v1739 = vadd.f32 %v1721, %v1730
          %v1740 = vadd.f32 %v1722, %v1730
          %v1741 = vadd.f32 %v1723, %v1735
          %v1742 = vadd.f32 %v1724, %v1735
          %v1743 = vadd.f32 %v1725, %v1735
          %v1744 = vadd.f32 %v1726, %v1735
          %v1745 = vpack.c.bf16 %v1741, %v1737
          %v1746 = vpack.c.bf16 %v1742, %v1738
          %v1747 = vpack.c.bf16 %v1743, %v1739
          %v1748 = vpack.c.bf16 %v1744, %v1740
          %v1753 = vunpack.c.l.b16 %v1745
          %v1754 = vunpack.c.l.b16 %v1746
          %v1755 = vunpack.c.l.b16 %v1747
          %v1756 = vunpack.c.l.b16 %v1748
          %v1757 = vunpack.c.h.b16 %v1745
          %v1758 = vunpack.c.h.b16 %v1746
          %v1759 = vunpack.c.h.b16 %v1747
          %v1760 = vunpack.c.h.b16 %v1748
          %v1761 = vpack.c.b16 %v1754, %v1753
          %v1762 = vpack.c.b16 %v1756, %v1755
          %v1763 = vpack.c.b16 %v1758, %v1757
          %v1764 = vpack.c.b16 %v1760, %v1759
          %1769 = vst [vmem:[%s604] sm:$0xff] %v1761
          %1770 = vst [vmem:[%s604 + $0x8] sm:$0xff] %v1762
          %1771 = vst [vmem:[%s604 + $0x20] sm:$0xff] %v1763
          %1772 = vst [vmem:[%s604 + $0x28] sm:$0xff] %v1764
          %v1773 = vld [vmem:[#allocation2 + $0x20] sm:$0xff]
          %v1774 = vld [vmem:[#allocation2 + $0x28] sm:$0xff]
          %v1775 = vld [vmem:[#allocation2 + $0x30] sm:$0xff]
          %v1776 = vld [vmem:[#allocation2 + $0x38] sm:$0xff]
          %v1777 = vld [vmem:[#allocation2 + $0x60] sm:$0xff]
          %v1778 = vld [vmem:[#allocation2 + $0x68] sm:$0xff]
          %v1779 = vld [vmem:[#allocation2 + $0x70] sm:$0xff]
          %v1780 = vld [vmem:[#allocation2 + $0x78] sm:$0xff]
          %v1781 = vmul.f32 %v1773, %v1712
          %v1782 = vmul.f32 %v1774, %v1712
          %v1783 = vmul.f32 %v1775, %v1712
          %v1784 = vmul.f32 %v1776, %v1712
          %v1785 = vmul.f32 %v1777, %v1717
          %v1786 = vmul.f32 %v1778, %v1717
          %v1787 = vmul.f32 %v1779, %v1717
          %v1788 = vmul.f32 %v1780, %v1717
          %v1789 = vadd.f32 %v1781, %v1730
          %v1790 = vadd.f32 %v1782, %v1730
          %v1791 = vadd.f32 %v1783, %v1730
          %v1792 = vadd.f32 %v1784, %v1730
          %v1793 = vadd.f32 %v1785, %v1735
          %v1794 = vadd.f32 %v1786, %v1735
          %v1795 = vadd.f32 %v1787, %v1735
          %v1796 = vadd.f32 %v1788, %v1735
          %v1797 = vpack.c.bf16 %v1793, %v1789
          %v1798 = vpack.c.bf16 %v1794, %v1790
          %v1799 = vpack.c.bf16 %v1795, %v1791
          %v1800 = vpack.c.bf16 %v1796, %v1792
          %v1805 = vunpack.c.l.b16 %v1797
          %v1806 = vunpack.c.l.b16 %v1798
          %v1807 = vunpack.c.l.b16 %v1799
          %v1808 = vunpack.c.l.b16 %v1800
          %v1809 = vunpack.c.h.b16 %v1797
          %v1810 = vunpack.c.h.b16 %v1798
          %v1811 = vunpack.c.h.b16 %v1799
          %v1812 = vunpack.c.h.b16 %v1800
          %v1813 = vpack.c.b16 %v1806, %v1805
          %v1814 = vpack.c.b16 %v1808, %v1807
          %v1815 = vpack.c.b16 %v1810, %v1809
          %v1816 = vpack.c.b16 %v1812, %v1811
          %1821 = vst [vmem:[%s604 + $0x10] sm:$0xff] %v1813
          %1822 = vst [vmem:[%s604 + $0x18] sm:$0xff] %v1814
          %1823 = vst [vmem:[%s604 + $0x30] sm:$0xff] %v1815
          %1824 = vst [vmem:[%s604 + $0x38] sm:$0xff] %v1816
        $region71: #{simple_encoder3d_forward.4} parent=58 // pred_fallthru
          _
        %s1825 = smul.u32 2, %s20
        %p1826 = scmp.lt.s32.totalorder %s1825, 1
        %s1827 = scalar_select %p1826, %s1825, 1
        %s1828 = smul.addr %s1827, 8
        %s1829 = smul.addr %s1828, 4
        %s1830 = scalar_lea.vmem %s5, %s1829
        // Predicated region
        $region72: #{simple_encoder3d_forward.4} parent=58 // pred_check
          %p1831 = pneg %p176
        $region73: #{simple_encoder3d_forward.4} parent=58 // pred_check_branch
          %1833 = sbr.rel (%p1831) target = $region75
        $region74: #{simple_encoder3d_forward.4} parent=58 // pred_region
          %s1834 = smul.u32 2, %s20
        $region75: #{simple_encoder3d_forward.4} parent=58 // pred_fallthru
          _
        // Predicated region
        $region76: #{simple_encoder3d_forward.4} parent=58 // pred_check
          %p1835 = pneg %p176
        $region77: #{simple_encoder3d_forward.4} parent=58 // pred_check_branch
          %1837 = sbr.rel (%p1835) target = $region79
        $region78: #{simple_encoder3d_forward.4} parent=58 // pred_region
          %s1838 = smul.u32 2, %s20
          %p1839 = scmp.lt.s32.totalorder %s1838, 1
          %s1840 = scalar_select %p1839, %s1838, 1
          %s1841 = smul.addr %s1840, 8
          %s1842 = smul.addr %s1841, 4
          %s1843 = scalar_lea.vmem %s5, %s1842
        $region79: #{simple_encoder3d_forward.4} parent=58 // pred_fallthru
          _
      $region59: #{simple_encoder3d_forward.4} parent=5 // pred_fallthru
        _
      %p1844 = scmp.le.s32.totalorder 2, %s11
      // Predicated region
      $region80: #{simple_encoder3d_forward.4} parent=5 // pred_check
        %p1845 = pneg %p1844
      $region81: #{simple_encoder3d_forward.4} parent=5 // pred_check_branch
        %1847 = sbr.rel (%p1845) target = $region83
      $region82: #{simple_encoder3d_forward.4} parent=5 // pred_region
        %s1848 = ssub.s32 %s11, 2
      $region83: #{simple_encoder3d_forward.4} parent=5 // pred_fallthru
        _
    $region6: #{simple_encoder3d_forward.4} parent=1 // loop_footer
      %s15 = sadd.s32 1, %s11
    $region7: #{simple_encoder3d_forward.4} parent=1 // loop_footer_branch
      %10 = sbr.rel target = $region3
    $region8: #{simple_encoder3d_forward.4} parent=1 // loop_exit
      _

// kernel: simple_encoder3d_forward.5
$region0: #{simple_encoder3d_forward.5}
  #allocation0 [shape = 'u32[]', space=smem, size = 0x4, offset = 0x4, fixed_abs, tag = 'smem constant byte address 0x4 - core index']
  #allocation1 [shape = 'u32[144,128]{1,0:T(1,128)}', space=vmem, size = 0x12000, scoped, tag = 'internal scratch']
  #allocation2 [shape = 'f32[16,128]{1,0:T(8,128)}', space=vmem, size = 0x2000, scoped, tag = 'scratch operand']
  #allocation3 [shape = 'f32[16,1]{1,0:T(8,128)}', space=vmem, size = 0x2000, scoped, tag = 'scratch operand']
  #allocation4 [shape = 'f32[16,1]{1,0:T(8,128)}', space=vmem, size = 0x2000, scoped, tag = 'scratch operand']
  %s0 = inlined_call_operand.vmem [shape: bf16[1024,128], index: 0, kind: input, shape index: {}]
  %s1 = inlined_call_operand.vmem [shape: bf16[32,1024], index: 1, kind: input, shape index: {}]
  %s2 = inlined_call_operand.vmem [shape: f32[32,1], index: 2, kind: input, shape index: {}]
  %s3 = inlined_call_operand.vmem [shape: f32[32,1], index: 3, kind: input, shape index: {}]
  %s4 = inlined_call_operand.vmem [shape: f32[32,1], index: 4, kind: input, shape index: {}]
  %s5 = inlined_call_operand.vmem [shape: f32[32,128], index: 5, kind: output, shape index: {}]
  %s6 = sld [smem:[#allocation0]]
  $region61: #{simple_encoder3d_forward.5} parent=0
    _
  %s8 = ssub.s32 1, %s6
  %s9 = scalar_select 0, %s8, %s6
  loop: start=0, step=1, limit=4
  $region2: #{simple_encoder3d_forward.5} parent=0 // loop_pre_header
    _
  $region3: #{simple_encoder3d_forward.5} parent=0 // loop_header
    %s11 = sphi 0, %s15
    %p12 = scmp.ge.s32.totalorder %s11, 4
    %s18 = sphi 0, %s30
    %s19 = sphi 0, %s26
    %s20 = sphi 0, %s18
    %s21 = sphi 0, %s19
    %s22 = sphi 0, %s20
    %s23 = sphi 0, %s21
    %s33 = sphi 0, %s35
    %s36 = sphi 0, %s33
    %s37 = sphi 0, %s36
    %s53 = sphi 0, %s37
    %s59 = sphi 0, %s61
    %s62 = sphi 0, %s59
    %s63 = sphi 0, %s62
    %s79 = sphi 0, %s63
    %s85 = sphi 0, %s87
    %s88 = sphi 0, %s85
    %s89 = sphi 0, %s88
    %s105 = sphi 0, %s89
    %s111 = sphi 0, %s113
    %s114 = sphi 0, %s111
    %s115 = sphi 0, %s114
    %s131 = sphi 0, %s115
    %s137 = sphi 0, %s139
    %s140 = sphi 0, %s137
    %s141 = sphi 0, %s140
    %s157 = sphi 0, %s141
    %s163 = sphi 0, %s165
    %s166 = sphi 0, %s163
    %s167 = sphi 0, %s166
    %s183 = sphi 0, %s167
  $region4: #{simple_encoder3d_forward.5} parent=0 // loop_header_branch
    %14 = sbr.rel (%p12) target = $region8
  $region5: #{simple_encoder3d_forward.5} parent=0 // loop_body
    %s16 = ssub.s32 %s11, 1
    %s17 = ssub.s32 %s11, 2
    %s24 = sadd.s32 1, %s19
    %p25 = scmp.ge.s32.totalorder %s24, 1
    %s26 = scalar_select %p25, 0, %s24
    %s27 = sadd.s32 1, %s18
    %s28 = scalar_select %p25, %s27, %s18
    %p29 = scmp.ge.s32.totalorder %s28, 2
    %s30 = scalar_select %p29, 0, %s28
    %s31 = ssub.s32 %s19, %s26
    %p32 = scmp.eq.s32.totalorder %s31, 0
    %s34 = sadd.s32 %s33, 1
    %s35 = scalar_select %p32, %s33, %s34
    %p38 = pneg %p32
    %p39 = scmp.eq.s32.totalorder %s11, 1
    %p40 = por %p38, %p39
    %p41 = scmp.ne.s32.totalorder %s33, %s36
    %p42 = scmp.eq.s32.totalorder %s11, 0
    %p43 = por %p41, %p42
    %p44 = scmp.ne.s32.totalorder %s33, %s36
    %p45 = scmp.eq.s32.totalorder %s16, 1
    %p46 = por %p44, %p45
    %p47 = scmp.ne.s32.totalorder %s36, %s37
    %p48 = scmp.eq.s32.totalorder %s16, 0
    %p49 = por %p47, %p48
    %p50 = scmp.ne.s32.totalorder %s36, %s37
    %p51 = scmp.eq.s32.totalorder %s17, 1
    %p52 = por %p50, %p51
    %p54 = scmp.ne.s32.totalorder %s37, %s53
    %p55 = scmp.eq.s32.totalorder %s17, 0
    %p56 = por %p54, %p55
    %s57 = ssub.s32 %s18, %s30
    %p58 = scmp.eq.s32.totalorder %s57, 0
    %s60 = sadd.s32 %s59, 1
    %s61 = scalar_select %p58, %s59, %s60
    %p64 = pneg %p58
    %p65 = scmp.eq.s32.totalorder %s11, 1
    %p66 = por %p64, %p65
    %p67 = scmp.ne.s32.totalorder %s59, %s62
    %p68 = scmp.eq.s32.totalorder %s11, 0
    %p69 = por %p67, %p68
    %p70 = scmp.ne.s32.totalorder %s59, %s62
    %p71 = scmp.eq.s32.totalorder %s16, 1
    %p72 = por %p70, %p71
    %p73 = scmp.ne.s32.totalorder %s62, %s63
    %p74 = scmp.eq.s32.totalorder %s16, 0
    %p75 = por %p73, %p74
    %p76 = scmp.ne.s32.totalorder %s62, %s63
    %p77 = scmp.eq.s32.totalorder %s17, 1
    %p78 = por %p76, %p77
    %p80 = scmp.ne.s32.totalorder %s63, %s79
    %p81 = scmp.eq.s32.totalorder %s17, 0
    %p82 = por %p80, %p81
    %s83 = ssub.s32 %s18, %s30
    %p84 = scmp.eq.s32.totalorder %s83, 0
    %s86 = sadd.s32 %s85, 1
    %s87 = scalar_select %p84, %s85, %s86
    %p90 = pneg %p84
    %p91 = scmp.eq.s32.totalorder %s11, 1
    %p92 = por %p90, %p91
    %p93 = scmp.ne.s32.totalorder %s85, %s88
    %p94 = scmp.eq.s32.totalorder %s11, 0
    %p95 = por %p93, %p94
    %p96 = scmp.ne.s32.totalorder %s85, %s88
    %p97 = scmp.eq.s32.totalorder %s16, 1
    %p98 = por %p96, %p97
    %p99 = scmp.ne.s32.totalorder %s88, %s89
    %p100 = scmp.eq.s32.totalorder %s16, 0
    %p101 = por %p99, %p100
    %p102 = scmp.ne.s32.totalorder %s88, %s89
    %p103 = scmp.eq.s32.totalorder %s17, 1
    %p104 = por %p102, %p103
    %p106 = scmp.ne.s32.totalorder %s89, %s105
    %p107 = scmp.eq.s32.totalorder %s17, 0
    %p108 = por %p106, %p107
    %s109 = ssub.s32 %s18, %s30
    %p110 = scmp.eq.s32.totalorder %s109, 0
    %s112 = sadd.s32 %s111, 1
    %s113 = scalar_select %p110, %s111, %s112
    %p116 = pneg %p110
    %p117 = scmp.eq.s32.totalorder %s11, 1
    %p118 = por %p116, %p117
    %p119 = scmp.ne.s32.totalorder %s111, %s114
    %p120 = scmp.eq.s32.totalorder %s11, 0
    %p121 = por %p119, %p120
    %p122 = scmp.ne.s32.totalorder %s111, %s114
    %p123 = scmp.eq.s32.totalorder %s16, 1
    %p124 = por %p122, %p123
    %p125 = scmp.ne.s32.totalorder %s114, %s115
    %p126 = scmp.eq.s32.totalorder %s16, 0
    %p127 = por %p125, %p126
    %p128 = scmp.ne.s32.totalorder %s114, %s115
    %p129 = scmp.eq.s32.totalorder %s17, 1
    %p130 = por %p128, %p129
    %p132 = scmp.ne.s32.totalorder %s115, %s131
    %p133 = scmp.eq.s32.totalorder %s17, 0
    %p134 = por %p132, %p133
    %s135 = ssub.s32 %s18, %s30
    %p136 = scmp.eq.s32.totalorder %s135, 0
    %s138 = sadd.s32 %s137, 1
    %s139 = scalar_select %p136, %s137, %s138
    %p142 = pneg %p136
    %p143 = scmp.eq.s32.totalorder %s11, 1
    %p144 = por %p142, %p143
    %p145 = scmp.ne.s32.totalorder %s137, %s140
    %p146 = scmp.eq.s32.totalorder %s11, 0
    %p147 = por %p145, %p146
    %p148 = scmp.ne.s32.totalorder %s137, %s140
    %p149 = scmp.eq.s32.totalorder %s16, 1
    %p150 = por %p148, %p149
    %p151 = scmp.ne.s32.totalorder %s140, %s141
    %p152 = scmp.eq.s32.totalorder %s16, 0
    %p153 = por %p151, %p152
    %p154 = scmp.ne.s32.totalorder %s140, %s141
    %p155 = scmp.eq.s32.totalorder %s17, 1
    %p156 = por %p154, %p155
    %p158 = scmp.ne.s32.totalorder %s141, %s157
    %p159 = scmp.eq.s32.totalorder %s17, 0
    %p160 = por %p158, %p159
    %s161 = ssub.s32 %s18, %s30
    %p162 = scmp.eq.s32.totalorder %s161, 0
    %s164 = sadd.s32 %s163, 1
    %s165 = scalar_select %p162, %s163, %s164
    %p168 = pneg %p162
    %p169 = scmp.eq.s32.totalorder %s11, 1
    %p170 = por %p168, %p169
    %p171 = scmp.ne.s32.totalorder %s163, %s166
    %p172 = scmp.eq.s32.totalorder %s11, 0
    %p173 = por %p171, %p172
    %p174 = scmp.ne.s32.totalorder %s163, %s166
    %p175 = scmp.eq.s32.totalorder %s16, 1
    %p176 = por %p174, %p175
    %p177 = scmp.ne.s32.totalorder %s166, %s167
    %p178 = scmp.eq.s32.totalorder %s16, 0
    %p179 = por %p177, %p178
    %p180 = scmp.ne.s32.totalorder %s166, %s167
    %p181 = scmp.eq.s32.totalorder %s17, 1
    %p182 = por %p180, %p181
    %p184 = scmp.ne.s32.totalorder %s167, %s183
    %p185 = scmp.eq.s32.totalorder %s17, 0
    %p186 = por %p184, %p185
    %p187 = scmp.le.s32.totalorder 1, %s11
    %p188 = scmp.lt.s32.totalorder %s11, 3
    %p189 = pnand %p187, %p188
    %p190 = pneg %p189
    // Predicated region
    $region9: #{simple_encoder3d_forward.5} parent=5 // pred_check
      _
    $region10: #{simple_encoder3d_forward.5} parent=5 // pred_check_branch
      %192 = sbr.rel (%p189) target = $region12
    $region11: #{simple_encoder3d_forward.5} parent=5 // pred_region
      %s193 = ssub.s32 %s11, 1
      // Predicated region
      $region13: #{simple_encoder3d_forward.5} parent=11 // pred_check
        %p194 = pneg %p49
      $region14: #{simple_encoder3d_forward.5} parent=11 // pred_check_branch
        %196 = sbr.rel (%p194) target = $region16
      $region15: #{simple_encoder3d_forward.5} parent=11 // pred_region
        %p197 = scmp.lt.s32.totalorder %s21, 0
        %s198 = scalar_select %p197, %s21, 0
        %s199 = smul.addr %s198, 4
        %s200 = scalar_lea.vmem %s0, %s199
      $region16: #{simple_encoder3d_forward.5} parent=11 // pred_fallthru
        _
    $region12: #{simple_encoder3d_forward.5} parent=5 // pred_fallthru
      _
    %p201 = scmp.lt.s32.totalorder %s11, 2
    // Predicated region
    $region17: #{simple_encoder3d_forward.5} parent=5 // pred_check
      %p202 = pneg %p201
    $region18: #{simple_encoder3d_forward.5} parent=5 // pred_check_branch
      %204 = sbr.rel (%p202) target = $region20
    $region19: #{simple_encoder3d_forward.5} parent=5 // pred_region
      // Predicated region
      $region21: #{simple_encoder3d_forward.5} parent=19 // pred_check
        %p205 = pneg %p69
      $region22: #{simple_encoder3d_forward.5} parent=19 // pred_check_branch
        %207 = sbr.rel (%p205) target = $region24
      $region23: #{simple_encoder3d_forward.5} parent=19 // pred_region
        %s208 = smul.u32 2, %s18
        %p209 = scmp.lt.s32.totalorder %s208, 3
        %s210 = scalar_select %p209, %s208, 3
        %s211 = smul.addr %s210, 8
        %s212 = smul.addr %s211, 4
        %s213 = scalar_lea.vmem %s1, %s212
        %s214 = smul.u32 2, %s18
      $region24: #{simple_encoder3d_forward.5} parent=19 // pred_fallthru
        _
      // Predicated region
      $region25: #{simple_encoder3d_forward.5} parent=19 // pred_check
        %p215 = pneg %p95
      $region26: #{simple_encoder3d_forward.5} parent=19 // pred_check_branch
        %217 = sbr.rel (%p215) target = $region28
      $region27: #{simple_encoder3d_forward.5} parent=19 // pred_region
        %s218 = smul.u32 2, %s18
        %p219 = scmp.lt.s32.totalorder %s218, 3
        %s220 = scalar_select %p219, %s218, 3
        %s221 = smul.addr %s220, 8
        %s222 = scalar_lea.vmem %s2, %s221
        %s223 = smul.u32 2, %s18
      $region28: #{simple_encoder3d_forward.5} parent=19 // pred_fallthru
        _
      // Predicated region
      $region29: #{simple_encoder3d_forward.5} parent=19 // pred_check
        %p224 = pneg %p121
      $region30: #{simple_encoder3d_forward.5} parent=19 // pred_check_branch
        %226 = sbr.rel (%p224) target = $region32
      $region31: #{simple_encoder3d_forward.5} parent=19 // pred_region
        %s227 = smul.u32 2, %s18
        %p228 = scmp.lt.s32.totalorder %s227, 3
        %s229 = scalar_select %p228, %s227, 3
        %s230 = smul.addr %s229, 8
        %s231 = scalar_lea.vmem %s3, %s230
        %s232 = smul.u32 2, %s18
      $region32: #{simple_encoder3d_forward.5} parent=19 // pred_fallthru
        _
      // Predicated region
      $region33: #{simple_encoder3d_forward.5} parent=19 // pred_check
        %p233 = pneg %p147
      $region34: #{simple_encoder3d_forward.5} parent=19 // pred_check_branch
        %235 = sbr.rel (%p233) target = $region36
      $region35: #{simple_encoder3d_forward.5} parent=19 // pred_region
        %s236 = smul.u32 2, %s18
        %p237 = scmp.lt.s32.totalorder %s236, 3
        %s238 = scalar_select %p237, %s236, 3
        %s239 = smul.addr %s238, 8
        %s240 = scalar_lea.vmem %s4, %s239
        %s241 = smul.u32 2, %s18
      $region36: #{simple_encoder3d_forward.5} parent=19 // pred_fallthru
        _
    $region20: #{simple_encoder3d_forward.5} parent=5 // pred_fallthru
      _
    %p242 = scmp.le.s32.totalorder 1, %s11
    %p243 = scmp.lt.s32.totalorder %s11, 3
    %p244 = pnand %p242, %p243
    %p245 = pneg %p244
    // Predicated region
    $region37: #{simple_encoder3d_forward.5} parent=5 // pred_check
      _
    $region38: #{simple_encoder3d_forward.5} parent=5 // pred_check_branch
      %247 = sbr.rel (%p244) target = $region40
    $region39: #{simple_encoder3d_forward.5} parent=5 // pred_region
      %s248 = ssub.s32 %s11, 1
      %p249 = scmp.lt.s32.totalorder %s21, 0
      %s250 = scalar_select %p249, %s21, 0
      %s251 = smul.addr %s250, 4
      %s252 = scalar_lea.vmem %s0, %s251
      %p253 = pneg %p49
      %p254 = pneg %p46
      %s255 = smul.u32 2, %s20
      %p256 = scmp.lt.s32.totalorder %s255, 3
      %s257 = scalar_select %p256, %s255, 3
      %s258 = smul.addr %s257, 8
      %s259 = smul.addr %s258, 4
      %s260 = scalar_lea.vmem %s1, %s259
      %p261 = pneg %p75
      %p262 = pneg %p72
      %s263 = smul.u32 2, %s20
      %p264 = scmp.lt.s32.totalorder %s263, 3
      %s265 = scalar_select %p264, %s263, 3
      %s266 = smul.addr %s265, 8
      %s267 = scalar_lea.vmem %s2, %s266
      %p268 = pneg %p101
      %p269 = pneg %p98
      %s270 = smul.u32 2, %s20
      %p271 = scmp.lt.s32.totalorder %s270, 3
      %s272 = scalar_select %p271, %s270, 3
      %s273 = smul.addr %s272, 8
      %s274 = scalar_lea.vmem %s3, %s273
      %p275 = pneg %p127
      %p276 = pneg %p124
      %s277 = smul.u32 2, %s20
      %p278 = scmp.lt.s32.totalorder %s277, 3
      %s279 = scalar_select %p278, %s277, 3
      %s280 = smul.addr %s279, 8
      %s281 = scalar_lea.vmem %s4, %s280
      %p282 = pneg %p153
      %p283 = pneg %p150
      %p284 = pneg %p179
      %p285 = pneg %p176
      %s286 = smul.u32 2, %s20
      %p287 = scmp.lt.s32.totalorder %s286, 3
      %s288 = scalar_select %p287, %s286, 3
      %s289 = smul.addr %s288, 8
      %s290 = scalar_lea.vmem %s5, %s289
      %p291 = scmp.lt.s32.totalorder %s21, 0
      %s292 = scalar_select %p291, %s21, 0
      %s293 = smul.addr %s292, 4
      %s294 = scalar_lea.vmem %s0, %s293
      %s295 = smul.u32 2, %s20
      %p296 = scmp.lt.s32.totalorder %s295, 3
      %s297 = scalar_select %p296, %s295, 3
      %s298 = smul.addr %s297, 8
      %s299 = smul.addr %s298, 4
      %s300 = scalar_lea.vmem %s1, %s299
      %s301 = smul.u32 2, %s20
      %s302 = smul.u32 2, %s20
      %p303 = scmp.lt.s32.totalorder %s302, 3
      %s304 = scalar_select %p303, %s302, 3
      %s305 = smul.addr %s304, 8
      %s306 = scalar_lea.vmem %s2, %s305
      %s307 = smul.u32 2, %s20
      %s308 = smul.u32 2, %s20
      %p309 = scmp.lt.s32.totalorder %s308, 3
      %s310 = scalar_select %p309, %s308, 3
      %s311 = smul.addr %s310, 8
      %s312 = scalar_lea.vmem %s3, %s311
      %s313 = smul.u32 2, %s20
      %s314 = smul.u32 2, %s20
      %p315 = scmp.lt.s32.totalorder %s314, 3
      %s316 = scalar_select %p315, %s314, 3
      %s317 = smul.addr %s316, 8
      %s318 = scalar_lea.vmem %s4, %s317
      %s319 = smul.u32 2, %s20
      %s320 = smul.u32 2, %s20
      %p321 = scmp.lt.s32.totalorder %s320, 3
      %s322 = scalar_select %p321, %s320, 3
      %s323 = smul.addr %s322, 8
      %s324 = scalar_lea.vmem %s5, %s323
      %s325 = smul.u32 2, %s20
      %p327 = scmp.eq.s32.totalorder %s21, 0
      // Predicated region
      $region41: #{simple_encoder3d_forward.5} parent=39 // pred_check
        %p328 = pneg %p327
      $region42: #{simple_encoder3d_forward.5} parent=39 // pred_check_branch
        %330 = sbr.rel (%p328) target = $region44
      $region43: #{simple_encoder3d_forward.5} parent=39 // pred_region
        %vm331 = vcmask 7168
        %332 = vst.msk [vmem:[#allocation3] sm:$0xff] %vm331, 0.0
        %333 = vst.msk [vmem:[#allocation3 + $0x8] sm:$0xff] %vm331, 0.0
        %334 = vst.msk [vmem:[#allocation4] sm:$0xff] %vm331, 0.0
        %335 = vst.msk [vmem:[#allocation4 + $0x8] sm:$0xff] %vm331, 0.0
      $region44: #{simple_encoder3d_forward.5} parent=39 // pred_fallthru
        _
      %v336 = vld [vmem:[%s300] sm:$0xff]
      %v337 = vld [vmem:[%s300 + $0x8] sm:$0xff]
      %v338 = vld [vmem:[%s300 + $0x10] sm:$0xff]
      %v339 = vld [vmem:[%s300 + $0x18] sm:$0xff]
      %v340 = vld [vmem:[%s300 + $0x20] sm:$0xff]
      %v341 = vld [vmem:[%s300 + $0x28] sm:$0xff]
      %v342 = vld [vmem:[%s300 + $0x30] sm:$0xff]
      %v343 = vld [vmem:[%s300 + $0x38] sm:$0xff]
      %v344 = vld [vmem:[%s294] sm:$0xf]
      %v345 = vld [vmem:[%s294 + $0x4] sm:$0xf]
      %v346 = vld [vmem:[%s294 + $0x8] sm:$0xf]
      %v347 = vld [vmem:[%s294 + $0xc] sm:$0xf]
      %v348 = vld [vmem:[%s294 + $0x10] sm:$0xf]
      %v349 = vld [vmem:[%s294 + $0x14] sm:$0xf]
      %v350 = vld [vmem:[%s294 + $0x18] sm:$0xf]
      %v351 = vld [vmem:[%s294 + $0x1c] sm:$0xf]
      %v352 = vld [vmem:[%s294 + $0x20] sm:$0xf]
      %v353 = vld [vmem:[%s294 + $0x24] sm:$0xf]
      %v354 = vld [vmem:[%s294 + $0x28] sm:$0xf]
      %v355 = vld [vmem:[%s294 + $0x2c] sm:$0xf]
      %v356 = vld [vmem:[%s294 + $0x30] sm:$0xf]
      %v357 = vld [vmem:[%s294 + $0x34] sm:$0xf]
      %v358 = vld [vmem:[%s294 + $0x38] sm:$0xf]
      %v359 = vld [vmem:[%s294 + $0x3c] sm:$0xf]
      %v360 = vld [vmem:[%s294 + $0x40] sm:$0xf]
      %v361 = vld [vmem:[%s294 + $0x44] sm:$0xf]
      %v362 = vld [vmem:[%s294 + $0x48] sm:$0xf]
      %v363 = vld [vmem:[%s294 + $0x4c] sm:$0xf]
      %v364 = vld [vmem:[%s294 + $0x50] sm:$0xf]
      %v365 = vld [vmem:[%s294 + $0x54] sm:$0xf]
      %v366 = vld [vmem:[%s294 + $0x58] sm:$0xf]
      %v367 = vld [vmem:[%s294 + $0x5c] sm:$0xf]
      %v368 = vld [vmem:[%s294 + $0x60] sm:$0xf]
      %v369 = vld [vmem:[%s294 + $0x64] sm:$0xf]
      %v370 = vld [vmem:[%s294 + $0x68] sm:$0xf]
      %v371 = vld [vmem:[%s294 + $0x6c] sm:$0xf]
      %v372 = vld [vmem:[%s294 + $0x70] sm:$0xf]
      %v373 = vld [vmem:[%s294 + $0x74] sm:$0xf]
      %v374 = vld [vmem:[%s294 + $0x78] sm:$0xf]
      %v375 = vld [vmem:[%s294 + $0x7c] sm:$0xf]
      %v376 = vld [vmem:[%s294 + $0x80] sm:$0xf]
      %v377 = vld [vmem:[%s294 + $0x84] sm:$0xf]
      %v378 = vld [vmem:[%s294 + $0x88] sm:$0xf]
      %v379 = vld [vmem:[%s294 + $0x8c] sm:$0xf]
      %v380 = vld [vmem:[%s294 + $0x90] sm:$0xf]
      %v381 = vld [vmem:[%s294 + $0x94] sm:$0xf]
      %v382 = vld [vmem:[%s294 + $0x98] sm:$0xf]
      %v383 = vld [vmem:[%s294 + $0x9c] sm:$0xf]
      %v384 = vld [vmem:[%s294 + $0xa0] sm:$0xf]
      %v385 = vld [vmem:[%s294 + $0xa4] sm:$0xf]
      %v386 = vld [vmem:[%s294 + $0xa8] sm:$0xf]
      %v387 = vld [vmem:[%s294 + $0xac] sm:$0xf]
      %v388 = vld [vmem:[%s294 + $0xb0] sm:$0xf]
      %v389 = vld [vmem:[%s294 + $0xb4] sm:$0xf]
      %v390 = vld [vmem:[%s294 + $0xb8] sm:$0xf]
      %v391 = vld [vmem:[%s294 + $0xbc] sm:$0xf]
      %v392 = vld [vmem:[%s294 + $0xc0] sm:$0xf]
      %v393 = vld [vmem:[%s294 + $0xc4] sm:$0xf]
      %v394 = vld [vmem:[%s294 + $0xc8] sm:$0xf]
      %v395 = vld [vmem:[%s294 + $0xcc] sm:$0xf]
      %v396 = vld [vmem:[%s294 + $0xd0] sm:$0xf]
      %v397 = vld [vmem:[%s294 + $0xd4] sm:$0xf]
      %v398 = vld [vmem:[%s294 + $0xd8] sm:$0xf]
      %v399 = vld [vmem:[%s294 + $0xdc] sm:$0xf]
      %v400 = vld [vmem:[%s294 + $0xe0] sm:$0xf]
      %v401 = vld [vmem:[%s294 + $0xe4] sm:$0xf]
      %v402 = vld [vmem:[%s294 + $0xe8] sm:$0xf]
      %v403 = vld [vmem:[%s294 + $0xec] sm:$0xf]
      %v404 = vld [vmem:[%s294 + $0xf0] sm:$0xf]
      %v405 = vld [vmem:[%s294 + $0xf4] sm:$0xf]
      %v406 = vld [vmem:[%s294 + $0xf8] sm:$0xf]
      %v407 = vld [vmem:[%s294 + $0xfc] sm:$0xf]
      %v408 = vld [vmem:[%s294 + $0x100] sm:$0xf]
      %v409 = vld [vmem:[%s294 + $0x104] sm:$0xf]
      %v410 = vld [vmem:[%s294 + $0x108] sm:$0xf]
      %v411 = vld [vmem:[%s294 + $0x10c] sm:$0xf]
      %v412 = vld [vmem:[%s294 + $0x110] sm:$0xf]
      %v413 = vld [vmem:[%s294 + $0x114] sm:$0xf]
      %v414 = vld [vmem:[%s294 + $0x118] sm:$0xf]
      %v415 = vld [vmem:[%s294 + $0x11c] sm:$0xf]
      %v416 = vld [vmem:[%s294 + $0x120] sm:$0xf]
      %v417 = vld [vmem:[%s294 + $0x124] sm:$0xf]
      %v418 = vld [vmem:[%s294 + $0x128] sm:$0xf]
      %v419 = vld [vmem:[%s294 + $0x12c] sm:$0xf]
      %v420 = vld [vmem:[%s294 + $0x130] sm:$0xf]
      %v421 = vld [vmem:[%s294 + $0x134] sm:$0xf]
      %v422 = vld [vmem:[%s294 + $0x138] sm:$0xf]
      %v423 = vld [vmem:[%s294 + $0x13c] sm:$0xf]
      %v424 = vld [vmem:[%s294 + $0x140] sm:$0xf]
      %v425 = vld [vmem:[%s294 + $0x144] sm:$0xf]
      %v426 = vld [vmem:[%s294 + $0x148] sm:$0xf]
      %v427 = vld [vmem:[%s294 + $0x14c] sm:$0xf]
      %v428 = vld [vmem:[%s294 + $0x150] sm:$0xf]
      %v429 = vld [vmem:[%s294 + $0x154] sm:$0xf]
      %v430 = vld [vmem:[%s294 + $0x158] sm:$0xf]
      %v431 = vld [vmem:[%s294 + $0x15c] sm:$0xf]
      %v432 = vld [vmem:[%s294 + $0x160] sm:$0xf]
      %v433 = vld [vmem:[%s294 + $0x164] sm:$0xf]
      %v434 = vld [vmem:[%s294 + $0x168] sm:$0xf]
      %v435 = vld [vmem:[%s294 + $0x16c] sm:$0xf]
      %v436 = vld [vmem:[%s294 + $0x170] sm:$0xf]
      %v437 = vld [vmem:[%s294 + $0x174] sm:$0xf]
      %v438 = vld [vmem:[%s294 + $0x178] sm:$0xf]
      %v439 = vld [vmem:[%s294 + $0x17c] sm:$0xf]
      %v440 = vld [vmem:[%s294 + $0x180] sm:$0xf]
      %v441 = vld [vmem:[%s294 + $0x184] sm:$0xf]
      %v442 = vld [vmem:[%s294 + $0x188] sm:$0xf]
      %v443 = vld [vmem:[%s294 + $0x18c] sm:$0xf]
      %v444 = vld [vmem:[%s294 + $0x190] sm:$0xf]
      %v445 = vld [vmem:[%s294 + $0x194] sm:$0xf]
      %v446 = vld [vmem:[%s294 + $0x198] sm:$0xf]
      %v447 = vld [vmem:[%s294 + $0x19c] sm:$0xf]
      %v448 = vld [vmem:[%s294 + $0x1a0] sm:$0xf]
      %v449 = vld [vmem:[%s294 + $0x1a4] sm:$0xf]
      %v450 = vld [vmem:[%s294 + $0x1a8] sm:$0xf]
      %v451 = vld [vmem:[%s294 + $0x1ac] sm:$0xf]
      %v452 = vld [vmem:[%s294 + $0x1b0] sm:$0xf]
      %v453 = vld [vmem:[%s294 + $0x1b4] sm:$0xf]
      %v454 = vld [vmem:[%s294 + $0x1b8] sm:$0xf]
      %v455 = vld [vmem:[%s294 + $0x1bc] sm:$0xf]
      %v456 = vld [vmem:[%s294 + $0x1c0] sm:$0xf]
      %v457 = vld [vmem:[%s294 + $0x1c4] sm:$0xf]
      %v458 = vld [vmem:[%s294 + $0x1c8] sm:$0xf]
      %v459 = vld [vmem:[%s294 + $0x1cc] sm:$0xf]
      %v460 = vld [vmem:[%s294 + $0x1d0] sm:$0xf]
      %v461 = vld [vmem:[%s294 + $0x1d4] sm:$0xf]
      %v462 = vld [vmem:[%s294 + $0x1d8] sm:$0xf]
      %v463 = vld [vmem:[%s294 + $0x1dc] sm:$0xf]
      %v464 = vld [vmem:[%s294 + $0x1e0] sm:$0xf]
      %v465 = vld [vmem:[%s294 + $0x1e4] sm:$0xf]
      %v466 = vld [vmem:[%s294 + $0x1e8] sm:$0xf]
      %v467 = vld [vmem:[%s294 + $0x1ec] sm:$0xf]
      %v468 = vld [vmem:[%s294 + $0x1f0] sm:$0xf]
      %v469 = vld [vmem:[%s294 + $0x1f4] sm:$0xf]
      %v470 = vld [vmem:[%s294 + $0x1f8] sm:$0xf]
      %v471 = vld [vmem:[%s294 + $0x1fc] sm:$0xf]
      %v472 = vld [vmem:[%s306] sm:$0xff]
      %v473 = vld [vmem:[%s306 + $0x8] sm:$0xff]
      %475 = vset.pattern.permute.xlu0 0
      %476 = vperm.xlu0 %475, %v472
      %v477 = vpop.permute.xlu0 %476
      %480 = vset.pattern.permute.xlu0 0
      %481 = vperm.xlu0 %480, %v473
      %v482 = vpop.permute.xlu0 %481
      %v492 = vunpack.c.l.b16 %v336
      %v493 = vunpack.c.h.b16 %v336
      %v494 = vunpack.c.l.b16 %v337
      %v495 = vunpack.c.h.b16 %v337
      %v496 = vunpack.c.l.b16 %v338
      %v497 = vunpack.c.h.b16 %v338
      %v498 = vunpack.c.l.b16 %v339
      %v499 = vunpack.c.h.b16 %v339
      %v500 = vunpack.c.l.b16 %v340
      %v501 = vunpack.c.h.b16 %v340
      %v502 = vunpack.c.l.b16 %v341
      %v503 = vunpack.c.h.b16 %v341
      %v504 = vunpack.c.l.b16 %v342
      %v505 = vunpack.c.h.b16 %v342
      %v506 = vunpack.c.l.b16 %v343
      %v507 = vunpack.c.h.b16 %v343
      %v508 = vpack.c.b16 %v500, %v492
      %v509 = vpack.c.b16 %v501, %v493
      %v510 = vpack.c.b16 %v502, %v494
      %v511 = vpack.c.b16 %v503, %v495
      %v512 = vpack.c.b16 %v504, %v496
      %v513 = vpack.c.b16 %v505, %v497
      %v514 = vpack.c.b16 %v506, %v498
      %v515 = vpack.c.b16 %v507, %v499
      %v652 = vunpack.c.l.b16 %v344
      %v653 = vunpack.c.l.b16 %v345
      %v654 = vunpack.c.l.b16 %v346
      %v655 = vunpack.c.l.b16 %v347
      %v656 = vunpack.c.l.b16 %v348
      %v657 = vunpack.c.l.b16 %v349
      %v658 = vunpack.c.l.b16 %v350
      %v659 = vunpack.c.l.b16 %v351
      %v660 = vunpack.c.l.b16 %v352
      %v661 = vunpack.c.l.b16 %v353
      %v662 = vunpack.c.l.b16 %v354
      %v663 = vunpack.c.l.b16 %v355
      %v664 = vunpack.c.l.b16 %v356
      %v665 = vunpack.c.l.b16 %v357
      %v666 = vunpack.c.l.b16 %v358
      %v667 = vunpack.c.l.b16 %v359
      %v668 = vunpack.c.l.b16 %v360
      %v669 = vunpack.c.l.b16 %v361
      %v670 = vunpack.c.l.b16 %v362
      %v671 = vunpack.c.l.b16 %v363
      %v672 = vunpack.c.l.b16 %v364
      %v673 = vunpack.c.l.b16 %v365
      %v674 = vunpack.c.l.b16 %v366
      %v675 = vunpack.c.l.b16 %v367
      %v676 = vunpack.c.l.b16 %v368
      %v677 = vunpack.c.l.b16 %v369
      %v678 = vunpack.c.l.b16 %v370
      %v679 = vunpack.c.l.b16 %v371
      %v680 = vunpack.c.l.b16 %v372
      %v681 = vunpack.c.l.b16 %v373
      %v682 = vunpack.c.l.b16 %v374
      %v683 = vunpack.c.l.b16 %v375
      %v684 = vunpack.c.l.b16 %v376
      %v685 = vunpack.c.l.b16 %v377
      %v686 = vunpack.c.l.b16 %v378
      %v687 = vunpack.c.l.b16 %v379
      %v688 = vunpack.c.l.b16 %v380
      %v689 = vunpack.c.l.b16 %v381
      %v690 = vunpack.c.l.b16 %v382
      %v691 = vunpack.c.l.b16 %v383
      %v692 = vunpack.c.l.b16 %v384
      %v693 = vunpack.c.l.b16 %v385
      %v694 = vunpack.c.l.b16 %v386
      %v695 = vunpack.c.l.b16 %v387
      %v696 = vunpack.c.l.b16 %v388
      %v697 = vunpack.c.l.b16 %v389
      %v698 = vunpack.c.l.b16 %v390
      %v699 = vunpack.c.l.b16 %v391
      %v700 = vunpack.c.l.b16 %v392
      %v701 = vunpack.c.l.b16 %v393
      %v702 = vunpack.c.l.b16 %v394
      %v703 = vunpack.c.l.b16 %v395
      %v704 = vunpack.c.l.b16 %v396
      %v705 = vunpack.c.l.b16 %v397
      %v706 = vunpack.c.l.b16 %v398
      %v707 = vunpack.c.l.b16 %v399
      %v708 = vunpack.c.l.b16 %v400
      %v709 = vunpack.c.l.b16 %v401
      %v710 = vunpack.c.l.b16 %v402
      %v711 = vunpack.c.l.b16 %v403
      %v712 = vunpack.c.l.b16 %v404
      %v713 = vunpack.c.l.b16 %v405
      %v714 = vunpack.c.l.b16 %v406
      %v715 = vunpack.c.l.b16 %v407
      %v716 = vunpack.c.l.b16 %v408
      %v717 = vunpack.c.l.b16 %v409
      %v718 = vunpack.c.l.b16 %v410
      %v719 = vunpack.c.l.b16 %v411
      %v720 = vunpack.c.l.b16 %v412
      %v721 = vunpack.c.l.b16 %v413
      %v722 = vunpack.c.l.b16 %v414
      %v723 = vunpack.c.l.b16 %v415
      %v724 = vunpack.c.l.b16 %v416
      %v725 = vunpack.c.l.b16 %v417
      %v726 = vunpack.c.l.b16 %v418
      %v727 = vunpack.c.l.b16 %v419
      %v728 = vunpack.c.l.b16 %v420
      %v729 = vunpack.c.l.b16 %v421
      %v730 = vunpack.c.l.b16 %v422
      %v731 = vunpack.c.l.b16 %v423
      %v732 = vunpack.c.l.b16 %v424
      %v733 = vunpack.c.l.b16 %v425
      %v734 = vunpack.c.l.b16 %v426
      %v735 = vunpack.c.l.b16 %v427
      %v736 = vunpack.c.l.b16 %v428
      %v737 = vunpack.c.l.b16 %v429
      %v738 = vunpack.c.l.b16 %v430
      %v739 = vunpack.c.l.b16 %v431
      %v740 = vunpack.c.l.b16 %v432
      %v741 = vunpack.c.l.b16 %v433
      %v742 = vunpack.c.l.b16 %v434
      %v743 = vunpack.c.l.b16 %v435
      %v744 = vunpack.c.l.b16 %v436
      %v745 = vunpack.c.l.b16 %v437
      %v746 = vunpack.c.l.b16 %v438
      %v747 = vunpack.c.l.b16 %v439
      %v748 = vunpack.c.l.b16 %v440
      %v749 = vunpack.c.l.b16 %v441
      %v750 = vunpack.c.l.b16 %v442
      %v751 = vunpack.c.l.b16 %v443
      %v752 = vunpack.c.l.b16 %v444
      %v753 = vunpack.c.l.b16 %v445
      %v754 = vunpack.c.l.b16 %v446
      %v755 = vunpack.c.l.b16 %v447
      %v756 = vunpack.c.l.b16 %v448
      %v757 = vunpack.c.l.b16 %v449
      %v758 = vunpack.c.l.b16 %v450
      %v759 = vunpack.c.l.b16 %v451
      %v760 = vunpack.c.l.b16 %v452
      %v761 = vunpack.c.l.b16 %v453
      %v762 = vunpack.c.l.b16 %v454
      %v763 = vunpack.c.l.b16 %v455
      %v764 = vunpack.c.l.b16 %v456
      %v765 = vunpack.c.l.b16 %v457
      %v766 = vunpack.c.l.b16 %v458
      %v767 = vunpack.c.l.b16 %v459
      %v768 = vunpack.c.l.b16 %v460
      %v769 = vunpack.c.l.b16 %v461
      %v770 = vunpack.c.l.b16 %v462
      %v771 = vunpack.c.l.b16 %v463
      %v772 = vunpack.c.l.b16 %v464
      %v773 = vunpack.c.l.b16 %v465
      %v774 = vunpack.c.l.b16 %v466
      %v775 = vunpack.c.l.b16 %v467
      %v776 = vunpack.c.l.b16 %v468
      %v777 = vunpack.c.l.b16 %v469
      %v778 = vunpack.c.l.b16 %v470
      %v779 = vunpack.c.l.b16 %v471
      %v780 = vpack.c.b16 %v653, %v652
      %v781 = vpack.c.b16 %v655, %v654
      %v782 = vpack.c.b16 %v657, %v656
      %v783 = vpack.c.b16 %v659, %v658
      %v784 = vpack.c.b16 %v661, %v660
      %v785 = vpack.c.b16 %v663, %v662
      %v786 = vpack.c.b16 %v665, %v664
      %v787 = vpack.c.b16 %v667, %v666
      %v788 = vpack.c.b16 %v669, %v668
      %v789 = vpack.c.b16 %v671, %v670
      %v790 = vpack.c.b16 %v673, %v672
      %v791 = vpack.c.b16 %v675, %v674
      %v792 = vpack.c.b16 %v677, %v676
      %v793 = vpack.c.b16 %v679, %v678
      %v794 = vpack.c.b16 %v681, %v680
      %v795 = vpack.c.b16 %v683, %v682
      %v796 = vpack.c.b16 %v685, %v684
      %v797 = vpack.c.b16 %v687, %v686
      %v798 = vpack.c.b16 %v689, %v688
      %v799 = vpack.c.b16 %v691, %v690
      %v800 = vpack.c.b16 %v693, %v692
      %v801 = vpack.c.b16 %v695, %v694
      %v802 = vpack.c.b16 %v697, %v696
      %v803 = vpack.c.b16 %v699, %v698
      %v804 = vpack.c.b16 %v701, %v700
      %v805 = vpack.c.b16 %v703, %v702
      %v806 = vpack.c.b16 %v705, %v704
      %v807 = vpack.c.b16 %v707, %v706
      %v808 = vpack.c.b16 %v709, %v708
      %v809 = vpack.c.b16 %v711, %v710
      %v810 = vpack.c.b16 %v713, %v712
      %v811 = vpack.c.b16 %v715, %v714
      %v812 = vpack.c.b16 %v717, %v716
      %v813 = vpack.c.b16 %v719, %v718
      %v814 = vpack.c.b16 %v721, %v720
      %v815 = vpack.c.b16 %v723, %v722
      %v816 = vpack.c.b16 %v725, %v724
      %v817 = vpack.c.b16 %v727, %v726
      %v818 = vpack.c.b16 %v729, %v728
      %v819 = vpack.c.b16 %v731, %v730
      %v820 = vpack.c.b16 %v733, %v732
      %v821 = vpack.c.b16 %v735, %v734
      %v822 = vpack.c.b16 %v737, %v736
      %v823 = vpack.c.b16 %v739, %v738
      %v824 = vpack.c.b16 %v741, %v740
      %v825 = vpack.c.b16 %v743, %v742
      %v826 = vpack.c.b16 %v745, %v744
      %v827 = vpack.c.b16 %v747, %v746
      %v828 = vpack.c.b16 %v749, %v748
      %v829 = vpack.c.b16 %v751, %v750
      %v830 = vpack.c.b16 %v753, %v752
      %v831 = vpack.c.b16 %v755, %v754
      %v832 = vpack.c.b16 %v757, %v756
      %v833 = vpack.c.b16 %v759, %v758
      %v834 = vpack.c.b16 %v761, %v760
      %v835 = vpack.c.b16 %v763, %v762
      %v836 = vpack.c.b16 %v765, %v764
      %v837 = vpack.c.b16 %v767, %v766
      %v838 = vpack.c.b16 %v769, %v768
      %v839 = vpack.c.b16 %v771, %v770
      %v840 = vpack.c.b16 %v773, %v772
      %v841 = vpack.c.b16 %v775, %v774
      %v842 = vpack.c.b16 %v777, %v776
      %v843 = vpack.c.b16 %v779, %v778
      %908 = vmatprep.subr.bf16.mxu0 0
      %909 = vmatpush1.bf16.msra.mxu0 %v787
      %910 = vmatprep.subr.bf16.mxu0 0
      %911 = vmatpush1.bf16.msra.mxu0 %v786
      %912 = vmatprep.subr.bf16.mxu0 0
      %913 = vmatpush1.bf16.msra.mxu0 %v785
      %914 = vmatprep.subr.bf16.mxu0 0
      %915 = vmatpush1.bf16.msra.mxu0 %v784
      %916 = vmatprep.subr.bf16.mxu0 0
      %917 = vmatpush1.bf16.msra.mxu0 %v783
      %918 = vmatprep.subr.bf16.mxu0 0
      %919 = vmatpush1.bf16.msra.mxu0 %v782
      %920 = vmatprep.subr.bf16.mxu0 0
      %921 = vmatpush1.bf16.msra.mxu0 %v781
      %922 = vmatprep.subr.bf16.mxu0 0
      %923 = vmatpush1.bf16.msra.mxu0 %v780
      %924 = vmatprep.subr.bf16.mxu0 0
      %925 = vmatpush2.bf16.msra.mxu0 %v795
      %926 = vmatprep.subr.bf16.mxu0 0
      %927 = vmatpush2.bf16.msra.mxu0 %v794
      %928 = vmatprep.subr.bf16.mxu0 0
      %929 = vmatpush2.bf16.msra.mxu0 %v793
      %930 = vmatprep.subr.bf16.mxu0 0
      %931 = vmatpush2.bf16.msra.mxu0 %v792
      %932 = vmatprep.subr.bf16.mxu0 0
      %933 = vmatpush2.bf16.msra.mxu0 %v791
      %934 = vmatprep.subr.bf16.mxu0 0
      %935 = vmatpush2.bf16.msra.mxu0 %v790
      %936 = vmatprep.subr.bf16.mxu0 0
      %937 = vmatpush2.bf16.msra.mxu0 %v789
      %938 = vmatprep.subr.bf16.mxu0 0
      %939 = vmatpush2.bf16.msra.mxu0 %v788
      %940 = vmatprep.mubr.bf16.mxu0 %v509
      %941 = vmatmul.mubr.bf16.gmra.mxu0 %v508
      %v942 = vpop.f32.mrf.mxu0
      %v943 = vadd.f32 %v477, %v942
      %v944 = vpop.f32.mrf.mxu0
      %v945 = vpop.f32.mrf.mxu0
      %v946 = vadd.f32 %v482, %v945
      %v947 = vpop.f32.mrf.mxu0
      %948 = vdwg.mxu0
      %949 = vmatprep.subr.bf16.mxu0 0
      %950 = vmatpush1.bf16.msra.mxu0 %v803
      %951 = vmatprep.subr.bf16.mxu0 0
      %952 = vmatpush1.bf16.msra.mxu0 %v802
      %953 = vmatprep.subr.bf16.mxu0 0
      %954 = vmatpush1.bf16.msra.mxu0 %v801
      %955 = vmatprep.subr.bf16.mxu0 0
      %956 = vmatpush1.bf16.msra.mxu0 %v800
      %957 = vmatprep.subr.bf16.mxu0 0
      %958 = vmatpush1.bf16.msra.mxu0 %v799
      %959 = vmatprep.subr.bf16.mxu0 0
      %960 = vmatpush1.bf16.msra.mxu0 %v798
      %961 = vmatprep.subr.bf16.mxu0 0
      %962 = vmatpush1.bf16.msra.mxu0 %v797
      %963 = vmatprep.subr.bf16.mxu0 0
      %964 = vmatpush1.bf16.msra.mxu0 %v796
      %965 = vmatprep.subr.bf16.mxu0 0
      %966 = vmatpush2.bf16.msra.mxu0 %v811
      %967 = vmatprep.subr.bf16.mxu0 0
      %968 = vmatpush2.bf16.msra.mxu0 %v810
      %969 = vmatprep.subr.bf16.mxu0 0
      %970 = vmatpush2.bf16.msra.mxu0 %v809
      %971 = vmatprep.subr.bf16.mxu0 0
      %972 = vmatpush2.bf16.msra.mxu0 %v808
      %973 = vmatprep.subr.bf16.mxu0 0
      %974 = vmatpush2.bf16.msra.mxu0 %v807
      %975 = vmatprep.subr.bf16.mxu0 0
      %976 = vmatpush2.bf16.msra.mxu0 %v806
      %977 = vmatprep.subr.bf16.mxu0 0
      %978 = vmatpush2.bf16.msra.mxu0 %v805
      %979 = vmatprep.subr.bf16.mxu0 0
      %980 = vmatpush2.bf16.msra.mxu0 %v804
      %981 = vmatprep.mubr.bf16.mxu0 %v511
      %982 = vmatmul.mubr.bf16.gmra.mxu0 %v510
      %v983 = vpop.f32.mrf.mxu0
      %v984 = vadd.f32 %v943, %v983
      %v985 = vpop.f32.mrf.mxu0
      %v986 = vpop.f32.mrf.mxu0
      %v987 = vadd.f32 %v946, %v986
      %v988 = vpop.f32.mrf.mxu0
      %989 = vdwg.mxu0
      %990 = vmatprep.subr.bf16.mxu0 0
      %991 = vmatpush1.bf16.msra.mxu0 %v819
      %992 = vmatprep.subr.bf16.mxu0 0
      %993 = vmatpush1.bf16.msra.mxu0 %v818
      %994 = vmatprep.subr.bf16.mxu0 0
      %995 = vmatpush1.bf16.msra.mxu0 %v817
      %996 = vmatprep.subr.bf16.mxu0 0
      %997 = vmatpush1.bf16.msra.mxu0 %v816
      %998 = vmatprep.subr.bf16.mxu0 0
      %999 = vmatpush1.bf16.msra.mxu0 %v815
      %1000 = vmatprep.subr.bf16.mxu0 0
      %1001 = vmatpush1.bf16.msra.mxu0 %v814
      %1002 = vmatprep.subr.bf16.mxu0 0
      %1003 = vmatpush1.bf16.msra.mxu0 %v813
      %1004 = vmatprep.subr.bf16.mxu0 0
      %1005 = vmatpush1.bf16.msra.mxu0 %v812
      %1006 = vmatprep.subr.bf16.mxu0 0
      %1007 = vmatpush2.bf16.msra.mxu0 %v827
      %1008 = vmatprep.subr.bf16.mxu0 0
      %1009 = vmatpush2.bf16.msra.mxu0 %v826
      %1010 = vmatprep.subr.bf16.mxu0 0
      %1011 = vmatpush2.bf16.msra.mxu0 %v825
      %1012 = vmatprep.subr.bf16.mxu0 0
      %1013 = vmatpush2.bf16.msra.mxu0 %v824
      %1014 = vmatprep.subr.bf16.mxu0 0
      %1015 = vmatpush2.bf16.msra.mxu0 %v823
      %1016 = vmatprep.subr.bf16.mxu0 0
      %1017 = vmatpush2.bf16.msra.mxu0 %v822
      %1018 = vmatprep.subr.bf16.mxu0 0
      %1019 = vmatpush2.bf16.msra.mxu0 %v821
      %1020 = vmatprep.subr.bf16.mxu0 0
      %1021 = vmatpush2.bf16.msra.mxu0 %v820
      %1022 = vmatprep.mubr.bf16.mxu0 %v513
      %1023 = vmatmul.mubr.bf16.gmra.mxu0 %v512
      %v1024 = vpop.f32.mrf.mxu0
      %v1025 = vadd.f32 %v984, %v1024
      %v1026 = vpop.f32.mrf.mxu0
      %v1027 = vpop.f32.mrf.mxu0
      %v1028 = vadd.f32 %v987, %v1027
      %v1029 = vpop.f32.mrf.mxu0
      %1030 = vdwg.mxu0
      %1031 = vmatprep.subr.bf16.mxu0 0
      %1032 = vmatpush1.bf16.msra.mxu0 %v835
      %1033 = vmatprep.subr.bf16.mxu0 0
      %1034 = vmatpush1.bf16.msra.mxu0 %v834
      %1035 = vmatprep.subr.bf16.mxu0 0
      %1036 = vmatpush1.bf16.msra.mxu0 %v833
      %1037 = vmatprep.subr.bf16.mxu0 0
      %1038 = vmatpush1.bf16.msra.mxu0 %v832
      %1039 = vmatprep.subr.bf16.mxu0 0
      %1040 = vmatpush1.bf16.msra.mxu0 %v831
      %1041 = vmatprep.subr.bf16.mxu0 0
      %1042 = vmatpush1.bf16.msra.mxu0 %v830
      %1043 = vmatprep.subr.bf16.mxu0 0
      %1044 = vmatpush1.bf16.msra.mxu0 %v829
      %1045 = vmatprep.subr.bf16.mxu0 0
      %1046 = vmatpush1.bf16.msra.mxu0 %v828
      %1047 = vmatprep.subr.bf16.mxu0 0
      %1048 = vmatpush2.bf16.msra.mxu0 %v843
      %1049 = vmatprep.subr.bf16.mxu0 0
      %1050 = vmatpush2.bf16.msra.mxu0 %v842
      %1051 = vmatprep.subr.bf16.mxu0 0
      %1052 = vmatpush2.bf16.msra.mxu0 %v841
      %1053 = vmatprep.subr.bf16.mxu0 0
      %1054 = vmatpush2.bf16.msra.mxu0 %v840
      %1055 = vmatprep.subr.bf16.mxu0 0
      %1056 = vmatpush2.bf16.msra.mxu0 %v839
      %1057 = vmatprep.subr.bf16.mxu0 0
      %1058 = vmatpush2.bf16.msra.mxu0 %v838
      %1059 = vmatprep.subr.bf16.mxu0 0
      %1060 = vmatpush2.bf16.msra.mxu0 %v837
      %1061 = vmatprep.subr.bf16.mxu0 0
      %1062 = vmatpush2.bf16.msra.mxu0 %v836
      %1063 = vmatprep.mubr.bf16.mxu0 %v515
      %1064 = vmatmul.mubr.bf16.gmra.mxu0 %v514
      %v1065 = vpop.f32.mrf.mxu0
      %v1066 = vadd.f32 %v1025, %v1065
      %v1067 = vpop.f32.mrf.mxu0
      %v1068 = vpop.f32.mrf.mxu0
      %v1069 = vadd.f32 %v1028, %v1068
      %v1070 = vpop.f32.mrf.mxu0
      %1071 = vdwg.mxu0
      %vm1072 = vcmp.gt.f32.partialorder %v1066, 0.0
      %vm1073 = vcmp.gt.f32.partialorder %v1069, 0.0
      %v1074 = vmul.f32 %v1066, 0.01
      %v1075 = vmul.f32 %v1069, 0.01
      %v1076 = vsel %vm1072, %v1066, %v1074
      %v1077 = vsel %vm1073, %v1069, %v1075
      %v1078 = vld [vmem:[#allocation3] sm:$0xff]
      %v1079 = vld [vmem:[#allocation3 + $0x8] sm:$0xff]
      %1080 = vadd.xlane.f32.xlu0 %v1076
      %v1081 = vpop.xlane.xlu0 %1080
      %1082 = vadd.xlane.f32.xlu0 %v1077
      %v1083 = vpop.xlane.xlu0 %1082
      %v1084 = vadd.f32 %v1078, %v1081
      %v1085 = vadd.f32 %v1079, %v1083
      %vm1086 = vcmask 7168
      %1087 = vst.msk [vmem:[#allocation3] sm:$0xff] %vm1086, %v1084
      %1088 = vst.msk [vmem:[#allocation3 + $0x8] sm:$0xff] %vm1086, %v1085
      %v1089 = vld [vmem:[#allocation4] sm:$0xff]
      %v1090 = vld [vmem:[#allocation4 + $0x8] sm:$0xff]
      %v1091 = vmul.f32 %v1076, %v1076
      %v1092 = vmul.f32 %v1077, %v1077
      %1093 = vadd.xlane.f32.xlu0 %v1091
      %v1094 = vpop.xlane.xlu0 %1093
      %1095 = vadd.xlane.f32.xlu0 %v1092
      %v1096 = vpop.xlane.xlu0 %1095
      %v1097 = vadd.f32 %v1089, %v1094
      %v1098 = vadd.f32 %v1090, %v1096
      %1099 = vst.msk [vmem:[#allocation4] sm:$0xff] %vm1086, %v1097
      %1100 = vst.msk [vmem:[#allocation4 + $0x8] sm:$0xff] %vm1086, %v1098
      %s1101 = smul.u32 %s21, 128
      %s1102 = sshra.s32 %s1101, 7
      %s1103 = sand.u32 %s1101, 127
      %s1104 = scalar_lea.vmem [#allocation2], %s1102
      %1105 = vst [vmem:[%s1104] sm:$0xff] %v1076
      %1106 = vst [vmem:[%s1104 + $0x8] sm:$0xff] %v1077
      // Predicated region
      $region45: #{simple_encoder3d_forward.5} parent=39 // pred_check
        %p1107 = pneg %p327
      $region46: #{simple_encoder3d_forward.5} parent=39 // pred_check_branch
        %1109 = sbr.rel (%p1107) target = $region48
      $region47: #{simple_encoder3d_forward.5} parent=39 // pred_region
        %v1110 = vld [vmem:[#allocation3] sm:$0xff]
        %v1111 = vld [vmem:[#allocation3 + $0x8] sm:$0xff]
        %v1112 = vmul.f32 %v1110, 0.0078125
        %v1113 = vmul.f32 %v1111, 0.0078125
        %v1114 = vld [vmem:[#allocation4] sm:$0xff]
        %v1115 = vld [vmem:[#allocation4 + $0x8] sm:$0xff]
        %v1116 = vmul.f32 %v1114, 0.0078125
        %v1117 = vmul.f32 %v1115, 0.0078125
        %v1118 = vmul.f32 %v1112, %v1112
        %v1119 = vmul.f32 %v1113, %v1113
        %v1120 = vsub.f32 %v1116, %v1118
        %v1121 = vsub.f32 %v1117, %v1119
        %v1122 = vmax.f32 %v1120, 0.0
        %v1123 = vmax.f32 %v1121, 0.0
        %v1124 = vld [vmem:[%s312] sm:$0xff]
        %v1125 = vld [vmem:[%s312 + $0x8] sm:$0xff]
        %v1126 = vadd.f32 %v1122, 1e-05
        %v1127 = vadd.f32 %v1123, 1e-05
        %v1128 = vrsqrt.pop %v1126
        %v1129 = vrsqrt.pop %v1127
        %v1130 = vmul.f32 %v1124, %v1128
        %v1131 = vmul.f32 %v1125, %v1129
        %v1132 = vld [vmem:[%s318] sm:$0xff]
        %v1133 = vld [vmem:[%s318 + $0x8] sm:$0xff]
        %v1134 = vmul.f32 %v1112, %v1130
        %v1135 = vmul.f32 %v1113, %v1131
        %v1136 = vsub.f32 %v1132, %v1134
        %v1137 = vsub.f32 %v1133, %v1135
        %v1138 = vld [vmem:[#allocation2] sm:$0xff]
        %v1139 = vld [vmem:[#allocation2 + $0x8] sm:$0xff]
        %1141 = vset.pattern.permute.xlu0 0
        %1142 = vperm.xlu0 %1141, %v1130
        %v1143 = vpop.permute.xlu0 %1142
        %1146 = vset.pattern.permute.xlu0 0
        %1147 = vperm.xlu0 %1146, %v1131
        %v1148 = vpop.permute.xlu0 %1147
        %v1150 = vmul.f32 %v1138, %v1143
        %v1151 = vmul.f32 %v1139, %v1148
        %1153 = vset.pattern.permute.xlu0 0
        %1154 = vperm.xlu0 %1153, %v1136
        %v1155 = vpop.permute.xlu0 %1154
        %1158 = vset.pattern.permute.xlu0 0
        %1159 = vperm.xlu0 %1158, %v1137
        %v1160 = vpop.permute.xlu0 %1159
        %v1162 = vadd.f32 %v1150, %v1155
        %v1163 = vadd.f32 %v1151, %v1160
        %1164 = vst [vmem:[%s324] sm:$0xff] %v1162
        %1165 = vst [vmem:[%s324 + $0x8] sm:$0xff] %v1163
      $region48: #{simple_encoder3d_forward.5} parent=39 // pred_fallthru
        _
      %s1166 = smul.u32 2, %s20
      %p1167 = scmp.lt.s32.totalorder %s1166, 3
      %s1168 = scalar_select %p1167, %s1166, 3
      %s1169 = smul.addr %s1168, 8
      %s1170 = scalar_lea.vmem %s5, %s1169
      // Predicated region
      $region49: #{simple_encoder3d_forward.5} parent=39 // pred_check
        %p1171 = pneg %p176
      $region50: #{simple_encoder3d_forward.5} parent=39 // pred_check_branch
        %1173 = sbr.rel (%p1171) target = $region52
      $region51: #{simple_encoder3d_forward.5} parent=39 // pred_region
        %s1174 = smul.u32 2, %s20
      $region52: #{simple_encoder3d_forward.5} parent=39 // pred_fallthru
        _
    $region40: #{simple_encoder3d_forward.5} parent=5 // pred_fallthru
      _
    %p1175 = scmp.le.s32.totalorder 2, %s11
    // Predicated region
    $region53: #{simple_encoder3d_forward.5} parent=5 // pred_check
      %p1176 = pneg %p1175
    $region54: #{simple_encoder3d_forward.5} parent=5 // pred_check_branch
      %1178 = sbr.rel (%p1176) target = $region56
    $region55: #{simple_encoder3d_forward.5} parent=5 // pred_region
      %s1179 = ssub.s32 %s11, 2
      // Predicated region
      $region57: #{simple_encoder3d_forward.5} parent=55 // pred_check
        %p1180 = pneg %p182
      $region58: #{simple_encoder3d_forward.5} parent=55 // pred_check_branch
        %1182 = sbr.rel (%p1180) target = $region60
      $region59: #{simple_encoder3d_forward.5} parent=55 // pred_region
        %s1183 = smul.u32 2, %s22
        %p1184 = scmp.lt.s32.totalorder %s1183, 3
        %s1185 = scalar_select %p1184, %s1183, 3
        %s1186 = smul.addr %s1185, 8
        %s1187 = scalar_lea.vmem %s5, %s1186
      $region60: #{simple_encoder3d_forward.5} parent=55 // pred_fallthru
        _
    $region56: #{simple_encoder3d_forward.5} parent=5 // pred_fallthru
      _
  $region6: #{simple_encoder3d_forward.5} parent=0 // loop_footer
    %s15 = sadd.s32 1, %s11
  $region7: #{simple_encoder3d_forward.5} parent=0 // loop_footer_branch
    %10 = sbr.rel target = $region3
  $region8: #{simple_encoder3d_forward.5} parent=0 // loop_exit
    _

</llo_original>
